<compile_context>
chip_gen: v7x
topology: tpu7x:2x2x1
jax: 0.10.0
libtpu: 0.0.40
codegen_flags: <defaults>
</compile_context>

<pallas_src>
import jax
import jax.numpy as jnp
from jax.experimental import pallas as pl
from jax.experimental.pallas import tpu as pltpu

KS = (5, 9, 13)          # SPP pooling kernel sizes (spec; used by reference)
K_POOL = 5               # cascaded pool kernel (5 -> 9 -> 13)
PMAX = K_POOL // 2       # -inf border thickness actually consumed (2)
PAD_L = 16               # interior column offset (16-aligned for bf16 tiles)
PAD_R = 8                # right-side scratch columns (>= PMAX, keeps Wp % 8 == 0)
LANE = 128               # TPU lane width


def _round_up(x, m):
    return (x + m - 1) // m * m


def _default_pool_dtype():
    # bf16 pooling only where the VPU has native bf16 (v6e / v7x).  On v5e and
    # older, packed bf16 max would be emulated and the kernel is MXU-bound
    # anyway, so keep pooling in f32 there.
    try:
        kind = jax.devices()[0].device_kind.lower()
    except Exception:
        return jnp.bfloat16
    if any(tag in kind for tag in ("v2", "v3", "v4", "v5")):
        return jnp.float32
    return jnp.bfloat16


def _default_vmem_limit():
    # ~75% of physical VMEM, capped at 64 MiB (v7x only has 64 MiB per TC).
    try:
        cap = pltpu.get_tpu_info().vmem_capacity_bytes
        return int(min(64 * 1024 * 1024, cap * 3 // 4))
    except Exception:
        return 64 * 1024 * 1024


def _make_spp_kernel(H, W, c1, c_p, c2p, pool_dtype):
    HW = H * W
    Hp = H + 2 * PMAX
    base = PAD_L - PMAX            # first consumed scratch column
    Wwin = W + 2 * PMAX            # consumed column-window width
    pool_is_bf16 = jnp.dtype(pool_dtype) == jnp.dtype(jnp.bfloat16)

    def spp_kernel(x_ref, w1_ref, s1_ref, b1_ref, w2_ref, s2_ref, b2_ref,
                   o_ref, pad_ref):
        # -------- (re)assert only the -inf border pool5 actually reads -------
        # PMAX columns each side of the interior (all rows) and PMAX rows
        # above/below, restricted to the consumed column window.  Columns
        # outside [base, base+Wwin) are never read, so they may stay garbage.
        # Rewriting this small frame every grid step keeps correctness
        # independent of how the parallel batch axis is split across cores.
        pad_ref[:, base:PAD_L, :] = jnp.full((Hp, PMAX, c_p), -jnp.inf,
                                             pool_dtype)
        pad_ref[:, PAD_L + W:base + Wwin, :] = jnp.full((Hp, PMAX, c_p),
                                                        -jnp.inf, pool_dtype)
        pad_ref[0:PMAX, base:base + Wwin, :] = jnp.full((PMAX, Wwin, c_p),
                                                        -jnp.inf, pool_dtype)
        pad_ref[PMAX + H:, base:base + Wwin, :] = jnp.full((PMAX, Wwin, c_p),
                                                           -jnp.inf, pool_dtype)

        def silu(v):
            # exp and approx reciprocal both on the EUP (frees the VPU slot).
            return v * pl.reciprocal(1.0 + jnp.exp(-v), approx=True)

        def pool5(src):
            """MaxPool2d(5, stride=1, pad=2) via separable row/col max."""
            # interior store at a 16-aligned column offset (unmasked vst even
            # for bf16 packed sublanes)
            pad_ref[PMAX:PMAX + H, PAD_L:PAD_L + W, :] = src
            # read back only the consumed column window
            win = pad_ref[:, base:base + Wwin, :]            # (Hp, W+4, c_p)
            t = win[0:H]
            for dh in range(1, K_POOL):                      # row direction
                t = jnp.maximum(t, win[dh:dh + H])
            o = t[:, 0:W, :]
            for dw in range(1, K_POOL):                      # column direction
                # TODO(synk): pltpu.roll(t, -dw, axis=1) + one aligned slice
                # would push these sublane shifts onto the idle XLU slot.
                o = jnp.maximum(o, t[:, dw:dw + W, :])
            return o                                         # (H, W, c_p)

        # -------- cv1: 1x1 conv (bf16 MXU, f32 acc) + folded BN + SiLU -------
        x = x_ref[0].reshape(HW, c1)                                  # bf16
        y = jnp.dot(x, w1_ref[...], preferred_element_type=jnp.float32)
        y = silu(y * s1_ref[...] + b1_ref[...])                       # (HW,c_p)

        # -------- cascaded SPP pooling fused with cv2 chunk matmuls ----------
        # pool5(pool5(y)) == pool9(y), pool5^3(y) == pool13(y) for stride-1
        # max pooling with -inf padding; concat-then-matmul == sum of
        # per-chunk matmuls, so only one pooled map is live at a time.
        yb = y.astype(jnp.bfloat16)
        acc = jnp.dot(yb, w2_ref[0:c_p, :],
                      preferred_element_type=jnp.float32)             # (HW,c2p)
        p = (yb if pool_is_bf16 else y).reshape(H, W, c_p)
        for i in range(1, 4):
            p = pool5(p)
            acc = acc + jnp.dot(p.reshape(HW, c_p).astype(jnp.bfloat16),
                                w2_ref[i * c_p:(i + 1) * c_p, :],
                                preferred_element_type=jnp.float32)

        # -------- cv2 folded BN + SiLU, bf16 output ---------------------------
        acc = silu(acc * s2_ref[...] + b2_ref[...])
        o_ref[0] = acc.astype(o_ref.dtype).reshape(H, W, c2p)

    return spp_kernel


def spp_pallas(x_nhwc, w1, s1, b1, w2, s2, b2, *, pool_dtype=None,
               out_dtype=jnp.bfloat16):
    N, H, W, c1 = x_nhwc.shape
    c_ = w1.shape[1]
    c2 = w2.shape[1]
    assert w2.shape[0] == 4 * c_
    assert W % 8 == 0, "W must be a multiple of 8 for clean TPU layout"
    if pool_dtype is None:
        pool_dtype = _default_pool_dtype()

    # Zero-pad channel dims to the 128-lane width: costs nothing inside the
    # kernel (lanes are layout-padded anyway) and makes all matmul operands and
    # the output store lane-dense.
    # TODO(synk): also pad c1 for non-canonical channel counts if the extra HBM
    # bytes of a padded input are worth lane-dense cv1 loads (no-op for YOLO).
    c_p = _round_up(c_, LANE)
    c2p = _round_up(c2, LANE)
    w1p = jnp.zeros((c1, c_p), jnp.float32).at[:, :c_].set(w1)
    w1p = w1p.astype(jnp.bfloat16)
    s1p = jnp.zeros((1, c_p), jnp.float32).at[:, :c_].set(s1)
    b1p = jnp.zeros((1, c_p), jnp.float32).at[:, :c_].set(b1)
    w2p = jnp.zeros((4, c_p, c2p), jnp.float32).at[:, :c_, :c2].set(
        w2.reshape(4, c_, c2)).reshape(4 * c_p, c2p).astype(jnp.bfloat16)
    s2p = jnp.zeros((1, c2p), jnp.float32).at[:, :c2].set(s2)
    b2p = jnp.zeros((1, c2p), jnp.float32).at[:, :c2].set(b2)
    xb = x_nhwc.astype(jnp.bfloat16)

    Hp = H + 2 * PMAX
    Wp = W + PAD_L + PAD_R
    kernel = _make_spp_kernel(H, W, c1, c_p, c2p, pool_dtype)

    # Weights / folded-BN params never change across the grid: pass them as
    # whole-array VMEM operands (no per-step double buffering).
    const_spec = pl.BlockSpec(memory_space=pltpu.MemorySpace.VMEM)

    out = pl.pallas_call(
        kernel,
        out_shape=jax.ShapeDtypeStruct((N, H, W, c2p), out_dtype),
        grid_spec=pltpu.PrefetchScalarGridSpec(
            num_scalar_prefetch=0,
            grid=(N,),
            in_specs=[
                pl.BlockSpec((1, H, W, c1), lambda n: (n, 0, 0, 0)),   # x
                const_spec,   # w1
                const_spec,   # s1
                const_spec,   # b1
                const_spec,   # w2
                const_spec,   # s2
                const_spec,   # b2
            ],
            out_specs=pl.BlockSpec((1, H, W, c2p), lambda n: (n, 0, 0, 0)),
            scratch_shapes=[pltpu.VMEM((Hp, Wp, c_p), pool_dtype)],
        ),
        compiler_params=pltpu.CompilerParams(
            dimension_semantics=("parallel",),
            vmem_limit_bytes=_default_vmem_limit()),
    )(xb, w1p, s1p, b1p, w2p, s2p, b2p)
    # No-op when c2 is already a multiple of 128 (canonical YOLO widths);
    # otherwise XLA slices the padded channels off outside the kernel.
    return out[..., :c2]


# ------------------------- precision-matched reference -----------------------
def spp_ref(x_nhwc, w1, s1, b1, w2, s2, b2):
    # bf16 matmul inputs + f32 accumulation to mirror the kernel; pooling /
    # BN / SiLU in f32 (kernel's approx EUP reciprocal and bf16 output cast
    # are covered by the test tolerance).
    y = jnp.einsum("nhwc,cd->nhwd", x_nhwc.astype(jnp.bfloat16),
                   w1.astype(jnp.bfloat16),
                   preferred_element_type=jnp.float32) * s1 + b1
    y = y * jax.nn.sigmoid(y)
    feats = [y]
    for k in KS:
        p = k // 2
        feats.append(jax.lax.reduce_window(
            y, -jnp.inf, jax.lax.max,
            window_dimensions=(1, k, k, 1), window_strides=(1, 1, 1, 1),
            padding=[(0, 0), (p, p), (p, p), (0, 0)]))
    z = jnp.concatenate(feats, axis=-1)
    o = jnp.einsum("nhwc,cd->nhwd", z.astype(jnp.bfloat16),
                   w2.astype(jnp.bfloat16),
                   preferred_element_type=jnp.float32) * s2 + b2
    return o * jax.nn.sigmoid(o)


def _fold_bn(gamma, beta, mean, var, eps=1e-5):
    scale = gamma / jnp.sqrt(var + eps)
    bias = beta - mean * scale
    return scale.reshape(1, -1), bias.reshape(1, -1)


if __name__ == "__main__":
    key = jax.random.PRNGKey(0)
    keys = jax.random.split(key, 12)

    # Small shapes consistent with SPP(c1=4, c2=8), input NCHW (2, 4, 16, 16).
    N, c1, H, W = 2, 4, 16, 16
    c_ = c1 // 2
    c2 = 8

    x_nchw = jax.random.normal(keys[0], (N, c1, H, W), jnp.float32)
    x_nhwc = jnp.transpose(x_nchw, (0, 2, 3, 1))

    # cv1: Conv2d(c1, c_, 1) weight (c_, c1, 1, 1) -> matmul weight (c1, c_)
    w1 = 0.3 * jax.random.normal(keys[1], (c1, c_), jnp.float32)
    s1, b1 = _fold_bn(
        1.0 + 0.1 * jax.random.normal(keys[2], (c_,), jnp.float32),
        0.1 * jax.random.normal(keys[3], (c_,), jnp.float32),
        0.1 * jax.random.normal(keys[4], (c_,), jnp.float32),
        0.5 + jax.random.uniform(keys[5], (c_,), jnp.float32))

    # cv2: Conv2d(4*c_, c2, 1) weight -> matmul weight (4*c_, c2)
    w2 = 0.3 * jax.random.normal(keys[6], (4 * c_, c2), jnp.float32)
    s2, b2 = _fold_bn(
        1.0 + 0.1 * jax.random.normal(keys[7], (c2,), jnp.float32),
        0.1 * jax.random.normal(keys[8], (c2,), jnp.float32),
        0.1 * jax.random.normal(keys[9], (c2,), jnp.float32),
        0.5 + jax.random.uniform(keys[10], (c2,), jnp.float32))

    out = spp_pallas(x_nhwc, w1, s1, b1, w2, s2, b2)
    out = jax.block_until_ready(out)

    ref = spp_ref(x_nhwc, w1, s1, b1, w2, s2, b2)
    assert out.shape == (N, H, W, c2)
    out_f32 = out.astype(jnp.float32)
    err = float(jnp.max(jnp.abs(out_f32 - ref)))
    assert jnp.allclose(out_f32, ref, atol=5e-2, rtol=5e-2), err
    print("KERNEL_OK")
</pallas_src>

<mosaic_0001>
module attributes {stable_mosaic.version = 11 : i64} {
  func.func @spp_kernel(%arg0: i32, %arg1: memref<1x16x16x4xbf16, #tpu.memory_space<vmem>>, %arg2: memref<4x128xbf16, #tpu.memory_space<vmem>>, %arg3: memref<1x128xf32, #tpu.memory_space<vmem>>, %arg4: memref<1x128xf32, #tpu.memory_space<vmem>>, %arg5: memref<512x128xbf16, #tpu.memory_space<vmem>>, %arg6: memref<1x128xf32, #tpu.memory_space<vmem>>, %arg7: memref<1x128xf32, #tpu.memory_space<vmem>>, %arg8: memref<1x16x16x128xbf16, #tpu.memory_space<vmem>>, %arg9: memref<20x40x128xbf16, #tpu.memory_space<vmem>>) attributes {dimension_semantics = [#tpu.dimension_semantics<parallel>], iteration_bounds = array<i64: 2>, scalar_prefetch = 0 : i64, scratch_operands = 1 : i64, tpu.core_type = #tpu.core_type<tc>, window_params = [{transform_indices = @transform_0, window_bounds = array<i64: 1, 16, 16, 4>}, {pipeline_mode = #tpu.pipeline_mode<synchronous>, transform_indices = @transform_1, window_bounds = array<i64: 4, 128>}, {pipeline_mode = #tpu.pipeline_mode<synchronous>, transform_indices = @transform_2, window_bounds = array<i64: 1, 128>}, {pipeline_mode = #tpu.pipeline_mode<synchronous>, transform_indices = @transform_3, window_bounds = array<i64: 1, 128>}, {pipeline_mode = #tpu.pipeline_mode<synchronous>, transform_indices = @transform_4, window_bounds = array<i64: 512, 128>}, {pipeline_mode = #tpu.pipeline_mode<synchronous>, transform_indices = @transform_5, window_bounds = array<i64: 1, 128>}, {pipeline_mode = #tpu.pipeline_mode<synchronous>, transform_indices = @transform_6, window_bounds = array<i64: 1, 128>}, {transform_indices = @transform_7, window_bounds = array<i64: 1, 16, 16, 128>}]} {
    %cst = arith.constant 0xFF80 : bf16
    %0 = vector.broadcast %cst : bf16 to vector<20x2x128xbf16>
    %c0 = arith.constant 0 : index
    %c14 = arith.constant 14 : index
    %c0_0 = arith.constant 0 : index
    %1 = vector.load %arg9[%c0, %c14, %c0_0] : memref<20x40x128xbf16, #tpu.memory_space<vmem>>, vector<20x2x128xbf16>
    tpu.vector_store %arg9[%c0, %c14, %c0_0], %0 {strides = array<i32>} : memref<20x40x128xbf16, #tpu.memory_space<vmem>>, vector<20x2x128xbf16>,
    %cst_1 = arith.constant 0xFF80 : bf16
    %2 = vector.broadcast %cst_1 : bf16 to vector<20x2x128xbf16>
    %c0_2 = arith.constant 0 : index
    %c32 = arith.constant 32 : index
    %c0_3 = arith.constant 0 : index
    %3 = vector.load %arg9[%c0_2, %c32, %c0_3] : memref<20x40x128xbf16, #tpu.memory_space<vmem>>, vector<20x2x128xbf16>
    tpu.vector_store %arg9[%c0_2, %c32, %c0_3], %2 {strides = array<i32>} : memref<20x40x128xbf16, #tpu.memory_space<vmem>>, vector<20x2x128xbf16>,
    %cst_4 = arith.constant 0xFF80 : bf16
    %4 = vector.broadcast %cst_4 : bf16 to vector<2x20x128xbf16>
    %c0_5 = arith.constant 0 : index
    %c14_6 = arith.constant 14 : index
    %c0_7 = arith.constant 0 : index
    %5 = vector.load %arg9[%c0_5, %c14_6, %c0_7] : memref<20x40x128xbf16, #tpu.memory_space<vmem>>, vector<2x20x128xbf16>
    tpu.vector_store %arg9[%c0_5, %c14_6, %c0_7], %4 {strides = array<i32>} : memref<20x40x128xbf16, #tpu.memory_space<vmem>>, vector<2x20x128xbf16>,
    %cst_8 = arith.constant 0xFF80 : bf16
    %6 = vector.broadcast %cst_8 : bf16 to vector<2x20x128xbf16>
    %c18 = arith.constant 18 : index
    %c14_9 = arith.constant 14 : index
    %c0_10 = arith.constant 0 : index
    %7 = vector.load %arg9[%c18, %c14_9, %c0_10] : memref<20x40x128xbf16, #tpu.memory_space<vmem>>, vector<2x20x128xbf16>
    tpu.vector_store %arg9[%c18, %c14_9, %c0_10], %6 {strides = array<i32>} : memref<20x40x128xbf16, #tpu.memory_space<vmem>>, vector<2x20x128xbf16>,
    %c0_11 = arith.constant 0 : index
    %c0_12 = arith.constant 0 : index
    %c0_13 = arith.constant 0 : index
    %c0_14 = arith.constant 0 : index
    %8 = vector.load %arg1[%c0_11, %c0_12, %c0_13, %c0_14] : memref<1x16x16x4xbf16, #tpu.memory_space<vmem>>, vector<1x16x16x4xbf16>
    %9 = vector.shape_cast %8 : vector<1x16x16x4xbf16> to vector<16x16x4xbf16>
    %10 = vector.shape_cast %9 : vector<16x16x4xbf16> to vector<256x4xbf16>
    %c0_15 = arith.constant 0 : index
    %c0_16 = arith.constant 0 : index
    %11 = vector.load %arg2[%c0_15, %c0_16] : memref<4x128xbf16, #tpu.memory_space<vmem>>, vector<4x128xbf16>
    %cst_17 = arith.constant dense<0.000000e+00> : vector<256x128xf32>
    %12 = tpu.matmul %10, %11, %cst_17 {dimension_numbers = #tpu.dot_dimension_numbers<[1], [0], [0], [1], [0, 0, 1, 1], [], []>} : vector<256x4xbf16>, vector<4x128xbf16>, vector<256x128xf32> -> vector<256x128xf32>
    %c0_18 = arith.constant 0 : index
    %c0_19 = arith.constant 0 : index
    %13 = vector.load %arg3[%c0_18, %c0_19] : memref<1x128xf32, #tpu.memory_space<vmem>>, vector<1x128xf32>
    %14 = vector.broadcast %13 : vector<1x128xf32> to vector<256x128xf32>
    %15 = arith.mulf %12, %14 : vector<256x128xf32>
    %c0_20 = arith.constant 0 : index
    %c0_21 = arith.constant 0 : index
    %16 = vector.load %arg4[%c0_20, %c0_21] : memref<1x128xf32, #tpu.memory_space<vmem>>, vector<1x128xf32>
    %17 = vector.broadcast %16 : vector<1x128xf32> to vector<256x128xf32>
    %18 = arith.addf %15, %17 : vector<256x128xf32>
    %cst_22 = arith.constant 0.000000e+00 : f32
    %19 = vector.broadcast %cst_22 : f32 to vector<256x128xf32>
    %20 = arith.subf %19, %18 : vector<256x128xf32>
    %21 = math.exp %20 : vector<256x128xf32>
    %cst_23 = arith.constant 1.000000e+00 : f32
    %22 = vector.broadcast %cst_23 : f32 to vector<256x128xf32>
    %23 = arith.addf %22, %21 : vector<256x128xf32>
    %24 = tpu.reciprocal %23 {approx = true} : vector<256x128xf32> -> vector<256x128xf32>
    %25 = arith.mulf %18, %24 : vector<256x128xf32>
    %26 = arith.truncf %25 : vector<256x128xf32> to vector<256x128xbf16>
    %c0_24 = arith.constant 0 : index
    %c0_25 = arith.constant 0 : index
    %27 = vector.load %arg5[%c0_24, %c0_25] : memref<512x128xbf16, #tpu.memory_space<vmem>>, vector<128x128xbf16>
    %cst_26 = arith.constant dense<0.000000e+00> : vector<256x128xf32>
    %28 = tpu.matmul %26, %27, %cst_26 {dimension_numbers = #tpu.dot_dimension_numbers<[1], [0], [0], [1], [0, 0, 1, 1], [], []>} : vector<256x128xbf16>, vector<128x128xbf16>, vector<256x128xf32> -> vector<256x128xf32>
    %29 = vector.shape_cast %26 : vector<256x128xbf16> to vector<16x16x128xbf16>
    %c2 = arith.constant 2 : index
    %c16 = arith.constant 16 : index
    %c0_27 = arith.constant 0 : index
    %30 = vector.load %arg9[%c2, %c16, %c0_27] : memref<20x40x128xbf16, #tpu.memory_space<vmem>>, vector<16x16x128xbf16>
    tpu.vector_store %arg9[%c2, %c16, %c0_27], %29 {strides = array<i32>} : memref<20x40x128xbf16, #tpu.memory_space<vmem>>, vector<16x16x128xbf16>,
    %c0_28 = arith.constant 0 : index
    %c14_29 = arith.constant 14 : index
    %c0_30 = arith.constant 0 : index
    %31 = vector.load %arg9[%c0_28, %c14_29, %c0_30] : memref<20x40x128xbf16, #tpu.memory_space<vmem>>, vector<20x20x128xbf16>
    %32 = vector.extract_strided_slice %31 {offsets = [0, 0, 0], sizes = [16, 20, 128], strides = [1, 1, 1]} : vector<20x20x128xbf16> to vector<16x20x128xbf16>
    %33 = vector.extract_strided_slice %31 {offsets = [1, 0, 0], sizes = [16, 20, 128], strides = [1, 1, 1]} : vector<20x20x128xbf16> to vector<16x20x128xbf16>
    %34 = arith.maximumf %32, %33 : vector<16x20x128xbf16>
    %35 = vector.extract_strided_slice %31 {offsets = [2, 0, 0], sizes = [16, 20, 128], strides = [1, 1, 1]} : vector<20x20x128xbf16> to vector<16x20x128xbf16>
    %36 = arith.maximumf %34, %35 : vector<16x20x128xbf16>
    %37 = vector.extract_strided_slice %31 {offsets = [3, 0, 0], sizes = [16, 20, 128], strides = [1, 1, 1]} : vector<20x20x128xbf16> to vector<16x20x128xbf16>
    %38 = arith.maximumf %36, %37 : vector<16x20x128xbf16>
    %39 = vector.extract_strided_slice %31 {offsets = [4, 0, 0], sizes = [16, 20, 128], strides = [1, 1, 1]} : vector<20x20x128xbf16> to vector<16x20x128xbf16>
    %40 = arith.maximumf %38, %39 : vector<16x20x128xbf16>
    %41 = vector.extract_strided_slice %40 {offsets = [0, 0, 0], sizes = [16, 16, 128], strides = [1, 1, 1]} : vector<16x20x128xbf16> to vector<16x16x128xbf16>
    %42 = vector.extract_strided_slice %40 {offsets = [0, 1, 0], sizes = [16, 16, 128], strides = [1, 1, 1]} : vector<16x20x128xbf16> to vector<16x16x128xbf16>
    %43 = arith.maximumf %41, %42 : vector<16x16x128xbf16>
    %44 = vector.extract_strided_slice %40 {offsets = [0, 2, 0], sizes = [16, 16, 128], strides = [1, 1, 1]} : vector<16x20x128xbf16> to vector<16x16x128xbf16>
    %45 = arith.maximumf %43, %44 : vector<16x16x128xbf16>
    %46 = vector.extract_strided_slice %40 {offsets = [0, 3, 0], sizes = [16, 16, 128], strides = [1, 1, 1]} : vector<16x20x128xbf16> to vector<16x16x128xbf16>
    %47 = arith.maximumf %45, %46 : vector<16x16x128xbf16>
    %48 = vector.extract_strided_slice %40 {offsets = [0, 4, 0], sizes = [16, 16, 128], strides = [1, 1, 1]} : vector<16x20x128xbf16> to vector<16x16x128xbf16>
    %49 = arith.maximumf %47, %48 : vector<16x16x128xbf16>
    %50 = vector.shape_cast %49 : vector<16x16x128xbf16> to vector<256x128xbf16>
    %c128 = arith.constant 128 : index
    %c0_31 = arith.constant 0 : index
    %51 = vector.load %arg5[%c128, %c0_31] : memref<512x128xbf16, #tpu.memory_space<vmem>>, vector<128x128xbf16>
    %cst_32 = arith.constant dense<0.000000e+00> : vector<256x128xf32>
    %52 = tpu.matmul %50, %51, %cst_32 {dimension_numbers = #tpu.dot_dimension_numbers<[1], [0], [0], [1], [0, 0, 1, 1], [], []>} : vector<256x128xbf16>, vector<128x128xbf16>, vector<256x128xf32> -> vector<256x128xf32>
    %53 = arith.addf %28, %52 : vector<256x128xf32>
    %c2_33 = arith.constant 2 : index
    %c16_34 = arith.constant 16 : index
    %c0_35 = arith.constant 0 : index
    %54 = vector.load %arg9[%c2_33, %c16_34, %c0_35] : memref<20x40x128xbf16, #tpu.memory_space<vmem>>, vector<16x16x128xbf16>
    tpu.vector_store %arg9[%c2_33, %c16_34, %c0_35], %49 {strides = array<i32>} : memref<20x40x128xbf16, #tpu.memory_space<vmem>>, vector<16x16x128xbf16>,
    %c0_36 = arith.constant 0 : index
    %c14_37 = arith.constant 14 : index
    %c0_38 = arith.constant 0 : index
    %55 = vector.load %arg9[%c0_36, %c14_37, %c0_38] : memref<20x40x128xbf16, #tpu.memory_space<vmem>>, vector<20x20x128xbf16>
    %56 = vector.extract_strided_slice %55 {offsets = [0, 0, 0], sizes = [16, 20, 128], strides = [1, 1, 1]} : vector<20x20x128xbf16> to vector<16x20x128xbf16>
    %57 = vector.extract_strided_slice %55 {offsets = [1, 0, 0], sizes = [16, 20, 128], strides = [1, 1, 1]} : vector<20x20x128xbf16> to vector<16x20x128xbf16>
    %58 = arith.maximumf %56, %57 : vector<16x20x128xbf16>
    %59 = vector.extract_strided_slice %55 {offsets = [2, 0, 0], sizes = [16, 20, 128], strides = [1, 1, 1]} : vector<20x20x128xbf16> to vector<16x20x128xbf16>
    %60 = arith.maximumf %58, %59 : vector<16x20x128xbf16>
    %61 = vector.extract_strided_slice %55 {offsets = [3, 0, 0], sizes = [16, 20, 128], strides = [1, 1, 1]} : vector<20x20x128xbf16> to vector<16x20x128xbf16>
    %62 = arith.maximumf %60, %61 : vector<16x20x128xbf16>
    %63 = vector.extract_strided_slice %55 {offsets = [4, 0, 0], sizes = [16, 20, 128], strides = [1, 1, 1]} : vector<20x20x128xbf16> to vector<16x20x128xbf16>
    %64 = arith.maximumf %62, %63 : vector<16x20x128xbf16>
    %65 = vector.extract_strided_slice %64 {offsets = [0, 0, 0], sizes = [16, 16, 128], strides = [1, 1, 1]} : vector<16x20x128xbf16> to vector<16x16x128xbf16>
    %66 = vector.extract_strided_slice %64 {offsets = [0, 1, 0], sizes = [16, 16, 128], strides = [1, 1, 1]} : vector<16x20x128xbf16> to vector<16x16x128xbf16>
    %67 = arith.maximumf %65, %66 : vector<16x16x128xbf16>
    %68 = vector.extract_strided_slice %64 {offsets = [0, 2, 0], sizes = [16, 16, 128], strides = [1, 1, 1]} : vector<16x20x128xbf16> to vector<16x16x128xbf16>
    %69 = arith.maximumf %67, %68 : vector<16x16x128xbf16>
    %70 = vector.extract_strided_slice %64 {offsets = [0, 3, 0], sizes = [16, 16, 128], strides = [1, 1, 1]} : vector<16x20x128xbf16> to vector<16x16x128xbf16>
    %71 = arith.maximumf %69, %70 : vector<16x16x128xbf16>
    %72 = vector.extract_strided_slice %64 {offsets = [0, 4, 0], sizes = [16, 16, 128], strides = [1, 1, 1]} : vector<16x20x128xbf16> to vector<16x16x128xbf16>
    %73 = arith.maximumf %71, %72 : vector<16x16x128xbf16>
    %74 = vector.shape_cast %73 : vector<16x16x128xbf16> to vector<256x128xbf16>
    %c256 = arith.constant 256 : index
    %c0_39 = arith.constant 0 : index
    %75 = vector.load %arg5[%c256, %c0_39] : memref<512x128xbf16, #tpu.memory_space<vmem>>, vector<128x128xbf16>
    %cst_40 = arith.constant dense<0.000000e+00> : vector<256x128xf32>
    %76 = tpu.matmul %74, %75, %cst_40 {dimension_numbers = #tpu.dot_dimension_numbers<[1], [0], [0], [1], [0, 0, 1, 1], [], []>} : vector<256x128xbf16>, vector<128x128xbf16>, vector<256x128xf32> -> vector<256x128xf32>
    %77 = arith.addf %53, %76 : vector<256x128xf32>
    %c2_41 = arith.constant 2 : index
    %c16_42 = arith.constant 16 : index
    %c0_43 = arith.constant 0 : index
    %78 = vector.load %arg9[%c2_41, %c16_42, %c0_43] : memref<20x40x128xbf16, #tpu.memory_space<vmem>>, vector<16x16x128xbf16>
    tpu.vector_store %arg9[%c2_41, %c16_42, %c0_43], %73 {strides = array<i32>} : memref<20x40x128xbf16, #tpu.memory_space<vmem>>, vector<16x16x128xbf16>,
    %c0_44 = arith.constant 0 : index
    %c14_45 = arith.constant 14 : index
    %c0_46 = arith.constant 0 : index
    %79 = vector.load %arg9[%c0_44, %c14_45, %c0_46] : memref<20x40x128xbf16, #tpu.memory_space<vmem>>, vector<20x20x128xbf16>
    %80 = vector.extract_strided_slice %79 {offsets = [0, 0, 0], sizes = [16, 20, 128], strides = [1, 1, 1]} : vector<20x20x128xbf16> to vector<16x20x128xbf16>
    %81 = vector.extract_strided_slice %79 {offsets = [1, 0, 0], sizes = [16, 20, 128], strides = [1, 1, 1]} : vector<20x20x128xbf16> to vector<16x20x128xbf16>
    %82 = arith.maximumf %80, %81 : vector<16x20x128xbf16>
    %83 = vector.extract_strided_slice %79 {offsets = [2, 0, 0], sizes = [16, 20, 128], strides = [1, 1, 1]} : vector<20x20x128xbf16> to vector<16x20x128xbf16>
    %84 = arith.maximumf %82, %83 : vector<16x20x128xbf16>
    %85 = vector.extract_strided_slice %79 {offsets = [3, 0, 0], sizes = [16, 20, 128], strides = [1, 1, 1]} : vector<20x20x128xbf16> to vector<16x20x128xbf16>
    %86 = arith.maximumf %84, %85 : vector<16x20x128xbf16>
    %87 = vector.extract_strided_slice %79 {offsets = [4, 0, 0], sizes = [16, 20, 128], strides = [1, 1, 1]} : vector<20x20x128xbf16> to vector<16x20x128xbf16>
    %88 = arith.maximumf %86, %87 : vector<16x20x128xbf16>
    %89 = vector.extract_strided_slice %88 {offsets = [0, 0, 0], sizes = [16, 16, 128], strides = [1, 1, 1]} : vector<16x20x128xbf16> to vector<16x16x128xbf16>
    %90 = vector.extract_strided_slice %88 {offsets = [0, 1, 0], sizes = [16, 16, 128], strides = [1, 1, 1]} : vector<16x20x128xbf16> to vector<16x16x128xbf16>
    %91 = arith.maximumf %89, %90 : vector<16x16x128xbf16>
    %92 = vector.extract_strided_slice %88 {offsets = [0, 2, 0], sizes = [16, 16, 128], strides = [1, 1, 1]} : vector<16x20x128xbf16> to vector<16x16x128xbf16>
    %93 = arith.maximumf %91, %92 : vector<16x16x128xbf16>
    %94 = vector.extract_strided_slice %88 {offsets = [0, 3, 0], sizes = [16, 16, 128], strides = [1, 1, 1]} : vector<16x20x128xbf16> to vector<16x16x128xbf16>
    %95 = arith.maximumf %93, %94 : vector<16x16x128xbf16>
    %96 = vector.extract_strided_slice %88 {offsets = [0, 4, 0], sizes = [16, 16, 128], strides = [1, 1, 1]} : vector<16x20x128xbf16> to vector<16x16x128xbf16>
    %97 = arith.maximumf %95, %96 : vector<16x16x128xbf16>
    %98 = vector.shape_cast %97 : vector<16x16x128xbf16> to vector<256x128xbf16>
    %c384 = arith.constant 384 : index
    %c0_47 = arith.constant 0 : index
    %99 = vector.load %arg5[%c384, %c0_47] : memref<512x128xbf16, #tpu.memory_space<vmem>>, vector<128x128xbf16>
    %cst_48 = arith.constant dense<0.000000e+00> : vector<256x128xf32>
    %100 = tpu.matmul %98, %99, %cst_48 {dimension_numbers = #tpu.dot_dimension_numbers<[1], [0], [0], [1], [0, 0, 1, 1], [], []>} : vector<256x128xbf16>, vector<128x128xbf16>, vector<256x128xf32> -> vector<256x128xf32>
    %101 = arith.addf %77, %100 : vector<256x128xf32>
    %c0_49 = arith.constant 0 : index
    %c0_50 = arith.constant 0 : index
    %102 = vector.load %arg6[%c0_49, %c0_50] : memref<1x128xf32, #tpu.memory_space<vmem>>, vector<1x128xf32>
    %103 = vector.broadcast %102 : vector<1x128xf32> to vector<256x128xf32>
    %104 = arith.mulf %101, %103 : vector<256x128xf32>
    %c0_51 = arith.constant 0 : index
    %c0_52 = arith.constant 0 : index
    %105 = vector.load %arg7[%c0_51, %c0_52] : memref<1x128xf32, #tpu.memory_space<vmem>>, vector<1x128xf32>
    %106 = vector.broadcast %105 : vector<1x128xf32> to vector<256x128xf32>
    %107 = arith.addf %104, %106 : vector<256x128xf32>
    %cst_53 = arith.constant 0.000000e+00 : f32
    %108 = vector.broadcast %cst_53 : f32 to vector<256x128xf32>
    %109 = arith.subf %108, %107 : vector<256x128xf32>
    %110 = math.exp %109 : vector<256x128xf32>
    %cst_54 = arith.constant 1.000000e+00 : f32
    %111 = vector.broadcast %cst_54 : f32 to vector<256x128xf32>
    %112 = arith.addf %111, %110 : vector<256x128xf32>
    %113 = tpu.reciprocal %112 {approx = true} : vector<256x128xf32> -> vector<256x128xf32>
    %114 = arith.mulf %107, %113 : vector<256x128xf32>
    %115 = arith.truncf %114 : vector<256x128xf32> to vector<256x128xbf16>
    %116 = vector.shape_cast %115 : vector<256x128xbf16> to vector<16x16x128xbf16>
    %c0_55 = arith.constant 0 : index
    %c0_56 = arith.constant 0 : index
    %c0_57 = arith.constant 0 : index
    %c0_58 = arith.constant 0 : index
    %117 = vector.load %arg8[%c0_55, %c0_56, %c0_57, %c0_58] : memref<1x16x16x128xbf16, #tpu.memory_space<vmem>>, vector<1x16x16x128xbf16>
    %118 = vector.shape_cast %117 : vector<1x16x16x128xbf16> to vector<16x16x128xbf16>
    %119 = vector.shape_cast %116 : vector<16x16x128xbf16> to vector<1x16x16x128xbf16>
    tpu.vector_store %arg8[%c0_55, %c0_56, %c0_57, %c0_58], %119 {strides = array<i32>} : memref<1x16x16x128xbf16, #tpu.memory_space<vmem>>, vector<1x16x16x128xbf16>,
    return
  }
  func.func @transform_0(%arg0: i32) -> (i32, i32, i32, i32) {
    %c0_i32 = arith.constant 0 : i32
    %c0_i32_0 = arith.constant 0 : i32
    %c0_i32_1 = arith.constant 0 : i32
    %c0_i32_2 = arith.constant 0 : i32
    return %arg0, %c0_i32, %c0_i32_0, %c0_i32_1 : i32, i32, i32, i32
  }
  func.func @transform_1(%arg0: i32) -> (i32, i32) {
    %c0_i32 = arith.constant 0 : i32
    %c0_i32_0 = arith.constant 0 : i32
    %c0_i32_1 = arith.constant 0 : i32
    return %c0_i32, %c0_i32_0 : i32, i32
  }
  func.func @transform_2(%arg0: i32) -> (i32, i32) {
    %c0_i32 = arith.constant 0 : i32
    %c0_i32_0 = arith.constant 0 : i32
    %c0_i32_1 = arith.constant 0 : i32
    return %c0_i32, %c0_i32_0 : i32, i32
  }
  func.func @transform_3(%arg0: i32) -> (i32, i32) {
    %c0_i32 = arith.constant 0 : i32
    %c0_i32_0 = arith.constant 0 : i32
    %c0_i32_1 = arith.constant 0 : i32
    return %c0_i32, %c0_i32_0 : i32, i32
  }
  func.func @transform_4(%arg0: i32) -> (i32, i32) {
    %c0_i32 = arith.constant 0 : i32
    %c0_i32_0 = arith.constant 0 : i32
    %c0_i32_1 = arith.constant 0 : i32
    return %c0_i32, %c0_i32_0 : i32, i32
  }
  func.func @transform_5(%arg0: i32) -> (i32, i32) {
    %c0_i32 = arith.constant 0 : i32
    %c0_i32_0 = arith.constant 0 : i32
    %c0_i32_1 = arith.constant 0 : i32
    return %c0_i32, %c0_i32_0 : i32, i32
  }
  func.func @transform_6(%arg0: i32) -> (i32, i32) {
    %c0_i32 = arith.constant 0 : i32
    %c0_i32_0 = arith.constant 0 : i32
    %c0_i32_1 = arith.constant 0 : i32
    return %c0_i32, %c0_i32_0 : i32, i32
  }
  func.func @transform_7(%arg0: i32) -> (i32, i32, i32, i32) {
    %c0_i32 = arith.constant 0 : i32
    %c0_i32_0 = arith.constant 0 : i32
    %c0_i32_1 = arith.constant 0 : i32
    %c0_i32_2 = arith.constant 0 : i32
    return %arg0, %c0_i32, %c0_i32_0, %c0_i32_1 : i32, i32, i32, i32
  }
}

</mosaic_0001>

<llo_original>
// kernel: tpu_custom_call.1
$region0: #{tpu_custom_call.1}
  #allocation0 [shape = 'u32[]', space=smem, size = 0x4, offset = 0x4, fixed_abs, tag = 'smem constant byte address 0x4 - core index']
  #allocation1 [shape = 'u32[144,128]{1,0:T(1,128)}', space=vmem, size = 0x12000, scoped, tag = 'internal scratch']
  #allocation2 [shape = 'bf16[20,40,128]{2,1,0:T(8,128)(2,1)}', space=vmem, size = 0x32000, scoped, tag = 'scratch operand']
  %s0 = inlined_call_operand.hbm [shape: bf16[2,16,16,4], index: 0, kind: input, shape index: {}]
  %s1 = inlined_call_operand.hbm [shape: bf16[4,128], index: 1, kind: input, shape index: {}]
  %s2 = inlined_call_operand.hbm [shape: f32[1,128], index: 2, kind: input, shape index: {}]
  %s3 = inlined_call_operand.hbm [shape: f32[1,128], index: 3, kind: input, shape index: {}]
  %s4 = inlined_call_operand.hbm [shape: bf16[512,128], index: 4, kind: input, shape index: {}]
  %s5 = inlined_call_operand.hbm [shape: f32[1,128], index: 5, kind: input, shape index: {}]
  %s6 = inlined_call_operand.hbm [shape: f32[1,128], index: 6, kind: input, shape index: {}]
  %s7 = inlined_call_operand.hbm [shape: bf16[2,16,16,128], index: 7, kind: output, shape index: {}]
  %s8 = sld [smem:[#allocation0]]
  $region89: #{tpu_custom_call.1} parent=0
    _
  %s10 = ssub.s32 1, %s8
  %s11 = scalar_select 0, %s10, %s8
  $region1: #{tpu_custom_call.1} parent=0
    #allocation3 [shape = 'u8[131072]{0}', space=vmem, size = 0x20000, scoped, tag = 'input window, operand 0']
    #allocation4 [shape = 's32[2]{0}', space=sflag, size = 0x8, scoped, tag = 'scoped memory for tpu_custom_call.1']
    #allocation5 [shape = 's32[2]{0}', space=sflag, size = 0x8, scoped, tag = 'scoped memory for tpu_custom_call.1']
    #allocation6 [shape = 'u8[1024]{0}', space=vmem, size = 0x400, scoped, tag = 'input window, operand 1, single buffered']
    #allocation7 [shape = 's32[1]{0}', space=sflag, size = 0x4, scoped, tag = 'scoped memory for tpu_custom_call.1']
    #allocation8 [shape = 'u8[512]{0}', space=vmem, size = 0x400, scoped, tag = 'input window, operand 2, single buffered']
    #allocation9 [shape = 'u8[512]{0}', space=vmem, size = 0x400, scoped, tag = 'input window, operand 3, single buffered']
    #allocation10 [shape = 's32[1]{0}', space=sflag, size = 0x4, scoped, tag = 'scoped memory for tpu_custom_call.1']
    #allocation11 [shape = 'u8[131072]{0}', space=vmem, size = 0x20000, scoped, tag = 'input window, operand 4, single buffered']
    #allocation12 [shape = 'u8[512]{0}', space=vmem, size = 0x400, scoped, tag = 'input window, operand 5, single buffered']
    #allocation13 [shape = 's32[1]{0}', space=sflag, size = 0x4, scoped, tag = 'scoped memory for tpu_custom_call.1']
    #allocation14 [shape = 'u8[512]{0}', space=vmem, size = 0x400, scoped, tag = 'input window, operand 6, single buffered']
    #allocation15 [shape = 'u8[131072]{0}', space=vmem, size = 0x20000, scoped, tag = 'output window, operand 0']
    %12 = vsyncpa [#allocation4], 0
    %s13 = scalar_lea.sflag [#allocation4], 1
    %14 = vsyncpa %s13, 0
    %15 = vsyncpa [#allocation7], 0
    %16 = vsyncpa [#allocation10], 0
    %17 = vsyncpa [#allocation13], 0
    %18 = vsyncpa [#allocation5], 0
    %s19 = scalar_lea.sflag [#allocation5], 1
    %20 = vsyncpa %s19, 0
    loop: start=0, step=1, limit=4
    $region2: #{tpu_custom_call.1} parent=1 // loop_pre_header
      _
    $region3: #{tpu_custom_call.1} parent=1 // loop_header
      %s22 = sphi 0, %s26
      %p23 = scmp.ge.s32.totalorder %s22, 4
      %s32 = sphi 0, %s34
      %s35 = sphi 0, %s32
      %s36 = sphi 0, %s35
      %s52 = sphi 0, %s36
      %s56 = sphi 0, %s56
      %s58 = sphi 0, %s56
      %s59 = sphi 0, %s58
      %s73 = sphi 0, %s59
      %s77 = sphi 0, %s77
      %s79 = sphi 0, %s77
      %s80 = sphi 0, %s79
      %s94 = sphi 0, %s80
      %s98 = sphi 0, %s98
      %s100 = sphi 0, %s98
      %s101 = sphi 0, %s100
      %s115 = sphi 0, %s101
      %s119 = sphi 0, %s119
      %s121 = sphi 0, %s119
      %s122 = sphi 0, %s121
      %s136 = sphi 0, %s122
      %s140 = sphi 0, %s140
      %s142 = sphi 0, %s140
      %s143 = sphi 0, %s142
      %s157 = sphi 0, %s143
      %s161 = sphi 0, %s161
      %s163 = sphi 0, %s161
      %s164 = sphi 0, %s163
      %s178 = sphi 0, %s164
      %s184 = sphi 0, %s186
      %s187 = sphi 0, %s184
      %s188 = sphi 0, %s187
      %s204 = sphi 0, %s188
    $region4: #{tpu_custom_call.1} parent=1 // loop_header_branch
      %25 = sbr.rel (%p23) target = $region8
    $region5: #{tpu_custom_call.1} parent=1 // loop_body
      %s27 = ssub.s32 %s22, 1
      %s28 = ssub.s32 %s22, 2
      %s29 = sadd.s32 %s22, 1
      %s30 = ssub.s32 %s22, %s29
      %p31 = scmp.eq.s32.totalorder %s30, 0
      %s33 = sadd.s32 %s32, 1
      %s34 = scalar_select %p31, %s32, %s33
      %p37 = pneg %p31
      %p38 = scmp.eq.s32.totalorder %s22, 1
      %p39 = por %p37, %p38
      %p40 = scmp.ne.s32.totalorder %s32, %s35
      %p41 = scmp.eq.s32.totalorder %s22, 0
      %p42 = por %p40, %p41
      %p43 = scmp.ne.s32.totalorder %s32, %s35
      %p44 = scmp.eq.s32.totalorder %s27, 1
      %p45 = por %p43, %p44
      %p46 = scmp.ne.s32.totalorder %s35, %s36
      %p47 = scmp.eq.s32.totalorder %s27, 0
      %p48 = por %p46, %p47
      %p49 = scmp.ne.s32.totalorder %s35, %s36
      %p50 = scmp.eq.s32.totalorder %s28, 1
      %p51 = por %p49, %p50
      %p53 = scmp.ne.s32.totalorder %s36, %s52
      %p54 = scmp.eq.s32.totalorder %s28, 0
      %p55 = por %p53, %p54
      %s57 = sadd.s32 %s56, 1
      %p60 = scmp.eq.s32.totalorder %s22, 1
      %p61 = scmp.ne.s32.totalorder %s56, %s58
      %p62 = scmp.eq.s32.totalorder %s22, 0
      %p63 = por %p61, %p62
      %p64 = scmp.ne.s32.totalorder %s56, %s58
      %p65 = scmp.eq.s32.totalorder %s27, 1
      %p66 = por %p64, %p65
      %p67 = scmp.ne.s32.totalorder %s58, %s59
      %p68 = scmp.eq.s32.totalorder %s27, 0
      %p69 = por %p67, %p68
      %p70 = scmp.ne.s32.totalorder %s58, %s59
      %p71 = scmp.eq.s32.totalorder %s28, 1
      %p72 = por %p70, %p71
      %p74 = scmp.ne.s32.totalorder %s59, %s73
      %p75 = scmp.eq.s32.totalorder %s28, 0
      %p76 = por %p74, %p75
      %s78 = sadd.s32 %s77, 1
      %p81 = scmp.eq.s32.totalorder %s22, 1
      %p82 = scmp.ne.s32.totalorder %s77, %s79
      %p83 = scmp.eq.s32.totalorder %s22, 0
      %p84 = por %p82, %p83
      %p85 = scmp.ne.s32.totalorder %s77, %s79
      %p86 = scmp.eq.s32.totalorder %s27, 1
      %p87 = por %p85, %p86
      %p88 = scmp.ne.s32.totalorder %s79, %s80
      %p89 = scmp.eq.s32.totalorder %s27, 0
      %p90 = por %p88, %p89
      %p91 = scmp.ne.s32.totalorder %s79, %s80
      %p92 = scmp.eq.s32.totalorder %s28, 1
      %p93 = por %p91, %p92
      %p95 = scmp.ne.s32.totalorder %s80, %s94
      %p96 = scmp.eq.s32.totalorder %s28, 0
      %p97 = por %p95, %p96
      %s99 = sadd.s32 %s98, 1
      %p102 = scmp.eq.s32.totalorder %s22, 1
      %p103 = scmp.ne.s32.totalorder %s98, %s100
      %p104 = scmp.eq.s32.totalorder %s22, 0
      %p105 = por %p103, %p104
      %p106 = scmp.ne.s32.totalorder %s98, %s100
      %p107 = scmp.eq.s32.totalorder %s27, 1
      %p108 = por %p106, %p107
      %p109 = scmp.ne.s32.totalorder %s100, %s101
      %p110 = scmp.eq.s32.totalorder %s27, 0
      %p111 = por %p109, %p110
      %p112 = scmp.ne.s32.totalorder %s100, %s101
      %p113 = scmp.eq.s32.totalorder %s28, 1
      %p114 = por %p112, %p113
      %p116 = scmp.ne.s32.totalorder %s101, %s115
      %p117 = scmp.eq.s32.totalorder %s28, 0
      %p118 = por %p116, %p117
      %s120 = sadd.s32 %s119, 1
      %p123 = scmp.eq.s32.totalorder %s22, 1
      %p124 = scmp.ne.s32.totalorder %s119, %s121
      %p125 = scmp.eq.s32.totalorder %s22, 0
      %p126 = por %p124, %p125
      %p127 = scmp.ne.s32.totalorder %s119, %s121
      %p128 = scmp.eq.s32.totalorder %s27, 1
      %p129 = por %p127, %p128
      %p130 = scmp.ne.s32.totalorder %s121, %s122
      %p131 = scmp.eq.s32.totalorder %s27, 0
      %p132 = por %p130, %p131
      %p133 = scmp.ne.s32.totalorder %s121, %s122
      %p134 = scmp.eq.s32.totalorder %s28, 1
      %p135 = por %p133, %p134
      %p137 = scmp.ne.s32.totalorder %s122, %s136
      %p138 = scmp.eq.s32.totalorder %s28, 0
      %p139 = por %p137, %p138
      %s141 = sadd.s32 %s140, 1
      %p144 = scmp.eq.s32.totalorder %s22, 1
      %p145 = scmp.ne.s32.totalorder %s140, %s142
      %p146 = scmp.eq.s32.totalorder %s22, 0
      %p147 = por %p145, %p146
      %p148 = scmp.ne.s32.totalorder %s140, %s142
      %p149 = scmp.eq.s32.totalorder %s27, 1
      %p150 = por %p148, %p149
      %p151 = scmp.ne.s32.totalorder %s142, %s143
      %p152 = scmp.eq.s32.totalorder %s27, 0
      %p153 = por %p151, %p152
      %p154 = scmp.ne.s32.totalorder %s142, %s143
      %p155 = scmp.eq.s32.totalorder %s28, 1
      %p156 = por %p154, %p155
      %p158 = scmp.ne.s32.totalorder %s143, %s157
      %p159 = scmp.eq.s32.totalorder %s28, 0
      %p160 = por %p158, %p159
      %s162 = sadd.s32 %s161, 1
      %p165 = scmp.eq.s32.totalorder %s22, 1
      %p166 = scmp.ne.s32.totalorder %s161, %s163
      %p167 = scmp.eq.s32.totalorder %s22, 0
      %p168 = por %p166, %p167
      %p169 = scmp.ne.s32.totalorder %s161, %s163
      %p170 = scmp.eq.s32.totalorder %s27, 1
      %p171 = por %p169, %p170
      %p172 = scmp.ne.s32.totalorder %s163, %s164
      %p173 = scmp.eq.s32.totalorder %s27, 0
      %p174 = por %p172, %p173
      %p175 = scmp.ne.s32.totalorder %s163, %s164
      %p176 = scmp.eq.s32.totalorder %s28, 1
      %p177 = por %p175, %p176
      %p179 = scmp.ne.s32.totalorder %s164, %s178
      %p180 = scmp.eq.s32.totalorder %s28, 0
      %p181 = por %p179, %p180
      %s182 = ssub.s32 %s22, %s29
      %p183 = scmp.eq.s32.totalorder %s182, 0
      %s185 = sadd.s32 %s184, 1
      %s186 = scalar_select %p183, %s184, %s185
      %p189 = pneg %p183
      %p190 = scmp.eq.s32.totalorder %s22, 1
      %p191 = por %p189, %p190
      %p192 = scmp.ne.s32.totalorder %s184, %s187
      %p193 = scmp.eq.s32.totalorder %s22, 0
      %p194 = por %p192, %p193
      %p195 = scmp.ne.s32.totalorder %s184, %s187
      %p196 = scmp.eq.s32.totalorder %s27, 1
      %p197 = por %p195, %p196
      %p198 = scmp.ne.s32.totalorder %s187, %s188
      %p199 = scmp.eq.s32.totalorder %s27, 0
      %p200 = por %p198, %p199
      %p201 = scmp.ne.s32.totalorder %s187, %s188
      %p202 = scmp.eq.s32.totalorder %s28, 1
      %p203 = por %p201, %p202
      %p205 = scmp.ne.s32.totalorder %s188, %s204
      %p206 = scmp.eq.s32.totalorder %s28, 0
      %p207 = por %p205, %p206
      %p208 = scmp.le.s32.totalorder 1, %s22
      %p209 = scmp.lt.s32.totalorder %s22, 3
      %p210 = pnand %p208, %p209
      %p211 = pneg %p210
      // Predicated region
      $region9: #{tpu_custom_call.1} parent=5 // pred_check
        _
      $region10: #{tpu_custom_call.1} parent=5 // pred_check_branch
        %213 = sbr.rel (%p210) target = $region12
      $region11: #{tpu_custom_call.1} parent=5 // pred_region
        %s214 = ssub.s32 %s22, 1
        // Predicated region
        $region13: #{tpu_custom_call.1} parent=11 // pred_check
          %p215 = pneg %p69
        $region14: #{tpu_custom_call.1} parent=11 // pred_check_branch
          %217 = sbr.rel (%p215) target = $region16
        $region15: #{tpu_custom_call.1} parent=11 // pred_region
          %s219 = ssub.s32 32, 32
          %220 = vsyncadd [#allocation7], %s219
          %s222 = sshll.u32 [#allocation6], 4
          %s223 = int_to_ptr.vmem [resolvable:$true] %s222
          %225 = dma.hbm_to_vmem [thread:$0]  %s1, 32, %s223, [#allocation7]
        $region16: #{tpu_custom_call.1} parent=11 // pred_fallthru
          _
        // Predicated region
        $region17: #{tpu_custom_call.1} parent=11 // pred_check
          %p226 = pneg %p90
        $region18: #{tpu_custom_call.1} parent=11 // pred_check_branch
          %228 = sbr.rel (%p226) target = $region20
        $region19: #{tpu_custom_call.1} parent=11 // pred_region
          %s230 = ssub.s32 16, 16
          %231 = vsyncadd [#allocation7], %s230
          %s233 = sshll.u32 [#allocation8], 4
          %s234 = int_to_ptr.vmem [resolvable:$true] %s233
          %236 = dma.hbm_to_vmem [thread:$0]  %s2, 16, %s234, [#allocation7]
        $region20: #{tpu_custom_call.1} parent=11 // pred_fallthru
          _
        // Predicated region
        $region21: #{tpu_custom_call.1} parent=11 // pred_check
          %p237 = pneg %p111
        $region22: #{tpu_custom_call.1} parent=11 // pred_check_branch
          %239 = sbr.rel (%p237) target = $region24
        $region23: #{tpu_custom_call.1} parent=11 // pred_region
          %s241 = ssub.s32 16, 16
          %242 = vsyncadd [#allocation10], %s241
          %s244 = sshll.u32 [#allocation9], 4
          %s245 = int_to_ptr.vmem [resolvable:$true] %s244
          %247 = dma.hbm_to_vmem [thread:$0]  %s3, 16, %s245, [#allocation10]
        $region24: #{tpu_custom_call.1} parent=11 // pred_fallthru
          _
        // Predicated region
        $region25: #{tpu_custom_call.1} parent=11 // pred_check
          %p248 = pneg %p132
        $region26: #{tpu_custom_call.1} parent=11 // pred_check_branch
          %250 = sbr.rel (%p248) target = $region28
        $region27: #{tpu_custom_call.1} parent=11 // pred_region
          %s252 = ssub.s32 4096, 4096
          %253 = vsyncadd [#allocation10], %s252
          %s254 = sshll.u32 [#allocation11], 4
          %s255 = int_to_ptr.vmem [resolvable:$true] %s254
          %260 = dma.hbm_to_vmem [thread:$0]  %s4, 4096, %s255, [#allocation10], 64, 64, 4
        $region28: #{tpu_custom_call.1} parent=11 // pred_fallthru
          _
        // Predicated region
        $region29: #{tpu_custom_call.1} parent=11 // pred_check
          %p261 = pneg %p153
        $region30: #{tpu_custom_call.1} parent=11 // pred_check_branch
          %263 = sbr.rel (%p261) target = $region32
        $region31: #{tpu_custom_call.1} parent=11 // pred_region
          %s265 = ssub.s32 16, 16
          %266 = vsyncadd [#allocation13], %s265
          %s268 = sshll.u32 [#allocation12], 4
          %s269 = int_to_ptr.vmem [resolvable:$true] %s268
          %271 = dma.hbm_to_vmem [thread:$0]  %s5, 16, %s269, [#allocation13]
        $region32: #{tpu_custom_call.1} parent=11 // pred_fallthru
          _
        // Predicated region
        $region33: #{tpu_custom_call.1} parent=11 // pred_check
          %p272 = pneg %p174
        $region34: #{tpu_custom_call.1} parent=11 // pred_check_branch
          %274 = sbr.rel (%p272) target = $region36
        $region35: #{tpu_custom_call.1} parent=11 // pred_region
          %s276 = ssub.s32 16, 16
          %277 = vsyncadd [#allocation13], %s276
          %s279 = sshll.u32 [#allocation14], 4
          %s280 = int_to_ptr.vmem [resolvable:$true] %s279
          %282 = dma.hbm_to_vmem [thread:$0]  %s6, 16, %s280, [#allocation13]
        $region36: #{tpu_custom_call.1} parent=11 // pred_fallthru
          _
      $region12: #{tpu_custom_call.1} parent=5 // pred_fallthru
        _
      %p283 = scmp.lt.s32.totalorder %s22, 2
      // Predicated region
      $region37: #{tpu_custom_call.1} parent=5 // pred_check
        %p284 = pneg %p283
      $region38: #{tpu_custom_call.1} parent=5 // pred_check_branch
        %286 = sbr.rel (%p284) target = $region40
      $region39: #{tpu_custom_call.1} parent=5 // pred_region
        // Predicated region
        $region41: #{tpu_custom_call.1} parent=39 // pred_check
          %p287 = pneg %p42
        $region42: #{tpu_custom_call.1} parent=39 // pred_check_branch
          %289 = sbr.rel (%p287) target = $region44
        $region43: #{tpu_custom_call.1} parent=39 // pred_region
          %s290 = sand.u32 %s32, 1
          %s291 = scalar_lea.sflag [#allocation4], %s290
          %s292 = sand.u32 %s32, 1
          %s293 = smul.addr %s292, 128
          %s294 = scalar_lea.vmem [#allocation3], %s293
          %s296 = ssub.s32 2048, 2048
          %297 = vsyncadd %s291, %s296
          %s298 = smul.addr %s22, 32
          %s299 = smul.addr %s298, 64
          %s300 = scalar_lea.hbm %s0, %s299
          %s301 = sshll.u32 %s294, 4
          %s302 = int_to_ptr.vmem [resolvable:$true] %s301
          %307 = dma.hbm_to_vmem [thread:$0]  %s300, 2048, %s302, %s291, 64, 64, 4
        $region44: #{tpu_custom_call.1} parent=39 // pred_fallthru
          _
      $region40: #{tpu_custom_call.1} parent=5 // pred_fallthru
        _
      %p308 = scmp.le.s32.totalorder 1, %s22
      %p309 = scmp.lt.s32.totalorder %s22, 3
      %p310 = pnand %p308, %p309
      %p311 = pneg %p310
      // Predicated region
      $region45: #{tpu_custom_call.1} parent=5 // pred_check
        _
      $region46: #{tpu_custom_call.1} parent=5 // pred_check_branch
        %313 = sbr.rel (%p310) target = $region48
      $region47: #{tpu_custom_call.1} parent=5 // pred_region
        %s314 = ssub.s32 %s22, 1
        %s315 = sand.u32 %s35, 1
        %s316 = scalar_lea.sflag [#allocation4], %s315
        %s317 = sand.u32 %s35, 1
        %s318 = smul.addr %s317, 128
        %s319 = scalar_lea.vmem [#allocation3], %s318
        // Predicated region
        $region49: #{tpu_custom_call.1} parent=47 // pred_check
          %p320 = pneg %p48
        $region50: #{tpu_custom_call.1} parent=47 // pred_check_branch
          %322 = sbr.rel (%p320) target = $region52
        $region51: #{tpu_custom_call.1} parent=47 // pred_region
          %323 = dma.done %s316, 2048
        $region52: #{tpu_custom_call.1} parent=47 // pred_fallthru
          _
        // Predicated region
        $region53: #{tpu_custom_call.1} parent=47 // pred_check
          %p324 = pneg %p69
        $region54: #{tpu_custom_call.1} parent=47 // pred_check_branch
          %326 = sbr.rel (%p324) target = $region56
        $region55: #{tpu_custom_call.1} parent=47 // pred_region
          %327 = dma.done [#allocation7], 32
        $region56: #{tpu_custom_call.1} parent=47 // pred_fallthru
          _
        // Predicated region
        $region57: #{tpu_custom_call.1} parent=47 // pred_check
          %p328 = pneg %p90
        $region58: #{tpu_custom_call.1} parent=47 // pred_check_branch
          %330 = sbr.rel (%p328) target = $region60
        $region59: #{tpu_custom_call.1} parent=47 // pred_region
          %331 = dma.done [#allocation7], 16
        $region60: #{tpu_custom_call.1} parent=47 // pred_fallthru
          _
        // Predicated region
        $region61: #{tpu_custom_call.1} parent=47 // pred_check
          %p332 = pneg %p111
        $region62: #{tpu_custom_call.1} parent=47 // pred_check_branch
          %334 = sbr.rel (%p332) target = $region64
        $region63: #{tpu_custom_call.1} parent=47 // pred_region
          %335 = dma.done [#allocation10], 16
        $region64: #{tpu_custom_call.1} parent=47 // pred_fallthru
          _
        // Predicated region
        $region65: #{tpu_custom_call.1} parent=47 // pred_check
          %p336 = pneg %p132
        $region66: #{tpu_custom_call.1} parent=47 // pred_check_branch
          %338 = sbr.rel (%p336) target = $region68
        $region67: #{tpu_custom_call.1} parent=47 // pred_region
          %339 = dma.done [#allocation10], 4096
        $region68: #{tpu_custom_call.1} parent=47 // pred_fallthru
          _
        // Predicated region
        $region69: #{tpu_custom_call.1} parent=47 // pred_check
          %p340 = pneg %p153
        $region70: #{tpu_custom_call.1} parent=47 // pred_check_branch
          %342 = sbr.rel (%p340) target = $region72
        $region71: #{tpu_custom_call.1} parent=47 // pred_region
          %343 = dma.done [#allocation13], 16
        $region72: #{tpu_custom_call.1} parent=47 // pred_fallthru
          _
        // Predicated region
        $region73: #{tpu_custom_call.1} parent=47 // pred_check
          %p344 = pneg %p174
        $region74: #{tpu_custom_call.1} parent=47 // pred_check_branch
          %346 = sbr.rel (%p344) target = $region76
        $region75: #{tpu_custom_call.1} parent=47 // pred_region
          %347 = dma.done [#allocation13], 16
        $region76: #{tpu_custom_call.1} parent=47 // pred_fallthru
          _
        %s348 = sand.u32 %s35, 1
        %s349 = scalar_lea.sflag [#allocation4], %s348
        %s350 = sand.u32 %s35, 1
        %s351 = smul.addr %s350, 128
        %s352 = scalar_lea.vmem [#allocation3], %s351
        %p353 = pneg %p48
        %p354 = pneg %p45
        %p355 = pneg %p69
        %p356 = pneg %p66
        %p357 = pneg %p90
        %p358 = pneg %p87
        %p359 = pneg %p111
        %p360 = pneg %p108
        %p361 = pneg %p132
        %p362 = pneg %p129
        %p363 = pneg %p153
        %p364 = pneg %p150
        %p365 = pneg %p174
        %p366 = pneg %p171
        %p367 = pneg %p200
        %p368 = pneg %p197
        %s369 = sand.u32 %s187, 1
        %s370 = scalar_lea.sflag [#allocation5], %s369
        %s371 = sand.u32 %s187, 1
        %s372 = smul.addr %s371, 128
        %s373 = scalar_lea.vmem [#allocation15], %s372
        %376 = vst [vmem:[#allocation2 + $0x4] sm:$0x8] 4286644096
        %377 = vst [vmem:[#allocation2 + $0x18] sm:$0x8] 4286644096
        %378 = vst [vmem:[#allocation2 + $0x2c] sm:$0x8] 4286644096
        %379 = vst [vmem:[#allocation2 + $0x40] sm:$0x8] 4286644096
        %380 = vst [vmem:[#allocation2 + $0x54] sm:$0x8] 4286644096
        %381 = vst [vmem:[#allocation2 + $0x68] sm:$0x8] 4286644096
        %382 = vst [vmem:[#allocation2 + $0x7c] sm:$0x8] 4286644096
        %383 = vst [vmem:[#allocation2 + $0x90] sm:$0x8] 4286644096
        %384 = vst [vmem:[#allocation2 + $0xa4] sm:$0x8] 4286644096
        %385 = vst [vmem:[#allocation2 + $0xb8] sm:$0x8] 4286644096
        %386 = vst [vmem:[#allocation2 + $0xcc] sm:$0x8] 4286644096
        %387 = vst [vmem:[#allocation2 + $0xe0] sm:$0x8] 4286644096
        %388 = vst [vmem:[#allocation2 + $0xf4] sm:$0x8] 4286644096
        %389 = vst [vmem:[#allocation2 + $0x108] sm:$0x8] 4286644096
        %390 = vst [vmem:[#allocation2 + $0x11c] sm:$0x8] 4286644096
        %391 = vst [vmem:[#allocation2 + $0x130] sm:$0x8] 4286644096
        %392 = vst [vmem:[#allocation2 + $0x144] sm:$0x8] 4286644096
        %393 = vst [vmem:[#allocation2 + $0x158] sm:$0x8] 4286644096
        %394 = vst [vmem:[#allocation2 + $0x16c] sm:$0x8] 4286644096
        %395 = vst [vmem:[#allocation2 + $0x180] sm:$0x8] 4286644096
        %396 = vst [vmem:[#allocation2 + $0x10] sm:$0x1] 4286644096
        %397 = vst [vmem:[#allocation2 + $0x24] sm:$0x1] 4286644096
        %398 = vst [vmem:[#allocation2 + $0x38] sm:$0x1] 4286644096
        %399 = vst [vmem:[#allocation2 + $0x4c] sm:$0x1] 4286644096
        %400 = vst [vmem:[#allocation2 + $0x60] sm:$0x1] 4286644096
        %401 = vst [vmem:[#allocation2 + $0x74] sm:$0x1] 4286644096
        %402 = vst [vmem:[#allocation2 + $0x88] sm:$0x1] 4286644096
        %403 = vst [vmem:[#allocation2 + $0x9c] sm:$0x1] 4286644096
        %404 = vst [vmem:[#allocation2 + $0xb0] sm:$0x1] 4286644096
        %405 = vst [vmem:[#allocation2 + $0xc4] sm:$0x1] 4286644096
        %406 = vst [vmem:[#allocation2 + $0xd8] sm:$0x1] 4286644096
        %407 = vst [vmem:[#allocation2 + $0xec] sm:$0x1] 4286644096
        %408 = vst [vmem:[#allocation2 + $0x100] sm:$0x1] 4286644096
        %409 = vst [vmem:[#allocation2 + $0x114] sm:$0x1] 4286644096
        %410 = vst [vmem:[#allocation2 + $0x128] sm:$0x1] 4286644096
        %411 = vst [vmem:[#allocation2 + $0x13c] sm:$0x1] 4286644096
        %412 = vst [vmem:[#allocation2 + $0x150] sm:$0x1] 4286644096
        %413 = vst [vmem:[#allocation2 + $0x164] sm:$0x1] 4286644096
        %414 = vst [vmem:[#allocation2 + $0x178] sm:$0x1] 4286644096
        %415 = vst [vmem:[#allocation2 + $0x18c] sm:$0x1] 4286644096
        %416 = vst [vmem:[#allocation2 + $0x4] sm:$0x8] 4286644096
        %417 = vst [vmem:[#allocation2 + $0x8] sm:$0xf] 4286644096
        %418 = vst [vmem:[#allocation2 + $0xc] sm:$0xf] 4286644096
        %419 = vst [vmem:[#allocation2 + $0x10] sm:$0x1] 4286644096
        %420 = vst [vmem:[#allocation2 + $0x18] sm:$0x8] 4286644096
        %421 = vst [vmem:[#allocation2 + $0x1c] sm:$0xf] 4286644096
        %422 = vst [vmem:[#allocation2 + $0x20] sm:$0xf] 4286644096
        %423 = vst [vmem:[#allocation2 + $0x24] sm:$0x1] 4286644096
        %s424 = scalar_lea.vmem [#allocation2], 360
        %425 = vst [vmem:[%s424 + $0x4] sm:$0x8] 4286644096
        %426 = vst [vmem:[%s424 + $0x8] sm:$0xf] 4286644096
        %427 = vst [vmem:[%s424 + $0xc] sm:$0xf] 4286644096
        %428 = vst [vmem:[%s424 + $0x10] sm:$0x1] 4286644096
        %429 = vst [vmem:[%s424 + $0x18] sm:$0x8] 4286644096
        %430 = vst [vmem:[%s424 + $0x1c] sm:$0xf] 4286644096
        %431 = vst [vmem:[%s424 + $0x20] sm:$0xf] 4286644096
        %432 = vst [vmem:[%s424 + $0x24] sm:$0x1] 4286644096
        %v433 = vld [vmem:[%s319] sm:$0xf]
        %v434 = vld [vmem:[%s319 + $0x4] sm:$0xf]
        %v435 = vld [vmem:[%s319 + $0x8] sm:$0xf]
        %v436 = vld [vmem:[%s319 + $0xc] sm:$0xf]
        %v437 = vld [vmem:[%s319 + $0x10] sm:$0xf]
        %v438 = vld [vmem:[%s319 + $0x14] sm:$0xf]
        %v439 = vld [vmem:[%s319 + $0x18] sm:$0xf]
        %v440 = vld [vmem:[%s319 + $0x1c] sm:$0xf]
        %v441 = vld [vmem:[%s319 + $0x20] sm:$0xf]
        %v442 = vld [vmem:[%s319 + $0x24] sm:$0xf]
        %v443 = vld [vmem:[%s319 + $0x28] sm:$0xf]
        %v444 = vld [vmem:[%s319 + $0x2c] sm:$0xf]
        %v445 = vld [vmem:[%s319 + $0x30] sm:$0xf]
        %v446 = vld [vmem:[%s319 + $0x34] sm:$0xf]
        %v447 = vld [vmem:[%s319 + $0x38] sm:$0xf]
        %v448 = vld [vmem:[%s319 + $0x3c] sm:$0xf]
        %v449 = vld [vmem:[%s319 + $0x40] sm:$0xf]
        %v450 = vld [vmem:[%s319 + $0x44] sm:$0xf]
        %v451 = vld [vmem:[%s319 + $0x48] sm:$0xf]
        %v452 = vld [vmem:[%s319 + $0x4c] sm:$0xf]
        %v453 = vld [vmem:[%s319 + $0x50] sm:$0xf]
        %v454 = vld [vmem:[%s319 + $0x54] sm:$0xf]
        %v455 = vld [vmem:[%s319 + $0x58] sm:$0xf]
        %v456 = vld [vmem:[%s319 + $0x5c] sm:$0xf]
        %v457 = vld [vmem:[%s319 + $0x60] sm:$0xf]
        %v458 = vld [vmem:[%s319 + $0x64] sm:$0xf]
        %v459 = vld [vmem:[%s319 + $0x68] sm:$0xf]
        %v460 = vld [vmem:[%s319 + $0x6c] sm:$0xf]
        %v461 = vld [vmem:[%s319 + $0x70] sm:$0xf]
        %v462 = vld [vmem:[%s319 + $0x74] sm:$0xf]
        %v463 = vld [vmem:[%s319 + $0x78] sm:$0xf]
        %v464 = vld [vmem:[%s319 + $0x7c] sm:$0xf]
        %v465 = vld [vmem:[#allocation6] sm:$0x3]
        %v498 = vunpack.c.l.b16 %v433
        %v499 = vunpack.c.l.b16 %v434
        %v500 = vunpack.c.l.b16 %v435
        %v501 = vunpack.c.l.b16 %v436
        %v502 = vunpack.c.l.b16 %v437
        %v503 = vunpack.c.l.b16 %v438
        %v504 = vunpack.c.l.b16 %v439
        %v505 = vunpack.c.l.b16 %v440
        %v506 = vunpack.c.l.b16 %v441
        %v507 = vunpack.c.l.b16 %v442
        %v508 = vunpack.c.l.b16 %v443
        %v509 = vunpack.c.l.b16 %v444
        %v510 = vunpack.c.l.b16 %v445
        %v511 = vunpack.c.l.b16 %v446
        %v512 = vunpack.c.l.b16 %v447
        %v513 = vunpack.c.l.b16 %v448
        %v514 = vunpack.c.l.b16 %v449
        %v515 = vunpack.c.l.b16 %v450
        %v516 = vunpack.c.l.b16 %v451
        %v517 = vunpack.c.l.b16 %v452
        %v518 = vunpack.c.l.b16 %v453
        %v519 = vunpack.c.l.b16 %v454
        %v520 = vunpack.c.l.b16 %v455
        %v521 = vunpack.c.l.b16 %v456
        %v522 = vunpack.c.l.b16 %v457
        %v523 = vunpack.c.l.b16 %v458
        %v524 = vunpack.c.l.b16 %v459
        %v525 = vunpack.c.l.b16 %v460
        %v526 = vunpack.c.l.b16 %v461
        %v527 = vunpack.c.l.b16 %v462
        %v528 = vunpack.c.l.b16 %v463
        %v529 = vunpack.c.l.b16 %v464
        %v530 = vpack.c.b16 %v499, %v498
        %v531 = vpack.c.b16 %v501, %v500
        %v532 = vpack.c.b16 %v503, %v502
        %v533 = vpack.c.b16 %v505, %v504
        %v534 = vpack.c.b16 %v507, %v506
        %v535 = vpack.c.b16 %v509, %v508
        %v536 = vpack.c.b16 %v511, %v510
        %v537 = vpack.c.b16 %v513, %v512
        %v538 = vpack.c.b16 %v515, %v514
        %v539 = vpack.c.b16 %v517, %v516
        %v540 = vpack.c.b16 %v519, %v518
        %v541 = vpack.c.b16 %v521, %v520
        %v542 = vpack.c.b16 %v523, %v522
        %v543 = vpack.c.b16 %v525, %v524
        %v544 = vpack.c.b16 %v527, %v526
        %v545 = vpack.c.b16 %v529, %v528
        %vm546 = vcmask 31744
        %v548 = vsel %vm546, %v530, 0
        %v551 = vsel %vm546, %v531, 0
        %v554 = vsel %vm546, %v532, 0
        %v557 = vsel %vm546, %v533, 0
        %v560 = vsel %vm546, %v534, 0
        %v563 = vsel %vm546, %v535, 0
        %v566 = vsel %vm546, %v536, 0
        %v569 = vsel %vm546, %v537, 0
        %v572 = vsel %vm546, %v538, 0
        %v575 = vsel %vm546, %v539, 0
        %v578 = vsel %vm546, %v540, 0
        %v581 = vsel %vm546, %v541, 0
        %v584 = vsel %vm546, %v542, 0
        %v587 = vsel %vm546, %v543, 0
        %v590 = vsel %vm546, %v544, 0
        %v593 = vsel %vm546, %v545, 0
        %vm595 = vcmask 1041408
        %v597 = vsel %vm595, %v465, 0
        %599 = vmatprep.subr.bf16.mxu0 0
        %600 = vmatpush1.bf16.msra.mxu0 %v597
        %601 = vmatprep.subr.bf16.mxu0 0
        %602 = vmatpush1.bf16.msra.mxu0 0
        %603 = vmatprep.subr.bf16.mxu0 0
        %604 = vmatpush1.bf16.msra.mxu0 0
        %605 = vmatprep.subr.bf16.mxu0 0
        %606 = vmatpush1.bf16.msra.mxu0 0
        %607 = vmatprep.subr.bf16.mxu0 0
        %608 = vmatpush1.bf16.msra.mxu0 0
        %609 = vmatprep.subr.bf16.mxu0 0
        %610 = vmatpush1.bf16.msra.mxu0 0
        %611 = vmatprep.subr.bf16.mxu0 0
        %612 = vmatpush1.bf16.msra.mxu0 0
        %613 = vmatprep.subr.bf16.mxu0 0
        %614 = vmatpush1.bf16.msra.mxu0 0
        %615 = vmatprep.subr.bf16.mxu0 0
        %616 = vmatpush1.bf16.msra.mxu0 0
        %617 = vmatprep.subr.bf16.mxu0 0
        %618 = vmatpush1.bf16.msra.mxu0 0
        %619 = vmatprep.subr.bf16.mxu0 0
        %620 = vmatpush1.bf16.msra.mxu0 0
        %621 = vmatprep.subr.bf16.mxu0 0
        %622 = vmatpush1.bf16.msra.mxu0 0
        %623 = vmatprep.subr.bf16.mxu0 0
        %624 = vmatpush1.bf16.msra.mxu0 0
        %625 = vmatprep.subr.bf16.mxu0 0
        %626 = vmatpush1.bf16.msra.mxu0 0
        %627 = vmatprep.subr.bf16.mxu0 0
        %628 = vmatpush1.bf16.msra.mxu0 0
        %629 = vmatprep.subr.bf16.mxu0 0
        %630 = vmatpush1.bf16.msra.mxu0 0
        %631 = vmatprep.mubr.bf16.mxu0 0
        %632 = vmatmul.mubr.bf16.gmra.mrb[0].mxu0 %v548
        %v633 = vpop.f32.mrb[0].mxu0
        %v634 = vadd.f32 0.0, %v633
        %v635 = vpop.f32.mrb[0].mxu0
        %v636 = vpop.f32.mrb[0].mxu0
        %v637 = vadd.f32 0.0, %v636
        %v638 = vpop.f32.mrb[0].mxu0
        %639 = vmatprep.mubr.bf16.mxu0 0
        %640 = vmatmul.mubr.bf16.gmra.mrb[0].mxu0 %v551
        %v641 = vpop.f32.mrb[0].mxu0
        %v642 = vadd.f32 0.0, %v641
        %v643 = vpop.f32.mrb[0].mxu0
        %v644 = vpop.f32.mrb[0].mxu0
        %v645 = vadd.f32 0.0, %v644
        %v646 = vpop.f32.mrb[0].mxu0
        %647 = vmatprep.mubr.bf16.mxu0 0
        %648 = vmatmul.mubr.bf16.gmra.mrb[0].mxu0 %v554
        %v649 = vpop.f32.mrb[0].mxu0
        %v650 = vadd.f32 0.0, %v649
        %v651 = vpop.f32.mrb[0].mxu0
        %v652 = vpop.f32.mrb[0].mxu0
        %v653 = vadd.f32 0.0, %v652
        %v654 = vpop.f32.mrb[0].mxu0
        %655 = vmatprep.mubr.bf16.mxu0 0
        %656 = vmatmul.mubr.bf16.gmra.mrb[0].mxu0 %v557
        %v657 = vpop.f32.mrb[0].mxu0
        %v658 = vadd.f32 0.0, %v657
        %v659 = vpop.f32.mrb[0].mxu0
        %v660 = vpop.f32.mrb[0].mxu0
        %v661 = vadd.f32 0.0, %v660
        %v662 = vpop.f32.mrb[0].mxu0
        %663 = vmatprep.mubr.bf16.mxu0 0
        %664 = vmatmul.mubr.bf16.gmra.mrb[0].mxu0 %v560
        %v665 = vpop.f32.mrb[0].mxu0
        %v666 = vadd.f32 0.0, %v665
        %v667 = vpop.f32.mrb[0].mxu0
        %v668 = vpop.f32.mrb[0].mxu0
        %v669 = vadd.f32 0.0, %v668
        %v670 = vpop.f32.mrb[0].mxu0
        %671 = vmatprep.mubr.bf16.mxu0 0
        %672 = vmatmul.mubr.bf16.gmra.mrb[0].mxu0 %v563
        %v673 = vpop.f32.mrb[0].mxu0
        %v674 = vadd.f32 0.0, %v673
        %v675 = vpop.f32.mrb[0].mxu0
        %v676 = vpop.f32.mrb[0].mxu0
        %v677 = vadd.f32 0.0, %v676
        %v678 = vpop.f32.mrb[0].mxu0
        %679 = vmatprep.mubr.bf16.mxu0 0
        %680 = vmatmul.mubr.bf16.gmra.mrb[0].mxu0 %v566
        %v681 = vpop.f32.mrb[0].mxu0
        %v682 = vadd.f32 0.0, %v681
        %v683 = vpop.f32.mrb[0].mxu0
        %v684 = vpop.f32.mrb[0].mxu0
        %v685 = vadd.f32 0.0, %v684
        %v686 = vpop.f32.mrb[0].mxu0
        %687 = vmatprep.mubr.bf16.mxu0 0
        %688 = vmatmul.mubr.bf16.gmra.mrb[0].mxu0 %v569
        %v689 = vpop.f32.mrb[0].mxu0
        %v690 = vadd.f32 0.0, %v689
        %v691 = vpop.f32.mrb[0].mxu0
        %v692 = vpop.f32.mrb[0].mxu0
        %v693 = vadd.f32 0.0, %v692
        %v694 = vpop.f32.mrb[0].mxu0
        %695 = vmatprep.mubr.bf16.mxu0 0
        %696 = vmatmul.mubr.bf16.gmra.mrb[0].mxu0 %v572
        %v697 = vpop.f32.mrb[0].mxu0
        %v698 = vadd.f32 0.0, %v697
        %v699 = vpop.f32.mrb[0].mxu0
        %v700 = vpop.f32.mrb[0].mxu0
        %v701 = vadd.f32 0.0, %v700
        %v702 = vpop.f32.mrb[0].mxu0
        %703 = vmatprep.mubr.bf16.mxu0 0
        %704 = vmatmul.mubr.bf16.gmra.mrb[0].mxu0 %v575
        %v705 = vpop.f32.mrb[0].mxu0
        %v706 = vadd.f32 0.0, %v705
        %v707 = vpop.f32.mrb[0].mxu0
        %v708 = vpop.f32.mrb[0].mxu0
        %v709 = vadd.f32 0.0, %v708
        %v710 = vpop.f32.mrb[0].mxu0
        %711 = vmatprep.mubr.bf16.mxu0 0
        %712 = vmatmul.mubr.bf16.gmra.mrb[0].mxu0 %v578
        %v713 = vpop.f32.mrb[0].mxu0
        %v714 = vadd.f32 0.0, %v713
        %v715 = vpop.f32.mrb[0].mxu0
        %v716 = vpop.f32.mrb[0].mxu0
        %v717 = vadd.f32 0.0, %v716
        %v718 = vpop.f32.mrb[0].mxu0
        %719 = vmatprep.mubr.bf16.mxu0 0
        %720 = vmatmul.mubr.bf16.gmra.mrb[0].mxu0 %v581
        %v721 = vpop.f32.mrb[0].mxu0
        %v722 = vadd.f32 0.0, %v721
        %v723 = vpop.f32.mrb[0].mxu0
        %v724 = vpop.f32.mrb[0].mxu0
        %v725 = vadd.f32 0.0, %v724
        %v726 = vpop.f32.mrb[0].mxu0
        %727 = vmatprep.mubr.bf16.mxu0 0
        %728 = vmatmul.mubr.bf16.gmra.mrb[0].mxu0 %v584
        %v729 = vpop.f32.mrb[0].mxu0
        %v730 = vadd.f32 0.0, %v729
        %v731 = vpop.f32.mrb[0].mxu0
        %v732 = vpop.f32.mrb[0].mxu0
        %v733 = vadd.f32 0.0, %v732
        %v734 = vpop.f32.mrb[0].mxu0
        %735 = vmatprep.mubr.bf16.mxu0 0
        %736 = vmatmul.mubr.bf16.gmra.mrb[0].mxu0 %v587
        %v737 = vpop.f32.mrb[0].mxu0
        %v738 = vadd.f32 0.0, %v737
        %v739 = vpop.f32.mrb[0].mxu0
        %v740 = vpop.f32.mrb[0].mxu0
        %v741 = vadd.f32 0.0, %v740
        %v742 = vpop.f32.mrb[0].mxu0
        %743 = vmatprep.mubr.bf16.mxu0 0
        %744 = vmatmul.mubr.bf16.gmra.mrb[0].mxu0 %v590
        %v745 = vpop.f32.mrb[0].mxu0
        %v746 = vadd.f32 0.0, %v745
        %v747 = vpop.f32.mrb[0].mxu0
        %v748 = vpop.f32.mrb[0].mxu0
        %v749 = vadd.f32 0.0, %v748
        %v750 = vpop.f32.mrb[0].mxu0
        %751 = vmatprep.mubr.bf16.mxu0 0
        %752 = vmatmul.mubr.bf16.gmra.mrb[0].mxu0 %v593
        %v753 = vpop.f32.mrb[0].mxu0
        %v754 = vadd.f32 0.0, %v753
        %v755 = vpop.f32.mrb[0].mxu0
        %v756 = vpop.f32.mrb[0].mxu0
        %v757 = vadd.f32 0.0, %v756
        %v758 = vpop.f32.mrb[0].mxu0
        %759 = vdwg.mxu0
        %v760 = vld [vmem:[#allocation8] sm:$0x1]
        %v762 = vlaneseq
        %v763 = vshrl.u32 %v762, 7
        %v764 = vsub.s32 0, %v763
        %v765 = vrot.slane %v760, %v764
        %v767 = vmul.f32 %v634, %v765
        %v768 = vmul.f32 %v637, %v765
        %v769 = vmul.f32 %v642, %v765
        %v770 = vmul.f32 %v645, %v765
        %v771 = vmul.f32 %v650, %v765
        %v772 = vmul.f32 %v653, %v765
        %v773 = vmul.f32 %v658, %v765
        %v774 = vmul.f32 %v661, %v765
        %v775 = vmul.f32 %v666, %v765
        %v776 = vmul.f32 %v669, %v765
        %v777 = vmul.f32 %v674, %v765
        %v778 = vmul.f32 %v677, %v765
        %v779 = vmul.f32 %v682, %v765
        %v780 = vmul.f32 %v685, %v765
        %v781 = vmul.f32 %v690, %v765
        %v782 = vmul.f32 %v693, %v765
        %v783 = vmul.f32 %v698, %v765
        %v784 = vmul.f32 %v701, %v765
        %v785 = vmul.f32 %v706, %v765
        %v786 = vmul.f32 %v709, %v765
        %v787 = vmul.f32 %v714, %v765
        %v788 = vmul.f32 %v717, %v765
        %v789 = vmul.f32 %v722, %v765
        %v790 = vmul.f32 %v725, %v765
        %v791 = vmul.f32 %v730, %v765
        %v792 = vmul.f32 %v733, %v765
        %v793 = vmul.f32 %v738, %v765
        %v794 = vmul.f32 %v741, %v765
        %v795 = vmul.f32 %v746, %v765
        %v796 = vmul.f32 %v749, %v765
        %v797 = vmul.f32 %v754, %v765
        %v798 = vmul.f32 %v757, %v765
        %v799 = vld [vmem:[#allocation9] sm:$0x1]
        %v801 = vlaneseq
        %v802 = vshrl.u32 %v801, 7
        %v803 = vsub.s32 0, %v802
        %v804 = vrot.slane %v799, %v803
        %v806 = vadd.f32 %v767, %v804
        %v807 = vadd.f32 %v768, %v804
        %v808 = vadd.f32 %v769, %v804
        %v809 = vadd.f32 %v770, %v804
        %v810 = vadd.f32 %v771, %v804
        %v811 = vadd.f32 %v772, %v804
        %v812 = vadd.f32 %v773, %v804
        %v813 = vadd.f32 %v774, %v804
        %v814 = vadd.f32 %v775, %v804
        %v815 = vadd.f32 %v776, %v804
        %v816 = vadd.f32 %v777, %v804
        %v817 = vadd.f32 %v778, %v804
        %v818 = vadd.f32 %v779, %v804
        %v819 = vadd.f32 %v780, %v804
        %v820 = vadd.f32 %v781, %v804
        %v821 = vadd.f32 %v782, %v804
        %v822 = vadd.f32 %v783, %v804
        %v823 = vadd.f32 %v784, %v804
        %v824 = vadd.f32 %v785, %v804
        %v825 = vadd.f32 %v786, %v804
        %v826 = vadd.f32 %v787, %v804
        %v827 = vadd.f32 %v788, %v804
        %v828 = vadd.f32 %v789, %v804
        %v829 = vadd.f32 %v790, %v804
        %v830 = vadd.f32 %v791, %v804
        %v831 = vadd.f32 %v792, %v804
        %v832 = vadd.f32 %v793, %v804
        %v833 = vadd.f32 %v794, %v804
        %v834 = vadd.f32 %v795, %v804
        %v835 = vadd.f32 %v796, %v804
        %v836 = vadd.f32 %v797, %v804
        %v837 = vadd.f32 %v798, %v804
        %v838 = vsub.f32 0.0, %v806
        %v839 = vsub.f32 0.0, %v807
        %v840 = vsub.f32 0.0, %v808
        %v841 = vsub.f32 0.0, %v809
        %v842 = vsub.f32 0.0, %v810
        %v843 = vsub.f32 0.0, %v811
        %v844 = vsub.f32 0.0, %v812
        %v845 = vsub.f32 0.0, %v813
        %v846 = vsub.f32 0.0, %v814
        %v847 = vsub.f32 0.0, %v815
        %v848 = vsub.f32 0.0, %v816
        %v849 = vsub.f32 0.0, %v817
        %v850 = vsub.f32 0.0, %v818
        %v851 = vsub.f32 0.0, %v819
        %v852 = vsub.f32 0.0, %v820
        %v853 = vsub.f32 0.0, %v821
        %v854 = vsub.f32 0.0, %v822
        %v855 = vsub.f32 0.0, %v823
        %v856 = vsub.f32 0.0, %v824
        %v857 = vsub.f32 0.0, %v825
        %v858 = vsub.f32 0.0, %v826
        %v859 = vsub.f32 0.0, %v827
        %v860 = vsub.f32 0.0, %v828
        %v861 = vsub.f32 0.0, %v829
        %v862 = vsub.f32 0.0, %v830
        %v863 = vsub.f32 0.0, %v831
        %v864 = vsub.f32 0.0, %v832
        %v865 = vsub.f32 0.0, %v833
        %v866 = vsub.f32 0.0, %v834
        %v867 = vsub.f32 0.0, %v835
        %v868 = vsub.f32 0.0, %v836
        %v869 = vsub.f32 0.0, %v837
        %v870 = vmul.f32 %v838, 1.442695
        %v871 = vpow.pop %v870
        %v872 = vmul.f32 %v839, 1.442695
        %v873 = vpow.pop %v872
        %v874 = vmul.f32 %v840, 1.442695
        %v875 = vpow.pop %v874
        %v876 = vmul.f32 %v841, 1.442695
        %v877 = vpow.pop %v876
        %v878 = vmul.f32 %v842, 1.442695
        %v879 = vpow.pop %v878
        %v880 = vmul.f32 %v843, 1.442695
        %v881 = vpow.pop %v880
        %v882 = vmul.f32 %v844, 1.442695
        %v883 = vpow.pop %v882
        %v884 = vmul.f32 %v845, 1.442695
        %v885 = vpow.pop %v884
        %v886 = vmul.f32 %v846, 1.442695
        %v887 = vpow.pop %v886
        %v888 = vmul.f32 %v847, 1.442695
        %v889 = vpow.pop %v888
        %v890 = vmul.f32 %v848, 1.442695
        %v891 = vpow.pop %v890
        %v892 = vmul.f32 %v849, 1.442695
        %v893 = vpow.pop %v892
        %v894 = vmul.f32 %v850, 1.442695
        %v895 = vpow.pop %v894
        %v896 = vmul.f32 %v851, 1.442695
        %v897 = vpow.pop %v896
        %v898 = vmul.f32 %v852, 1.442695
        %v899 = vpow.pop %v898
        %v900 = vmul.f32 %v853, 1.442695
        %v901 = vpow.pop %v900
        %v902 = vmul.f32 %v854, 1.442695
        %v903 = vpow.pop %v902
        %v904 = vmul.f32 %v855, 1.442695
        %v905 = vpow.pop %v904
        %v906 = vmul.f32 %v856, 1.442695
        %v907 = vpow.pop %v906
        %v908 = vmul.f32 %v857, 1.442695
        %v909 = vpow.pop %v908
        %v910 = vmul.f32 %v858, 1.442695
        %v911 = vpow.pop %v910
        %v912 = vmul.f32 %v859, 1.442695
        %v913 = vpow.pop %v912
        %v914 = vmul.f32 %v860, 1.442695
        %v915 = vpow.pop %v914
        %v916 = vmul.f32 %v861, 1.442695
        %v917 = vpow.pop %v916
        %v918 = vmul.f32 %v862, 1.442695
        %v919 = vpow.pop %v918
        %v920 = vmul.f32 %v863, 1.442695
        %v921 = vpow.pop %v920
        %v922 = vmul.f32 %v864, 1.442695
        %v923 = vpow.pop %v922
        %v924 = vmul.f32 %v865, 1.442695
        %v925 = vpow.pop %v924
        %v926 = vmul.f32 %v866, 1.442695
        %v927 = vpow.pop %v926
        %v928 = vmul.f32 %v867, 1.442695
        %v929 = vpow.pop %v928
        %v930 = vmul.f32 %v868, 1.442695
        %v931 = vpow.pop %v930
        %v932 = vmul.f32 %v869, 1.442695
        %v933 = vpow.pop %v932
        %v934 = vadd.f32 %v871, 1.0
        %v935 = vadd.f32 %v873, 1.0
        %v936 = vadd.f32 %v875, 1.0
        %v937 = vadd.f32 %v877, 1.0
        %v938 = vadd.f32 %v879, 1.0
        %v939 = vadd.f32 %v881, 1.0
        %v940 = vadd.f32 %v883, 1.0
        %v941 = vadd.f32 %v885, 1.0
        %v942 = vadd.f32 %v887, 1.0
        %v943 = vadd.f32 %v889, 1.0
        %v944 = vadd.f32 %v891, 1.0
        %v945 = vadd.f32 %v893, 1.0
        %v946 = vadd.f32 %v895, 1.0
        %v947 = vadd.f32 %v897, 1.0
        %v948 = vadd.f32 %v899, 1.0
        %v949 = vadd.f32 %v901, 1.0
        %v950 = vadd.f32 %v903, 1.0
        %v951 = vadd.f32 %v905, 1.0
        %v952 = vadd.f32 %v907, 1.0
        %v953 = vadd.f32 %v909, 1.0
        %v954 = vadd.f32 %v911, 1.0
        %v955 = vadd.f32 %v913, 1.0
        %v956 = vadd.f32 %v915, 1.0
        %v957 = vadd.f32 %v917, 1.0
        %v958 = vadd.f32 %v919, 1.0
        %v959 = vadd.f32 %v921, 1.0
        %v960 = vadd.f32 %v923, 1.0
        %v961 = vadd.f32 %v925, 1.0
        %v962 = vadd.f32 %v927, 1.0
        %v963 = vadd.f32 %v929, 1.0
        %v964 = vadd.f32 %v931, 1.0
        %v965 = vadd.f32 %v933, 1.0
        %v966 = vrcp.pop %v934
        %v967 = vrcp.pop %v935
        %v968 = vrcp.pop %v936
        %v969 = vrcp.pop %v937
        %v970 = vrcp.pop %v938
        %v971 = vrcp.pop %v939
        %v972 = vrcp.pop %v940
        %v973 = vrcp.pop %v941
        %v974 = vrcp.pop %v942
        %v975 = vrcp.pop %v943
        %v976 = vrcp.pop %v944
        %v977 = vrcp.pop %v945
        %v978 = vrcp.pop %v946
        %v979 = vrcp.pop %v947
        %v980 = vrcp.pop %v948
        %v981 = vrcp.pop %v949
        %v982 = vrcp.pop %v950
        %v983 = vrcp.pop %v951
        %v984 = vrcp.pop %v952
        %v985 = vrcp.pop %v953
        %v986 = vrcp.pop %v954
        %v987 = vrcp.pop %v955
        %v988 = vrcp.pop %v956
        %v989 = vrcp.pop %v957
        %v990 = vrcp.pop %v958
        %v991 = vrcp.pop %v959
        %v992 = vrcp.pop %v960
        %v993 = vrcp.pop %v961
        %v994 = vrcp.pop %v962
        %v995 = vrcp.pop %v963
        %v996 = vrcp.pop %v964
        %v997 = vrcp.pop %v965
        %v998 = vmul.f32 %v806, %v966
        %v999 = vmul.f32 %v807, %v967
        %v1000 = vmul.f32 %v808, %v968
        %v1001 = vmul.f32 %v809, %v969
        %v1002 = vmul.f32 %v810, %v970
        %v1003 = vmul.f32 %v811, %v971
        %v1004 = vmul.f32 %v812, %v972
        %v1005 = vmul.f32 %v813, %v973
        %v1006 = vmul.f32 %v814, %v974
        %v1007 = vmul.f32 %v815, %v975
        %v1008 = vmul.f32 %v816, %v976
        %v1009 = vmul.f32 %v817, %v977
        %v1010 = vmul.f32 %v818, %v978
        %v1011 = vmul.f32 %v819, %v979
        %v1012 = vmul.f32 %v820, %v980
        %v1013 = vmul.f32 %v821, %v981
        %v1014 = vmul.f32 %v822, %v982
        %v1015 = vmul.f32 %v823, %v983
        %v1016 = vmul.f32 %v824, %v984
        %v1017 = vmul.f32 %v825, %v985
        %v1018 = vmul.f32 %v826, %v986
        %v1019 = vmul.f32 %v827, %v987
        %v1020 = vmul.f32 %v828, %v988
        %v1021 = vmul.f32 %v829, %v989
        %v1022 = vmul.f32 %v830, %v990
        %v1023 = vmul.f32 %v831, %v991
        %v1024 = vmul.f32 %v832, %v992
        %v1025 = vmul.f32 %v833, %v993
        %v1026 = vmul.f32 %v834, %v994
        %v1027 = vmul.f32 %v835, %v995
        %v1028 = vmul.f32 %v836, %v996
        %v1029 = vmul.f32 %v837, %v997
        %v1030 = vpack.c.bf16 %v999, %v998
        %v1031 = vpack.c.bf16 %v1001, %v1000
        %v1032 = vpack.c.bf16 %v1003, %v1002
        %v1033 = vpack.c.bf16 %v1005, %v1004
        %v1034 = vpack.c.bf16 %v1007, %v1006
        %v1035 = vpack.c.bf16 %v1009, %v1008
        %v1036 = vpack.c.bf16 %v1011, %v1010
        %v1037 = vpack.c.bf16 %v1013, %v1012
        %v1038 = vpack.c.bf16 %v1015, %v1014
        %v1039 = vpack.c.bf16 %v1017, %v1016
        %v1040 = vpack.c.bf16 %v1019, %v1018
        %v1041 = vpack.c.bf16 %v1021, %v1020
        %v1042 = vpack.c.bf16 %v1023, %v1022
        %v1043 = vpack.c.bf16 %v1025, %v1024
        %v1044 = vpack.c.bf16 %v1027, %v1026
        %v1045 = vpack.c.bf16 %v1029, %v1028
        %v1046 = vld [vmem:[#allocation11] sm:$0xf]
        %v1047 = vld [vmem:[#allocation11 + $0x4] sm:$0xf]
        %v1048 = vld [vmem:[#allocation11 + $0x8] sm:$0xf]
        %v1049 = vld [vmem:[#allocation11 + $0xc] sm:$0xf]
        %v1050 = vld [vmem:[#allocation11 + $0x10] sm:$0xf]
        %v1051 = vld [vmem:[#allocation11 + $0x14] sm:$0xf]
        %v1052 = vld [vmem:[#allocation11 + $0x18] sm:$0xf]
        %v1053 = vld [vmem:[#allocation11 + $0x1c] sm:$0xf]
        %v1054 = vld [vmem:[#allocation11 + $0x20] sm:$0xf]
        %v1055 = vld [vmem:[#allocation11 + $0x24] sm:$0xf]
        %v1056 = vld [vmem:[#allocation11 + $0x28] sm:$0xf]
        %v1057 = vld [vmem:[#allocation11 + $0x2c] sm:$0xf]
        %v1058 = vld [vmem:[#allocation11 + $0x30] sm:$0xf]
        %v1059 = vld [vmem:[#allocation11 + $0x34] sm:$0xf]
        %v1060 = vld [vmem:[#allocation11 + $0x38] sm:$0xf]
        %v1061 = vld [vmem:[#allocation11 + $0x3c] sm:$0xf]
        %v1078 = vunpack.c.l.b16 %v1030
        %v1079 = vunpack.c.h.b16 %v1030
        %v1080 = vunpack.c.l.b16 %v1031
        %v1081 = vunpack.c.h.b16 %v1031
        %v1082 = vunpack.c.l.b16 %v1032
        %v1083 = vunpack.c.h.b16 %v1032
        %v1084 = vunpack.c.l.b16 %v1033
        %v1085 = vunpack.c.h.b16 %v1033
        %v1086 = vunpack.c.l.b16 %v1034
        %v1087 = vunpack.c.h.b16 %v1034
        %v1088 = vunpack.c.l.b16 %v1035
        %v1089 = vunpack.c.h.b16 %v1035
        %v1090 = vunpack.c.l.b16 %v1036
        %v1091 = vunpack.c.h.b16 %v1036
        %v1092 = vunpack.c.l.b16 %v1037
        %v1093 = vunpack.c.h.b16 %v1037
        %v1094 = vunpack.c.l.b16 %v1038
        %v1095 = vunpack.c.h.b16 %v1038
        %v1096 = vunpack.c.l.b16 %v1039
        %v1097 = vunpack.c.h.b16 %v1039
        %v1098 = vunpack.c.l.b16 %v1040
        %v1099 = vunpack.c.h.b16 %v1040
        %v1100 = vunpack.c.l.b16 %v1041
        %v1101 = vunpack.c.h.b16 %v1041
        %v1102 = vunpack.c.l.b16 %v1042
        %v1103 = vunpack.c.h.b16 %v1042
        %v1104 = vunpack.c.l.b16 %v1043
        %v1105 = vunpack.c.h.b16 %v1043
        %v1106 = vunpack.c.l.b16 %v1044
        %v1107 = vunpack.c.h.b16 %v1044
        %v1108 = vunpack.c.l.b16 %v1045
        %v1109 = vunpack.c.h.b16 %v1045
        %v1110 = vpack.c.b16 %v1078, %v1078
        %v1111 = vpack.c.b16 %v1079, %v1079
        %v1112 = vpack.c.b16 %v1080, %v1080
        %v1113 = vpack.c.b16 %v1081, %v1081
        %v1114 = vpack.c.b16 %v1082, %v1082
        %v1115 = vpack.c.b16 %v1083, %v1083
        %v1116 = vpack.c.b16 %v1084, %v1084
        %v1117 = vpack.c.b16 %v1085, %v1085
        %v1118 = vpack.c.b16 %v1086, %v1086
        %v1119 = vpack.c.b16 %v1087, %v1087
        %v1120 = vpack.c.b16 %v1088, %v1088
        %v1121 = vpack.c.b16 %v1089, %v1089
        %v1122 = vpack.c.b16 %v1090, %v1090
        %v1123 = vpack.c.b16 %v1091, %v1091
        %v1124 = vpack.c.b16 %v1092, %v1092
        %v1125 = vpack.c.b16 %v1093, %v1093
        %v1126 = vpack.c.b16 %v1094, %v1094
        %v1127 = vpack.c.b16 %v1095, %v1095
        %v1128 = vpack.c.b16 %v1096, %v1096
        %v1129 = vpack.c.b16 %v1097, %v1097
        %v1130 = vpack.c.b16 %v1098, %v1098
        %v1131 = vpack.c.b16 %v1099, %v1099
        %v1132 = vpack.c.b16 %v1100, %v1100
        %v1133 = vpack.c.b16 %v1101, %v1101
        %v1134 = vpack.c.b16 %v1102, %v1102
        %v1135 = vpack.c.b16 %v1103, %v1103
        %v1136 = vpack.c.b16 %v1104, %v1104
        %v1137 = vpack.c.b16 %v1105, %v1105
        %v1138 = vpack.c.b16 %v1106, %v1106
        %v1139 = vpack.c.b16 %v1107, %v1107
        %v1140 = vpack.c.b16 %v1108, %v1108
        %v1141 = vpack.c.b16 %v1109, %v1109
        %s1174 = scalar_lea.vmem [#allocation2], 40
        %1175 = vst [vmem:[%s1174 + $0x8] sm:$0xf] %v1110
        %1176 = vst [vmem:[%s1174 + $0xc] sm:$0xf] %v1111
        %1177 = vst [vmem:[%s1174 + $0x1c] sm:$0xf] %v1112
        %1178 = vst [vmem:[%s1174 + $0x20] sm:$0xf] %v1113
        %1179 = vst [vmem:[%s1174 + $0x30] sm:$0xf] %v1114
        %1180 = vst [vmem:[%s1174 + $0x34] sm:$0xf] %v1115
        %1181 = vst [vmem:[%s1174 + $0x44] sm:$0xf] %v1116
        %1182 = vst [vmem:[%s1174 + $0x48] sm:$0xf] %v1117
        %1183 = vst [vmem:[%s1174 + $0x58] sm:$0xf] %v1118
        %1184 = vst [vmem:[%s1174 + $0x5c] sm:$0xf] %v1119
        %1185 = vst [vmem:[%s1174 + $0x6c] sm:$0xf] %v1120
        %1186 = vst [vmem:[%s1174 + $0x70] sm:$0xf] %v1121
        %1187 = vst [vmem:[%s1174 + $0x80] sm:$0xf] %v1122
        %1188 = vst [vmem:[%s1174 + $0x84] sm:$0xf] %v1123
        %1189 = vst [vmem:[%s1174 + $0x94] sm:$0xf] %v1124
        %1190 = vst [vmem:[%s1174 + $0x98] sm:$0xf] %v1125
        %1191 = vst [vmem:[%s1174 + $0xa8] sm:$0xf] %v1126
        %1192 = vst [vmem:[%s1174 + $0xac] sm:$0xf] %v1127
        %1193 = vst [vmem:[%s1174 + $0xbc] sm:$0xf] %v1128
        %1194 = vst [vmem:[%s1174 + $0xc0] sm:$0xf] %v1129
        %1195 = vst [vmem:[%s1174 + $0xd0] sm:$0xf] %v1130
        %1196 = vst [vmem:[%s1174 + $0xd4] sm:$0xf] %v1131
        %1197 = vst [vmem:[%s1174 + $0xe4] sm:$0xf] %v1132
        %1198 = vst [vmem:[%s1174 + $0xe8] sm:$0xf] %v1133
        %1199 = vst [vmem:[%s1174 + $0xf8] sm:$0xf] %v1134
        %1200 = vst [vmem:[%s1174 + $0xfc] sm:$0xf] %v1135
        %1201 = vst [vmem:[%s1174 + $0x10c] sm:$0xf] %v1136
        %1202 = vst [vmem:[%s1174 + $0x110] sm:$0xf] %v1137
        %1203 = vst [vmem:[%s1174 + $0x120] sm:$0xf] %v1138
        %1204 = vst [vmem:[%s1174 + $0x124] sm:$0xf] %v1139
        %1205 = vst [vmem:[%s1174 + $0x134] sm:$0xf] %v1140
        %1206 = vst [vmem:[%s1174 + $0x138] sm:$0xf] %v1141
        %v1207 = vld [vmem:[#allocation2 + $0x4] sm:$0x8]
        %v1208 = vld [vmem:[#allocation2 + $0x8] sm:$0xf]
        %v1209 = vld [vmem:[#allocation2 + $0xc] sm:$0xf]
        %v1210 = vld [vmem:[#allocation2 + $0x10] sm:$0x1]
        %v1211 = vld [vmem:[#allocation2 + $0x18] sm:$0x8]
        %v1212 = vld [vmem:[#allocation2 + $0x1c] sm:$0xf]
        %v1213 = vld [vmem:[#allocation2 + $0x20] sm:$0xf]
        %v1214 = vld [vmem:[#allocation2 + $0x24] sm:$0x1]
        %v1215 = vld [vmem:[#allocation2 + $0x2c] sm:$0x8]
        %v1216 = vld [vmem:[#allocation2 + $0x30] sm:$0xf]
        %v1217 = vld [vmem:[#allocation2 + $0x34] sm:$0xf]
        %v1218 = vld [vmem:[#allocation2 + $0x38] sm:$0x1]
        %v1219 = vld [vmem:[#allocation2 + $0x40] sm:$0x8]
        %v1220 = vld [vmem:[#allocation2 + $0x44] sm:$0xf]
        %v1221 = vld [vmem:[#allocation2 + $0x48] sm:$0xf]
        %v1222 = vld [vmem:[#allocation2 + $0x4c] sm:$0x1]
        %v1223 = vld [vmem:[#allocation2 + $0x54] sm:$0x8]
        %v1224 = vld [vmem:[#allocation2 + $0x58] sm:$0xf]
        %v1225 = vld [vmem:[#allocation2 + $0x5c] sm:$0xf]
        %v1226 = vld [vmem:[#allocation2 + $0x60] sm:$0x1]
        %v1227 = vld [vmem:[#allocation2 + $0x68] sm:$0x8]
        %v1228 = vld [vmem:[#allocation2 + $0x6c] sm:$0xf]
        %v1229 = vld [vmem:[#allocation2 + $0x70] sm:$0xf]
        %v1230 = vld [vmem:[#allocation2 + $0x74] sm:$0x1]
        %v1231 = vld [vmem:[#allocation2 + $0x7c] sm:$0x8]
        %v1232 = vld [vmem:[#allocation2 + $0x80] sm:$0xf]
        %v1233 = vld [vmem:[#allocation2 + $0x84] sm:$0xf]
        %v1234 = vld [vmem:[#allocation2 + $0x88] sm:$0x1]
        %v1235 = vld [vmem:[#allocation2 + $0x90] sm:$0x8]
        %v1236 = vld [vmem:[#allocation2 + $0x94] sm:$0xf]
        %v1237 = vld [vmem:[#allocation2 + $0x98] sm:$0xf]
        %v1238 = vld [vmem:[#allocation2 + $0x9c] sm:$0x1]
        %v1239 = vld [vmem:[#allocation2 + $0xa4] sm:$0x8]
        %v1240 = vld [vmem:[#allocation2 + $0xa8] sm:$0xf]
        %v1241 = vld [vmem:[#allocation2 + $0xac] sm:$0xf]
        %v1242 = vld [vmem:[#allocation2 + $0xb0] sm:$0x1]
        %v1243 = vld [vmem:[#allocation2 + $0xb8] sm:$0x8]
        %v1244 = vld [vmem:[#allocation2 + $0xbc] sm:$0xf]
        %v1245 = vld [vmem:[#allocation2 + $0xc0] sm:$0xf]
        %v1246 = vld [vmem:[#allocation2 + $0xc4] sm:$0x1]
        %v1247 = vld [vmem:[#allocation2 + $0xcc] sm:$0x8]
        %v1248 = vld [vmem:[#allocation2 + $0xd0] sm:$0xf]
        %v1249 = vld [vmem:[#allocation2 + $0xd4] sm:$0xf]
        %v1250 = vld [vmem:[#allocation2 + $0xd8] sm:$0x1]
        %v1251 = vld [vmem:[#allocation2 + $0xe0] sm:$0x8]
        %v1252 = vld [vmem:[#allocation2 + $0xe4] sm:$0xf]
        %v1253 = vld [vmem:[#allocation2 + $0xe8] sm:$0xf]
        %v1254 = vld [vmem:[#allocation2 + $0xec] sm:$0x1]
        %v1255 = vld [vmem:[#allocation2 + $0xf4] sm:$0x8]
        %v1256 = vld [vmem:[#allocation2 + $0xf8] sm:$0xf]
        %v1257 = vld [vmem:[#allocation2 + $0xfc] sm:$0xf]
        %v1258 = vld [vmem:[#allocation2 + $0x100] sm:$0x1]
        %v1259 = vld [vmem:[#allocation2 + $0x108] sm:$0x8]
        %v1260 = vld [vmem:[#allocation2 + $0x10c] sm:$0xf]
        %v1261 = vld [vmem:[#allocation2 + $0x110] sm:$0xf]
        %v1262 = vld [vmem:[#allocation2 + $0x114] sm:$0x1]
        %v1263 = vld [vmem:[#allocation2 + $0x11c] sm:$0x8]
        %v1264 = vld [vmem:[#allocation2 + $0x120] sm:$0xf]
        %v1265 = vld [vmem:[#allocation2 + $0x124] sm:$0xf]
        %v1266 = vld [vmem:[#allocation2 + $0x128] sm:$0x1]
        %v1267 = vld [vmem:[#allocation2 + $0x130] sm:$0x8]
        %v1268 = vld [vmem:[#allocation2 + $0x134] sm:$0xf]
        %v1269 = vld [vmem:[#allocation2 + $0x138] sm:$0xf]
        %v1270 = vld [vmem:[#allocation2 + $0x13c] sm:$0x1]
        %v1271 = vld [vmem:[#allocation2 + $0x144] sm:$0x8]
        %v1272 = vld [vmem:[#allocation2 + $0x148] sm:$0xf]
        %v1273 = vld [vmem:[#allocation2 + $0x14c] sm:$0xf]
        %v1274 = vld [vmem:[#allocation2 + $0x150] sm:$0x1]
        %v1275 = vld [vmem:[#allocation2 + $0x158] sm:$0x8]
        %v1276 = vld [vmem:[#allocation2 + $0x15c] sm:$0xf]
        %v1277 = vld [vmem:[#allocation2 + $0x160] sm:$0xf]
        %v1278 = vld [vmem:[#allocation2 + $0x164] sm:$0x1]
        %v1279 = vld [vmem:[#allocation2 + $0x16c] sm:$0x8]
        %v1280 = vld [vmem:[#allocation2 + $0x170] sm:$0xf]
        %v1281 = vld [vmem:[#allocation2 + $0x174] sm:$0xf]
        %v1282 = vld [vmem:[#allocation2 + $0x178] sm:$0x1]
        %v1283 = vld [vmem:[#allocation2 + $0x180] sm:$0x8]
        %v1284 = vld [vmem:[#allocation2 + $0x184] sm:$0xf]
        %v1285 = vld [vmem:[#allocation2 + $0x188] sm:$0xf]
        %v1286 = vld [vmem:[#allocation2 + $0x18c] sm:$0x1]
        %v1287 = vmax.bf16 %v1207, %v1211
        %v1288 = vmax.bf16 %v1208, %v1212
        %v1289 = vmax.bf16 %v1209, %v1213
        %v1290 = vmax.bf16 %v1210, %v1214
        %v1291 = vmax.bf16 %v1211, %v1215
        %v1292 = vmax.bf16 %v1212, %v1216
        %v1293 = vmax.bf16 %v1213, %v1217
        %v1294 = vmax.bf16 %v1214, %v1218
        %v1295 = vmax.bf16 %v1215, %v1219
        %v1296 = vmax.bf16 %v1216, %v1220
        %v1297 = vmax.bf16 %v1217, %v1221
        %v1298 = vmax.bf16 %v1218, %v1222
        %v1299 = vmax.bf16 %v1219, %v1223
        %v1300 = vmax.bf16 %v1220, %v1224
        %v1301 = vmax.bf16 %v1221, %v1225
        %v1302 = vmax.bf16 %v1222, %v1226
        %v1303 = vmax.bf16 %v1223, %v1227
        %v1304 = vmax.bf16 %v1224, %v1228
        %v1305 = vmax.bf16 %v1225, %v1229
        %v1306 = vmax.bf16 %v1226, %v1230
        %v1307 = vmax.bf16 %v1227, %v1231
        %v1308 = vmax.bf16 %v1228, %v1232
        %v1309 = vmax.bf16 %v1229, %v1233
        %v1310 = vmax.bf16 %v1230, %v1234
        %v1311 = vmax.bf16 %v1231, %v1235
        %v1312 = vmax.bf16 %v1232, %v1236
        %v1313 = vmax.bf16 %v1233, %v1237
        %v1314 = vmax.bf16 %v1234, %v1238
        %v1315 = vmax.bf16 %v1235, %v1239
        %v1316 = vmax.bf16 %v1236, %v1240
        %v1317 = vmax.bf16 %v1237, %v1241
        %v1318 = vmax.bf16 %v1238, %v1242
        %v1319 = vmax.bf16 %v1239, %v1243
        %v1320 = vmax.bf16 %v1240, %v1244
        %v1321 = vmax.bf16 %v1241, %v1245
        %v1322 = vmax.bf16 %v1242, %v1246
        %v1323 = vmax.bf16 %v1243, %v1247
        %v1324 = vmax.bf16 %v1244, %v1248
        %v1325 = vmax.bf16 %v1245, %v1249
        %v1326 = vmax.bf16 %v1246, %v1250
        %v1327 = vmax.bf16 %v1247, %v1251
        %v1328 = vmax.bf16 %v1248, %v1252
        %v1329 = vmax.bf16 %v1249, %v1253
        %v1330 = vmax.bf16 %v1250, %v1254
        %v1331 = vmax.bf16 %v1251, %v1255
        %v1332 = vmax.bf16 %v1252, %v1256
        %v1333 = vmax.bf16 %v1253, %v1257
        %v1334 = vmax.bf16 %v1254, %v1258
        %v1335 = vmax.bf16 %v1255, %v1259
        %v1336 = vmax.bf16 %v1256, %v1260
        %v1337 = vmax.bf16 %v1257, %v1261
        %v1338 = vmax.bf16 %v1258, %v1262
        %v1339 = vmax.bf16 %v1259, %v1263
        %v1340 = vmax.bf16 %v1260, %v1264
        %v1341 = vmax.bf16 %v1261, %v1265
        %v1342 = vmax.bf16 %v1262, %v1266
        %v1343 = vmax.bf16 %v1263, %v1267
        %v1344 = vmax.bf16 %v1264, %v1268
        %v1345 = vmax.bf16 %v1265, %v1269
        %v1346 = vmax.bf16 %v1266, %v1270
        %v1347 = vmax.bf16 %v1267, %v1271
        %v1348 = vmax.bf16 %v1268, %v1272
        %v1349 = vmax.bf16 %v1269, %v1273
        %v1350 = vmax.bf16 %v1270, %v1274
        %v1351 = vmax.bf16 %v1287, %v1215
        %v1352 = vmax.bf16 %v1288, %v1216
        %v1353 = vmax.bf16 %v1289, %v1217
        %v1354 = vmax.bf16 %v1290, %v1218
        %v1355 = vmax.bf16 %v1291, %v1219
        %v1356 = vmax.bf16 %v1292, %v1220
        %v1357 = vmax.bf16 %v1293, %v1221
        %v1358 = vmax.bf16 %v1294, %v1222
        %v1359 = vmax.bf16 %v1295, %v1223
        %v1360 = vmax.bf16 %v1296, %v1224
        %v1361 = vmax.bf16 %v1297, %v1225
        %v1362 = vmax.bf16 %v1298, %v1226
        %v1363 = vmax.bf16 %v1299, %v1227
        %v1364 = vmax.bf16 %v1300, %v1228
        %v1365 = vmax.bf16 %v1301, %v1229
        %v1366 = vmax.bf16 %v1302, %v1230
        %v1367 = vmax.bf16 %v1303, %v1231
        %v1368 = vmax.bf16 %v1304, %v1232
        %v1369 = vmax.bf16 %v1305, %v1233
        %v1370 = vmax.bf16 %v1306, %v1234
        %v1371 = vmax.bf16 %v1307, %v1235
        %v1372 = vmax.bf16 %v1308, %v1236
        %v1373 = vmax.bf16 %v1309, %v1237
        %v1374 = vmax.bf16 %v1310, %v1238
        %v1375 = vmax.bf16 %v1311, %v1239
        %v1376 = vmax.bf16 %v1312, %v1240
        %v1377 = vmax.bf16 %v1313, %v1241
        %v1378 = vmax.bf16 %v1314, %v1242
        %v1379 = vmax.bf16 %v1315, %v1243
        %v1380 = vmax.bf16 %v1316, %v1244
        %v1381 = vmax.bf16 %v1317, %v1245
        %v1382 = vmax.bf16 %v1318, %v1246
        %v1383 = vmax.bf16 %v1319, %v1247
        %v1384 = vmax.bf16 %v1320, %v1248
        %v1385 = vmax.bf16 %v1321, %v1249
        %v1386 = vmax.bf16 %v1322, %v1250
        %v1387 = vmax.bf16 %v1323, %v1251
        %v1388 = vmax.bf16 %v1324, %v1252
        %v1389 = vmax.bf16 %v1325, %v1253
        %v1390 = vmax.bf16 %v1326, %v1254
        %v1391 = vmax.bf16 %v1327, %v1255
        %v1392 = vmax.bf16 %v1328, %v1256
        %v1393 = vmax.bf16 %v1329, %v1257
        %v1394 = vmax.bf16 %v1330, %v1258
        %v1395 = vmax.bf16 %v1331, %v1259
        %v1396 = vmax.bf16 %v1332, %v1260
        %v1397 = vmax.bf16 %v1333, %v1261
        %v1398 = vmax.bf16 %v1334, %v1262
        %v1399 = vmax.bf16 %v1335, %v1263
        %v1400 = vmax.bf16 %v1336, %v1264
        %v1401 = vmax.bf16 %v1337, %v1265
        %v1402 = vmax.bf16 %v1338, %v1266
        %v1403 = vmax.bf16 %v1339, %v1267
        %v1404 = vmax.bf16 %v1340, %v1268
        %v1405 = vmax.bf16 %v1341, %v1269
        %v1406 = vmax.bf16 %v1342, %v1270
        %v1407 = vmax.bf16 %v1343, %v1271
        %v1408 = vmax.bf16 %v1344, %v1272
        %v1409 = vmax.bf16 %v1345, %v1273
        %v1410 = vmax.bf16 %v1346, %v1274
        %v1411 = vmax.bf16 %v1347, %v1275
        %v1412 = vmax.bf16 %v1348, %v1276
        %v1413 = vmax.bf16 %v1349, %v1277
        %v1414 = vmax.bf16 %v1350, %v1278
        %v1415 = vmax.bf16 %v1351, %v1219
        %v1416 = vmax.bf16 %v1352, %v1220
        %v1417 = vmax.bf16 %v1353, %v1221
        %v1418 = vmax.bf16 %v1354, %v1222
        %v1419 = vmax.bf16 %v1355, %v1223
        %v1420 = vmax.bf16 %v1356, %v1224
        %v1421 = vmax.bf16 %v1357, %v1225
        %v1422 = vmax.bf16 %v1358, %v1226
        %v1423 = vmax.bf16 %v1359, %v1227
        %v1424 = vmax.bf16 %v1360, %v1228
        %v1425 = vmax.bf16 %v1361, %v1229
        %v1426 = vmax.bf16 %v1362, %v1230
        %v1427 = vmax.bf16 %v1363, %v1231
        %v1428 = vmax.bf16 %v1364, %v1232
        %v1429 = vmax.bf16 %v1365, %v1233
        %v1430 = vmax.bf16 %v1366, %v1234
        %v1431 = vmax.bf16 %v1367, %v1235
        %v1432 = vmax.bf16 %v1368, %v1236
        %v1433 = vmax.bf16 %v1369, %v1237
        %v1434 = vmax.bf16 %v1370, %v1238
        %v1435 = vmax.bf16 %v1371, %v1239
        %v1436 = vmax.bf16 %v1372, %v1240
        %v1437 = vmax.bf16 %v1373, %v1241
        %v1438 = vmax.bf16 %v1374, %v1242
        %v1439 = vmax.bf16 %v1375, %v1243
        %v1440 = vmax.bf16 %v1376, %v1244
        %v1441 = vmax.bf16 %v1377, %v1245
        %v1442 = vmax.bf16 %v1378, %v1246
        %v1443 = vmax.bf16 %v1379, %v1247
        %v1444 = vmax.bf16 %v1380, %v1248
        %v1445 = vmax.bf16 %v1381, %v1249
        %v1446 = vmax.bf16 %v1382, %v1250
        %v1447 = vmax.bf16 %v1383, %v1251
        %v1448 = vmax.bf16 %v1384, %v1252
        %v1449 = vmax.bf16 %v1385, %v1253
        %v1450 = vmax.bf16 %v1386, %v1254
        %v1451 = vmax.bf16 %v1387, %v1255
        %v1452 = vmax.bf16 %v1388, %v1256
        %v1453 = vmax.bf16 %v1389, %v1257
        %v1454 = vmax.bf16 %v1390, %v1258
        %v1455 = vmax.bf16 %v1391, %v1259
        %v1456 = vmax.bf16 %v1392, %v1260
        %v1457 = vmax.bf16 %v1393, %v1261
        %v1458 = vmax.bf16 %v1394, %v1262
        %v1459 = vmax.bf16 %v1395, %v1263
        %v1460 = vmax.bf16 %v1396, %v1264
        %v1461 = vmax.bf16 %v1397, %v1265
        %v1462 = vmax.bf16 %v1398, %v1266
        %v1463 = vmax.bf16 %v1399, %v1267
        %v1464 = vmax.bf16 %v1400, %v1268
        %v1465 = vmax.bf16 %v1401, %v1269
        %v1466 = vmax.bf16 %v1402, %v1270
        %v1467 = vmax.bf16 %v1403, %v1271
        %v1468 = vmax.bf16 %v1404, %v1272
        %v1469 = vmax.bf16 %v1405, %v1273
        %v1470 = vmax.bf16 %v1406, %v1274
        %v1471 = vmax.bf16 %v1407, %v1275
        %v1472 = vmax.bf16 %v1408, %v1276
        %v1473 = vmax.bf16 %v1409, %v1277
        %v1474 = vmax.bf16 %v1410, %v1278
        %v1475 = vmax.bf16 %v1411, %v1279
        %v1476 = vmax.bf16 %v1412, %v1280
        %v1477 = vmax.bf16 %v1413, %v1281
        %v1478 = vmax.bf16 %v1414, %v1282
        %v1479 = vmax.bf16 %v1415, %v1223
        %v1480 = vmax.bf16 %v1416, %v1224
        %v1481 = vmax.bf16 %v1417, %v1225
        %v1482 = vmax.bf16 %v1418, %v1226
        %v1483 = vmax.bf16 %v1419, %v1227
        %v1484 = vmax.bf16 %v1420, %v1228
        %v1485 = vmax.bf16 %v1421, %v1229
        %v1486 = vmax.bf16 %v1422, %v1230
        %v1487 = vmax.bf16 %v1423, %v1231
        %v1488 = vmax.bf16 %v1424, %v1232
        %v1489 = vmax.bf16 %v1425, %v1233
        %v1490 = vmax.bf16 %v1426, %v1234
        %v1491 = vmax.bf16 %v1427, %v1235
        %v1492 = vmax.bf16 %v1428, %v1236
        %v1493 = vmax.bf16 %v1429, %v1237
        %v1494 = vmax.bf16 %v1430, %v1238
        %v1495 = vmax.bf16 %v1431, %v1239
        %v1496 = vmax.bf16 %v1432, %v1240
        %v1497 = vmax.bf16 %v1433, %v1241
        %v1498 = vmax.bf16 %v1434, %v1242
        %v1499 = vmax.bf16 %v1435, %v1243
        %v1500 = vmax.bf16 %v1436, %v1244
        %v1501 = vmax.bf16 %v1437, %v1245
        %v1502 = vmax.bf16 %v1438, %v1246
        %v1503 = vmax.bf16 %v1439, %v1247
        %v1504 = vmax.bf16 %v1440, %v1248
        %v1505 = vmax.bf16 %v1441, %v1249
        %v1506 = vmax.bf16 %v1442, %v1250
        %v1507 = vmax.bf16 %v1443, %v1251
        %v1508 = vmax.bf16 %v1444, %v1252
        %v1509 = vmax.bf16 %v1445, %v1253
        %v1510 = vmax.bf16 %v1446, %v1254
        %v1511 = vmax.bf16 %v1447, %v1255
        %v1512 = vmax.bf16 %v1448, %v1256
        %v1513 = vmax.bf16 %v1449, %v1257
        %v1514 = vmax.bf16 %v1450, %v1258
        %v1515 = vmax.bf16 %v1451, %v1259
        %v1516 = vmax.bf16 %v1452, %v1260
        %v1517 = vmax.bf16 %v1453, %v1261
        %v1518 = vmax.bf16 %v1454, %v1262
        %v1519 = vmax.bf16 %v1455, %v1263
        %v1520 = vmax.bf16 %v1456, %v1264
        %v1521 = vmax.bf16 %v1457, %v1265
        %v1522 = vmax.bf16 %v1458, %v1266
        %v1523 = vmax.bf16 %v1459, %v1267
        %v1524 = vmax.bf16 %v1460, %v1268
        %v1525 = vmax.bf16 %v1461, %v1269
        %v1526 = vmax.bf16 %v1462, %v1270
        %v1527 = vmax.bf16 %v1463, %v1271
        %v1528 = vmax.bf16 %v1464, %v1272
        %v1529 = vmax.bf16 %v1465, %v1273
        %v1530 = vmax.bf16 %v1466, %v1274
        %v1531 = vmax.bf16 %v1467, %v1275
        %v1532 = vmax.bf16 %v1468, %v1276
        %v1533 = vmax.bf16 %v1469, %v1277
        %v1534 = vmax.bf16 %v1470, %v1278
        %v1535 = vmax.bf16 %v1471, %v1279
        %v1536 = vmax.bf16 %v1472, %v1280
        %v1537 = vmax.bf16 %v1473, %v1281
        %v1538 = vmax.bf16 %v1474, %v1282
        %v1539 = vmax.bf16 %v1475, %v1283
        %v1540 = vmax.bf16 %v1476, %v1284
        %v1541 = vmax.bf16 %v1477, %v1285
        %v1542 = vmax.bf16 %v1478, %v1286
        %vm1543 = vsmask.f32 3328
        %vm1544 = vsmask.f32 7440
        %vm1545 = vmor %vm1543, %vm1544
        %v1547 = vshrl.u32 %v1479, 16
        %v1549 = vrot.slane %v1547, 4
        %v1550 = vrot.slane %v1549, 4
        %v1552 = vshll.u32 %v1480, 16
        %v1554 = vrot.slane %v1552, 5
        %v1555 = vsel %vm1545, %v1550, %v1554
        %v1556 = vshrl.u32 %v1480, 16
        %v1558 = vrot.slane %v1556, 4
        %v1559 = vor.u32 %v1558, %v1554
        %v1560 = vrot.slane %v1559, 4
        %v1562 = vshll.u32 %v1481, 16
        %v1564 = vrot.slane %v1562, 5
        %v1565 = vsel %vm1545, %v1560, %v1564
        %v1566 = vshrl.u32 %v1481, 16
        %v1568 = vrot.slane %v1566, 4
        %v1569 = vor.u32 %v1568, %v1564
        %v1570 = vrot.slane %v1569, 4
        %v1572 = vshrl.u32 %v1483, 16
        %v1574 = vrot.slane %v1572, 4
        %v1575 = vrot.slane %v1574, 4
        %v1577 = vshll.u32 %v1484, 16
        %v1579 = vrot.slane %v1577, 5
        %v1580 = vsel %vm1545, %v1575, %v1579
        %v1581 = vshrl.u32 %v1484, 16
        %v1583 = vrot.slane %v1581, 4
        %v1584 = vor.u32 %v1583, %v1579
        %v1585 = vrot.slane %v1584, 4
        %v1587 = vshll.u32 %v1485, 16
        %v1589 = vrot.slane %v1587, 5
        %v1590 = vsel %vm1545, %v1585, %v1589
        %v1591 = vshrl.u32 %v1485, 16
        %v1593 = vrot.slane %v1591, 4
        %v1594 = vor.u32 %v1593, %v1589
        %v1595 = vrot.slane %v1594, 4
        %v1597 = vshrl.u32 %v1487, 16
        %v1599 = vrot.slane %v1597, 4
        %v1600 = vrot.slane %v1599, 4
        %v1602 = vshll.u32 %v1488, 16
        %v1604 = vrot.slane %v1602, 5
        %v1605 = vsel %vm1545, %v1600, %v1604
        %v1606 = vshrl.u32 %v1488, 16
        %v1608 = vrot.slane %v1606, 4
        %v1609 = vor.u32 %v1608, %v1604
        %v1610 = vrot.slane %v1609, 4
        %v1612 = vshll.u32 %v1489, 16
        %v1614 = vrot.slane %v1612, 5
        %v1615 = vsel %vm1545, %v1610, %v1614
        %v1616 = vshrl.u32 %v1489, 16
        %v1618 = vrot.slane %v1616, 4
        %v1619 = vor.u32 %v1618, %v1614
        %v1620 = vrot.slane %v1619, 4
        %v1622 = vshrl.u32 %v1491, 16
        %v1624 = vrot.slane %v1622, 4
        %v1625 = vrot.slane %v1624, 4
        %v1627 = vshll.u32 %v1492, 16
        %v1629 = vrot.slane %v1627, 5
        %v1630 = vsel %vm1545, %v1625, %v1629
        %v1631 = vshrl.u32 %v1492, 16
        %v1633 = vrot.slane %v1631, 4
        %v1634 = vor.u32 %v1633, %v1629
        %v1635 = vrot.slane %v1634, 4
        %v1637 = vshll.u32 %v1493, 16
        %v1639 = vrot.slane %v1637, 5
        %v1640 = vsel %vm1545, %v1635, %v1639
        %v1641 = vshrl.u32 %v1493, 16
        %v1643 = vrot.slane %v1641, 4
        %v1644 = vor.u32 %v1643, %v1639
        %v1645 = vrot.slane %v1644, 4
        %v1647 = vshrl.u32 %v1495, 16
        %v1649 = vrot.slane %v1647, 4
        %v1650 = vrot.slane %v1649, 4
        %v1652 = vshll.u32 %v1496, 16
        %v1654 = vrot.slane %v1652, 5
        %v1655 = vsel %vm1545, %v1650, %v1654
        %v1656 = vshrl.u32 %v1496, 16
        %v1658 = vrot.slane %v1656, 4
        %v1659 = vor.u32 %v1658, %v1654
        %v1660 = vrot.slane %v1659, 4
        %v1662 = vshll.u32 %v1497, 16
        %v1664 = vrot.slane %v1662, 5
        %v1665 = vsel %vm1545, %v1660, %v1664
        %v1666 = vshrl.u32 %v1497, 16
        %v1668 = vrot.slane %v1666, 4
        %v1669 = vor.u32 %v1668, %v1664
        %v1670 = vrot.slane %v1669, 4
        %v1672 = vshrl.u32 %v1499, 16
        %v1674 = vrot.slane %v1672, 4
        %v1675 = vrot.slane %v1674, 4
        %v1677 = vshll.u32 %v1500, 16
        %v1679 = vrot.slane %v1677, 5
        %v1680 = vsel %vm1545, %v1675, %v1679
        %v1681 = vshrl.u32 %v1500, 16
        %v1683 = vrot.slane %v1681, 4
        %v1684 = vor.u32 %v1683, %v1679
        %v1685 = vrot.slane %v1684, 4
        %v1687 = vshll.u32 %v1501, 16
        %v1689 = vrot.slane %v1687, 5
        %v1690 = vsel %vm1545, %v1685, %v1689
        %v1691 = vshrl.u32 %v1501, 16
        %v1693 = vrot.slane %v1691, 4
        %v1694 = vor.u32 %v1693, %v1689
        %v1695 = vrot.slane %v1694, 4
        %v1697 = vshrl.u32 %v1503, 16
        %v1699 = vrot.slane %v1697, 4
        %v1700 = vrot.slane %v1699, 4
        %v1702 = vshll.u32 %v1504, 16
        %v1704 = vrot.slane %v1702, 5
        %v1705 = vsel %vm1545, %v1700, %v1704
        %v1706 = vshrl.u32 %v1504, 16
        %v1708 = vrot.slane %v1706, 4
        %v1709 = vor.u32 %v1708, %v1704
        %v1710 = vrot.slane %v1709, 4
        %v1712 = vshll.u32 %v1505, 16
        %v1714 = vrot.slane %v1712, 5
        %v1715 = vsel %vm1545, %v1710, %v1714
        %v1716 = vshrl.u32 %v1505, 16
        %v1718 = vrot.slane %v1716, 4
        %v1719 = vor.u32 %v1718, %v1714
        %v1720 = vrot.slane %v1719, 4
        %v1722 = vshrl.u32 %v1507, 16
        %v1724 = vrot.slane %v1722, 4
        %v1725 = vrot.slane %v1724, 4
        %v1727 = vshll.u32 %v1508, 16
        %v1729 = vrot.slane %v1727, 5
        %v1730 = vsel %vm1545, %v1725, %v1729
        %v1731 = vshrl.u32 %v1508, 16
        %v1733 = vrot.slane %v1731, 4
        %v1734 = vor.u32 %v1733, %v1729
        %v1735 = vrot.slane %v1734, 4
        %v1737 = vshll.u32 %v1509, 16
        %v1739 = vrot.slane %v1737, 5
        %v1740 = vsel %vm1545, %v1735, %v1739
        %v1741 = vshrl.u32 %v1509, 16
        %v1743 = vrot.slane %v1741, 4
        %v1744 = vor.u32 %v1743, %v1739
        %v1745 = vrot.slane %v1744, 4
        %v1747 = vshrl.u32 %v1511, 16
        %v1749 = vrot.slane %v1747, 4
        %v1750 = vrot.slane %v1749, 4
        %v1752 = vshll.u32 %v1512, 16
        %v1754 = vrot.slane %v1752, 5
        %v1755 = vsel %vm1545, %v1750, %v1754
        %v1756 = vshrl.u32 %v1512, 16
        %v1758 = vrot.slane %v1756, 4
        %v1759 = vor.u32 %v1758, %v1754
        %v1760 = vrot.slane %v1759, 4
        %v1762 = vshll.u32 %v1513, 16
        %v1764 = vrot.slane %v1762, 5
        %v1765 = vsel %vm1545, %v1760, %v1764
        %v1766 = vshrl.u32 %v1513, 16
        %v1768 = vrot.slane %v1766, 4
        %v1769 = vor.u32 %v1768, %v1764
        %v1770 = vrot.slane %v1769, 4
        %v1772 = vshrl.u32 %v1515, 16
        %v1774 = vrot.slane %v1772, 4
        %v1775 = vrot.slane %v1774, 4
        %v1777 = vshll.u32 %v1516, 16
        %v1779 = vrot.slane %v1777, 5
        %v1780 = vsel %vm1545, %v1775, %v1779
        %v1781 = vshrl.u32 %v1516, 16
        %v1783 = vrot.slane %v1781, 4
        %v1784 = vor.u32 %v1783, %v1779
        %v1785 = vrot.slane %v1784, 4
        %v1787 = vshll.u32 %v1517, 16
        %v1789 = vrot.slane %v1787, 5
        %v1790 = vsel %vm1545, %v1785, %v1789
        %v1791 = vshrl.u32 %v1517, 16
        %v1793 = vrot.slane %v1791, 4
        %v1794 = vor.u32 %v1793, %v1789
        %v1795 = vrot.slane %v1794, 4
        %v1797 = vshrl.u32 %v1519, 16
        %v1799 = vrot.slane %v1797, 4
        %v1800 = vrot.slane %v1799, 4
        %v1802 = vshll.u32 %v1520, 16
        %v1804 = vrot.slane %v1802, 5
        %v1805 = vsel %vm1545, %v1800, %v1804
        %v1806 = vshrl.u32 %v1520, 16
        %v1808 = vrot.slane %v1806, 4
        %v1809 = vor.u32 %v1808, %v1804
        %v1810 = vrot.slane %v1809, 4
        %v1812 = vshll.u32 %v1521, 16
        %v1814 = vrot.slane %v1812, 5
        %v1815 = vsel %vm1545, %v1810, %v1814
        %v1816 = vshrl.u32 %v1521, 16
        %v1818 = vrot.slane %v1816, 4
        %v1819 = vor.u32 %v1818, %v1814
        %v1820 = vrot.slane %v1819, 4
        %v1822 = vshrl.u32 %v1523, 16
        %v1824 = vrot.slane %v1822, 4
        %v1825 = vrot.slane %v1824, 4
        %v1827 = vshll.u32 %v1524, 16
        %v1829 = vrot.slane %v1827, 5
        %v1830 = vsel %vm1545, %v1825, %v1829
        %v1831 = vshrl.u32 %v1524, 16
        %v1833 = vrot.slane %v1831, 4
        %v1834 = vor.u32 %v1833, %v1829
        %v1835 = vrot.slane %v1834, 4
        %v1837 = vshll.u32 %v1525, 16
        %v1839 = vrot.slane %v1837, 5
        %v1840 = vsel %vm1545, %v1835, %v1839
        %v1841 = vshrl.u32 %v1525, 16
        %v1843 = vrot.slane %v1841, 4
        %v1844 = vor.u32 %v1843, %v1839
        %v1845 = vrot.slane %v1844, 4
        %v1847 = vshrl.u32 %v1527, 16
        %v1849 = vrot.slane %v1847, 4
        %v1850 = vrot.slane %v1849, 4
        %v1852 = vshll.u32 %v1528, 16
        %v1854 = vrot.slane %v1852, 5
        %v1855 = vsel %vm1545, %v1850, %v1854
        %v1856 = vshrl.u32 %v1528, 16
        %v1858 = vrot.slane %v1856, 4
        %v1859 = vor.u32 %v1858, %v1854
        %v1860 = vrot.slane %v1859, 4
        %v1862 = vshll.u32 %v1529, 16
        %v1864 = vrot.slane %v1862, 5
        %v1865 = vsel %vm1545, %v1860, %v1864
        %v1866 = vshrl.u32 %v1529, 16
        %v1868 = vrot.slane %v1866, 4
        %v1869 = vor.u32 %v1868, %v1864
        %v1870 = vrot.slane %v1869, 4
        %v1872 = vshrl.u32 %v1531, 16
        %v1874 = vrot.slane %v1872, 4
        %v1875 = vrot.slane %v1874, 4
        %v1877 = vshll.u32 %v1532, 16
        %v1879 = vrot.slane %v1877, 5
        %v1880 = vsel %vm1545, %v1875, %v1879
        %v1881 = vshrl.u32 %v1532, 16
        %v1883 = vrot.slane %v1881, 4
        %v1884 = vor.u32 %v1883, %v1879
        %v1885 = vrot.slane %v1884, 4
        %v1887 = vshll.u32 %v1533, 16
        %v1889 = vrot.slane %v1887, 5
        %v1890 = vsel %vm1545, %v1885, %v1889
        %v1891 = vshrl.u32 %v1533, 16
        %v1893 = vrot.slane %v1891, 4
        %v1894 = vor.u32 %v1893, %v1889
        %v1895 = vrot.slane %v1894, 4
        %v1897 = vshrl.u32 %v1535, 16
        %v1899 = vrot.slane %v1897, 4
        %v1900 = vrot.slane %v1899, 4
        %v1902 = vshll.u32 %v1536, 16
        %v1904 = vrot.slane %v1902, 5
        %v1905 = vsel %vm1545, %v1900, %v1904
        %v1906 = vshrl.u32 %v1536, 16
        %v1908 = vrot.slane %v1906, 4
        %v1909 = vor.u32 %v1908, %v1904
        %v1910 = vrot.slane %v1909, 4
        %v1912 = vshll.u32 %v1537, 16
        %v1914 = vrot.slane %v1912, 5
        %v1915 = vsel %vm1545, %v1910, %v1914
        %v1916 = vshrl.u32 %v1537, 16
        %v1918 = vrot.slane %v1916, 4
        %v1919 = vor.u32 %v1918, %v1914
        %v1920 = vrot.slane %v1919, 4
        %v1922 = vshrl.u32 %v1539, 16
        %v1924 = vrot.slane %v1922, 4
        %v1925 = vrot.slane %v1924, 4
        %v1927 = vshll.u32 %v1540, 16
        %v1929 = vrot.slane %v1927, 5
        %v1930 = vsel %vm1545, %v1925, %v1929
        %v1931 = vshrl.u32 %v1540, 16
        %v1933 = vrot.slane %v1931, 4
        %v1934 = vor.u32 %v1933, %v1929
        %v1935 = vrot.slane %v1934, 4
        %v1937 = vshll.u32 %v1541, 16
        %v1939 = vrot.slane %v1937, 5
        %v1940 = vsel %vm1545, %v1935, %v1939
        %v1941 = vshrl.u32 %v1541, 16
        %v1943 = vrot.slane %v1941, 4
        %v1944 = vor.u32 %v1943, %v1939
        %v1945 = vrot.slane %v1944, 4
        %v1994 = vmax.bf16 %v1479, %v1555
        %v1995 = vmax.bf16 %v1480, %v1565
        %v1996 = vmax.bf16 %v1481, %v1570
        %v1997 = vmax.bf16 %v1483, %v1580
        %v1998 = vmax.bf16 %v1484, %v1590
        %v1999 = vmax.bf16 %v1485, %v1595
        %v2000 = vmax.bf16 %v1487, %v1605
        %v2001 = vmax.bf16 %v1488, %v1615
        %v2002 = vmax.bf16 %v1489, %v1620
        %v2003 = vmax.bf16 %v1491, %v1630
        %v2004 = vmax.bf16 %v1492, %v1640
        %v2005 = vmax.bf16 %v1493, %v1645
        %v2006 = vmax.bf16 %v1495, %v1655
        %v2007 = vmax.bf16 %v1496, %v1665
        %v2008 = vmax.bf16 %v1497, %v1670
        %v2009 = vmax.bf16 %v1499, %v1680
        %v2010 = vmax.bf16 %v1500, %v1690
        %v2011 = vmax.bf16 %v1501, %v1695
        %v2012 = vmax.bf16 %v1503, %v1705
        %v2013 = vmax.bf16 %v1504, %v1715
        %v2014 = vmax.bf16 %v1505, %v1720
        %v2015 = vmax.bf16 %v1507, %v1730
        %v2016 = vmax.bf16 %v1508, %v1740
        %v2017 = vmax.bf16 %v1509, %v1745
        %v2018 = vmax.bf16 %v1511, %v1755
        %v2019 = vmax.bf16 %v1512, %v1765
        %v2020 = vmax.bf16 %v1513, %v1770
        %v2021 = vmax.bf16 %v1515, %v1780
        %v2022 = vmax.bf16 %v1516, %v1790
        %v2023 = vmax.bf16 %v1517, %v1795
        %v2024 = vmax.bf16 %v1519, %v1805
        %v2025 = vmax.bf16 %v1520, %v1815
        %v2026 = vmax.bf16 %v1521, %v1820
        %v2027 = vmax.bf16 %v1523, %v1830
        %v2028 = vmax.bf16 %v1524, %v1840
        %v2029 = vmax.bf16 %v1525, %v1845
        %v2030 = vmax.bf16 %v1527, %v1855
        %v2031 = vmax.bf16 %v1528, %v1865
        %v2032 = vmax.bf16 %v1529, %v1870
        %v2033 = vmax.bf16 %v1531, %v1880
        %v2034 = vmax.bf16 %v1532, %v1890
        %v2035 = vmax.bf16 %v1533, %v1895
        %v2036 = vmax.bf16 %v1535, %v1905
        %v2037 = vmax.bf16 %v1536, %v1915
        %v2038 = vmax.bf16 %v1537, %v1920
        %v2039 = vmax.bf16 %v1539, %v1930
        %v2040 = vmax.bf16 %v1540, %v1940
        %v2041 = vmax.bf16 %v1541, %v1945
        %vm2074 = vcmask 1042432
        %vm2075 = vcmask 1046532
        %vm2076 = vmor %vm2074, %vm2075
        %v2077 = vrot.slane %v1480, 5
        %v2078 = vrot.slane %v2077, 4
        %v2079 = vrot.slane %v1481, 5
        %v2080 = vsel %vm2076, %v2078, %v2079
        %v2081 = vrot.slane %v2079, 4
        %v2082 = vrot.slane %v1484, 5
        %v2083 = vrot.slane %v2082, 4
        %v2084 = vrot.slane %v1485, 5
        %v2085 = vsel %vm2076, %v2083, %v2084
        %v2086 = vrot.slane %v2084, 4
        %v2087 = vrot.slane %v1488, 5
        %v2088 = vrot.slane %v2087, 4
        %v2089 = vrot.slane %v1489, 5
        %v2090 = vsel %vm2076, %v2088, %v2089
        %v2091 = vrot.slane %v2089, 4
        %v2092 = vrot.slane %v1492, 5
        %v2093 = vrot.slane %v2092, 4
        %v2094 = vrot.slane %v1493, 5
        %v2095 = vsel %vm2076, %v2093, %v2094
        %v2096 = vrot.slane %v2094, 4
        %v2097 = vrot.slane %v1496, 5
        %v2098 = vrot.slane %v2097, 4
        %v2099 = vrot.slane %v1497, 5
        %v2100 = vsel %vm2076, %v2098, %v2099
        %v2101 = vrot.slane %v2099, 4
        %v2102 = vrot.slane %v1500, 5
        %v2103 = vrot.slane %v2102, 4
        %v2104 = vrot.slane %v1501, 5
        %v2105 = vsel %vm2076, %v2103, %v2104
        %v2106 = vrot.slane %v2104, 4
        %v2107 = vrot.slane %v1504, 5
        %v2108 = vrot.slane %v2107, 4
        %v2109 = vrot.slane %v1505, 5
        %v2110 = vsel %vm2076, %v2108, %v2109
        %v2111 = vrot.slane %v2109, 4
        %v2112 = vrot.slane %v1508, 5
        %v2113 = vrot.slane %v2112, 4
        %v2114 = vrot.slane %v1509, 5
        %v2115 = vsel %vm2076, %v2113, %v2114
        %v2116 = vrot.slane %v2114, 4
        %v2117 = vrot.slane %v1512, 5
        %v2118 = vrot.slane %v2117, 4
        %v2119 = vrot.slane %v1513, 5
        %v2120 = vsel %vm2076, %v2118, %v2119
        %v2121 = vrot.slane %v2119, 4
        %v2122 = vrot.slane %v1516, 5
        %v2123 = vrot.slane %v2122, 4
        %v2124 = vrot.slane %v1517, 5
        %v2125 = vsel %vm2076, %v2123, %v2124
        %v2126 = vrot.slane %v2124, 4
        %v2127 = vrot.slane %v1520, 5
        %v2128 = vrot.slane %v2127, 4
        %v2129 = vrot.slane %v1521, 5
        %v2130 = vsel %vm2076, %v2128, %v2129
        %v2131 = vrot.slane %v2129, 4
        %v2132 = vrot.slane %v1524, 5
        %v2133 = vrot.slane %v2132, 4
        %v2134 = vrot.slane %v1525, 5
        %v2135 = vsel %vm2076, %v2133, %v2134
        %v2136 = vrot.slane %v2134, 4
        %v2137 = vrot.slane %v1528, 5
        %v2138 = vrot.slane %v2137, 4
        %v2139 = vrot.slane %v1529, 5
        %v2140 = vsel %vm2076, %v2138, %v2139
        %v2141 = vrot.slane %v2139, 4
        %v2142 = vrot.slane %v1532, 5
        %v2143 = vrot.slane %v2142, 4
        %v2144 = vrot.slane %v1533, 5
        %v2145 = vsel %vm2076, %v2143, %v2144
        %v2146 = vrot.slane %v2144, 4
        %v2147 = vrot.slane %v1536, 5
        %v2148 = vrot.slane %v2147, 4
        %v2149 = vrot.slane %v1537, 5
        %v2150 = vsel %vm2076, %v2148, %v2149
        %v2151 = vrot.slane %v2149, 4
        %v2152 = vrot.slane %v1540, 5
        %v2153 = vrot.slane %v2152, 4
        %v2154 = vrot.slane %v1541, 5
        %v2155 = vsel %vm2076, %v2153, %v2154
        %v2156 = vrot.slane %v2154, 4
        %v2205 = vmax.bf16 %v1994, %v2077
        %v2206 = vmax.bf16 %v1995, %v2080
        %v2207 = vmax.bf16 %v1996, %v2081
        %v2208 = vmax.bf16 %v1997, %v2082
        %v2209 = vmax.bf16 %v1998, %v2085
        %v2210 = vmax.bf16 %v1999, %v2086
        %v2211 = vmax.bf16 %v2000, %v2087
        %v2212 = vmax.bf16 %v2001, %v2090
        %v2213 = vmax.bf16 %v2002, %v2091
        %v2214 = vmax.bf16 %v2003, %v2092
        %v2215 = vmax.bf16 %v2004, %v2095
        %v2216 = vmax.bf16 %v2005, %v2096
        %v2217 = vmax.bf16 %v2006, %v2097
        %v2218 = vmax.bf16 %v2007, %v2100
        %v2219 = vmax.bf16 %v2008, %v2101
        %v2220 = vmax.bf16 %v2009, %v2102
        %v2221 = vmax.bf16 %v2010, %v2105
        %v2222 = vmax.bf16 %v2011, %v2106
        %v2223 = vmax.bf16 %v2012, %v2107
        %v2224 = vmax.bf16 %v2013, %v2110
        %v2225 = vmax.bf16 %v2014, %v2111
        %v2226 = vmax.bf16 %v2015, %v2112
        %v2227 = vmax.bf16 %v2016, %v2115
        %v2228 = vmax.bf16 %v2017, %v2116
        %v2229 = vmax.bf16 %v2018, %v2117
        %v2230 = vmax.bf16 %v2019, %v2120
        %v2231 = vmax.bf16 %v2020, %v2121
        %v2232 = vmax.bf16 %v2021, %v2122
        %v2233 = vmax.bf16 %v2022, %v2125
        %v2234 = vmax.bf16 %v2023, %v2126
        %v2235 = vmax.bf16 %v2024, %v2127
        %v2236 = vmax.bf16 %v2025, %v2130
        %v2237 = vmax.bf16 %v2026, %v2131
        %v2238 = vmax.bf16 %v2027, %v2132
        %v2239 = vmax.bf16 %v2028, %v2135
        %v2240 = vmax.bf16 %v2029, %v2136
        %v2241 = vmax.bf16 %v2030, %v2137
        %v2242 = vmax.bf16 %v2031, %v2140
        %v2243 = vmax.bf16 %v2032, %v2141
        %v2244 = vmax.bf16 %v2033, %v2142
        %v2245 = vmax.bf16 %v2034, %v2145
        %v2246 = vmax.bf16 %v2035, %v2146
        %v2247 = vmax.bf16 %v2036, %v2147
        %v2248 = vmax.bf16 %v2037, %v2150
        %v2249 = vmax.bf16 %v2038, %v2151
        %v2250 = vmax.bf16 %v2039, %v2152
        %v2251 = vmax.bf16 %v2040, %v2155
        %v2252 = vmax.bf16 %v2041, %v2156
        %vm2253 = vsmask.f32 2304
        %vm2254 = vsmask.f32 6416
        %vm2255 = vmor %vm2253, %vm2254
        %v2256 = vrot.slane %v1556, 5
        %v2257 = vrot.slane %v1552, 6
        %v2258 = vor.u32 %v2256, %v2257
        %v2259 = vrot.slane %v2258, 4
        %v2260 = vrot.slane %v1566, 5
        %v2261 = vrot.slane %v1562, 6
        %v2262 = vor.u32 %v2260, %v2261
        %v2263 = vsel %vm2255, %v2259, %v2262
        %v2264 = vrot.slane %v2262, 4
        %v2266 = vshll.u32 %v1482, 16
        %v2268 = vrot.slane %v2266, 6
        %v2269 = vsel %vm2255, %v2264, %v2268
        %v2270 = vrot.slane %v1581, 5
        %v2271 = vrot.slane %v1577, 6
        %v2272 = vor.u32 %v2270, %v2271
        %v2273 = vrot.slane %v2272, 4
        %v2274 = vrot.slane %v1591, 5
        %v2275 = vrot.slane %v1587, 6
        %v2276 = vor.u32 %v2274, %v2275
        %v2277 = vsel %vm2255, %v2273, %v2276
        %v2278 = vrot.slane %v2276, 4
        %v2280 = vshll.u32 %v1486, 16
        %v2282 = vrot.slane %v2280, 6
        %v2283 = vsel %vm2255, %v2278, %v2282
        %v2284 = vrot.slane %v1606, 5
        %v2285 = vrot.slane %v1602, 6
        %v2286 = vor.u32 %v2284, %v2285
        %v2287 = vrot.slane %v2286, 4
        %v2288 = vrot.slane %v1616, 5
        %v2289 = vrot.slane %v1612, 6
        %v2290 = vor.u32 %v2288, %v2289
        %v2291 = vsel %vm2255, %v2287, %v2290
        %v2292 = vrot.slane %v2290, 4
        %v2294 = vshll.u32 %v1490, 16
        %v2296 = vrot.slane %v2294, 6
        %v2297 = vsel %vm2255, %v2292, %v2296
        %v2298 = vrot.slane %v1631, 5
        %v2299 = vrot.slane %v1627, 6
        %v2300 = vor.u32 %v2298, %v2299
        %v2301 = vrot.slane %v2300, 4
        %v2302 = vrot.slane %v1641, 5
        %v2303 = vrot.slane %v1637, 6
        %v2304 = vor.u32 %v2302, %v2303
        %v2305 = vsel %vm2255, %v2301, %v2304
        %v2306 = vrot.slane %v2304, 4
        %v2308 = vshll.u32 %v1494, 16
        %v2310 = vrot.slane %v2308, 6
        %v2311 = vsel %vm2255, %v2306, %v2310
        %v2312 = vrot.slane %v1656, 5
        %v2313 = vrot.slane %v1652, 6
        %v2314 = vor.u32 %v2312, %v2313
        %v2315 = vrot.slane %v2314, 4
        %v2316 = vrot.slane %v1666, 5
        %v2317 = vrot.slane %v1662, 6
        %v2318 = vor.u32 %v2316, %v2317
        %v2319 = vsel %vm2255, %v2315, %v2318
        %v2320 = vrot.slane %v2318, 4
        %v2322 = vshll.u32 %v1498, 16
        %v2324 = vrot.slane %v2322, 6
        %v2325 = vsel %vm2255, %v2320, %v2324
        %v2326 = vrot.slane %v1681, 5
        %v2327 = vrot.slane %v1677, 6
        %v2328 = vor.u32 %v2326, %v2327
        %v2329 = vrot.slane %v2328, 4
        %v2330 = vrot.slane %v1691, 5
        %v2331 = vrot.slane %v1687, 6
        %v2332 = vor.u32 %v2330, %v2331
        %v2333 = vsel %vm2255, %v2329, %v2332
        %v2334 = vrot.slane %v2332, 4
        %v2336 = vshll.u32 %v1502, 16
        %v2338 = vrot.slane %v2336, 6
        %v2339 = vsel %vm2255, %v2334, %v2338
        %v2340 = vrot.slane %v1706, 5
        %v2341 = vrot.slane %v1702, 6
        %v2342 = vor.u32 %v2340, %v2341
        %v2343 = vrot.slane %v2342, 4
        %v2344 = vrot.slane %v1716, 5
        %v2345 = vrot.slane %v1712, 6
        %v2346 = vor.u32 %v2344, %v2345
        %v2347 = vsel %vm2255, %v2343, %v2346
        %v2348 = vrot.slane %v2346, 4
        %v2350 = vshll.u32 %v1506, 16
        %v2352 = vrot.slane %v2350, 6
        %v2353 = vsel %vm2255, %v2348, %v2352
        %v2354 = vrot.slane %v1731, 5
        %v2355 = vrot.slane %v1727, 6
        %v2356 = vor.u32 %v2354, %v2355
        %v2357 = vrot.slane %v2356, 4
        %v2358 = vrot.slane %v1741, 5
        %v2359 = vrot.slane %v1737, 6
        %v2360 = vor.u32 %v2358, %v2359
        %v2361 = vsel %vm2255, %v2357, %v2360
        %v2362 = vrot.slane %v2360, 4
        %v2364 = vshll.u32 %v1510, 16
        %v2366 = vrot.slane %v2364, 6
        %v2367 = vsel %vm2255, %v2362, %v2366
        %v2368 = vrot.slane %v1756, 5
        %v2369 = vrot.slane %v1752, 6
        %v2370 = vor.u32 %v2368, %v2369
        %v2371 = vrot.slane %v2370, 4
        %v2372 = vrot.slane %v1766, 5
        %v2373 = vrot.slane %v1762, 6
        %v2374 = vor.u32 %v2372, %v2373
        %v2375 = vsel %vm2255, %v2371, %v2374
        %v2376 = vrot.slane %v2374, 4
        %v2378 = vshll.u32 %v1514, 16
        %v2380 = vrot.slane %v2378, 6
        %v2381 = vsel %vm2255, %v2376, %v2380
        %v2382 = vrot.slane %v1781, 5
        %v2383 = vrot.slane %v1777, 6
        %v2384 = vor.u32 %v2382, %v2383
        %v2385 = vrot.slane %v2384, 4
        %v2386 = vrot.slane %v1791, 5
        %v2387 = vrot.slane %v1787, 6
        %v2388 = vor.u32 %v2386, %v2387
        %v2389 = vsel %vm2255, %v2385, %v2388
        %v2390 = vrot.slane %v2388, 4
        %v2392 = vshll.u32 %v1518, 16
        %v2394 = vrot.slane %v2392, 6
        %v2395 = vsel %vm2255, %v2390, %v2394
        %v2396 = vrot.slane %v1806, 5
        %v2397 = vrot.slane %v1802, 6
        %v2398 = vor.u32 %v2396, %v2397
        %v2399 = vrot.slane %v2398, 4
        %v2400 = vrot.slane %v1816, 5
        %v2401 = vrot.slane %v1812, 6
        %v2402 = vor.u32 %v2400, %v2401
        %v2403 = vsel %vm2255, %v2399, %v2402
        %v2404 = vrot.slane %v2402, 4
        %v2406 = vshll.u32 %v1522, 16
        %v2408 = vrot.slane %v2406, 6
        %v2409 = vsel %vm2255, %v2404, %v2408
        %v2410 = vrot.slane %v1831, 5
        %v2411 = vrot.slane %v1827, 6
        %v2412 = vor.u32 %v2410, %v2411
        %v2413 = vrot.slane %v2412, 4
        %v2414 = vrot.slane %v1841, 5
        %v2415 = vrot.slane %v1837, 6
        %v2416 = vor.u32 %v2414, %v2415
        %v2417 = vsel %vm2255, %v2413, %v2416
        %v2418 = vrot.slane %v2416, 4
        %v2420 = vshll.u32 %v1526, 16
        %v2422 = vrot.slane %v2420, 6
        %v2423 = vsel %vm2255, %v2418, %v2422
        %v2424 = vrot.slane %v1856, 5
        %v2425 = vrot.slane %v1852, 6
        %v2426 = vor.u32 %v2424, %v2425
        %v2427 = vrot.slane %v2426, 4
        %v2428 = vrot.slane %v1866, 5
        %v2429 = vrot.slane %v1862, 6
        %v2430 = vor.u32 %v2428, %v2429
        %v2431 = vsel %vm2255, %v2427, %v2430
        %v2432 = vrot.slane %v2430, 4
        %v2434 = vshll.u32 %v1530, 16
        %v2436 = vrot.slane %v2434, 6
        %v2437 = vsel %vm2255, %v2432, %v2436
        %v2438 = vrot.slane %v1881, 5
        %v2439 = vrot.slane %v1877, 6
        %v2440 = vor.u32 %v2438, %v2439
        %v2441 = vrot.slane %v2440, 4
        %v2442 = vrot.slane %v1891, 5
        %v2443 = vrot.slane %v1887, 6
        %v2444 = vor.u32 %v2442, %v2443
        %v2445 = vsel %vm2255, %v2441, %v2444
        %v2446 = vrot.slane %v2444, 4
        %v2448 = vshll.u32 %v1534, 16
        %v2450 = vrot.slane %v2448, 6
        %v2451 = vsel %vm2255, %v2446, %v2450
        %v2452 = vrot.slane %v1906, 5
        %v2453 = vrot.slane %v1902, 6
        %v2454 = vor.u32 %v2452, %v2453
        %v2455 = vrot.slane %v2454, 4
        %v2456 = vrot.slane %v1916, 5
        %v2457 = vrot.slane %v1912, 6
        %v2458 = vor.u32 %v2456, %v2457
        %v2459 = vsel %vm2255, %v2455, %v2458
        %v2460 = vrot.slane %v2458, 4
        %v2462 = vshll.u32 %v1538, 16
        %v2464 = vrot.slane %v2462, 6
        %v2465 = vsel %vm2255, %v2460, %v2464
        %v2466 = vrot.slane %v1931, 5
        %v2467 = vrot.slane %v1927, 6
        %v2468 = vor.u32 %v2466, %v2467
        %v2469 = vrot.slane %v2468, 4
        %v2470 = vrot.slane %v1941, 5
        %v2471 = vrot.slane %v1937, 6
        %v2472 = vor.u32 %v2470, %v2471
        %v2473 = vsel %vm2255, %v2469, %v2472
        %v2474 = vrot.slane %v2472, 4
        %v2476 = vshll.u32 %v1542, 16
        %v2478 = vrot.slane %v2476, 6
        %v2479 = vsel %vm2255, %v2474, %v2478
        %v2528 = vmax.bf16 %v2205, %v2258
        %v2529 = vmax.bf16 %v2206, %v2263
        %v2530 = vmax.bf16 %v2207, %v2269
        %v2531 = vmax.bf16 %v2208, %v2272
        %v2532 = vmax.bf16 %v2209, %v2277
        %v2533 = vmax.bf16 %v2210, %v2283
        %v2534 = vmax.bf16 %v2211, %v2286
        %v2535 = vmax.bf16 %v2212, %v2291
        %v2536 = vmax.bf16 %v2213, %v2297
        %v2537 = vmax.bf16 %v2214, %v2300
        %v2538 = vmax.bf16 %v2215, %v2305
        %v2539 = vmax.bf16 %v2216, %v2311
        %v2540 = vmax.bf16 %v2217, %v2314
        %v2541 = vmax.bf16 %v2218, %v2319
        %v2542 = vmax.bf16 %v2219, %v2325
        %v2543 = vmax.bf16 %v2220, %v2328
        %v2544 = vmax.bf16 %v2221, %v2333
        %v2545 = vmax.bf16 %v2222, %v2339
        %v2546 = vmax.bf16 %v2223, %v2342
        %v2547 = vmax.bf16 %v2224, %v2347
        %v2548 = vmax.bf16 %v2225, %v2353
        %v2549 = vmax.bf16 %v2226, %v2356
        %v2550 = vmax.bf16 %v2227, %v2361
        %v2551 = vmax.bf16 %v2228, %v2367
        %v2552 = vmax.bf16 %v2229, %v2370
        %v2553 = vmax.bf16 %v2230, %v2375
        %v2554 = vmax.bf16 %v2231, %v2381
        %v2555 = vmax.bf16 %v2232, %v2384
        %v2556 = vmax.bf16 %v2233, %v2389
        %v2557 = vmax.bf16 %v2234, %v2395
        %v2558 = vmax.bf16 %v2235, %v2398
        %v2559 = vmax.bf16 %v2236, %v2403
        %v2560 = vmax.bf16 %v2237, %v2409
        %v2561 = vmax.bf16 %v2238, %v2412
        %v2562 = vmax.bf16 %v2239, %v2417
        %v2563 = vmax.bf16 %v2240, %v2423
        %v2564 = vmax.bf16 %v2241, %v2426
        %v2565 = vmax.bf16 %v2242, %v2431
        %v2566 = vmax.bf16 %v2243, %v2437
        %v2567 = vmax.bf16 %v2244, %v2440
        %v2568 = vmax.bf16 %v2245, %v2445
        %v2569 = vmax.bf16 %v2246, %v2451
        %v2570 = vmax.bf16 %v2247, %v2454
        %v2571 = vmax.bf16 %v2248, %v2459
        %v2572 = vmax.bf16 %v2249, %v2465
        %v2573 = vmax.bf16 %v2250, %v2468
        %v2574 = vmax.bf16 %v2251, %v2473
        %v2575 = vmax.bf16 %v2252, %v2479
        %vm2592 = vcmask 1041408
        %vm2593 = vcmask 1045508
        %vm2594 = vmor %vm2592, %vm2593
        %v2595 = vrot.slane %v1480, 6
        %v2596 = vrot.slane %v2595, 4
        %v2597 = vrot.slane %v1481, 6
        %v2598 = vsel %vm2594, %v2596, %v2597
        %v2599 = vrot.slane %v2597, 4
        %v2600 = vrot.slane %v1482, 6
        %v2601 = vsel %vm2594, %v2599, %v2600
        %v2602 = vrot.slane %v1484, 6
        %v2603 = vrot.slane %v2602, 4
        %v2604 = vrot.slane %v1485, 6
        %v2605 = vsel %vm2594, %v2603, %v2604
        %v2606 = vrot.slane %v2604, 4
        %v2607 = vrot.slane %v1486, 6
        %v2608 = vsel %vm2594, %v2606, %v2607
        %v2609 = vrot.slane %v1488, 6
        %v2610 = vrot.slane %v2609, 4
        %v2611 = vrot.slane %v1489, 6
        %v2612 = vsel %vm2594, %v2610, %v2611
        %v2613 = vrot.slane %v2611, 4
        %v2614 = vrot.slane %v1490, 6
        %v2615 = vsel %vm2594, %v2613, %v2614
        %v2616 = vrot.slane %v1492, 6
        %v2617 = vrot.slane %v2616, 4
        %v2618 = vrot.slane %v1493, 6
        %v2619 = vsel %vm2594, %v2617, %v2618
        %v2620 = vrot.slane %v2618, 4
        %v2621 = vrot.slane %v1494, 6
        %v2622 = vsel %vm2594, %v2620, %v2621
        %v2623 = vrot.slane %v1496, 6
        %v2624 = vrot.slane %v2623, 4
        %v2625 = vrot.slane %v1497, 6
        %v2626 = vsel %vm2594, %v2624, %v2625
        %v2627 = vrot.slane %v2625, 4
        %v2628 = vrot.slane %v1498, 6
        %v2629 = vsel %vm2594, %v2627, %v2628
        %v2630 = vrot.slane %v1500, 6
        %v2631 = vrot.slane %v2630, 4
        %v2632 = vrot.slane %v1501, 6
        %v2633 = vsel %vm2594, %v2631, %v2632
        %v2634 = vrot.slane %v2632, 4
        %v2635 = vrot.slane %v1502, 6
        %v2636 = vsel %vm2594, %v2634, %v2635
        %v2637 = vrot.slane %v1504, 6
        %v2638 = vrot.slane %v2637, 4
        %v2639 = vrot.slane %v1505, 6
        %v2640 = vsel %vm2594, %v2638, %v2639
        %v2641 = vrot.slane %v2639, 4
        %v2642 = vrot.slane %v1506, 6
        %v2643 = vsel %vm2594, %v2641, %v2642
        %v2644 = vrot.slane %v1508, 6
        %v2645 = vrot.slane %v2644, 4
        %v2646 = vrot.slane %v1509, 6
        %v2647 = vsel %vm2594, %v2645, %v2646
        %v2648 = vrot.slane %v2646, 4
        %v2649 = vrot.slane %v1510, 6
        %v2650 = vsel %vm2594, %v2648, %v2649
        %v2651 = vrot.slane %v1512, 6
        %v2652 = vrot.slane %v2651, 4
        %v2653 = vrot.slane %v1513, 6
        %v2654 = vsel %vm2594, %v2652, %v2653
        %v2655 = vrot.slane %v2653, 4
        %v2656 = vrot.slane %v1514, 6
        %v2657 = vsel %vm2594, %v2655, %v2656
        %v2658 = vrot.slane %v1516, 6
        %v2659 = vrot.slane %v2658, 4
        %v2660 = vrot.slane %v1517, 6
        %v2661 = vsel %vm2594, %v2659, %v2660
        %v2662 = vrot.slane %v2660, 4
        %v2663 = vrot.slane %v1518, 6
        %v2664 = vsel %vm2594, %v2662, %v2663
        %v2665 = vrot.slane %v1520, 6
        %v2666 = vrot.slane %v2665, 4
        %v2667 = vrot.slane %v1521, 6
        %v2668 = vsel %vm2594, %v2666, %v2667
        %v2669 = vrot.slane %v2667, 4
        %v2670 = vrot.slane %v1522, 6
        %v2671 = vsel %vm2594, %v2669, %v2670
        %v2672 = vrot.slane %v1524, 6
        %v2673 = vrot.slane %v2672, 4
        %v2674 = vrot.slane %v1525, 6
        %v2675 = vsel %vm2594, %v2673, %v2674
        %v2676 = vrot.slane %v2674, 4
        %v2677 = vrot.slane %v1526, 6
        %v2678 = vsel %vm2594, %v2676, %v2677
        %v2679 = vrot.slane %v1528, 6
        %v2680 = vrot.slane %v2679, 4
        %v2681 = vrot.slane %v1529, 6
        %v2682 = vsel %vm2594, %v2680, %v2681
        %v2683 = vrot.slane %v2681, 4
        %v2684 = vrot.slane %v1530, 6
        %v2685 = vsel %vm2594, %v2683, %v2684
        %v2686 = vrot.slane %v1532, 6
        %v2687 = vrot.slane %v2686, 4
        %v2688 = vrot.slane %v1533, 6
        %v2689 = vsel %vm2594, %v2687, %v2688
        %v2690 = vrot.slane %v2688, 4
        %v2691 = vrot.slane %v1534, 6
        %v2692 = vsel %vm2594, %v2690, %v2691
        %v2693 = vrot.slane %v1536, 6
        %v2694 = vrot.slane %v2693, 4
        %v2695 = vrot.slane %v1537, 6
        %v2696 = vsel %vm2594, %v2694, %v2695
        %v2697 = vrot.slane %v2695, 4
        %v2698 = vrot.slane %v1538, 6
        %v2699 = vsel %vm2594, %v2697, %v2698
        %v2700 = vrot.slane %v1540, 6
        %v2701 = vrot.slane %v2700, 4
        %v2702 = vrot.slane %v1541, 6
        %v2703 = vsel %vm2594, %v2701, %v2702
        %v2704 = vrot.slane %v2702, 4
        %v2705 = vrot.slane %v1542, 6
        %v2706 = vsel %vm2594, %v2704, %v2705
        %v2755 = vmax.bf16 %v2528, %v2595
        %v2756 = vmax.bf16 %v2529, %v2598
        %v2757 = vmax.bf16 %v2530, %v2601
        %v2758 = vmax.bf16 %v2531, %v2602
        %v2759 = vmax.bf16 %v2532, %v2605
        %v2760 = vmax.bf16 %v2533, %v2608
        %v2761 = vmax.bf16 %v2534, %v2609
        %v2762 = vmax.bf16 %v2535, %v2612
        %v2763 = vmax.bf16 %v2536, %v2615
        %v2764 = vmax.bf16 %v2537, %v2616
        %v2765 = vmax.bf16 %v2538, %v2619
        %v2766 = vmax.bf16 %v2539, %v2622
        %v2767 = vmax.bf16 %v2540, %v2623
        %v2768 = vmax.bf16 %v2541, %v2626
        %v2769 = vmax.bf16 %v2542, %v2629
        %v2770 = vmax.bf16 %v2543, %v2630
        %v2771 = vmax.bf16 %v2544, %v2633
        %v2772 = vmax.bf16 %v2545, %v2636
        %v2773 = vmax.bf16 %v2546, %v2637
        %v2774 = vmax.bf16 %v2547, %v2640
        %v2775 = vmax.bf16 %v2548, %v2643
        %v2776 = vmax.bf16 %v2549, %v2644
        %v2777 = vmax.bf16 %v2550, %v2647
        %v2778 = vmax.bf16 %v2551, %v2650
        %v2779 = vmax.bf16 %v2552, %v2651
        %v2780 = vmax.bf16 %v2553, %v2654
        %v2781 = vmax.bf16 %v2554, %v2657
        %v2782 = vmax.bf16 %v2555, %v2658
        %v2783 = vmax.bf16 %v2556, %v2661
        %v2784 = vmax.bf16 %v2557, %v2664
        %v2785 = vmax.bf16 %v2558, %v2665
        %v2786 = vmax.bf16 %v2559, %v2668
        %v2787 = vmax.bf16 %v2560, %v2671
        %v2788 = vmax.bf16 %v2561, %v2672
        %v2789 = vmax.bf16 %v2562, %v2675
        %v2790 = vmax.bf16 %v2563, %v2678
        %v2791 = vmax.bf16 %v2564, %v2679
        %v2792 = vmax.bf16 %v2565, %v2682
        %v2793 = vmax.bf16 %v2566, %v2685
        %v2794 = vmax.bf16 %v2567, %v2686
        %v2795 = vmax.bf16 %v2568, %v2689
        %v2796 = vmax.bf16 %v2569, %v2692
        %v2797 = vmax.bf16 %v2570, %v2693
        %v2798 = vmax.bf16 %v2571, %v2696
        %v2799 = vmax.bf16 %v2572, %v2699
        %v2800 = vmax.bf16 %v2573, %v2700
        %v2801 = vmax.bf16 %v2574, %v2703
        %v2802 = vmax.bf16 %v2575, %v2706
        %vm2851 = vcmask 1040384
        %vm2852 = vcmask 1044484
        %vm2853 = vmor %vm2851, %vm2852
        %v2854 = vrot.slane %v2755, 7
        %v2855 = vrot.slane %v2854, 4
        %v2856 = vrot.slane %v2756, 7
        %v2857 = vsel %vm2853, %v2855, %v2856
        %v2858 = vrot.slane %v2856, 4
        %v2859 = vrot.slane %v2757, 7
        %v2860 = vsel %vm2853, %v2858, %v2859
        %v2861 = vrot.slane %v2758, 7
        %v2862 = vrot.slane %v2861, 4
        %v2863 = vrot.slane %v2759, 7
        %v2864 = vsel %vm2853, %v2862, %v2863
        %v2865 = vrot.slane %v2863, 4
        %v2866 = vrot.slane %v2760, 7
        %v2867 = vsel %vm2853, %v2865, %v2866
        %v2868 = vrot.slane %v2761, 7
        %v2869 = vrot.slane %v2868, 4
        %v2870 = vrot.slane %v2762, 7
        %v2871 = vsel %vm2853, %v2869, %v2870
        %v2872 = vrot.slane %v2870, 4
        %v2873 = vrot.slane %v2763, 7
        %v2874 = vsel %vm2853, %v2872, %v2873
        %v2875 = vrot.slane %v2764, 7
        %v2876 = vrot.slane %v2875, 4
        %v2877 = vrot.slane %v2765, 7
        %v2878 = vsel %vm2853, %v2876, %v2877
        %v2879 = vrot.slane %v2877, 4
        %v2880 = vrot.slane %v2766, 7
        %v2881 = vsel %vm2853, %v2879, %v2880
        %v2882 = vrot.slane %v2767, 7
        %v2883 = vrot.slane %v2882, 4
        %v2884 = vrot.slane %v2768, 7
        %v2885 = vsel %vm2853, %v2883, %v2884
        %v2886 = vrot.slane %v2884, 4
        %v2887 = vrot.slane %v2769, 7
        %v2888 = vsel %vm2853, %v2886, %v2887
        %v2889 = vrot.slane %v2770, 7
        %v2890 = vrot.slane %v2889, 4
        %v2891 = vrot.slane %v2771, 7
        %v2892 = vsel %vm2853, %v2890, %v2891
        %v2893 = vrot.slane %v2891, 4
        %v2894 = vrot.slane %v2772, 7
        %v2895 = vsel %vm2853, %v2893, %v2894
        %v2896 = vrot.slane %v2773, 7
        %v2897 = vrot.slane %v2896, 4
        %v2898 = vrot.slane %v2774, 7
        %v2899 = vsel %vm2853, %v2897, %v2898
        %v2900 = vrot.slane %v2898, 4
        %v2901 = vrot.slane %v2775, 7
        %v2902 = vsel %vm2853, %v2900, %v2901
        %v2903 = vrot.slane %v2776, 7
        %v2904 = vrot.slane %v2903, 4
        %v2905 = vrot.slane %v2777, 7
        %v2906 = vsel %vm2853, %v2904, %v2905
        %v2907 = vrot.slane %v2905, 4
        %v2908 = vrot.slane %v2778, 7
        %v2909 = vsel %vm2853, %v2907, %v2908
        %v2910 = vrot.slane %v2779, 7
        %v2911 = vrot.slane %v2910, 4
        %v2912 = vrot.slane %v2780, 7
        %v2913 = vsel %vm2853, %v2911, %v2912
        %v2914 = vrot.slane %v2912, 4
        %v2915 = vrot.slane %v2781, 7
        %v2916 = vsel %vm2853, %v2914, %v2915
        %v2917 = vrot.slane %v2782, 7
        %v2918 = vrot.slane %v2917, 4
        %v2919 = vrot.slane %v2783, 7
        %v2920 = vsel %vm2853, %v2918, %v2919
        %v2921 = vrot.slane %v2919, 4
        %v2922 = vrot.slane %v2784, 7
        %v2923 = vsel %vm2853, %v2921, %v2922
        %v2924 = vrot.slane %v2785, 7
        %v2925 = vrot.slane %v2924, 4
        %v2926 = vrot.slane %v2786, 7
        %v2927 = vsel %vm2853, %v2925, %v2926
        %v2928 = vrot.slane %v2926, 4
        %v2929 = vrot.slane %v2787, 7
        %v2930 = vsel %vm2853, %v2928, %v2929
        %v2931 = vrot.slane %v2788, 7
        %v2932 = vrot.slane %v2931, 4
        %v2933 = vrot.slane %v2789, 7
        %v2934 = vsel %vm2853, %v2932, %v2933
        %v2935 = vrot.slane %v2933, 4
        %v2936 = vrot.slane %v2790, 7
        %v2937 = vsel %vm2853, %v2935, %v2936
        %v2938 = vrot.slane %v2791, 7
        %v2939 = vrot.slane %v2938, 4
        %v2940 = vrot.slane %v2792, 7
        %v2941 = vsel %vm2853, %v2939, %v2940
        %v2942 = vrot.slane %v2940, 4
        %v2943 = vrot.slane %v2793, 7
        %v2944 = vsel %vm2853, %v2942, %v2943
        %v2945 = vrot.slane %v2794, 7
        %v2946 = vrot.slane %v2945, 4
        %v2947 = vrot.slane %v2795, 7
        %v2948 = vsel %vm2853, %v2946, %v2947
        %v2949 = vrot.slane %v2947, 4
        %v2950 = vrot.slane %v2796, 7
        %v2951 = vsel %vm2853, %v2949, %v2950
        %v2952 = vrot.slane %v2797, 7
        %v2953 = vrot.slane %v2952, 4
        %v2954 = vrot.slane %v2798, 7
        %v2955 = vsel %vm2853, %v2953, %v2954
        %v2956 = vrot.slane %v2954, 4
        %v2957 = vrot.slane %v2799, 7
        %v2958 = vsel %vm2853, %v2956, %v2957
        %v2959 = vrot.slane %v2800, 7
        %v2960 = vrot.slane %v2959, 4
        %v2961 = vrot.slane %v2801, 7
        %v2962 = vsel %vm2853, %v2960, %v2961
        %v2963 = vrot.slane %v2961, 4
        %v2964 = vrot.slane %v2802, 7
        %v2965 = vsel %vm2853, %v2963, %v2964
        %v2966 = vld [vmem:[#allocation11 + $0x40] sm:$0xf]
        %v2967 = vld [vmem:[#allocation11 + $0x44] sm:$0xf]
        %v2968 = vld [vmem:[#allocation11 + $0x48] sm:$0xf]
        %v2969 = vld [vmem:[#allocation11 + $0x4c] sm:$0xf]
        %v2970 = vld [vmem:[#allocation11 + $0x50] sm:$0xf]
        %v2971 = vld [vmem:[#allocation11 + $0x54] sm:$0xf]
        %v2972 = vld [vmem:[#allocation11 + $0x58] sm:$0xf]
        %v2973 = vld [vmem:[#allocation11 + $0x5c] sm:$0xf]
        %v2974 = vld [vmem:[#allocation11 + $0x60] sm:$0xf]
        %v2975 = vld [vmem:[#allocation11 + $0x64] sm:$0xf]
        %v2976 = vld [vmem:[#allocation11 + $0x68] sm:$0xf]
        %v2977 = vld [vmem:[#allocation11 + $0x6c] sm:$0xf]
        %v2978 = vld [vmem:[#allocation11 + $0x70] sm:$0xf]
        %v2979 = vld [vmem:[#allocation11 + $0x74] sm:$0xf]
        %v2980 = vld [vmem:[#allocation11 + $0x78] sm:$0xf]
        %v2981 = vld [vmem:[#allocation11 + $0x7c] sm:$0xf]
        %v2982 = vunpack.c.l.b16 %v2857
        %v2983 = vunpack.c.l.b16 %v2860
        %v2984 = vunpack.c.l.b16 %v2864
        %v2985 = vunpack.c.l.b16 %v2867
        %v2986 = vunpack.c.l.b16 %v2871
        %v2987 = vunpack.c.l.b16 %v2874
        %v2988 = vunpack.c.l.b16 %v2878
        %v2989 = vunpack.c.l.b16 %v2881
        %v2990 = vunpack.c.l.b16 %v2885
        %v2991 = vunpack.c.l.b16 %v2888
        %v2992 = vunpack.c.l.b16 %v2892
        %v2993 = vunpack.c.l.b16 %v2895
        %v2994 = vunpack.c.l.b16 %v2899
        %v2995 = vunpack.c.l.b16 %v2902
        %v2996 = vunpack.c.l.b16 %v2906
        %v2997 = vunpack.c.l.b16 %v2909
        %v2998 = vunpack.c.l.b16 %v2913
        %v2999 = vunpack.c.l.b16 %v2916
        %v3000 = vunpack.c.l.b16 %v2920
        %v3001 = vunpack.c.l.b16 %v2923
        %v3002 = vunpack.c.l.b16 %v2927
        %v3003 = vunpack.c.l.b16 %v2930
        %v3004 = vunpack.c.l.b16 %v2934
        %v3005 = vunpack.c.l.b16 %v2937
        %v3006 = vunpack.c.l.b16 %v2941
        %v3007 = vunpack.c.l.b16 %v2944
        %v3008 = vunpack.c.l.b16 %v2948
        %v3009 = vunpack.c.l.b16 %v2951
        %v3010 = vunpack.c.l.b16 %v2955
        %v3011 = vunpack.c.l.b16 %v2958
        %v3012 = vunpack.c.l.b16 %v2962
        %v3013 = vunpack.c.l.b16 %v2965
        %v3014 = vpack.c.b16 %v2983, %v2982
        %v3015 = vpack.c.b16 %v2985, %v2984
        %v3016 = vpack.c.b16 %v2987, %v2986
        %v3017 = vpack.c.b16 %v2989, %v2988
        %v3018 = vpack.c.b16 %v2991, %v2990
        %v3019 = vpack.c.b16 %v2993, %v2992
        %v3020 = vpack.c.b16 %v2995, %v2994
        %v3021 = vpack.c.b16 %v2997, %v2996
        %v3022 = vpack.c.b16 %v2999, %v2998
        %v3023 = vpack.c.b16 %v3001, %v3000
        %v3024 = vpack.c.b16 %v3003, %v3002
        %v3025 = vpack.c.b16 %v3005, %v3004
        %v3026 = vpack.c.b16 %v3007, %v3006
        %v3027 = vpack.c.b16 %v3009, %v3008
        %v3028 = vpack.c.b16 %v3011, %v3010
        %v3029 = vpack.c.b16 %v3013, %v3012
        %v3062 = vunpack.c.l.b16 %v2966
        %v3063 = vunpack.c.l.b16 %v2967
        %v3064 = vunpack.c.l.b16 %v2968
        %v3065 = vunpack.c.l.b16 %v2969
        %v3066 = vunpack.c.l.b16 %v2970
        %v3067 = vunpack.c.l.b16 %v2971
        %v3068 = vunpack.c.l.b16 %v2972
        %v3069 = vunpack.c.l.b16 %v2973
        %v3070 = vunpack.c.l.b16 %v2974
        %v3071 = vunpack.c.l.b16 %v2975
        %v3072 = vunpack.c.l.b16 %v2976
        %v3073 = vunpack.c.l.b16 %v2977
        %v3074 = vunpack.c.l.b16 %v2978
        %v3075 = vunpack.c.l.b16 %v2979
        %v3076 = vunpack.c.l.b16 %v2980
        %v3077 = vunpack.c.l.b16 %v2981
        %v3078 = vpack.c.b16 %v3063, %v3062
        %v3079 = vpack.c.b16 %v3065, %v3064
        %v3080 = vpack.c.b16 %v3067, %v3066
        %v3081 = vpack.c.b16 %v3069, %v3068
        %v3082 = vpack.c.b16 %v3071, %v3070
        %v3083 = vpack.c.b16 %v3073, %v3072
        %v3084 = vpack.c.b16 %v3075, %v3074
        %v3085 = vpack.c.b16 %v3077, %v3076
        %3094 = vmatprep.subr.bf16.mxu0 0
        %3095 = vmatpush1.bf16.msra.mxu0 %v3078
        %3096 = vmatprep.subr.bf16.mxu0 0
        %3097 = vmatpush1.bf16.msra.mxu0 %v3079
        %3098 = vmatprep.subr.bf16.mxu0 0
        %3099 = vmatpush1.bf16.msra.mxu0 %v3080
        %3100 = vmatprep.subr.bf16.mxu0 0
        %3101 = vmatpush1.bf16.msra.mxu0 %v3081
        %3102 = vmatprep.subr.bf16.mxu0 0
        %3103 = vmatpush1.bf16.msra.mxu0 %v3082
        %3104 = vmatprep.subr.bf16.mxu0 0
        %3105 = vmatpush1.bf16.msra.mxu0 %v3083
        %3106 = vmatprep.subr.bf16.mxu0 0
        %3107 = vmatpush1.bf16.msra.mxu0 %v3084
        %3108 = vmatprep.subr.bf16.mxu0 0
        %3109 = vmatpush1.bf16.msra.mxu0 %v3085
        %3110 = vmatprep.subr.bf16.mxu0 0
        %3111 = vmatpush1.bf16.msra.mxu0 0
        %3112 = vmatprep.subr.bf16.mxu0 0
        %3113 = vmatpush1.bf16.msra.mxu0 0
        %3114 = vmatprep.subr.bf16.mxu0 0
        %3115 = vmatpush1.bf16.msra.mxu0 0
        %3116 = vmatprep.subr.bf16.mxu0 0
        %3117 = vmatpush1.bf16.msra.mxu0 0
        %3118 = vmatprep.subr.bf16.mxu0 0
        %3119 = vmatpush1.bf16.msra.mxu0 0
        %3120 = vmatprep.subr.bf16.mxu0 0
        %3121 = vmatpush1.bf16.msra.mxu0 0
        %3122 = vmatprep.subr.bf16.mxu0 0
        %3123 = vmatpush1.bf16.msra.mxu0 0
        %3124 = vmatprep.subr.bf16.mxu0 0
        %3125 = vmatpush1.bf16.msra.mxu0 0
        %3126 = vmatprep.mubr.bf16.mxu0 0
        %3127 = vmatmul.mubr.bf16.gmra.mrb[0].mxu0 %v3014
        %v3128 = vpop.f32.mrb[0].mxu0
        %v3129 = vadd.f32 0.0, %v3128
        %v3130 = vpop.f32.mrb[0].mxu0
        %v3131 = vpop.f32.mrb[0].mxu0
        %v3132 = vadd.f32 0.0, %v3131
        %v3133 = vpop.f32.mrb[0].mxu0
        %3134 = vmatprep.mubr.bf16.mxu0 0
        %3135 = vmatmul.mubr.bf16.gmra.mrb[0].mxu0 %v3015
        %v3136 = vpop.f32.mrb[0].mxu0
        %v3137 = vadd.f32 0.0, %v3136
        %v3138 = vpop.f32.mrb[0].mxu0
        %v3139 = vpop.f32.mrb[0].mxu0
        %v3140 = vadd.f32 0.0, %v3139
        %v3141 = vpop.f32.mrb[0].mxu0
        %3142 = vmatprep.mubr.bf16.mxu0 0
        %3143 = vmatmul.mubr.bf16.gmra.mrb[0].mxu0 %v3016
        %v3144 = vpop.f32.mrb[0].mxu0
        %v3145 = vadd.f32 0.0, %v3144
        %v3146 = vpop.f32.mrb[0].mxu0
        %v3147 = vpop.f32.mrb[0].mxu0
        %v3148 = vadd.f32 0.0, %v3147
        %v3149 = vpop.f32.mrb[0].mxu0
        %3150 = vmatprep.mubr.bf16.mxu0 0
        %3151 = vmatmul.mubr.bf16.gmra.mrb[0].mxu0 %v3017
        %v3152 = vpop.f32.mrb[0].mxu0
        %v3153 = vadd.f32 0.0, %v3152
        %v3154 = vpop.f32.mrb[0].mxu0
        %v3155 = vpop.f32.mrb[0].mxu0
        %v3156 = vadd.f32 0.0, %v3155
        %v3157 = vpop.f32.mrb[0].mxu0
        %3158 = vmatprep.mubr.bf16.mxu0 0
        %3159 = vmatmul.mubr.bf16.gmra.mrb[0].mxu0 %v3018
        %v3160 = vpop.f32.mrb[0].mxu0
        %v3161 = vadd.f32 0.0, %v3160
        %v3162 = vpop.f32.mrb[0].mxu0
        %v3163 = vpop.f32.mrb[0].mxu0
        %v3164 = vadd.f32 0.0, %v3163
        %v3165 = vpop.f32.mrb[0].mxu0
        %3166 = vmatprep.mubr.bf16.mxu0 0
        %3167 = vmatmul.mubr.bf16.gmra.mrb[0].mxu0 %v3019
        %v3168 = vpop.f32.mrb[0].mxu0
        %v3169 = vadd.f32 0.0, %v3168
        %v3170 = vpop.f32.mrb[0].mxu0
        %v3171 = vpop.f32.mrb[0].mxu0
        %v3172 = vadd.f32 0.0, %v3171
        %v3173 = vpop.f32.mrb[0].mxu0
        %3174 = vmatprep.mubr.bf16.mxu0 0
        %3175 = vmatmul.mubr.bf16.gmra.mrb[0].mxu0 %v3020
        %v3176 = vpop.f32.mrb[0].mxu0
        %v3177 = vadd.f32 0.0, %v3176
        %v3178 = vpop.f32.mrb[0].mxu0
        %v3179 = vpop.f32.mrb[0].mxu0
        %v3180 = vadd.f32 0.0, %v3179
        %v3181 = vpop.f32.mrb[0].mxu0
        %3182 = vmatprep.mubr.bf16.mxu0 0
        %3183 = vmatmul.mubr.bf16.gmra.mrb[0].mxu0 %v3021
        %v3184 = vpop.f32.mrb[0].mxu0
        %v3185 = vadd.f32 0.0, %v3184
        %v3186 = vpop.f32.mrb[0].mxu0
        %v3187 = vpop.f32.mrb[0].mxu0
        %v3188 = vadd.f32 0.0, %v3187
        %v3189 = vpop.f32.mrb[0].mxu0
        %3190 = vmatprep.mubr.bf16.mxu0 0
        %3191 = vmatmul.mubr.bf16.gmra.mrb[0].mxu0 %v3022
        %v3192 = vpop.f32.mrb[0].mxu0
        %v3193 = vadd.f32 0.0, %v3192
        %v3194 = vpop.f32.mrb[0].mxu0
        %v3195 = vpop.f32.mrb[0].mxu0
        %v3196 = vadd.f32 0.0, %v3195
        %v3197 = vpop.f32.mrb[0].mxu0
        %3198 = vmatprep.mubr.bf16.mxu0 0
        %3199 = vmatmul.mubr.bf16.gmra.mrb[0].mxu0 %v3023
        %v3200 = vpop.f32.mrb[0].mxu0
        %v3201 = vadd.f32 0.0, %v3200
        %v3202 = vpop.f32.mrb[0].mxu0
        %v3203 = vpop.f32.mrb[0].mxu0
        %v3204 = vadd.f32 0.0, %v3203
        %v3205 = vpop.f32.mrb[0].mxu0
        %3206 = vmatprep.mubr.bf16.mxu0 0
        %3207 = vmatmul.mubr.bf16.gmra.mrb[0].mxu0 %v3024
        %v3208 = vpop.f32.mrb[0].mxu0
        %v3209 = vadd.f32 0.0, %v3208
        %v3210 = vpop.f32.mrb[0].mxu0
        %v3211 = vpop.f32.mrb[0].mxu0
        %v3212 = vadd.f32 0.0, %v3211
        %v3213 = vpop.f32.mrb[0].mxu0
        %3214 = vmatprep.mubr.bf16.mxu0 0
        %3215 = vmatmul.mubr.bf16.gmra.mrb[0].mxu0 %v3025
        %v3216 = vpop.f32.mrb[0].mxu0
        %v3217 = vadd.f32 0.0, %v3216
        %v3218 = vpop.f32.mrb[0].mxu0
        %v3219 = vpop.f32.mrb[0].mxu0
        %v3220 = vadd.f32 0.0, %v3219
        %v3221 = vpop.f32.mrb[0].mxu0
        %3222 = vmatprep.mubr.bf16.mxu0 0
        %3223 = vmatmul.mubr.bf16.gmra.mrb[0].mxu0 %v3026
        %v3224 = vpop.f32.mrb[0].mxu0
        %v3225 = vadd.f32 0.0, %v3224
        %v3226 = vpop.f32.mrb[0].mxu0
        %v3227 = vpop.f32.mrb[0].mxu0
        %v3228 = vadd.f32 0.0, %v3227
        %v3229 = vpop.f32.mrb[0].mxu0
        %3230 = vmatprep.mubr.bf16.mxu0 0
        %3231 = vmatmul.mubr.bf16.gmra.mrb[0].mxu0 %v3027
        %v3232 = vpop.f32.mrb[0].mxu0
        %v3233 = vadd.f32 0.0, %v3232
        %v3234 = vpop.f32.mrb[0].mxu0
        %v3235 = vpop.f32.mrb[0].mxu0
        %v3236 = vadd.f32 0.0, %v3235
        %v3237 = vpop.f32.mrb[0].mxu0
        %3238 = vmatprep.mubr.bf16.mxu0 0
        %3239 = vmatmul.mubr.bf16.gmra.mrb[0].mxu0 %v3028
        %v3240 = vpop.f32.mrb[0].mxu0
        %v3241 = vadd.f32 0.0, %v3240
        %v3242 = vpop.f32.mrb[0].mxu0
        %v3243 = vpop.f32.mrb[0].mxu0
        %v3244 = vadd.f32 0.0, %v3243
        %v3245 = vpop.f32.mrb[0].mxu0
        %3246 = vmatprep.mubr.bf16.mxu0 0
        %3247 = vmatmul.mubr.bf16.gmra.mrb[0].mxu0 %v3029
        %v3248 = vpop.f32.mrb[0].mxu0
        %v3249 = vadd.f32 0.0, %v3248
        %v3250 = vpop.f32.mrb[0].mxu0
        %v3251 = vpop.f32.mrb[0].mxu0
        %v3252 = vadd.f32 0.0, %v3251
        %v3253 = vpop.f32.mrb[0].mxu0
        %3254 = vdwg.mxu0
        %v3271 = vunpack.c.l.b16 %v1046
        %v3272 = vunpack.c.l.b16 %v1047
        %v3273 = vunpack.c.l.b16 %v1048
        %v3274 = vunpack.c.l.b16 %v1049
        %v3275 = vunpack.c.l.b16 %v1050
        %v3276 = vunpack.c.l.b16 %v1051
        %v3277 = vunpack.c.l.b16 %v1052
        %v3278 = vunpack.c.l.b16 %v1053
        %v3279 = vunpack.c.l.b16 %v1054
        %v3280 = vunpack.c.l.b16 %v1055
        %v3281 = vunpack.c.l.b16 %v1056
        %v3282 = vunpack.c.l.b16 %v1057
        %v3283 = vunpack.c.l.b16 %v1058
        %v3284 = vunpack.c.l.b16 %v1059
        %v3285 = vunpack.c.l.b16 %v1060
        %v3286 = vunpack.c.l.b16 %v1061
        %v3287 = vpack.c.b16 %v3272, %v3271
        %v3288 = vpack.c.b16 %v3274, %v3273
        %v3289 = vpack.c.b16 %v3276, %v3275
        %v3290 = vpack.c.b16 %v3278, %v3277
        %v3291 = vpack.c.b16 %v3280, %v3279
        %v3292 = vpack.c.b16 %v3282, %v3281
        %v3293 = vpack.c.b16 %v3284, %v3283
        %v3294 = vpack.c.b16 %v3286, %v3285
        %3303 = vmatprep.subr.bf16.mxu0 0
        %3304 = vmatpush1.bf16.msra.mxu0 %v3287
        %3305 = vmatprep.subr.bf16.mxu0 0
        %3306 = vmatpush1.bf16.msra.mxu0 %v3288
        %3307 = vmatprep.subr.bf16.mxu0 0
        %3308 = vmatpush1.bf16.msra.mxu0 %v3289
        %3309 = vmatprep.subr.bf16.mxu0 0
        %3310 = vmatpush1.bf16.msra.mxu0 %v3290
        %3311 = vmatprep.subr.bf16.mxu0 0
        %3312 = vmatpush1.bf16.msra.mxu0 %v3291
        %3313 = vmatprep.subr.bf16.mxu0 0
        %3314 = vmatpush1.bf16.msra.mxu0 %v3292
        %3315 = vmatprep.subr.bf16.mxu0 0
        %3316 = vmatpush1.bf16.msra.mxu0 %v3293
        %3317 = vmatprep.subr.bf16.mxu0 0
        %3318 = vmatpush1.bf16.msra.mxu0 %v3294
        %3319 = vmatprep.subr.bf16.mxu0 0
        %3320 = vmatpush1.bf16.msra.mxu0 0
        %3321 = vmatprep.subr.bf16.mxu0 0
        %3322 = vmatpush1.bf16.msra.mxu0 0
        %3323 = vmatprep.subr.bf16.mxu0 0
        %3324 = vmatpush1.bf16.msra.mxu0 0
        %3325 = vmatprep.subr.bf16.mxu0 0
        %3326 = vmatpush1.bf16.msra.mxu0 0
        %3327 = vmatprep.subr.bf16.mxu0 0
        %3328 = vmatpush1.bf16.msra.mxu0 0
        %3329 = vmatprep.subr.bf16.mxu0 0
        %3330 = vmatpush1.bf16.msra.mxu0 0
        %3331 = vmatprep.subr.bf16.mxu0 0
        %3332 = vmatpush1.bf16.msra.mxu0 0
        %3333 = vmatprep.subr.bf16.mxu0 0
        %3334 = vmatpush1.bf16.msra.mxu0 0
        %3335 = vmatprep.mubr.bf16.mxu0 0
        %3336 = vmatmul.mubr.bf16.gmra.mrb[0].mxu0 %v1030
        %v3337 = vpop.f32.mrb[0].mxu0
        %v3338 = vadd.f32 %v3129, %v3337
        %v3339 = vpop.f32.mrb[0].mxu0
        %v3340 = vpop.f32.mrb[0].mxu0
        %v3341 = vadd.f32 %v3132, %v3340
        %v3342 = vpop.f32.mrb[0].mxu0
        %3343 = vmatprep.mubr.bf16.mxu0 0
        %3344 = vmatmul.mubr.bf16.gmra.mrb[0].mxu0 %v1031
        %v3345 = vpop.f32.mrb[0].mxu0
        %v3346 = vadd.f32 %v3137, %v3345
        %v3347 = vpop.f32.mrb[0].mxu0
        %v3348 = vpop.f32.mrb[0].mxu0
        %v3349 = vadd.f32 %v3140, %v3348
        %v3350 = vpop.f32.mrb[0].mxu0
        %3351 = vmatprep.mubr.bf16.mxu0 0
        %3352 = vmatmul.mubr.bf16.gmra.mrb[0].mxu0 %v1032
        %v3353 = vpop.f32.mrb[0].mxu0
        %v3354 = vadd.f32 %v3145, %v3353
        %v3355 = vpop.f32.mrb[0].mxu0
        %v3356 = vpop.f32.mrb[0].mxu0
        %v3357 = vadd.f32 %v3148, %v3356
        %v3358 = vpop.f32.mrb[0].mxu0
        %3359 = vmatprep.mubr.bf16.mxu0 0
        %3360 = vmatmul.mubr.bf16.gmra.mrb[0].mxu0 %v1033
        %v3361 = vpop.f32.mrb[0].mxu0
        %v3362 = vadd.f32 %v3153, %v3361
        %v3363 = vpop.f32.mrb[0].mxu0
        %v3364 = vpop.f32.mrb[0].mxu0
        %v3365 = vadd.f32 %v3156, %v3364
        %v3366 = vpop.f32.mrb[0].mxu0
        %3367 = vmatprep.mubr.bf16.mxu0 0
        %3368 = vmatmul.mubr.bf16.gmra.mrb[0].mxu0 %v1034
        %v3369 = vpop.f32.mrb[0].mxu0
        %v3370 = vadd.f32 %v3161, %v3369
        %v3371 = vpop.f32.mrb[0].mxu0
        %v3372 = vpop.f32.mrb[0].mxu0
        %v3373 = vadd.f32 %v3164, %v3372
        %v3374 = vpop.f32.mrb[0].mxu0
        %3375 = vmatprep.mubr.bf16.mxu0 0
        %3376 = vmatmul.mubr.bf16.gmra.mrb[0].mxu0 %v1035
        %v3377 = vpop.f32.mrb[0].mxu0
        %v3378 = vadd.f32 %v3169, %v3377
        %v3379 = vpop.f32.mrb[0].mxu0
        %v3380 = vpop.f32.mrb[0].mxu0
        %v3381 = vadd.f32 %v3172, %v3380
        %v3382 = vpop.f32.mrb[0].mxu0
        %3383 = vmatprep.mubr.bf16.mxu0 0
        %3384 = vmatmul.mubr.bf16.gmra.mrb[0].mxu0 %v1036
        %v3385 = vpop.f32.mrb[0].mxu0
        %v3386 = vadd.f32 %v3177, %v3385
        %v3387 = vpop.f32.mrb[0].mxu0
        %v3388 = vpop.f32.mrb[0].mxu0
        %v3389 = vadd.f32 %v3180, %v3388
        %v3390 = vpop.f32.mrb[0].mxu0
        %3391 = vmatprep.mubr.bf16.mxu0 0
        %3392 = vmatmul.mubr.bf16.gmra.mrb[0].mxu0 %v1037
        %v3393 = vpop.f32.mrb[0].mxu0
        %v3394 = vadd.f32 %v3185, %v3393
        %v3395 = vpop.f32.mrb[0].mxu0
        %v3396 = vpop.f32.mrb[0].mxu0
        %v3397 = vadd.f32 %v3188, %v3396
        %v3398 = vpop.f32.mrb[0].mxu0
        %3399 = vmatprep.mubr.bf16.mxu0 0
        %3400 = vmatmul.mubr.bf16.gmra.mrb[0].mxu0 %v1038
        %v3401 = vpop.f32.mrb[0].mxu0
        %v3402 = vadd.f32 %v3193, %v3401
        %v3403 = vpop.f32.mrb[0].mxu0
        %v3404 = vpop.f32.mrb[0].mxu0
        %v3405 = vadd.f32 %v3196, %v3404
        %v3406 = vpop.f32.mrb[0].mxu0
        %3407 = vmatprep.mubr.bf16.mxu0 0
        %3408 = vmatmul.mubr.bf16.gmra.mrb[0].mxu0 %v1039
        %v3409 = vpop.f32.mrb[0].mxu0
        %v3410 = vadd.f32 %v3201, %v3409
        %v3411 = vpop.f32.mrb[0].mxu0
        %v3412 = vpop.f32.mrb[0].mxu0
        %v3413 = vadd.f32 %v3204, %v3412
        %v3414 = vpop.f32.mrb[0].mxu0
        %3415 = vmatprep.mubr.bf16.mxu0 0
        %3416 = vmatmul.mubr.bf16.gmra.mrb[0].mxu0 %v1040
        %v3417 = vpop.f32.mrb[0].mxu0
        %v3418 = vadd.f32 %v3209, %v3417
        %v3419 = vpop.f32.mrb[0].mxu0
        %v3420 = vpop.f32.mrb[0].mxu0
        %v3421 = vadd.f32 %v3212, %v3420
        %v3422 = vpop.f32.mrb[0].mxu0
        %3423 = vmatprep.mubr.bf16.mxu0 0
        %3424 = vmatmul.mubr.bf16.gmra.mrb[0].mxu0 %v1041
        %v3425 = vpop.f32.mrb[0].mxu0
        %v3426 = vadd.f32 %v3217, %v3425
        %v3427 = vpop.f32.mrb[0].mxu0
        %v3428 = vpop.f32.mrb[0].mxu0
        %v3429 = vadd.f32 %v3220, %v3428
        %v3430 = vpop.f32.mrb[0].mxu0
        %3431 = vmatprep.mubr.bf16.mxu0 0
        %3432 = vmatmul.mubr.bf16.gmra.mrb[0].mxu0 %v1042
        %v3433 = vpop.f32.mrb[0].mxu0
        %v3434 = vadd.f32 %v3225, %v3433
        %v3435 = vpop.f32.mrb[0].mxu0
        %v3436 = vpop.f32.mrb[0].mxu0
        %v3437 = vadd.f32 %v3228, %v3436
        %v3438 = vpop.f32.mrb[0].mxu0
        %3439 = vmatprep.mubr.bf16.mxu0 0
        %3440 = vmatmul.mubr.bf16.gmra.mrb[0].mxu0 %v1043
        %v3441 = vpop.f32.mrb[0].mxu0
        %v3442 = vadd.f32 %v3233, %v3441
        %v3443 = vpop.f32.mrb[0].mxu0
        %v3444 = vpop.f32.mrb[0].mxu0
        %v3445 = vadd.f32 %v3236, %v3444
        %v3446 = vpop.f32.mrb[0].mxu0
        %3447 = vmatprep.mubr.bf16.mxu0 0
        %3448 = vmatmul.mubr.bf16.gmra.mrb[0].mxu0 %v1044
        %v3449 = vpop.f32.mrb[0].mxu0
        %v3450 = vadd.f32 %v3241, %v3449
        %v3451 = vpop.f32.mrb[0].mxu0
        %v3452 = vpop.f32.mrb[0].mxu0
        %v3453 = vadd.f32 %v3244, %v3452
        %v3454 = vpop.f32.mrb[0].mxu0
        %3455 = vmatprep.mubr.bf16.mxu0 0
        %3456 = vmatmul.mubr.bf16.gmra.mrb[0].mxu0 %v1045
        %v3457 = vpop.f32.mrb[0].mxu0
        %v3458 = vadd.f32 %v3249, %v3457
        %v3459 = vpop.f32.mrb[0].mxu0
        %v3460 = vpop.f32.mrb[0].mxu0
        %v3461 = vadd.f32 %v3252, %v3460
        %v3462 = vpop.f32.mrb[0].mxu0
        %3463 = vdwg.mxu0
        %3496 = vst [vmem:[%s1174 + $0x8] sm:$0xf] %v2857
        %3497 = vst [vmem:[%s1174 + $0xc] sm:$0xf] %v2860
        %3498 = vst [vmem:[%s1174 + $0x1c] sm:$0xf] %v2864
        %3499 = vst [vmem:[%s1174 + $0x20] sm:$0xf] %v2867
        %3500 = vst [vmem:[%s1174 + $0x30] sm:$0xf] %v2871
        %3501 = vst [vmem:[%s1174 + $0x34] sm:$0xf] %v2874
        %3502 = vst [vmem:[%s1174 + $0x44] sm:$0xf] %v2878
        %3503 = vst [vmem:[%s1174 + $0x48] sm:$0xf] %v2881
        %3504 = vst [vmem:[%s1174 + $0x58] sm:$0xf] %v2885
        %3505 = vst [vmem:[%s1174 + $0x5c] sm:$0xf] %v2888
        %3506 = vst [vmem:[%s1174 + $0x6c] sm:$0xf] %v2892
        %3507 = vst [vmem:[%s1174 + $0x70] sm:$0xf] %v2895
        %3508 = vst [vmem:[%s1174 + $0x80] sm:$0xf] %v2899
        %3509 = vst [vmem:[%s1174 + $0x84] sm:$0xf] %v2902
        %3510 = vst [vmem:[%s1174 + $0x94] sm:$0xf] %v2906
        %3511 = vst [vmem:[%s1174 + $0x98] sm:$0xf] %v2909
        %3512 = vst [vmem:[%s1174 + $0xa8] sm:$0xf] %v2913
        %3513 = vst [vmem:[%s1174 + $0xac] sm:$0xf] %v2916
        %3514 = vst [vmem:[%s1174 + $0xbc] sm:$0xf] %v2920
        %3515 = vst [vmem:[%s1174 + $0xc0] sm:$0xf] %v2923
        %3516 = vst [vmem:[%s1174 + $0xd0] sm:$0xf] %v2927
        %3517 = vst [vmem:[%s1174 + $0xd4] sm:$0xf] %v2930
        %3518 = vst [vmem:[%s1174 + $0xe4] sm:$0xf] %v2934
        %3519 = vst [vmem:[%s1174 + $0xe8] sm:$0xf] %v2937
        %3520 = vst [vmem:[%s1174 + $0xf8] sm:$0xf] %v2941
        %3521 = vst [vmem:[%s1174 + $0xfc] sm:$0xf] %v2944
        %3522 = vst [vmem:[%s1174 + $0x10c] sm:$0xf] %v2948
        %3523 = vst [vmem:[%s1174 + $0x110] sm:$0xf] %v2951
        %3524 = vst [vmem:[%s1174 + $0x120] sm:$0xf] %v2955
        %3525 = vst [vmem:[%s1174 + $0x124] sm:$0xf] %v2958
        %3526 = vst [vmem:[%s1174 + $0x134] sm:$0xf] %v2962
        %3527 = vst [vmem:[%s1174 + $0x138] sm:$0xf] %v2965
        %v3528 = vld [vmem:[#allocation2 + $0x4] sm:$0x8]
        %v3529 = vld [vmem:[#allocation2 + $0x8] sm:$0xf]
        %v3530 = vld [vmem:[#allocation2 + $0xc] sm:$0xf]
        %v3531 = vld [vmem:[#allocation2 + $0x10] sm:$0x1]
        %v3532 = vld [vmem:[#allocation2 + $0x18] sm:$0x8]
        %v3533 = vld [vmem:[#allocation2 + $0x1c] sm:$0xf]
        %v3534 = vld [vmem:[#allocation2 + $0x20] sm:$0xf]
        %v3535 = vld [vmem:[#allocation2 + $0x24] sm:$0x1]
        %v3536 = vld [vmem:[#allocation2 + $0x2c] sm:$0x8]
        %v3537 = vld [vmem:[#allocation2 + $0x30] sm:$0xf]
        %v3538 = vld [vmem:[#allocation2 + $0x34] sm:$0xf]
        %v3539 = vld [vmem:[#allocation2 + $0x38] sm:$0x1]
        %v3540 = vld [vmem:[#allocation2 + $0x40] sm:$0x8]
        %v3541 = vld [vmem:[#allocation2 + $0x44] sm:$0xf]
        %v3542 = vld [vmem:[#allocation2 + $0x48] sm:$0xf]
        %v3543 = vld [vmem:[#allocation2 + $0x4c] sm:$0x1]
        %v3544 = vld [vmem:[#allocation2 + $0x54] sm:$0x8]
        %v3545 = vld [vmem:[#allocation2 + $0x58] sm:$0xf]
        %v3546 = vld [vmem:[#allocation2 + $0x5c] sm:$0xf]
        %v3547 = vld [vmem:[#allocation2 + $0x60] sm:$0x1]
        %v3548 = vld [vmem:[#allocation2 + $0x68] sm:$0x8]
        %v3549 = vld [vmem:[#allocation2 + $0x6c] sm:$0xf]
        %v3550 = vld [vmem:[#allocation2 + $0x70] sm:$0xf]
        %v3551 = vld [vmem:[#allocation2 + $0x74] sm:$0x1]
        %v3552 = vld [vmem:[#allocation2 + $0x7c] sm:$0x8]
        %v3553 = vld [vmem:[#allocation2 + $0x80] sm:$0xf]
        %v3554 = vld [vmem:[#allocation2 + $0x84] sm:$0xf]
        %v3555 = vld [vmem:[#allocation2 + $0x88] sm:$0x1]
        %v3556 = vld [vmem:[#allocation2 + $0x90] sm:$0x8]
        %v3557 = vld [vmem:[#allocation2 + $0x94] sm:$0xf]
        %v3558 = vld [vmem:[#allocation2 + $0x98] sm:$0xf]
        %v3559 = vld [vmem:[#allocation2 + $0x9c] sm:$0x1]
        %v3560 = vld [vmem:[#allocation2 + $0xa4] sm:$0x8]
        %v3561 = vld [vmem:[#allocation2 + $0xa8] sm:$0xf]
        %v3562 = vld [vmem:[#allocation2 + $0xac] sm:$0xf]
        %v3563 = vld [vmem:[#allocation2 + $0xb0] sm:$0x1]
        %v3564 = vld [vmem:[#allocation2 + $0xb8] sm:$0x8]
        %v3565 = vld [vmem:[#allocation2 + $0xbc] sm:$0xf]
        %v3566 = vld [vmem:[#allocation2 + $0xc0] sm:$0xf]
        %v3567 = vld [vmem:[#allocation2 + $0xc4] sm:$0x1]
        %v3568 = vld [vmem:[#allocation2 + $0xcc] sm:$0x8]
        %v3569 = vld [vmem:[#allocation2 + $0xd0] sm:$0xf]
        %v3570 = vld [vmem:[#allocation2 + $0xd4] sm:$0xf]
        %v3571 = vld [vmem:[#allocation2 + $0xd8] sm:$0x1]
        %v3572 = vld [vmem:[#allocation2 + $0xe0] sm:$0x8]
        %v3573 = vld [vmem:[#allocation2 + $0xe4] sm:$0xf]
        %v3574 = vld [vmem:[#allocation2 + $0xe8] sm:$0xf]
        %v3575 = vld [vmem:[#allocation2 + $0xec] sm:$0x1]
        %v3576 = vld [vmem:[#allocation2 + $0xf4] sm:$0x8]
        %v3577 = vld [vmem:[#allocation2 + $0xf8] sm:$0xf]
        %v3578 = vld [vmem:[#allocation2 + $0xfc] sm:$0xf]
        %v3579 = vld [vmem:[#allocation2 + $0x100] sm:$0x1]
        %v3580 = vld [vmem:[#allocation2 + $0x108] sm:$0x8]
        %v3581 = vld [vmem:[#allocation2 + $0x10c] sm:$0xf]
        %v3582 = vld [vmem:[#allocation2 + $0x110] sm:$0xf]
        %v3583 = vld [vmem:[#allocation2 + $0x114] sm:$0x1]
        %v3584 = vld [vmem:[#allocation2 + $0x11c] sm:$0x8]
        %v3585 = vld [vmem:[#allocation2 + $0x120] sm:$0xf]
        %v3586 = vld [vmem:[#allocation2 + $0x124] sm:$0xf]
        %v3587 = vld [vmem:[#allocation2 + $0x128] sm:$0x1]
        %v3588 = vld [vmem:[#allocation2 + $0x130] sm:$0x8]
        %v3589 = vld [vmem:[#allocation2 + $0x134] sm:$0xf]
        %v3590 = vld [vmem:[#allocation2 + $0x138] sm:$0xf]
        %v3591 = vld [vmem:[#allocation2 + $0x13c] sm:$0x1]
        %v3592 = vld [vmem:[#allocation2 + $0x144] sm:$0x8]
        %v3593 = vld [vmem:[#allocation2 + $0x148] sm:$0xf]
        %v3594 = vld [vmem:[#allocation2 + $0x14c] sm:$0xf]
        %v3595 = vld [vmem:[#allocation2 + $0x150] sm:$0x1]
        %v3596 = vld [vmem:[#allocation2 + $0x158] sm:$0x8]
        %v3597 = vld [vmem:[#allocation2 + $0x15c] sm:$0xf]
        %v3598 = vld [vmem:[#allocation2 + $0x160] sm:$0xf]
        %v3599 = vld [vmem:[#allocation2 + $0x164] sm:$0x1]
        %v3600 = vld [vmem:[#allocation2 + $0x16c] sm:$0x8]
        %v3601 = vld [vmem:[#allocation2 + $0x170] sm:$0xf]
        %v3602 = vld [vmem:[#allocation2 + $0x174] sm:$0xf]
        %v3603 = vld [vmem:[#allocation2 + $0x178] sm:$0x1]
        %v3604 = vld [vmem:[#allocation2 + $0x180] sm:$0x8]
        %v3605 = vld [vmem:[#allocation2 + $0x184] sm:$0xf]
        %v3606 = vld [vmem:[#allocation2 + $0x188] sm:$0xf]
        %v3607 = vld [vmem:[#allocation2 + $0x18c] sm:$0x1]
        %v3608 = vmax.bf16 %v3528, %v3532
        %v3609 = vmax.bf16 %v3529, %v3533
        %v3610 = vmax.bf16 %v3530, %v3534
        %v3611 = vmax.bf16 %v3531, %v3535
        %v3612 = vmax.bf16 %v3532, %v3536
        %v3613 = vmax.bf16 %v3533, %v3537
        %v3614 = vmax.bf16 %v3534, %v3538
        %v3615 = vmax.bf16 %v3535, %v3539
        %v3616 = vmax.bf16 %v3536, %v3540
        %v3617 = vmax.bf16 %v3537, %v3541
        %v3618 = vmax.bf16 %v3538, %v3542
        %v3619 = vmax.bf16 %v3539, %v3543
        %v3620 = vmax.bf16 %v3540, %v3544
        %v3621 = vmax.bf16 %v3541, %v3545
        %v3622 = vmax.bf16 %v3542, %v3546
        %v3623 = vmax.bf16 %v3543, %v3547
        %v3624 = vmax.bf16 %v3544, %v3548
        %v3625 = vmax.bf16 %v3545, %v3549
        %v3626 = vmax.bf16 %v3546, %v3550
        %v3627 = vmax.bf16 %v3547, %v3551
        %v3628 = vmax.bf16 %v3548, %v3552
        %v3629 = vmax.bf16 %v3549, %v3553
        %v3630 = vmax.bf16 %v3550, %v3554
        %v3631 = vmax.bf16 %v3551, %v3555
        %v3632 = vmax.bf16 %v3552, %v3556
        %v3633 = vmax.bf16 %v3553, %v3557
        %v3634 = vmax.bf16 %v3554, %v3558
        %v3635 = vmax.bf16 %v3555, %v3559
        %v3636 = vmax.bf16 %v3556, %v3560
        %v3637 = vmax.bf16 %v3557, %v3561
        %v3638 = vmax.bf16 %v3558, %v3562
        %v3639 = vmax.bf16 %v3559, %v3563
        %v3640 = vmax.bf16 %v3560, %v3564
        %v3641 = vmax.bf16 %v3561, %v3565
        %v3642 = vmax.bf16 %v3562, %v3566
        %v3643 = vmax.bf16 %v3563, %v3567
        %v3644 = vmax.bf16 %v3564, %v3568
        %v3645 = vmax.bf16 %v3565, %v3569
        %v3646 = vmax.bf16 %v3566, %v3570
        %v3647 = vmax.bf16 %v3567, %v3571
        %v3648 = vmax.bf16 %v3568, %v3572
        %v3649 = vmax.bf16 %v3569, %v3573
        %v3650 = vmax.bf16 %v3570, %v3574
        %v3651 = vmax.bf16 %v3571, %v3575
        %v3652 = vmax.bf16 %v3572, %v3576
        %v3653 = vmax.bf16 %v3573, %v3577
        %v3654 = vmax.bf16 %v3574, %v3578
        %v3655 = vmax.bf16 %v3575, %v3579
        %v3656 = vmax.bf16 %v3576, %v3580
        %v3657 = vmax.bf16 %v3577, %v3581
        %v3658 = vmax.bf16 %v3578, %v3582
        %v3659 = vmax.bf16 %v3579, %v3583
        %v3660 = vmax.bf16 %v3580, %v3584
        %v3661 = vmax.bf16 %v3581, %v3585
        %v3662 = vmax.bf16 %v3582, %v3586
        %v3663 = vmax.bf16 %v3583, %v3587
        %v3664 = vmax.bf16 %v3584, %v3588
        %v3665 = vmax.bf16 %v3585, %v3589
        %v3666 = vmax.bf16 %v3586, %v3590
        %v3667 = vmax.bf16 %v3587, %v3591
        %v3668 = vmax.bf16 %v3588, %v3592
        %v3669 = vmax.bf16 %v3589, %v3593
        %v3670 = vmax.bf16 %v3590, %v3594
        %v3671 = vmax.bf16 %v3591, %v3595
        %v3672 = vmax.bf16 %v3608, %v3536
        %v3673 = vmax.bf16 %v3609, %v3537
        %v3674 = vmax.bf16 %v3610, %v3538
        %v3675 = vmax.bf16 %v3611, %v3539
        %v3676 = vmax.bf16 %v3612, %v3540
        %v3677 = vmax.bf16 %v3613, %v3541
        %v3678 = vmax.bf16 %v3614, %v3542
        %v3679 = vmax.bf16 %v3615, %v3543
        %v3680 = vmax.bf16 %v3616, %v3544
        %v3681 = vmax.bf16 %v3617, %v3545
        %v3682 = vmax.bf16 %v3618, %v3546
        %v3683 = vmax.bf16 %v3619, %v3547
        %v3684 = vmax.bf16 %v3620, %v3548
        %v3685 = vmax.bf16 %v3621, %v3549
        %v3686 = vmax.bf16 %v3622, %v3550
        %v3687 = vmax.bf16 %v3623, %v3551
        %v3688 = vmax.bf16 %v3624, %v3552
        %v3689 = vmax.bf16 %v3625, %v3553
        %v3690 = vmax.bf16 %v3626, %v3554
        %v3691 = vmax.bf16 %v3627, %v3555
        %v3692 = vmax.bf16 %v3628, %v3556
        %v3693 = vmax.bf16 %v3629, %v3557
        %v3694 = vmax.bf16 %v3630, %v3558
        %v3695 = vmax.bf16 %v3631, %v3559
        %v3696 = vmax.bf16 %v3632, %v3560
        %v3697 = vmax.bf16 %v3633, %v3561
        %v3698 = vmax.bf16 %v3634, %v3562
        %v3699 = vmax.bf16 %v3635, %v3563
        %v3700 = vmax.bf16 %v3636, %v3564
        %v3701 = vmax.bf16 %v3637, %v3565
        %v3702 = vmax.bf16 %v3638, %v3566
        %v3703 = vmax.bf16 %v3639, %v3567
        %v3704 = vmax.bf16 %v3640, %v3568
        %v3705 = vmax.bf16 %v3641, %v3569
        %v3706 = vmax.bf16 %v3642, %v3570
        %v3707 = vmax.bf16 %v3643, %v3571
        %v3708 = vmax.bf16 %v3644, %v3572
        %v3709 = vmax.bf16 %v3645, %v3573
        %v3710 = vmax.bf16 %v3646, %v3574
        %v3711 = vmax.bf16 %v3647, %v3575
        %v3712 = vmax.bf16 %v3648, %v3576
        %v3713 = vmax.bf16 %v3649, %v3577
        %v3714 = vmax.bf16 %v3650, %v3578
        %v3715 = vmax.bf16 %v3651, %v3579
        %v3716 = vmax.bf16 %v3652, %v3580
        %v3717 = vmax.bf16 %v3653, %v3581
        %v3718 = vmax.bf16 %v3654, %v3582
        %v3719 = vmax.bf16 %v3655, %v3583
        %v3720 = vmax.bf16 %v3656, %v3584
        %v3721 = vmax.bf16 %v3657, %v3585
        %v3722 = vmax.bf16 %v3658, %v3586
        %v3723 = vmax.bf16 %v3659, %v3587
        %v3724 = vmax.bf16 %v3660, %v3588
        %v3725 = vmax.bf16 %v3661, %v3589
        %v3726 = vmax.bf16 %v3662, %v3590
        %v3727 = vmax.bf16 %v3663, %v3591
        %v3728 = vmax.bf16 %v3664, %v3592
        %v3729 = vmax.bf16 %v3665, %v3593
        %v3730 = vmax.bf16 %v3666, %v3594
        %v3731 = vmax.bf16 %v3667, %v3595
        %v3732 = vmax.bf16 %v3668, %v3596
        %v3733 = vmax.bf16 %v3669, %v3597
        %v3734 = vmax.bf16 %v3670, %v3598
        %v3735 = vmax.bf16 %v3671, %v3599
        %v3736 = vmax.bf16 %v3672, %v3540
        %v3737 = vmax.bf16 %v3673, %v3541
        %v3738 = vmax.bf16 %v3674, %v3542
        %v3739 = vmax.bf16 %v3675, %v3543
        %v3740 = vmax.bf16 %v3676, %v3544
        %v3741 = vmax.bf16 %v3677, %v3545
        %v3742 = vmax.bf16 %v3678, %v3546
        %v3743 = vmax.bf16 %v3679, %v3547
        %v3744 = vmax.bf16 %v3680, %v3548
        %v3745 = vmax.bf16 %v3681, %v3549
        %v3746 = vmax.bf16 %v3682, %v3550
        %v3747 = vmax.bf16 %v3683, %v3551
        %v3748 = vmax.bf16 %v3684, %v3552
        %v3749 = vmax.bf16 %v3685, %v3553
        %v3750 = vmax.bf16 %v3686, %v3554
        %v3751 = vmax.bf16 %v3687, %v3555
        %v3752 = vmax.bf16 %v3688, %v3556
        %v3753 = vmax.bf16 %v3689, %v3557
        %v3754 = vmax.bf16 %v3690, %v3558
        %v3755 = vmax.bf16 %v3691, %v3559
        %v3756 = vmax.bf16 %v3692, %v3560
        %v3757 = vmax.bf16 %v3693, %v3561
        %v3758 = vmax.bf16 %v3694, %v3562
        %v3759 = vmax.bf16 %v3695, %v3563
        %v3760 = vmax.bf16 %v3696, %v3564
        %v3761 = vmax.bf16 %v3697, %v3565
        %v3762 = vmax.bf16 %v3698, %v3566
        %v3763 = vmax.bf16 %v3699, %v3567
        %v3764 = vmax.bf16 %v3700, %v3568
        %v3765 = vmax.bf16 %v3701, %v3569
        %v3766 = vmax.bf16 %v3702, %v3570
        %v3767 = vmax.bf16 %v3703, %v3571
        %v3768 = vmax.bf16 %v3704, %v3572
        %v3769 = vmax.bf16 %v3705, %v3573
        %v3770 = vmax.bf16 %v3706, %v3574
        %v3771 = vmax.bf16 %v3707, %v3575
        %v3772 = vmax.bf16 %v3708, %v3576
        %v3773 = vmax.bf16 %v3709, %v3577
        %v3774 = vmax.bf16 %v3710, %v3578
        %v3775 = vmax.bf16 %v3711, %v3579
        %v3776 = vmax.bf16 %v3712, %v3580
        %v3777 = vmax.bf16 %v3713, %v3581
        %v3778 = vmax.bf16 %v3714, %v3582
        %v3779 = vmax.bf16 %v3715, %v3583
        %v3780 = vmax.bf16 %v3716, %v3584
        %v3781 = vmax.bf16 %v3717, %v3585
        %v3782 = vmax.bf16 %v3718, %v3586
        %v3783 = vmax.bf16 %v3719, %v3587
        %v3784 = vmax.bf16 %v3720, %v3588
        %v3785 = vmax.bf16 %v3721, %v3589
        %v3786 = vmax.bf16 %v3722, %v3590
        %v3787 = vmax.bf16 %v3723, %v3591
        %v3788 = vmax.bf16 %v3724, %v3592
        %v3789 = vmax.bf16 %v3725, %v3593
        %v3790 = vmax.bf16 %v3726, %v3594
        %v3791 = vmax.bf16 %v3727, %v3595
        %v3792 = vmax.bf16 %v3728, %v3596
        %v3793 = vmax.bf16 %v3729, %v3597
        %v3794 = vmax.bf16 %v3730, %v3598
        %v3795 = vmax.bf16 %v3731, %v3599
        %v3796 = vmax.bf16 %v3732, %v3600
        %v3797 = vmax.bf16 %v3733, %v3601
        %v3798 = vmax.bf16 %v3734, %v3602
        %v3799 = vmax.bf16 %v3735, %v3603
        %v3800 = vmax.bf16 %v3736, %v3544
        %v3801 = vmax.bf16 %v3737, %v3545
        %v3802 = vmax.bf16 %v3738, %v3546
        %v3803 = vmax.bf16 %v3739, %v3547
        %v3804 = vmax.bf16 %v3740, %v3548
        %v3805 = vmax.bf16 %v3741, %v3549
        %v3806 = vmax.bf16 %v3742, %v3550
        %v3807 = vmax.bf16 %v3743, %v3551
        %v3808 = vmax.bf16 %v3744, %v3552
        %v3809 = vmax.bf16 %v3745, %v3553
        %v3810 = vmax.bf16 %v3746, %v3554
        %v3811 = vmax.bf16 %v3747, %v3555
        %v3812 = vmax.bf16 %v3748, %v3556
        %v3813 = vmax.bf16 %v3749, %v3557
        %v3814 = vmax.bf16 %v3750, %v3558
        %v3815 = vmax.bf16 %v3751, %v3559
        %v3816 = vmax.bf16 %v3752, %v3560
        %v3817 = vmax.bf16 %v3753, %v3561
        %v3818 = vmax.bf16 %v3754, %v3562
        %v3819 = vmax.bf16 %v3755, %v3563
        %v3820 = vmax.bf16 %v3756, %v3564
        %v3821 = vmax.bf16 %v3757, %v3565
        %v3822 = vmax.bf16 %v3758, %v3566
        %v3823 = vmax.bf16 %v3759, %v3567
        %v3824 = vmax.bf16 %v3760, %v3568
        %v3825 = vmax.bf16 %v3761, %v3569
        %v3826 = vmax.bf16 %v3762, %v3570
        %v3827 = vmax.bf16 %v3763, %v3571
        %v3828 = vmax.bf16 %v3764, %v3572
        %v3829 = vmax.bf16 %v3765, %v3573
        %v3830 = vmax.bf16 %v3766, %v3574
        %v3831 = vmax.bf16 %v3767, %v3575
        %v3832 = vmax.bf16 %v3768, %v3576
        %v3833 = vmax.bf16 %v3769, %v3577
        %v3834 = vmax.bf16 %v3770, %v3578
        %v3835 = vmax.bf16 %v3771, %v3579
        %v3836 = vmax.bf16 %v3772, %v3580
        %v3837 = vmax.bf16 %v3773, %v3581
        %v3838 = vmax.bf16 %v3774, %v3582
        %v3839 = vmax.bf16 %v3775, %v3583
        %v3840 = vmax.bf16 %v3776, %v3584
        %v3841 = vmax.bf16 %v3777, %v3585
        %v3842 = vmax.bf16 %v3778, %v3586
        %v3843 = vmax.bf16 %v3779, %v3587
        %v3844 = vmax.bf16 %v3780, %v3588
        %v3845 = vmax.bf16 %v3781, %v3589
        %v3846 = vmax.bf16 %v3782, %v3590
        %v3847 = vmax.bf16 %v3783, %v3591
        %v3848 = vmax.bf16 %v3784, %v3592
        %v3849 = vmax.bf16 %v3785, %v3593
        %v3850 = vmax.bf16 %v3786, %v3594
        %v3851 = vmax.bf16 %v3787, %v3595
        %v3852 = vmax.bf16 %v3788, %v3596
        %v3853 = vmax.bf16 %v3789, %v3597
        %v3854 = vmax.bf16 %v3790, %v3598
        %v3855 = vmax.bf16 %v3791, %v3599
        %v3856 = vmax.bf16 %v3792, %v3600
        %v3857 = vmax.bf16 %v3793, %v3601
        %v3858 = vmax.bf16 %v3794, %v3602
        %v3859 = vmax.bf16 %v3795, %v3603
        %v3860 = vmax.bf16 %v3796, %v3604
        %v3861 = vmax.bf16 %v3797, %v3605
        %v3862 = vmax.bf16 %v3798, %v3606
        %v3863 = vmax.bf16 %v3799, %v3607
        %v3865 = vshrl.u32 %v3800, 16
        %v3867 = vrot.slane %v3865, 4
        %v3868 = vrot.slane %v3867, 4
        %v3870 = vshll.u32 %v3801, 16
        %v3872 = vrot.slane %v3870, 5
        %v3873 = vsel %vm1545, %v3868, %v3872
        %v3874 = vshrl.u32 %v3801, 16
        %v3876 = vrot.slane %v3874, 4
        %v3877 = vor.u32 %v3876, %v3872
        %v3878 = vrot.slane %v3877, 4
        %v3880 = vshll.u32 %v3802, 16
        %v3882 = vrot.slane %v3880, 5
        %v3883 = vsel %vm1545, %v3878, %v3882
        %v3884 = vshrl.u32 %v3802, 16
        %v3886 = vrot.slane %v3884, 4
        %v3887 = vor.u32 %v3886, %v3882
        %v3888 = vrot.slane %v3887, 4
        %v3890 = vshrl.u32 %v3804, 16
        %v3892 = vrot.slane %v3890, 4
        %v3893 = vrot.slane %v3892, 4
        %v3895 = vshll.u32 %v3805, 16
        %v3897 = vrot.slane %v3895, 5
        %v3898 = vsel %vm1545, %v3893, %v3897
        %v3899 = vshrl.u32 %v3805, 16
        %v3901 = vrot.slane %v3899, 4
        %v3902 = vor.u32 %v3901, %v3897
        %v3903 = vrot.slane %v3902, 4
        %v3905 = vshll.u32 %v3806, 16
        %v3907 = vrot.slane %v3905, 5
        %v3908 = vsel %vm1545, %v3903, %v3907
        %v3909 = vshrl.u32 %v3806, 16
        %v3911 = vrot.slane %v3909, 4
        %v3912 = vor.u32 %v3911, %v3907
        %v3913 = vrot.slane %v3912, 4
        %v3915 = vshrl.u32 %v3808, 16
        %v3917 = vrot.slane %v3915, 4
        %v3918 = vrot.slane %v3917, 4
        %v3920 = vshll.u32 %v3809, 16
        %v3922 = vrot.slane %v3920, 5
        %v3923 = vsel %vm1545, %v3918, %v3922
        %v3924 = vshrl.u32 %v3809, 16
        %v3926 = vrot.slane %v3924, 4
        %v3927 = vor.u32 %v3926, %v3922
        %v3928 = vrot.slane %v3927, 4
        %v3930 = vshll.u32 %v3810, 16
        %v3932 = vrot.slane %v3930, 5
        %v3933 = vsel %vm1545, %v3928, %v3932
        %v3934 = vshrl.u32 %v3810, 16
        %v3936 = vrot.slane %v3934, 4
        %v3937 = vor.u32 %v3936, %v3932
        %v3938 = vrot.slane %v3937, 4
        %v3940 = vshrl.u32 %v3812, 16
        %v3942 = vrot.slane %v3940, 4
        %v3943 = vrot.slane %v3942, 4
        %v3945 = vshll.u32 %v3813, 16
        %v3947 = vrot.slane %v3945, 5
        %v3948 = vsel %vm1545, %v3943, %v3947
        %v3949 = vshrl.u32 %v3813, 16
        %v3951 = vrot.slane %v3949, 4
        %v3952 = vor.u32 %v3951, %v3947
        %v3953 = vrot.slane %v3952, 4
        %v3955 = vshll.u32 %v3814, 16
        %v3957 = vrot.slane %v3955, 5
        %v3958 = vsel %vm1545, %v3953, %v3957
        %v3959 = vshrl.u32 %v3814, 16
        %v3961 = vrot.slane %v3959, 4
        %v3962 = vor.u32 %v3961, %v3957
        %v3963 = vrot.slane %v3962, 4
        %v3965 = vshrl.u32 %v3816, 16
        %v3967 = vrot.slane %v3965, 4
        %v3968 = vrot.slane %v3967, 4
        %v3970 = vshll.u32 %v3817, 16
        %v3972 = vrot.slane %v3970, 5
        %v3973 = vsel %vm1545, %v3968, %v3972
        %v3974 = vshrl.u32 %v3817, 16
        %v3976 = vrot.slane %v3974, 4
        %v3977 = vor.u32 %v3976, %v3972
        %v3978 = vrot.slane %v3977, 4
        %v3980 = vshll.u32 %v3818, 16
        %v3982 = vrot.slane %v3980, 5
        %v3983 = vsel %vm1545, %v3978, %v3982
        %v3984 = vshrl.u32 %v3818, 16
        %v3986 = vrot.slane %v3984, 4
        %v3987 = vor.u32 %v3986, %v3982
        %v3988 = vrot.slane %v3987, 4
        %v3990 = vshrl.u32 %v3820, 16
        %v3992 = vrot.slane %v3990, 4
        %v3993 = vrot.slane %v3992, 4
        %v3995 = vshll.u32 %v3821, 16
        %v3997 = vrot.slane %v3995, 5
        %v3998 = vsel %vm1545, %v3993, %v3997
        %v3999 = vshrl.u32 %v3821, 16
        %v4001 = vrot.slane %v3999, 4
        %v4002 = vor.u32 %v4001, %v3997
        %v4003 = vrot.slane %v4002, 4
        %v4005 = vshll.u32 %v3822, 16
        %v4007 = vrot.slane %v4005, 5
        %v4008 = vsel %vm1545, %v4003, %v4007
        %v4009 = vshrl.u32 %v3822, 16
        %v4011 = vrot.slane %v4009, 4
        %v4012 = vor.u32 %v4011, %v4007
        %v4013 = vrot.slane %v4012, 4
        %v4015 = vshrl.u32 %v3824, 16
        %v4017 = vrot.slane %v4015, 4
        %v4018 = vrot.slane %v4017, 4
        %v4020 = vshll.u32 %v3825, 16
        %v4022 = vrot.slane %v4020, 5
        %v4023 = vsel %vm1545, %v4018, %v4022
        %v4024 = vshrl.u32 %v3825, 16
        %v4026 = vrot.slane %v4024, 4
        %v4027 = vor.u32 %v4026, %v4022
        %v4028 = vrot.slane %v4027, 4
        %v4030 = vshll.u32 %v3826, 16
        %v4032 = vrot.slane %v4030, 5
        %v4033 = vsel %vm1545, %v4028, %v4032
        %v4034 = vshrl.u32 %v3826, 16
        %v4036 = vrot.slane %v4034, 4
        %v4037 = vor.u32 %v4036, %v4032
        %v4038 = vrot.slane %v4037, 4
        %v4040 = vshrl.u32 %v3828, 16
        %v4042 = vrot.slane %v4040, 4
        %v4043 = vrot.slane %v4042, 4
        %v4045 = vshll.u32 %v3829, 16
        %v4047 = vrot.slane %v4045, 5
        %v4048 = vsel %vm1545, %v4043, %v4047
        %v4049 = vshrl.u32 %v3829, 16
        %v4051 = vrot.slane %v4049, 4
        %v4052 = vor.u32 %v4051, %v4047
        %v4053 = vrot.slane %v4052, 4
        %v4055 = vshll.u32 %v3830, 16
        %v4057 = vrot.slane %v4055, 5
        %v4058 = vsel %vm1545, %v4053, %v4057
        %v4059 = vshrl.u32 %v3830, 16
        %v4061 = vrot.slane %v4059, 4
        %v4062 = vor.u32 %v4061, %v4057
        %v4063 = vrot.slane %v4062, 4
        %v4065 = vshrl.u32 %v3832, 16
        %v4067 = vrot.slane %v4065, 4
        %v4068 = vrot.slane %v4067, 4
        %v4070 = vshll.u32 %v3833, 16
        %v4072 = vrot.slane %v4070, 5
        %v4073 = vsel %vm1545, %v4068, %v4072
        %v4074 = vshrl.u32 %v3833, 16
        %v4076 = vrot.slane %v4074, 4
        %v4077 = vor.u32 %v4076, %v4072
        %v4078 = vrot.slane %v4077, 4
        %v4080 = vshll.u32 %v3834, 16
        %v4082 = vrot.slane %v4080, 5
        %v4083 = vsel %vm1545, %v4078, %v4082
        %v4084 = vshrl.u32 %v3834, 16
        %v4086 = vrot.slane %v4084, 4
        %v4087 = vor.u32 %v4086, %v4082
        %v4088 = vrot.slane %v4087, 4
        %v4090 = vshrl.u32 %v3836, 16
        %v4092 = vrot.slane %v4090, 4
        %v4093 = vrot.slane %v4092, 4
        %v4095 = vshll.u32 %v3837, 16
        %v4097 = vrot.slane %v4095, 5
        %v4098 = vsel %vm1545, %v4093, %v4097
        %v4099 = vshrl.u32 %v3837, 16
        %v4101 = vrot.slane %v4099, 4
        %v4102 = vor.u32 %v4101, %v4097
        %v4103 = vrot.slane %v4102, 4
        %v4105 = vshll.u32 %v3838, 16
        %v4107 = vrot.slane %v4105, 5
        %v4108 = vsel %vm1545, %v4103, %v4107
        %v4109 = vshrl.u32 %v3838, 16
        %v4111 = vrot.slane %v4109, 4
        %v4112 = vor.u32 %v4111, %v4107
        %v4113 = vrot.slane %v4112, 4
        %v4115 = vshrl.u32 %v3840, 16
        %v4117 = vrot.slane %v4115, 4
        %v4118 = vrot.slane %v4117, 4
        %v4120 = vshll.u32 %v3841, 16
        %v4122 = vrot.slane %v4120, 5
        %v4123 = vsel %vm1545, %v4118, %v4122
        %v4124 = vshrl.u32 %v3841, 16
        %v4126 = vrot.slane %v4124, 4
        %v4127 = vor.u32 %v4126, %v4122
        %v4128 = vrot.slane %v4127, 4
        %v4130 = vshll.u32 %v3842, 16
        %v4132 = vrot.slane %v4130, 5
        %v4133 = vsel %vm1545, %v4128, %v4132
        %v4134 = vshrl.u32 %v3842, 16
        %v4136 = vrot.slane %v4134, 4
        %v4137 = vor.u32 %v4136, %v4132
        %v4138 = vrot.slane %v4137, 4
        %v4140 = vshrl.u32 %v3844, 16
        %v4142 = vrot.slane %v4140, 4
        %v4143 = vrot.slane %v4142, 4
        %v4145 = vshll.u32 %v3845, 16
        %v4147 = vrot.slane %v4145, 5
        %v4148 = vsel %vm1545, %v4143, %v4147
        %v4149 = vshrl.u32 %v3845, 16
        %v4151 = vrot.slane %v4149, 4
        %v4152 = vor.u32 %v4151, %v4147
        %v4153 = vrot.slane %v4152, 4
        %v4155 = vshll.u32 %v3846, 16
        %v4157 = vrot.slane %v4155, 5
        %v4158 = vsel %vm1545, %v4153, %v4157
        %v4159 = vshrl.u32 %v3846, 16
        %v4161 = vrot.slane %v4159, 4
        %v4162 = vor.u32 %v4161, %v4157
        %v4163 = vrot.slane %v4162, 4
        %v4165 = vshrl.u32 %v3848, 16
        %v4167 = vrot.slane %v4165, 4
        %v4168 = vrot.slane %v4167, 4
        %v4170 = vshll.u32 %v3849, 16
        %v4172 = vrot.slane %v4170, 5
        %v4173 = vsel %vm1545, %v4168, %v4172
        %v4174 = vshrl.u32 %v3849, 16
        %v4176 = vrot.slane %v4174, 4
        %v4177 = vor.u32 %v4176, %v4172
        %v4178 = vrot.slane %v4177, 4
        %v4180 = vshll.u32 %v3850, 16
        %v4182 = vrot.slane %v4180, 5
        %v4183 = vsel %vm1545, %v4178, %v4182
        %v4184 = vshrl.u32 %v3850, 16
        %v4186 = vrot.slane %v4184, 4
        %v4187 = vor.u32 %v4186, %v4182
        %v4188 = vrot.slane %v4187, 4
        %v4190 = vshrl.u32 %v3852, 16
        %v4192 = vrot.slane %v4190, 4
        %v4193 = vrot.slane %v4192, 4
        %v4195 = vshll.u32 %v3853, 16
        %v4197 = vrot.slane %v4195, 5
        %v4198 = vsel %vm1545, %v4193, %v4197
        %v4199 = vshrl.u32 %v3853, 16
        %v4201 = vrot.slane %v4199, 4
        %v4202 = vor.u32 %v4201, %v4197
        %v4203 = vrot.slane %v4202, 4
        %v4205 = vshll.u32 %v3854, 16
        %v4207 = vrot.slane %v4205, 5
        %v4208 = vsel %vm1545, %v4203, %v4207
        %v4209 = vshrl.u32 %v3854, 16
        %v4211 = vrot.slane %v4209, 4
        %v4212 = vor.u32 %v4211, %v4207
        %v4213 = vrot.slane %v4212, 4
        %v4215 = vshrl.u32 %v3856, 16
        %v4217 = vrot.slane %v4215, 4
        %v4218 = vrot.slane %v4217, 4
        %v4220 = vshll.u32 %v3857, 16
        %v4222 = vrot.slane %v4220, 5
        %v4223 = vsel %vm1545, %v4218, %v4222
        %v4224 = vshrl.u32 %v3857, 16
        %v4226 = vrot.slane %v4224, 4
        %v4227 = vor.u32 %v4226, %v4222
        %v4228 = vrot.slane %v4227, 4
        %v4230 = vshll.u32 %v3858, 16
        %v4232 = vrot.slane %v4230, 5
        %v4233 = vsel %vm1545, %v4228, %v4232
        %v4234 = vshrl.u32 %v3858, 16
        %v4236 = vrot.slane %v4234, 4
        %v4237 = vor.u32 %v4236, %v4232
        %v4238 = vrot.slane %v4237, 4
        %v4240 = vshrl.u32 %v3860, 16
        %v4242 = vrot.slane %v4240, 4
        %v4243 = vrot.slane %v4242, 4
        %v4245 = vshll.u32 %v3861, 16
        %v4247 = vrot.slane %v4245, 5
        %v4248 = vsel %vm1545, %v4243, %v4247
        %v4249 = vshrl.u32 %v3861, 16
        %v4251 = vrot.slane %v4249, 4
        %v4252 = vor.u32 %v4251, %v4247
        %v4253 = vrot.slane %v4252, 4
        %v4255 = vshll.u32 %v3862, 16
        %v4257 = vrot.slane %v4255, 5
        %v4258 = vsel %vm1545, %v4253, %v4257
        %v4259 = vshrl.u32 %v3862, 16
        %v4261 = vrot.slane %v4259, 4
        %v4262 = vor.u32 %v4261, %v4257
        %v4263 = vrot.slane %v4262, 4
        %v4312 = vmax.bf16 %v3800, %v3873
        %v4313 = vmax.bf16 %v3801, %v3883
        %v4314 = vmax.bf16 %v3802, %v3888
        %v4315 = vmax.bf16 %v3804, %v3898
        %v4316 = vmax.bf16 %v3805, %v3908
        %v4317 = vmax.bf16 %v3806, %v3913
        %v4318 = vmax.bf16 %v3808, %v3923
        %v4319 = vmax.bf16 %v3809, %v3933
        %v4320 = vmax.bf16 %v3810, %v3938
        %v4321 = vmax.bf16 %v3812, %v3948
        %v4322 = vmax.bf16 %v3813, %v3958
        %v4323 = vmax.bf16 %v3814, %v3963
        %v4324 = vmax.bf16 %v3816, %v3973
        %v4325 = vmax.bf16 %v3817, %v3983
        %v4326 = vmax.bf16 %v3818, %v3988
        %v4327 = vmax.bf16 %v3820, %v3998
        %v4328 = vmax.bf16 %v3821, %v4008
        %v4329 = vmax.bf16 %v3822, %v4013
        %v4330 = vmax.bf16 %v3824, %v4023
        %v4331 = vmax.bf16 %v3825, %v4033
        %v4332 = vmax.bf16 %v3826, %v4038
        %v4333 = vmax.bf16 %v3828, %v4048
        %v4334 = vmax.bf16 %v3829, %v4058
        %v4335 = vmax.bf16 %v3830, %v4063
        %v4336 = vmax.bf16 %v3832, %v4073
        %v4337 = vmax.bf16 %v3833, %v4083
        %v4338 = vmax.bf16 %v3834, %v4088
        %v4339 = vmax.bf16 %v3836, %v4098
        %v4340 = vmax.bf16 %v3837, %v4108
        %v4341 = vmax.bf16 %v3838, %v4113
        %v4342 = vmax.bf16 %v3840, %v4123
        %v4343 = vmax.bf16 %v3841, %v4133
        %v4344 = vmax.bf16 %v3842, %v4138
        %v4345 = vmax.bf16 %v3844, %v4148
        %v4346 = vmax.bf16 %v3845, %v4158
        %v4347 = vmax.bf16 %v3846, %v4163
        %v4348 = vmax.bf16 %v3848, %v4173
        %v4349 = vmax.bf16 %v3849, %v4183
        %v4350 = vmax.bf16 %v3850, %v4188
        %v4351 = vmax.bf16 %v3852, %v4198
        %v4352 = vmax.bf16 %v3853, %v4208
        %v4353 = vmax.bf16 %v3854, %v4213
        %v4354 = vmax.bf16 %v3856, %v4223
        %v4355 = vmax.bf16 %v3857, %v4233
        %v4356 = vmax.bf16 %v3858, %v4238
        %v4357 = vmax.bf16 %v3860, %v4248
        %v4358 = vmax.bf16 %v3861, %v4258
        %v4359 = vmax.bf16 %v3862, %v4263
        %v4392 = vrot.slane %v3801, 5
        %v4393 = vrot.slane %v4392, 4
        %v4394 = vrot.slane %v3802, 5
        %v4395 = vsel %vm2076, %v4393, %v4394
        %v4396 = vrot.slane %v4394, 4
        %v4397 = vrot.slane %v3805, 5
        %v4398 = vrot.slane %v4397, 4
        %v4399 = vrot.slane %v3806, 5
        %v4400 = vsel %vm2076, %v4398, %v4399
        %v4401 = vrot.slane %v4399, 4
        %v4402 = vrot.slane %v3809, 5
        %v4403 = vrot.slane %v4402, 4
        %v4404 = vrot.slane %v3810, 5
        %v4405 = vsel %vm2076, %v4403, %v4404
        %v4406 = vrot.slane %v4404, 4
        %v4407 = vrot.slane %v3813, 5
        %v4408 = vrot.slane %v4407, 4
        %v4409 = vrot.slane %v3814, 5
        %v4410 = vsel %vm2076, %v4408, %v4409
        %v4411 = vrot.slane %v4409, 4
        %v4412 = vrot.slane %v3817, 5
        %v4413 = vrot.slane %v4412, 4
        %v4414 = vrot.slane %v3818, 5
        %v4415 = vsel %vm2076, %v4413, %v4414
        %v4416 = vrot.slane %v4414, 4
        %v4417 = vrot.slane %v3821, 5
        %v4418 = vrot.slane %v4417, 4
        %v4419 = vrot.slane %v3822, 5
        %v4420 = vsel %vm2076, %v4418, %v4419
        %v4421 = vrot.slane %v4419, 4
        %v4422 = vrot.slane %v3825, 5
        %v4423 = vrot.slane %v4422, 4
        %v4424 = vrot.slane %v3826, 5
        %v4425 = vsel %vm2076, %v4423, %v4424
        %v4426 = vrot.slane %v4424, 4
        %v4427 = vrot.slane %v3829, 5
        %v4428 = vrot.slane %v4427, 4
        %v4429 = vrot.slane %v3830, 5
        %v4430 = vsel %vm2076, %v4428, %v4429
        %v4431 = vrot.slane %v4429, 4
        %v4432 = vrot.slane %v3833, 5
        %v4433 = vrot.slane %v4432, 4
        %v4434 = vrot.slane %v3834, 5
        %v4435 = vsel %vm2076, %v4433, %v4434
        %v4436 = vrot.slane %v4434, 4
        %v4437 = vrot.slane %v3837, 5
        %v4438 = vrot.slane %v4437, 4
        %v4439 = vrot.slane %v3838, 5
        %v4440 = vsel %vm2076, %v4438, %v4439
        %v4441 = vrot.slane %v4439, 4
        %v4442 = vrot.slane %v3841, 5
        %v4443 = vrot.slane %v4442, 4
        %v4444 = vrot.slane %v3842, 5
        %v4445 = vsel %vm2076, %v4443, %v4444
        %v4446 = vrot.slane %v4444, 4
        %v4447 = vrot.slane %v3845, 5
        %v4448 = vrot.slane %v4447, 4
        %v4449 = vrot.slane %v3846, 5
        %v4450 = vsel %vm2076, %v4448, %v4449
        %v4451 = vrot.slane %v4449, 4
        %v4452 = vrot.slane %v3849, 5
        %v4453 = vrot.slane %v4452, 4
        %v4454 = vrot.slane %v3850, 5
        %v4455 = vsel %vm2076, %v4453, %v4454
        %v4456 = vrot.slane %v4454, 4
        %v4457 = vrot.slane %v3853, 5
        %v4458 = vrot.slane %v4457, 4
        %v4459 = vrot.slane %v3854, 5
        %v4460 = vsel %vm2076, %v4458, %v4459
        %v4461 = vrot.slane %v4459, 4
        %v4462 = vrot.slane %v3857, 5
        %v4463 = vrot.slane %v4462, 4
        %v4464 = vrot.slane %v3858, 5
        %v4465 = vsel %vm2076, %v4463, %v4464
        %v4466 = vrot.slane %v4464, 4
        %v4467 = vrot.slane %v3861, 5
        %v4468 = vrot.slane %v4467, 4
        %v4469 = vrot.slane %v3862, 5
        %v4470 = vsel %vm2076, %v4468, %v4469
        %v4471 = vrot.slane %v4469, 4
        %v4520 = vmax.bf16 %v4312, %v4392
        %v4521 = vmax.bf16 %v4313, %v4395
        %v4522 = vmax.bf16 %v4314, %v4396
        %v4523 = vmax.bf16 %v4315, %v4397
        %v4524 = vmax.bf16 %v4316, %v4400
        %v4525 = vmax.bf16 %v4317, %v4401
        %v4526 = vmax.bf16 %v4318, %v4402
        %v4527 = vmax.bf16 %v4319, %v4405
        %v4528 = vmax.bf16 %v4320, %v4406
        %v4529 = vmax.bf16 %v4321, %v4407
        %v4530 = vmax.bf16 %v4322, %v4410
        %v4531 = vmax.bf16 %v4323, %v4411
        %v4532 = vmax.bf16 %v4324, %v4412
        %v4533 = vmax.bf16 %v4325, %v4415
        %v4534 = vmax.bf16 %v4326, %v4416
        %v4535 = vmax.bf16 %v4327, %v4417
        %v4536 = vmax.bf16 %v4328, %v4420
        %v4537 = vmax.bf16 %v4329, %v4421
        %v4538 = vmax.bf16 %v4330, %v4422
        %v4539 = vmax.bf16 %v4331, %v4425
        %v4540 = vmax.bf16 %v4332, %v4426
        %v4541 = vmax.bf16 %v4333, %v4427
        %v4542 = vmax.bf16 %v4334, %v4430
        %v4543 = vmax.bf16 %v4335, %v4431
        %v4544 = vmax.bf16 %v4336, %v4432
        %v4545 = vmax.bf16 %v4337, %v4435
        %v4546 = vmax.bf16 %v4338, %v4436
        %v4547 = vmax.bf16 %v4339, %v4437
        %v4548 = vmax.bf16 %v4340, %v4440
        %v4549 = vmax.bf16 %v4341, %v4441
        %v4550 = vmax.bf16 %v4342, %v4442
        %v4551 = vmax.bf16 %v4343, %v4445
        %v4552 = vmax.bf16 %v4344, %v4446
        %v4553 = vmax.bf16 %v4345, %v4447
        %v4554 = vmax.bf16 %v4346, %v4450
        %v4555 = vmax.bf16 %v4347, %v4451
        %v4556 = vmax.bf16 %v4348, %v4452
        %v4557 = vmax.bf16 %v4349, %v4455
        %v4558 = vmax.bf16 %v4350, %v4456
        %v4559 = vmax.bf16 %v4351, %v4457
        %v4560 = vmax.bf16 %v4352, %v4460
        %v4561 = vmax.bf16 %v4353, %v4461
        %v4562 = vmax.bf16 %v4354, %v4462
        %v4563 = vmax.bf16 %v4355, %v4465
        %v4564 = vmax.bf16 %v4356, %v4466
        %v4565 = vmax.bf16 %v4357, %v4467
        %v4566 = vmax.bf16 %v4358, %v4470
        %v4567 = vmax.bf16 %v4359, %v4471
        %v4568 = vrot.slane %v3874, 5
        %v4569 = vrot.slane %v3870, 6
        %v4570 = vor.u32 %v4568, %v4569
        %v4571 = vrot.slane %v4570, 4
        %v4572 = vrot.slane %v3884, 5
        %v4573 = vrot.slane %v3880, 6
        %v4574 = vor.u32 %v4572, %v4573
        %v4575 = vsel %vm2255, %v4571, %v4574
        %v4576 = vrot.slane %v4574, 4
        %v4578 = vshll.u32 %v3803, 16
        %v4580 = vrot.slane %v4578, 6
        %v4581 = vsel %vm2255, %v4576, %v4580
        %v4582 = vrot.slane %v3899, 5
        %v4583 = vrot.slane %v3895, 6
        %v4584 = vor.u32 %v4582, %v4583
        %v4585 = vrot.slane %v4584, 4
        %v4586 = vrot.slane %v3909, 5
        %v4587 = vrot.slane %v3905, 6
        %v4588 = vor.u32 %v4586, %v4587
        %v4589 = vsel %vm2255, %v4585, %v4588
        %v4590 = vrot.slane %v4588, 4
        %v4592 = vshll.u32 %v3807, 16
        %v4594 = vrot.slane %v4592, 6
        %v4595 = vsel %vm2255, %v4590, %v4594
        %v4596 = vrot.slane %v3924, 5
        %v4597 = vrot.slane %v3920, 6
        %v4598 = vor.u32 %v4596, %v4597
        %v4599 = vrot.slane %v4598, 4
        %v4600 = vrot.slane %v3934, 5
        %v4601 = vrot.slane %v3930, 6
        %v4602 = vor.u32 %v4600, %v4601
        %v4603 = vsel %vm2255, %v4599, %v4602
        %v4604 = vrot.slane %v4602, 4
        %v4606 = vshll.u32 %v3811, 16
        %v4608 = vrot.slane %v4606, 6
        %v4609 = vsel %vm2255, %v4604, %v4608
        %v4610 = vrot.slane %v3949, 5
        %v4611 = vrot.slane %v3945, 6
        %v4612 = vor.u32 %v4610, %v4611
        %v4613 = vrot.slane %v4612, 4
        %v4614 = vrot.slane %v3959, 5
        %v4615 = vrot.slane %v3955, 6
        %v4616 = vor.u32 %v4614, %v4615
        %v4617 = vsel %vm2255, %v4613, %v4616
        %v4618 = vrot.slane %v4616, 4
        %v4620 = vshll.u32 %v3815, 16
        %v4622 = vrot.slane %v4620, 6
        %v4623 = vsel %vm2255, %v4618, %v4622
        %v4624 = vrot.slane %v3974, 5
        %v4625 = vrot.slane %v3970, 6
        %v4626 = vor.u32 %v4624, %v4625
        %v4627 = vrot.slane %v4626, 4
        %v4628 = vrot.slane %v3984, 5
        %v4629 = vrot.slane %v3980, 6
        %v4630 = vor.u32 %v4628, %v4629
        %v4631 = vsel %vm2255, %v4627, %v4630
        %v4632 = vrot.slane %v4630, 4
        %v4634 = vshll.u32 %v3819, 16
        %v4636 = vrot.slane %v4634, 6
        %v4637 = vsel %vm2255, %v4632, %v4636
        %v4638 = vrot.slane %v3999, 5
        %v4639 = vrot.slane %v3995, 6
        %v4640 = vor.u32 %v4638, %v4639
        %v4641 = vrot.slane %v4640, 4
        %v4642 = vrot.slane %v4009, 5
        %v4643 = vrot.slane %v4005, 6
        %v4644 = vor.u32 %v4642, %v4643
        %v4645 = vsel %vm2255, %v4641, %v4644
        %v4646 = vrot.slane %v4644, 4
        %v4648 = vshll.u32 %v3823, 16
        %v4650 = vrot.slane %v4648, 6
        %v4651 = vsel %vm2255, %v4646, %v4650
        %v4652 = vrot.slane %v4024, 5
        %v4653 = vrot.slane %v4020, 6
        %v4654 = vor.u32 %v4652, %v4653
        %v4655 = vrot.slane %v4654, 4
        %v4656 = vrot.slane %v4034, 5
        %v4657 = vrot.slane %v4030, 6
        %v4658 = vor.u32 %v4656, %v4657
        %v4659 = vsel %vm2255, %v4655, %v4658
        %v4660 = vrot.slane %v4658, 4
        %v4662 = vshll.u32 %v3827, 16
        %v4664 = vrot.slane %v4662, 6
        %v4665 = vsel %vm2255, %v4660, %v4664
        %v4666 = vrot.slane %v4049, 5
        %v4667 = vrot.slane %v4045, 6
        %v4668 = vor.u32 %v4666, %v4667
        %v4669 = vrot.slane %v4668, 4
        %v4670 = vrot.slane %v4059, 5
        %v4671 = vrot.slane %v4055, 6
        %v4672 = vor.u32 %v4670, %v4671
        %v4673 = vsel %vm2255, %v4669, %v4672
        %v4674 = vrot.slane %v4672, 4
        %v4676 = vshll.u32 %v3831, 16
        %v4678 = vrot.slane %v4676, 6
        %v4679 = vsel %vm2255, %v4674, %v4678
        %v4680 = vrot.slane %v4074, 5
        %v4681 = vrot.slane %v4070, 6
        %v4682 = vor.u32 %v4680, %v4681
        %v4683 = vrot.slane %v4682, 4
        %v4684 = vrot.slane %v4084, 5
        %v4685 = vrot.slane %v4080, 6
        %v4686 = vor.u32 %v4684, %v4685
        %v4687 = vsel %vm2255, %v4683, %v4686
        %v4688 = vrot.slane %v4686, 4
        %v4690 = vshll.u32 %v3835, 16
        %v4692 = vrot.slane %v4690, 6
        %v4693 = vsel %vm2255, %v4688, %v4692
        %v4694 = vrot.slane %v4099, 5
        %v4695 = vrot.slane %v4095, 6
        %v4696 = vor.u32 %v4694, %v4695
        %v4697 = vrot.slane %v4696, 4
        %v4698 = vrot.slane %v4109, 5
        %v4699 = vrot.slane %v4105, 6
        %v4700 = vor.u32 %v4698, %v4699
        %v4701 = vsel %vm2255, %v4697, %v4700
        %v4702 = vrot.slane %v4700, 4
        %v4704 = vshll.u32 %v3839, 16
        %v4706 = vrot.slane %v4704, 6
        %v4707 = vsel %vm2255, %v4702, %v4706
        %v4708 = vrot.slane %v4124, 5
        %v4709 = vrot.slane %v4120, 6
        %v4710 = vor.u32 %v4708, %v4709
        %v4711 = vrot.slane %v4710, 4
        %v4712 = vrot.slane %v4134, 5
        %v4713 = vrot.slane %v4130, 6
        %v4714 = vor.u32 %v4712, %v4713
        %v4715 = vsel %vm2255, %v4711, %v4714
        %v4716 = vrot.slane %v4714, 4
        %v4718 = vshll.u32 %v3843, 16
        %v4720 = vrot.slane %v4718, 6
        %v4721 = vsel %vm2255, %v4716, %v4720
        %v4722 = vrot.slane %v4149, 5
        %v4723 = vrot.slane %v4145, 6
        %v4724 = vor.u32 %v4722, %v4723
        %v4725 = vrot.slane %v4724, 4
        %v4726 = vrot.slane %v4159, 5
        %v4727 = vrot.slane %v4155, 6
        %v4728 = vor.u32 %v4726, %v4727
        %v4729 = vsel %vm2255, %v4725, %v4728
        %v4730 = vrot.slane %v4728, 4
        %v4732 = vshll.u32 %v3847, 16
        %v4734 = vrot.slane %v4732, 6
        %v4735 = vsel %vm2255, %v4730, %v4734
        %v4736 = vrot.slane %v4174, 5
        %v4737 = vrot.slane %v4170, 6
        %v4738 = vor.u32 %v4736, %v4737
        %v4739 = vrot.slane %v4738, 4
        %v4740 = vrot.slane %v4184, 5
        %v4741 = vrot.slane %v4180, 6
        %v4742 = vor.u32 %v4740, %v4741
        %v4743 = vsel %vm2255, %v4739, %v4742
        %v4744 = vrot.slane %v4742, 4
        %v4746 = vshll.u32 %v3851, 16
        %v4748 = vrot.slane %v4746, 6
        %v4749 = vsel %vm2255, %v4744, %v4748
        %v4750 = vrot.slane %v4199, 5
        %v4751 = vrot.slane %v4195, 6
        %v4752 = vor.u32 %v4750, %v4751
        %v4753 = vrot.slane %v4752, 4
        %v4754 = vrot.slane %v4209, 5
        %v4755 = vrot.slane %v4205, 6
        %v4756 = vor.u32 %v4754, %v4755
        %v4757 = vsel %vm2255, %v4753, %v4756
        %v4758 = vrot.slane %v4756, 4
        %v4760 = vshll.u32 %v3855, 16
        %v4762 = vrot.slane %v4760, 6
        %v4763 = vsel %vm2255, %v4758, %v4762
        %v4764 = vrot.slane %v4224, 5
        %v4765 = vrot.slane %v4220, 6
        %v4766 = vor.u32 %v4764, %v4765
        %v4767 = vrot.slane %v4766, 4
        %v4768 = vrot.slane %v4234, 5
        %v4769 = vrot.slane %v4230, 6
        %v4770 = vor.u32 %v4768, %v4769
        %v4771 = vsel %vm2255, %v4767, %v4770
        %v4772 = vrot.slane %v4770, 4
        %v4774 = vshll.u32 %v3859, 16
        %v4776 = vrot.slane %v4774, 6
        %v4777 = vsel %vm2255, %v4772, %v4776
        %v4778 = vrot.slane %v4249, 5
        %v4779 = vrot.slane %v4245, 6
        %v4780 = vor.u32 %v4778, %v4779
        %v4781 = vrot.slane %v4780, 4
        %v4782 = vrot.slane %v4259, 5
        %v4783 = vrot.slane %v4255, 6
        %v4784 = vor.u32 %v4782, %v4783
        %v4785 = vsel %vm2255, %v4781, %v4784
        %v4786 = vrot.slane %v4784, 4
        %v4788 = vshll.u32 %v3863, 16
        %v4790 = vrot.slane %v4788, 6
        %v4791 = vsel %vm2255, %v4786, %v4790
        %v4840 = vmax.bf16 %v4520, %v4570
        %v4841 = vmax.bf16 %v4521, %v4575
        %v4842 = vmax.bf16 %v4522, %v4581
        %v4843 = vmax.bf16 %v4523, %v4584
        %v4844 = vmax.bf16 %v4524, %v4589
        %v4845 = vmax.bf16 %v4525, %v4595
        %v4846 = vmax.bf16 %v4526, %v4598
        %v4847 = vmax.bf16 %v4527, %v4603
        %v4848 = vmax.bf16 %v4528, %v4609
        %v4849 = vmax.bf16 %v4529, %v4612
        %v4850 = vmax.bf16 %v4530, %v4617
        %v4851 = vmax.bf16 %v4531, %v4623
        %v4852 = vmax.bf16 %v4532, %v4626
        %v4853 = vmax.bf16 %v4533, %v4631
        %v4854 = vmax.bf16 %v4534, %v4637
        %v4855 = vmax.bf16 %v4535, %v4640
        %v4856 = vmax.bf16 %v4536, %v4645
        %v4857 = vmax.bf16 %v4537, %v4651
        %v4858 = vmax.bf16 %v4538, %v4654
        %v4859 = vmax.bf16 %v4539, %v4659
        %v4860 = vmax.bf16 %v4540, %v4665
        %v4861 = vmax.bf16 %v4541, %v4668
        %v4862 = vmax.bf16 %v4542, %v4673
        %v4863 = vmax.bf16 %v4543, %v4679
        %v4864 = vmax.bf16 %v4544, %v4682
        %v4865 = vmax.bf16 %v4545, %v4687
        %v4866 = vmax.bf16 %v4546, %v4693
        %v4867 = vmax.bf16 %v4547, %v4696
        %v4868 = vmax.bf16 %v4548, %v4701
        %v4869 = vmax.bf16 %v4549, %v4707
        %v4870 = vmax.bf16 %v4550, %v4710
        %v4871 = vmax.bf16 %v4551, %v4715
        %v4872 = vmax.bf16 %v4552, %v4721
        %v4873 = vmax.bf16 %v4553, %v4724
        %v4874 = vmax.bf16 %v4554, %v4729
        %v4875 = vmax.bf16 %v4555, %v4735
        %v4876 = vmax.bf16 %v4556, %v4738
        %v4877 = vmax.bf16 %v4557, %v4743
        %v4878 = vmax.bf16 %v4558, %v4749
        %v4879 = vmax.bf16 %v4559, %v4752
        %v4880 = vmax.bf16 %v4560, %v4757
        %v4881 = vmax.bf16 %v4561, %v4763
        %v4882 = vmax.bf16 %v4562, %v4766
        %v4883 = vmax.bf16 %v4563, %v4771
        %v4884 = vmax.bf16 %v4564, %v4777
        %v4885 = vmax.bf16 %v4565, %v4780
        %v4886 = vmax.bf16 %v4566, %v4785
        %v4887 = vmax.bf16 %v4567, %v4791
        %v4904 = vrot.slane %v3801, 6
        %v4905 = vrot.slane %v4904, 4
        %v4906 = vrot.slane %v3802, 6
        %v4907 = vsel %vm2594, %v4905, %v4906
        %v4908 = vrot.slane %v4906, 4
        %v4909 = vrot.slane %v3803, 6
        %v4910 = vsel %vm2594, %v4908, %v4909
        %v4911 = vrot.slane %v3805, 6
        %v4912 = vrot.slane %v4911, 4
        %v4913 = vrot.slane %v3806, 6
        %v4914 = vsel %vm2594, %v4912, %v4913
        %v4915 = vrot.slane %v4913, 4
        %v4916 = vrot.slane %v3807, 6
        %v4917 = vsel %vm2594, %v4915, %v4916
        %v4918 = vrot.slane %v3809, 6
        %v4919 = vrot.slane %v4918, 4
        %v4920 = vrot.slane %v3810, 6
        %v4921 = vsel %vm2594, %v4919, %v4920
        %v4922 = vrot.slane %v4920, 4
        %v4923 = vrot.slane %v3811, 6
        %v4924 = vsel %vm2594, %v4922, %v4923
        %v4925 = vrot.slane %v3813, 6
        %v4926 = vrot.slane %v4925, 4
        %v4927 = vrot.slane %v3814, 6
        %v4928 = vsel %vm2594, %v4926, %v4927
        %v4929 = vrot.slane %v4927, 4
        %v4930 = vrot.slane %v3815, 6
        %v4931 = vsel %vm2594, %v4929, %v4930
        %v4932 = vrot.slane %v3817, 6
        %v4933 = vrot.slane %v4932, 4
        %v4934 = vrot.slane %v3818, 6
        %v4935 = vsel %vm2594, %v4933, %v4934
        %v4936 = vrot.slane %v4934, 4
        %v4937 = vrot.slane %v3819, 6
        %v4938 = vsel %vm2594, %v4936, %v4937
        %v4939 = vrot.slane %v3821, 6
        %v4940 = vrot.slane %v4939, 4
        %v4941 = vrot.slane %v3822, 6
        %v4942 = vsel %vm2594, %v4940, %v4941
        %v4943 = vrot.slane %v4941, 4
        %v4944 = vrot.slane %v3823, 6
        %v4945 = vsel %vm2594, %v4943, %v4944
        %v4946 = vrot.slane %v3825, 6
        %v4947 = vrot.slane %v4946, 4
        %v4948 = vrot.slane %v3826, 6
        %v4949 = vsel %vm2594, %v4947, %v4948
        %v4950 = vrot.slane %v4948, 4
        %v4951 = vrot.slane %v3827, 6
        %v4952 = vsel %vm2594, %v4950, %v4951
        %v4953 = vrot.slane %v3829, 6
        %v4954 = vrot.slane %v4953, 4
        %v4955 = vrot.slane %v3830, 6
        %v4956 = vsel %vm2594, %v4954, %v4955
        %v4957 = vrot.slane %v4955, 4
        %v4958 = vrot.slane %v3831, 6
        %v4959 = vsel %vm2594, %v4957, %v4958
        %v4960 = vrot.slane %v3833, 6
        %v4961 = vrot.slane %v4960, 4
        %v4962 = vrot.slane %v3834, 6
        %v4963 = vsel %vm2594, %v4961, %v4962
        %v4964 = vrot.slane %v4962, 4
        %v4965 = vrot.slane %v3835, 6
        %v4966 = vsel %vm2594, %v4964, %v4965
        %v4967 = vrot.slane %v3837, 6
        %v4968 = vrot.slane %v4967, 4
        %v4969 = vrot.slane %v3838, 6
        %v4970 = vsel %vm2594, %v4968, %v4969
        %v4971 = vrot.slane %v4969, 4
        %v4972 = vrot.slane %v3839, 6
        %v4973 = vsel %vm2594, %v4971, %v4972
        %v4974 = vrot.slane %v3841, 6
        %v4975 = vrot.slane %v4974, 4
        %v4976 = vrot.slane %v3842, 6
        %v4977 = vsel %vm2594, %v4975, %v4976
        %v4978 = vrot.slane %v4976, 4
        %v4979 = vrot.slane %v3843, 6
        %v4980 = vsel %vm2594, %v4978, %v4979
        %v4981 = vrot.slane %v3845, 6
        %v4982 = vrot.slane %v4981, 4
        %v4983 = vrot.slane %v3846, 6
        %v4984 = vsel %vm2594, %v4982, %v4983
        %v4985 = vrot.slane %v4983, 4
        %v4986 = vrot.slane %v3847, 6
        %v4987 = vsel %vm2594, %v4985, %v4986
        %v4988 = vrot.slane %v3849, 6
        %v4989 = vrot.slane %v4988, 4
        %v4990 = vrot.slane %v3850, 6
        %v4991 = vsel %vm2594, %v4989, %v4990
        %v4992 = vrot.slane %v4990, 4
        %v4993 = vrot.slane %v3851, 6
        %v4994 = vsel %vm2594, %v4992, %v4993
        %v4995 = vrot.slane %v3853, 6
        %v4996 = vrot.slane %v4995, 4
        %v4997 = vrot.slane %v3854, 6
        %v4998 = vsel %vm2594, %v4996, %v4997
        %v4999 = vrot.slane %v4997, 4
        %v5000 = vrot.slane %v3855, 6
        %v5001 = vsel %vm2594, %v4999, %v5000
        %v5002 = vrot.slane %v3857, 6
        %v5003 = vrot.slane %v5002, 4
        %v5004 = vrot.slane %v3858, 6
        %v5005 = vsel %vm2594, %v5003, %v5004
        %v5006 = vrot.slane %v5004, 4
        %v5007 = vrot.slane %v3859, 6
        %v5008 = vsel %vm2594, %v5006, %v5007
        %v5009 = vrot.slane %v3861, 6
        %v5010 = vrot.slane %v5009, 4
        %v5011 = vrot.slane %v3862, 6
        %v5012 = vsel %vm2594, %v5010, %v5011
        %v5013 = vrot.slane %v5011, 4
        %v5014 = vrot.slane %v3863, 6
        %v5015 = vsel %vm2594, %v5013, %v5014
        %v5064 = vmax.bf16 %v4840, %v4904
        %v5065 = vmax.bf16 %v4841, %v4907
        %v5066 = vmax.bf16 %v4842, %v4910
        %v5067 = vmax.bf16 %v4843, %v4911
        %v5068 = vmax.bf16 %v4844, %v4914
        %v5069 = vmax.bf16 %v4845, %v4917
        %v5070 = vmax.bf16 %v4846, %v4918
        %v5071 = vmax.bf16 %v4847, %v4921
        %v5072 = vmax.bf16 %v4848, %v4924
        %v5073 = vmax.bf16 %v4849, %v4925
        %v5074 = vmax.bf16 %v4850, %v4928
        %v5075 = vmax.bf16 %v4851, %v4931
        %v5076 = vmax.bf16 %v4852, %v4932
        %v5077 = vmax.bf16 %v4853, %v4935
        %v5078 = vmax.bf16 %v4854, %v4938
        %v5079 = vmax.bf16 %v4855, %v4939
        %v5080 = vmax.bf16 %v4856, %v4942
        %v5081 = vmax.bf16 %v4857, %v4945
        %v5082 = vmax.bf16 %v4858, %v4946
        %v5083 = vmax.bf16 %v4859, %v4949
        %v5084 = vmax.bf16 %v4860, %v4952
        %v5085 = vmax.bf16 %v4861, %v4953
        %v5086 = vmax.bf16 %v4862, %v4956
        %v5087 = vmax.bf16 %v4863, %v4959
        %v5088 = vmax.bf16 %v4864, %v4960
        %v5089 = vmax.bf16 %v4865, %v4963
        %v5090 = vmax.bf16 %v4866, %v4966
        %v5091 = vmax.bf16 %v4867, %v4967
        %v5092 = vmax.bf16 %v4868, %v4970
        %v5093 = vmax.bf16 %v4869, %v4973
        %v5094 = vmax.bf16 %v4870, %v4974
        %v5095 = vmax.bf16 %v4871, %v4977
        %v5096 = vmax.bf16 %v4872, %v4980
        %v5097 = vmax.bf16 %v4873, %v4981
        %v5098 = vmax.bf16 %v4874, %v4984
        %v5099 = vmax.bf16 %v4875, %v4987
        %v5100 = vmax.bf16 %v4876, %v4988
        %v5101 = vmax.bf16 %v4877, %v4991
        %v5102 = vmax.bf16 %v4878, %v4994
        %v5103 = vmax.bf16 %v4879, %v4995
        %v5104 = vmax.bf16 %v4880, %v4998
        %v5105 = vmax.bf16 %v4881, %v5001
        %v5106 = vmax.bf16 %v4882, %v5002
        %v5107 = vmax.bf16 %v4883, %v5005
        %v5108 = vmax.bf16 %v4884, %v5008
        %v5109 = vmax.bf16 %v4885, %v5009
        %v5110 = vmax.bf16 %v4886, %v5012
        %v5111 = vmax.bf16 %v4887, %v5015
        %v5160 = vrot.slane %v5064, 7
        %v5161 = vrot.slane %v5160, 4
        %v5162 = vrot.slane %v5065, 7
        %v5163 = vsel %vm2853, %v5161, %v5162
        %v5164 = vrot.slane %v5162, 4
        %v5165 = vrot.slane %v5066, 7
        %v5166 = vsel %vm2853, %v5164, %v5165
        %v5167 = vrot.slane %v5067, 7
        %v5168 = vrot.slane %v5167, 4
        %v5169 = vrot.slane %v5068, 7
        %v5170 = vsel %vm2853, %v5168, %v5169
        %v5171 = vrot.slane %v5169, 4
        %v5172 = vrot.slane %v5069, 7
        %v5173 = vsel %vm2853, %v5171, %v5172
        %v5174 = vrot.slane %v5070, 7
        %v5175 = vrot.slane %v5174, 4
        %v5176 = vrot.slane %v5071, 7
        %v5177 = vsel %vm2853, %v5175, %v5176
        %v5178 = vrot.slane %v5176, 4
        %v5179 = vrot.slane %v5072, 7
        %v5180 = vsel %vm2853, %v5178, %v5179
        %v5181 = vrot.slane %v5073, 7
        %v5182 = vrot.slane %v5181, 4
        %v5183 = vrot.slane %v5074, 7
        %v5184 = vsel %vm2853, %v5182, %v5183
        %v5185 = vrot.slane %v5183, 4
        %v5186 = vrot.slane %v5075, 7
        %v5187 = vsel %vm2853, %v5185, %v5186
        %v5188 = vrot.slane %v5076, 7
        %v5189 = vrot.slane %v5188, 4
        %v5190 = vrot.slane %v5077, 7
        %v5191 = vsel %vm2853, %v5189, %v5190
        %v5192 = vrot.slane %v5190, 4
        %v5193 = vrot.slane %v5078, 7
        %v5194 = vsel %vm2853, %v5192, %v5193
        %v5195 = vrot.slane %v5079, 7
        %v5196 = vrot.slane %v5195, 4
        %v5197 = vrot.slane %v5080, 7
        %v5198 = vsel %vm2853, %v5196, %v5197
        %v5199 = vrot.slane %v5197, 4
        %v5200 = vrot.slane %v5081, 7
        %v5201 = vsel %vm2853, %v5199, %v5200
        %v5202 = vrot.slane %v5082, 7
        %v5203 = vrot.slane %v5202, 4
        %v5204 = vrot.slane %v5083, 7
        %v5205 = vsel %vm2853, %v5203, %v5204
        %v5206 = vrot.slane %v5204, 4
        %v5207 = vrot.slane %v5084, 7
        %v5208 = vsel %vm2853, %v5206, %v5207
        %v5209 = vrot.slane %v5085, 7
        %v5210 = vrot.slane %v5209, 4
        %v5211 = vrot.slane %v5086, 7
        %v5212 = vsel %vm2853, %v5210, %v5211
        %v5213 = vrot.slane %v5211, 4
        %v5214 = vrot.slane %v5087, 7
        %v5215 = vsel %vm2853, %v5213, %v5214
        %v5216 = vrot.slane %v5088, 7
        %v5217 = vrot.slane %v5216, 4
        %v5218 = vrot.slane %v5089, 7
        %v5219 = vsel %vm2853, %v5217, %v5218
        %v5220 = vrot.slane %v5218, 4
        %v5221 = vrot.slane %v5090, 7
        %v5222 = vsel %vm2853, %v5220, %v5221
        %v5223 = vrot.slane %v5091, 7
        %v5224 = vrot.slane %v5223, 4
        %v5225 = vrot.slane %v5092, 7
        %v5226 = vsel %vm2853, %v5224, %v5225
        %v5227 = vrot.slane %v5225, 4
        %v5228 = vrot.slane %v5093, 7
        %v5229 = vsel %vm2853, %v5227, %v5228
        %v5230 = vrot.slane %v5094, 7
        %v5231 = vrot.slane %v5230, 4
        %v5232 = vrot.slane %v5095, 7
        %v5233 = vsel %vm2853, %v5231, %v5232
        %v5234 = vrot.slane %v5232, 4
        %v5235 = vrot.slane %v5096, 7
        %v5236 = vsel %vm2853, %v5234, %v5235
        %v5237 = vrot.slane %v5097, 7
        %v5238 = vrot.slane %v5237, 4
        %v5239 = vrot.slane %v5098, 7
        %v5240 = vsel %vm2853, %v5238, %v5239
        %v5241 = vrot.slane %v5239, 4
        %v5242 = vrot.slane %v5099, 7
        %v5243 = vsel %vm2853, %v5241, %v5242
        %v5244 = vrot.slane %v5100, 7
        %v5245 = vrot.slane %v5244, 4
        %v5246 = vrot.slane %v5101, 7
        %v5247 = vsel %vm2853, %v5245, %v5246
        %v5248 = vrot.slane %v5246, 4
        %v5249 = vrot.slane %v5102, 7
        %v5250 = vsel %vm2853, %v5248, %v5249
        %v5251 = vrot.slane %v5103, 7
        %v5252 = vrot.slane %v5251, 4
        %v5253 = vrot.slane %v5104, 7
        %v5254 = vsel %vm2853, %v5252, %v5253
        %v5255 = vrot.slane %v5253, 4
        %v5256 = vrot.slane %v5105, 7
        %v5257 = vsel %vm2853, %v5255, %v5256
        %v5258 = vrot.slane %v5106, 7
        %v5259 = vrot.slane %v5258, 4
        %v5260 = vrot.slane %v5107, 7
        %v5261 = vsel %vm2853, %v5259, %v5260
        %v5262 = vrot.slane %v5260, 4
        %v5263 = vrot.slane %v5108, 7
        %v5264 = vsel %vm2853, %v5262, %v5263
        %v5265 = vrot.slane %v5109, 7
        %v5266 = vrot.slane %v5265, 4
        %v5267 = vrot.slane %v5110, 7
        %v5268 = vsel %vm2853, %v5266, %v5267
        %v5269 = vrot.slane %v5267, 4
        %v5270 = vrot.slane %v5111, 7
        %v5271 = vsel %vm2853, %v5269, %v5270
        %v5272 = vld [vmem:[#allocation11 + $0x80] sm:$0xf]
        %v5273 = vld [vmem:[#allocation11 + $0x84] sm:$0xf]
        %v5274 = vld [vmem:[#allocation11 + $0x88] sm:$0xf]
        %v5275 = vld [vmem:[#allocation11 + $0x8c] sm:$0xf]
        %v5276 = vld [vmem:[#allocation11 + $0x90] sm:$0xf]
        %v5277 = vld [vmem:[#allocation11 + $0x94] sm:$0xf]
        %v5278 = vld [vmem:[#allocation11 + $0x98] sm:$0xf]
        %v5279 = vld [vmem:[#allocation11 + $0x9c] sm:$0xf]
        %v5280 = vld [vmem:[#allocation11 + $0xa0] sm:$0xf]
        %v5281 = vld [vmem:[#allocation11 + $0xa4] sm:$0xf]
        %v5282 = vld [vmem:[#allocation11 + $0xa8] sm:$0xf]
        %v5283 = vld [vmem:[#allocation11 + $0xac] sm:$0xf]
        %v5284 = vld [vmem:[#allocation11 + $0xb0] sm:$0xf]
        %v5285 = vld [vmem:[#allocation11 + $0xb4] sm:$0xf]
        %v5286 = vld [vmem:[#allocation11 + $0xb8] sm:$0xf]
        %v5287 = vld [vmem:[#allocation11 + $0xbc] sm:$0xf]
        %v5288 = vunpack.c.l.b16 %v5163
        %v5289 = vunpack.c.l.b16 %v5166
        %v5290 = vunpack.c.l.b16 %v5170
        %v5291 = vunpack.c.l.b16 %v5173
        %v5292 = vunpack.c.l.b16 %v5177
        %v5293 = vunpack.c.l.b16 %v5180
        %v5294 = vunpack.c.l.b16 %v5184
        %v5295 = vunpack.c.l.b16 %v5187
        %v5296 = vunpack.c.l.b16 %v5191
        %v5297 = vunpack.c.l.b16 %v5194
        %v5298 = vunpack.c.l.b16 %v5198
        %v5299 = vunpack.c.l.b16 %v5201
        %v5300 = vunpack.c.l.b16 %v5205
        %v5301 = vunpack.c.l.b16 %v5208
        %v5302 = vunpack.c.l.b16 %v5212
        %v5303 = vunpack.c.l.b16 %v5215
        %v5304 = vunpack.c.l.b16 %v5219
        %v5305 = vunpack.c.l.b16 %v5222
        %v5306 = vunpack.c.l.b16 %v5226
        %v5307 = vunpack.c.l.b16 %v5229
        %v5308 = vunpack.c.l.b16 %v5233
        %v5309 = vunpack.c.l.b16 %v5236
        %v5310 = vunpack.c.l.b16 %v5240
        %v5311 = vunpack.c.l.b16 %v5243
        %v5312 = vunpack.c.l.b16 %v5247
        %v5313 = vunpack.c.l.b16 %v5250
        %v5314 = vunpack.c.l.b16 %v5254
        %v5315 = vunpack.c.l.b16 %v5257
        %v5316 = vunpack.c.l.b16 %v5261
        %v5317 = vunpack.c.l.b16 %v5264
        %v5318 = vunpack.c.l.b16 %v5268
        %v5319 = vunpack.c.l.b16 %v5271
        %v5320 = vpack.c.b16 %v5289, %v5288
        %v5321 = vpack.c.b16 %v5291, %v5290
        %v5322 = vpack.c.b16 %v5293, %v5292
        %v5323 = vpack.c.b16 %v5295, %v5294
        %v5324 = vpack.c.b16 %v5297, %v5296
        %v5325 = vpack.c.b16 %v5299, %v5298
        %v5326 = vpack.c.b16 %v5301, %v5300
        %v5327 = vpack.c.b16 %v5303, %v5302
        %v5328 = vpack.c.b16 %v5305, %v5304
        %v5329 = vpack.c.b16 %v5307, %v5306
        %v5330 = vpack.c.b16 %v5309, %v5308
        %v5331 = vpack.c.b16 %v5311, %v5310
        %v5332 = vpack.c.b16 %v5313, %v5312
        %v5333 = vpack.c.b16 %v5315, %v5314
        %v5334 = vpack.c.b16 %v5317, %v5316
        %v5335 = vpack.c.b16 %v5319, %v5318
        %v5368 = vunpack.c.l.b16 %v5272
        %v5369 = vunpack.c.l.b16 %v5273
        %v5370 = vunpack.c.l.b16 %v5274
        %v5371 = vunpack.c.l.b16 %v5275
        %v5372 = vunpack.c.l.b16 %v5276
        %v5373 = vunpack.c.l.b16 %v5277
        %v5374 = vunpack.c.l.b16 %v5278
        %v5375 = vunpack.c.l.b16 %v5279
        %v5376 = vunpack.c.l.b16 %v5280
        %v5377 = vunpack.c.l.b16 %v5281
        %v5378 = vunpack.c.l.b16 %v5282
        %v5379 = vunpack.c.l.b16 %v5283
        %v5380 = vunpack.c.l.b16 %v5284
        %v5381 = vunpack.c.l.b16 %v5285
        %v5382 = vunpack.c.l.b16 %v5286
        %v5383 = vunpack.c.l.b16 %v5287
        %v5384 = vpack.c.b16 %v5369, %v5368
        %v5385 = vpack.c.b16 %v5371, %v5370
        %v5386 = vpack.c.b16 %v5373, %v5372
        %v5387 = vpack.c.b16 %v5375, %v5374
        %v5388 = vpack.c.b16 %v5377, %v5376
        %v5389 = vpack.c.b16 %v5379, %v5378
        %v5390 = vpack.c.b16 %v5381, %v5380
        %v5391 = vpack.c.b16 %v5383, %v5382
        %5400 = vmatprep.subr.bf16.mxu0 0
        %5401 = vmatpush1.bf16.msra.mxu0 %v5384
        %5402 = vmatprep.subr.bf16.mxu0 0
        %5403 = vmatpush1.bf16.msra.mxu0 %v5385
        %5404 = vmatprep.subr.bf16.mxu0 0
        %5405 = vmatpush1.bf16.msra.mxu0 %v5386
        %5406 = vmatprep.subr.bf16.mxu0 0
        %5407 = vmatpush1.bf16.msra.mxu0 %v5387
        %5408 = vmatprep.subr.bf16.mxu0 0
        %5409 = vmatpush1.bf16.msra.mxu0 %v5388
        %5410 = vmatprep.subr.bf16.mxu0 0
        %5411 = vmatpush1.bf16.msra.mxu0 %v5389
        %5412 = vmatprep.subr.bf16.mxu0 0
        %5413 = vmatpush1.bf16.msra.mxu0 %v5390
        %5414 = vmatprep.subr.bf16.mxu0 0
        %5415 = vmatpush1.bf16.msra.mxu0 %v5391
        %5416 = vmatprep.subr.bf16.mxu0 0
        %5417 = vmatpush1.bf16.msra.mxu0 0
        %5418 = vmatprep.subr.bf16.mxu0 0
        %5419 = vmatpush1.bf16.msra.mxu0 0
        %5420 = vmatprep.subr.bf16.mxu0 0
        %5421 = vmatpush1.bf16.msra.mxu0 0
        %5422 = vmatprep.subr.bf16.mxu0 0
        %5423 = vmatpush1.bf16.msra.mxu0 0
        %5424 = vmatprep.subr.bf16.mxu0 0
        %5425 = vmatpush1.bf16.msra.mxu0 0
        %5426 = vmatprep.subr.bf16.mxu0 0
        %5427 = vmatpush1.bf16.msra.mxu0 0
        %5428 = vmatprep.subr.bf16.mxu0 0
        %5429 = vmatpush1.bf16.msra.mxu0 0
        %5430 = vmatprep.subr.bf16.mxu0 0
        %5431 = vmatpush1.bf16.msra.mxu0 0
        %5432 = vmatprep.mubr.bf16.mxu0 0
        %5433 = vmatmul.mubr.bf16.gmra.mrb[0].mxu0 %v5320
        %v5434 = vpop.f32.mrb[0].mxu0
        %v5435 = vadd.f32 0.0, %v5434
        %v5436 = vpop.f32.mrb[0].mxu0
        %v5437 = vpop.f32.mrb[0].mxu0
        %v5438 = vadd.f32 0.0, %v5437
        %v5439 = vpop.f32.mrb[0].mxu0
        %5440 = vmatprep.mubr.bf16.mxu0 0
        %5441 = vmatmul.mubr.bf16.gmra.mrb[0].mxu0 %v5321
        %v5442 = vpop.f32.mrb[0].mxu0
        %v5443 = vadd.f32 0.0, %v5442
        %v5444 = vpop.f32.mrb[0].mxu0
        %v5445 = vpop.f32.mrb[0].mxu0
        %v5446 = vadd.f32 0.0, %v5445
        %v5447 = vpop.f32.mrb[0].mxu0
        %5448 = vmatprep.mubr.bf16.mxu0 0
        %5449 = vmatmul.mubr.bf16.gmra.mrb[0].mxu0 %v5322
        %v5450 = vpop.f32.mrb[0].mxu0
        %v5451 = vadd.f32 0.0, %v5450
        %v5452 = vpop.f32.mrb[0].mxu0
        %v5453 = vpop.f32.mrb[0].mxu0
        %v5454 = vadd.f32 0.0, %v5453
        %v5455 = vpop.f32.mrb[0].mxu0
        %5456 = vmatprep.mubr.bf16.mxu0 0
        %5457 = vmatmul.mubr.bf16.gmra.mrb[0].mxu0 %v5323
        %v5458 = vpop.f32.mrb[0].mxu0
        %v5459 = vadd.f32 0.0, %v5458
        %v5460 = vpop.f32.mrb[0].mxu0
        %v5461 = vpop.f32.mrb[0].mxu0
        %v5462 = vadd.f32 0.0, %v5461
        %v5463 = vpop.f32.mrb[0].mxu0
        %5464 = vmatprep.mubr.bf16.mxu0 0
        %5465 = vmatmul.mubr.bf16.gmra.mrb[0].mxu0 %v5324
        %v5466 = vpop.f32.mrb[0].mxu0
        %v5467 = vadd.f32 0.0, %v5466
        %v5468 = vpop.f32.mrb[0].mxu0
        %v5469 = vpop.f32.mrb[0].mxu0
        %v5470 = vadd.f32 0.0, %v5469
        %v5471 = vpop.f32.mrb[0].mxu0
        %5472 = vmatprep.mubr.bf16.mxu0 0
        %5473 = vmatmul.mubr.bf16.gmra.mrb[0].mxu0 %v5325
        %v5474 = vpop.f32.mrb[0].mxu0
        %v5475 = vadd.f32 0.0, %v5474
        %v5476 = vpop.f32.mrb[0].mxu0
        %v5477 = vpop.f32.mrb[0].mxu0
        %v5478 = vadd.f32 0.0, %v5477
        %v5479 = vpop.f32.mrb[0].mxu0
        %5480 = vmatprep.mubr.bf16.mxu0 0
        %5481 = vmatmul.mubr.bf16.gmra.mrb[0].mxu0 %v5326
        %v5482 = vpop.f32.mrb[0].mxu0
        %v5483 = vadd.f32 0.0, %v5482
        %v5484 = vpop.f32.mrb[0].mxu0
        %v5485 = vpop.f32.mrb[0].mxu0
        %v5486 = vadd.f32 0.0, %v5485
        %v5487 = vpop.f32.mrb[0].mxu0
        %5488 = vmatprep.mubr.bf16.mxu0 0
        %5489 = vmatmul.mubr.bf16.gmra.mrb[0].mxu0 %v5327
        %v5490 = vpop.f32.mrb[0].mxu0
        %v5491 = vadd.f32 0.0, %v5490
        %v5492 = vpop.f32.mrb[0].mxu0
        %v5493 = vpop.f32.mrb[0].mxu0
        %v5494 = vadd.f32 0.0, %v5493
        %v5495 = vpop.f32.mrb[0].mxu0
        %5496 = vmatprep.mubr.bf16.mxu0 0
        %5497 = vmatmul.mubr.bf16.gmra.mrb[0].mxu0 %v5328
        %v5498 = vpop.f32.mrb[0].mxu0
        %v5499 = vadd.f32 0.0, %v5498
        %v5500 = vpop.f32.mrb[0].mxu0
        %v5501 = vpop.f32.mrb[0].mxu0
        %v5502 = vadd.f32 0.0, %v5501
        %v5503 = vpop.f32.mrb[0].mxu0
        %5504 = vmatprep.mubr.bf16.mxu0 0
        %5505 = vmatmul.mubr.bf16.gmra.mrb[0].mxu0 %v5329
        %v5506 = vpop.f32.mrb[0].mxu0
        %v5507 = vadd.f32 0.0, %v5506
        %v5508 = vpop.f32.mrb[0].mxu0
        %v5509 = vpop.f32.mrb[0].mxu0
        %v5510 = vadd.f32 0.0, %v5509
        %v5511 = vpop.f32.mrb[0].mxu0
        %5512 = vmatprep.mubr.bf16.mxu0 0
        %5513 = vmatmul.mubr.bf16.gmra.mrb[0].mxu0 %v5330
        %v5514 = vpop.f32.mrb[0].mxu0
        %v5515 = vadd.f32 0.0, %v5514
        %v5516 = vpop.f32.mrb[0].mxu0
        %v5517 = vpop.f32.mrb[0].mxu0
        %v5518 = vadd.f32 0.0, %v5517
        %v5519 = vpop.f32.mrb[0].mxu0
        %5520 = vmatprep.mubr.bf16.mxu0 0
        %5521 = vmatmul.mubr.bf16.gmra.mrb[0].mxu0 %v5331
        %v5522 = vpop.f32.mrb[0].mxu0
        %v5523 = vadd.f32 0.0, %v5522
        %v5524 = vpop.f32.mrb[0].mxu0
        %v5525 = vpop.f32.mrb[0].mxu0
        %v5526 = vadd.f32 0.0, %v5525
        %v5527 = vpop.f32.mrb[0].mxu0
        %5528 = vmatprep.mubr.bf16.mxu0 0
        %5529 = vmatmul.mubr.bf16.gmra.mrb[0].mxu0 %v5332
        %v5530 = vpop.f32.mrb[0].mxu0
        %v5531 = vadd.f32 0.0, %v5530
        %v5532 = vpop.f32.mrb[0].mxu0
        %v5533 = vpop.f32.mrb[0].mxu0
        %v5534 = vadd.f32 0.0, %v5533
        %v5535 = vpop.f32.mrb[0].mxu0
        %5536 = vmatprep.mubr.bf16.mxu0 0
        %5537 = vmatmul.mubr.bf16.gmra.mrb[0].mxu0 %v5333
        %v5538 = vpop.f32.mrb[0].mxu0
        %v5539 = vadd.f32 0.0, %v5538
        %v5540 = vpop.f32.mrb[0].mxu0
        %v5541 = vpop.f32.mrb[0].mxu0
        %v5542 = vadd.f32 0.0, %v5541
        %v5543 = vpop.f32.mrb[0].mxu0
        %5544 = vmatprep.mubr.bf16.mxu0 0
        %5545 = vmatmul.mubr.bf16.gmra.mrb[0].mxu0 %v5334
        %v5546 = vpop.f32.mrb[0].mxu0
        %v5547 = vadd.f32 0.0, %v5546
        %v5548 = vpop.f32.mrb[0].mxu0
        %v5549 = vpop.f32.mrb[0].mxu0
        %v5550 = vadd.f32 0.0, %v5549
        %v5551 = vpop.f32.mrb[0].mxu0
        %5552 = vmatprep.mubr.bf16.mxu0 0
        %5553 = vmatmul.mubr.bf16.gmra.mrb[0].mxu0 %v5335
        %v5554 = vpop.f32.mrb[0].mxu0
        %v5555 = vadd.f32 0.0, %v5554
        %v5556 = vpop.f32.mrb[0].mxu0
        %v5557 = vpop.f32.mrb[0].mxu0
        %v5558 = vadd.f32 0.0, %v5557
        %v5559 = vpop.f32.mrb[0].mxu0
        %5560 = vdwg.mxu0
        %v5561 = vadd.f32 %v3338, %v5435
        %v5562 = vadd.f32 %v3341, %v5438
        %v5563 = vadd.f32 %v3346, %v5443
        %v5564 = vadd.f32 %v3349, %v5446
        %v5565 = vadd.f32 %v3354, %v5451
        %v5566 = vadd.f32 %v3357, %v5454
        %v5567 = vadd.f32 %v3362, %v5459
        %v5568 = vadd.f32 %v3365, %v5462
        %v5569 = vadd.f32 %v3370, %v5467
        %v5570 = vadd.f32 %v3373, %v5470
        %v5571 = vadd.f32 %v3378, %v5475
        %v5572 = vadd.f32 %v3381, %v5478
        %v5573 = vadd.f32 %v3386, %v5483
        %v5574 = vadd.f32 %v3389, %v5486
        %v5575 = vadd.f32 %v3394, %v5491
        %v5576 = vadd.f32 %v3397, %v5494
        %v5577 = vadd.f32 %v3402, %v5499
        %v5578 = vadd.f32 %v3405, %v5502
        %v5579 = vadd.f32 %v3410, %v5507
        %v5580 = vadd.f32 %v3413, %v5510
        %v5581 = vadd.f32 %v3418, %v5515
        %v5582 = vadd.f32 %v3421, %v5518
        %v5583 = vadd.f32 %v3426, %v5523
        %v5584 = vadd.f32 %v3429, %v5526
        %v5585 = vadd.f32 %v3434, %v5531
        %v5586 = vadd.f32 %v3437, %v5534
        %v5587 = vadd.f32 %v3442, %v5539
        %v5588 = vadd.f32 %v3445, %v5542
        %v5589 = vadd.f32 %v3450, %v5547
        %v5590 = vadd.f32 %v3453, %v5550
        %v5591 = vadd.f32 %v3458, %v5555
        %v5592 = vadd.f32 %v3461, %v5558
        %5625 = vst [vmem:[%s1174 + $0x8] sm:$0xf] %v5163
        %5626 = vst [vmem:[%s1174 + $0xc] sm:$0xf] %v5166
        %5627 = vst [vmem:[%s1174 + $0x1c] sm:$0xf] %v5170
        %5628 = vst [vmem:[%s1174 + $0x20] sm:$0xf] %v5173
        %5629 = vst [vmem:[%s1174 + $0x30] sm:$0xf] %v5177
        %5630 = vst [vmem:[%s1174 + $0x34] sm:$0xf] %v5180
        %5631 = vst [vmem:[%s1174 + $0x44] sm:$0xf] %v5184
        %5632 = vst [vmem:[%s1174 + $0x48] sm:$0xf] %v5187
        %5633 = vst [vmem:[%s1174 + $0x58] sm:$0xf] %v5191
        %5634 = vst [vmem:[%s1174 + $0x5c] sm:$0xf] %v5194
        %5635 = vst [vmem:[%s1174 + $0x6c] sm:$0xf] %v5198
        %5636 = vst [vmem:[%s1174 + $0x70] sm:$0xf] %v5201
        %5637 = vst [vmem:[%s1174 + $0x80] sm:$0xf] %v5205
        %5638 = vst [vmem:[%s1174 + $0x84] sm:$0xf] %v5208
        %5639 = vst [vmem:[%s1174 + $0x94] sm:$0xf] %v5212
        %5640 = vst [vmem:[%s1174 + $0x98] sm:$0xf] %v5215
        %5641 = vst [vmem:[%s1174 + $0xa8] sm:$0xf] %v5219
        %5642 = vst [vmem:[%s1174 + $0xac] sm:$0xf] %v5222
        %5643 = vst [vmem:[%s1174 + $0xbc] sm:$0xf] %v5226
        %5644 = vst [vmem:[%s1174 + $0xc0] sm:$0xf] %v5229
        %5645 = vst [vmem:[%s1174 + $0xd0] sm:$0xf] %v5233
        %5646 = vst [vmem:[%s1174 + $0xd4] sm:$0xf] %v5236
        %5647 = vst [vmem:[%s1174 + $0xe4] sm:$0xf] %v5240
        %5648 = vst [vmem:[%s1174 + $0xe8] sm:$0xf] %v5243
        %5649 = vst [vmem:[%s1174 + $0xf8] sm:$0xf] %v5247
        %5650 = vst [vmem:[%s1174 + $0xfc] sm:$0xf] %v5250
        %5651 = vst [vmem:[%s1174 + $0x10c] sm:$0xf] %v5254
        %5652 = vst [vmem:[%s1174 + $0x110] sm:$0xf] %v5257
        %5653 = vst [vmem:[%s1174 + $0x120] sm:$0xf] %v5261
        %5654 = vst [vmem:[%s1174 + $0x124] sm:$0xf] %v5264
        %5655 = vst [vmem:[%s1174 + $0x134] sm:$0xf] %v5268
        %5656 = vst [vmem:[%s1174 + $0x138] sm:$0xf] %v5271
        %v5657 = vld [vmem:[#allocation2 + $0x4] sm:$0x8]
        %v5658 = vld [vmem:[#allocation2 + $0x8] sm:$0xf]
        %v5659 = vld [vmem:[#allocation2 + $0xc] sm:$0xf]
        %v5660 = vld [vmem:[#allocation2 + $0x10] sm:$0x1]
        %v5661 = vld [vmem:[#allocation2 + $0x18] sm:$0x8]
        %v5662 = vld [vmem:[#allocation2 + $0x1c] sm:$0xf]
        %v5663 = vld [vmem:[#allocation2 + $0x20] sm:$0xf]
        %v5664 = vld [vmem:[#allocation2 + $0x24] sm:$0x1]
        %v5665 = vld [vmem:[#allocation2 + $0x2c] sm:$0x8]
        %v5666 = vld [vmem:[#allocation2 + $0x30] sm:$0xf]
        %v5667 = vld [vmem:[#allocation2 + $0x34] sm:$0xf]
        %v5668 = vld [vmem:[#allocation2 + $0x38] sm:$0x1]
        %v5669 = vld [vmem:[#allocation2 + $0x40] sm:$0x8]
        %v5670 = vld [vmem:[#allocation2 + $0x44] sm:$0xf]
        %v5671 = vld [vmem:[#allocation2 + $0x48] sm:$0xf]
        %v5672 = vld [vmem:[#allocation2 + $0x4c] sm:$0x1]
        %v5673 = vld [vmem:[#allocation2 + $0x54] sm:$0x8]
        %v5674 = vld [vmem:[#allocation2 + $0x58] sm:$0xf]
        %v5675 = vld [vmem:[#allocation2 + $0x5c] sm:$0xf]
        %v5676 = vld [vmem:[#allocation2 + $0x60] sm:$0x1]
        %v5677 = vld [vmem:[#allocation2 + $0x68] sm:$0x8]
        %v5678 = vld [vmem:[#allocation2 + $0x6c] sm:$0xf]
        %v5679 = vld [vmem:[#allocation2 + $0x70] sm:$0xf]
        %v5680 = vld [vmem:[#allocation2 + $0x74] sm:$0x1]
        %v5681 = vld [vmem:[#allocation2 + $0x7c] sm:$0x8]
        %v5682 = vld [vmem:[#allocation2 + $0x80] sm:$0xf]
        %v5683 = vld [vmem:[#allocation2 + $0x84] sm:$0xf]
        %v5684 = vld [vmem:[#allocation2 + $0x88] sm:$0x1]
        %v5685 = vld [vmem:[#allocation2 + $0x90] sm:$0x8]
        %v5686 = vld [vmem:[#allocation2 + $0x94] sm:$0xf]
        %v5687 = vld [vmem:[#allocation2 + $0x98] sm:$0xf]
        %v5688 = vld [vmem:[#allocation2 + $0x9c] sm:$0x1]
        %v5689 = vld [vmem:[#allocation2 + $0xa4] sm:$0x8]
        %v5690 = vld [vmem:[#allocation2 + $0xa8] sm:$0xf]
        %v5691 = vld [vmem:[#allocation2 + $0xac] sm:$0xf]
        %v5692 = vld [vmem:[#allocation2 + $0xb0] sm:$0x1]
        %v5693 = vld [vmem:[#allocation2 + $0xb8] sm:$0x8]
        %v5694 = vld [vmem:[#allocation2 + $0xbc] sm:$0xf]
        %v5695 = vld [vmem:[#allocation2 + $0xc0] sm:$0xf]
        %v5696 = vld [vmem:[#allocation2 + $0xc4] sm:$0x1]
        %v5697 = vld [vmem:[#allocation2 + $0xcc] sm:$0x8]
        %v5698 = vld [vmem:[#allocation2 + $0xd0] sm:$0xf]
        %v5699 = vld [vmem:[#allocation2 + $0xd4] sm:$0xf]
        %v5700 = vld [vmem:[#allocation2 + $0xd8] sm:$0x1]
        %v5701 = vld [vmem:[#allocation2 + $0xe0] sm:$0x8]
        %v5702 = vld [vmem:[#allocation2 + $0xe4] sm:$0xf]
        %v5703 = vld [vmem:[#allocation2 + $0xe8] sm:$0xf]
        %v5704 = vld [vmem:[#allocation2 + $0xec] sm:$0x1]
        %v5705 = vld [vmem:[#allocation2 + $0xf4] sm:$0x8]
        %v5706 = vld [vmem:[#allocation2 + $0xf8] sm:$0xf]
        %v5707 = vld [vmem:[#allocation2 + $0xfc] sm:$0xf]
        %v5708 = vld [vmem:[#allocation2 + $0x100] sm:$0x1]
        %v5709 = vld [vmem:[#allocation2 + $0x108] sm:$0x8]
        %v5710 = vld [vmem:[#allocation2 + $0x10c] sm:$0xf]
        %v5711 = vld [vmem:[#allocation2 + $0x110] sm:$0xf]
        %v5712 = vld [vmem:[#allocation2 + $0x114] sm:$0x1]
        %v5713 = vld [vmem:[#allocation2 + $0x11c] sm:$0x8]
        %v5714 = vld [vmem:[#allocation2 + $0x120] sm:$0xf]
        %v5715 = vld [vmem:[#allocation2 + $0x124] sm:$0xf]
        %v5716 = vld [vmem:[#allocation2 + $0x128] sm:$0x1]
        %v5717 = vld [vmem:[#allocation2 + $0x130] sm:$0x8]
        %v5718 = vld [vmem:[#allocation2 + $0x134] sm:$0xf]
        %v5719 = vld [vmem:[#allocation2 + $0x138] sm:$0xf]
        %v5720 = vld [vmem:[#allocation2 + $0x13c] sm:$0x1]
        %v5721 = vld [vmem:[#allocation2 + $0x144] sm:$0x8]
        %v5722 = vld [vmem:[#allocation2 + $0x148] sm:$0xf]
        %v5723 = vld [vmem:[#allocation2 + $0x14c] sm:$0xf]
        %v5724 = vld [vmem:[#allocation2 + $0x150] sm:$0x1]
        %v5725 = vld [vmem:[#allocation2 + $0x158] sm:$0x8]
        %v5726 = vld [vmem:[#allocation2 + $0x15c] sm:$0xf]
        %v5727 = vld [vmem:[#allocation2 + $0x160] sm:$0xf]
        %v5728 = vld [vmem:[#allocation2 + $0x164] sm:$0x1]
        %v5729 = vld [vmem:[#allocation2 + $0x16c] sm:$0x8]
        %v5730 = vld [vmem:[#allocation2 + $0x170] sm:$0xf]
        %v5731 = vld [vmem:[#allocation2 + $0x174] sm:$0xf]
        %v5732 = vld [vmem:[#allocation2 + $0x178] sm:$0x1]
        %v5733 = vld [vmem:[#allocation2 + $0x180] sm:$0x8]
        %v5734 = vld [vmem:[#allocation2 + $0x184] sm:$0xf]
        %v5735 = vld [vmem:[#allocation2 + $0x188] sm:$0xf]
        %v5736 = vld [vmem:[#allocation2 + $0x18c] sm:$0x1]
        %v5737 = vmax.bf16 %v5657, %v5661
        %v5738 = vmax.bf16 %v5658, %v5662
        %v5739 = vmax.bf16 %v5659, %v5663
        %v5740 = vmax.bf16 %v5660, %v5664
        %v5741 = vmax.bf16 %v5661, %v5665
        %v5742 = vmax.bf16 %v5662, %v5666
        %v5743 = vmax.bf16 %v5663, %v5667
        %v5744 = vmax.bf16 %v5664, %v5668
        %v5745 = vmax.bf16 %v5665, %v5669
        %v5746 = vmax.bf16 %v5666, %v5670
        %v5747 = vmax.bf16 %v5667, %v5671
        %v5748 = vmax.bf16 %v5668, %v5672
        %v5749 = vmax.bf16 %v5669, %v5673
        %v5750 = vmax.bf16 %v5670, %v5674
        %v5751 = vmax.bf16 %v5671, %v5675
        %v5752 = vmax.bf16 %v5672, %v5676
        %v5753 = vmax.bf16 %v5673, %v5677
        %v5754 = vmax.bf16 %v5674, %v5678
        %v5755 = vmax.bf16 %v5675, %v5679
        %v5756 = vmax.bf16 %v5676, %v5680
        %v5757 = vmax.bf16 %v5677, %v5681
        %v5758 = vmax.bf16 %v5678, %v5682
        %v5759 = vmax.bf16 %v5679, %v5683
        %v5760 = vmax.bf16 %v5680, %v5684
        %v5761 = vmax.bf16 %v5681, %v5685
        %v5762 = vmax.bf16 %v5682, %v5686
        %v5763 = vmax.bf16 %v5683, %v5687
        %v5764 = vmax.bf16 %v5684, %v5688
        %v5765 = vmax.bf16 %v5685, %v5689
        %v5766 = vmax.bf16 %v5686, %v5690
        %v5767 = vmax.bf16 %v5687, %v5691
        %v5768 = vmax.bf16 %v5688, %v5692
        %v5769 = vmax.bf16 %v5689, %v5693
        %v5770 = vmax.bf16 %v5690, %v5694
        %v5771 = vmax.bf16 %v5691, %v5695
        %v5772 = vmax.bf16 %v5692, %v5696
        %v5773 = vmax.bf16 %v5693, %v5697
        %v5774 = vmax.bf16 %v5694, %v5698
        %v5775 = vmax.bf16 %v5695, %v5699
        %v5776 = vmax.bf16 %v5696, %v5700
        %v5777 = vmax.bf16 %v5697, %v5701
        %v5778 = vmax.bf16 %v5698, %v5702
        %v5779 = vmax.bf16 %v5699, %v5703
        %v5780 = vmax.bf16 %v5700, %v5704
        %v5781 = vmax.bf16 %v5701, %v5705
        %v5782 = vmax.bf16 %v5702, %v5706
        %v5783 = vmax.bf16 %v5703, %v5707
        %v5784 = vmax.bf16 %v5704, %v5708
        %v5785 = vmax.bf16 %v5705, %v5709
        %v5786 = vmax.bf16 %v5706, %v5710
        %v5787 = vmax.bf16 %v5707, %v5711
        %v5788 = vmax.bf16 %v5708, %v5712
        %v5789 = vmax.bf16 %v5709, %v5713
        %v5790 = vmax.bf16 %v5710, %v5714
        %v5791 = vmax.bf16 %v5711, %v5715
        %v5792 = vmax.bf16 %v5712, %v5716
        %v5793 = vmax.bf16 %v5713, %v5717
        %v5794 = vmax.bf16 %v5714, %v5718
        %v5795 = vmax.bf16 %v5715, %v5719
        %v5796 = vmax.bf16 %v5716, %v5720
        %v5797 = vmax.bf16 %v5717, %v5721
        %v5798 = vmax.bf16 %v5718, %v5722
        %v5799 = vmax.bf16 %v5719, %v5723
        %v5800 = vmax.bf16 %v5720, %v5724
        %v5801 = vmax.bf16 %v5737, %v5665
        %v5802 = vmax.bf16 %v5738, %v5666
        %v5803 = vmax.bf16 %v5739, %v5667
        %v5804 = vmax.bf16 %v5740, %v5668
        %v5805 = vmax.bf16 %v5741, %v5669
        %v5806 = vmax.bf16 %v5742, %v5670
        %v5807 = vmax.bf16 %v5743, %v5671
        %v5808 = vmax.bf16 %v5744, %v5672
        %v5809 = vmax.bf16 %v5745, %v5673
        %v5810 = vmax.bf16 %v5746, %v5674
        %v5811 = vmax.bf16 %v5747, %v5675
        %v5812 = vmax.bf16 %v5748, %v5676
        %v5813 = vmax.bf16 %v5749, %v5677
        %v5814 = vmax.bf16 %v5750, %v5678
        %v5815 = vmax.bf16 %v5751, %v5679
        %v5816 = vmax.bf16 %v5752, %v5680
        %v5817 = vmax.bf16 %v5753, %v5681
        %v5818 = vmax.bf16 %v5754, %v5682
        %v5819 = vmax.bf16 %v5755, %v5683
        %v5820 = vmax.bf16 %v5756, %v5684
        %v5821 = vmax.bf16 %v5757, %v5685
        %v5822 = vmax.bf16 %v5758, %v5686
        %v5823 = vmax.bf16 %v5759, %v5687
        %v5824 = vmax.bf16 %v5760, %v5688
        %v5825 = vmax.bf16 %v5761, %v5689
        %v5826 = vmax.bf16 %v5762, %v5690
        %v5827 = vmax.bf16 %v5763, %v5691
        %v5828 = vmax.bf16 %v5764, %v5692
        %v5829 = vmax.bf16 %v5765, %v5693
        %v5830 = vmax.bf16 %v5766, %v5694
        %v5831 = vmax.bf16 %v5767, %v5695
        %v5832 = vmax.bf16 %v5768, %v5696
        %v5833 = vmax.bf16 %v5769, %v5697
        %v5834 = vmax.bf16 %v5770, %v5698
        %v5835 = vmax.bf16 %v5771, %v5699
        %v5836 = vmax.bf16 %v5772, %v5700
        %v5837 = vmax.bf16 %v5773, %v5701
        %v5838 = vmax.bf16 %v5774, %v5702
        %v5839 = vmax.bf16 %v5775, %v5703
        %v5840 = vmax.bf16 %v5776, %v5704
        %v5841 = vmax.bf16 %v5777, %v5705
        %v5842 = vmax.bf16 %v5778, %v5706
        %v5843 = vmax.bf16 %v5779, %v5707
        %v5844 = vmax.bf16 %v5780, %v5708
        %v5845 = vmax.bf16 %v5781, %v5709
        %v5846 = vmax.bf16 %v5782, %v5710
        %v5847 = vmax.bf16 %v5783, %v5711
        %v5848 = vmax.bf16 %v5784, %v5712
        %v5849 = vmax.bf16 %v5785, %v5713
        %v5850 = vmax.bf16 %v5786, %v5714
        %v5851 = vmax.bf16 %v5787, %v5715
        %v5852 = vmax.bf16 %v5788, %v5716
        %v5853 = vmax.bf16 %v5789, %v5717
        %v5854 = vmax.bf16 %v5790, %v5718
        %v5855 = vmax.bf16 %v5791, %v5719
        %v5856 = vmax.bf16 %v5792, %v5720
        %v5857 = vmax.bf16 %v5793, %v5721
        %v5858 = vmax.bf16 %v5794, %v5722
        %v5859 = vmax.bf16 %v5795, %v5723
        %v5860 = vmax.bf16 %v5796, %v5724
        %v5861 = vmax.bf16 %v5797, %v5725
        %v5862 = vmax.bf16 %v5798, %v5726
        %v5863 = vmax.bf16 %v5799, %v5727
        %v5864 = vmax.bf16 %v5800, %v5728
        %v5865 = vmax.bf16 %v5801, %v5669
        %v5866 = vmax.bf16 %v5802, %v5670
        %v5867 = vmax.bf16 %v5803, %v5671
        %v5868 = vmax.bf16 %v5804, %v5672
        %v5869 = vmax.bf16 %v5805, %v5673
        %v5870 = vmax.bf16 %v5806, %v5674
        %v5871 = vmax.bf16 %v5807, %v5675
        %v5872 = vmax.bf16 %v5808, %v5676
        %v5873 = vmax.bf16 %v5809, %v5677
        %v5874 = vmax.bf16 %v5810, %v5678
        %v5875 = vmax.bf16 %v5811, %v5679
        %v5876 = vmax.bf16 %v5812, %v5680
        %v5877 = vmax.bf16 %v5813, %v5681
        %v5878 = vmax.bf16 %v5814, %v5682
        %v5879 = vmax.bf16 %v5815, %v5683
        %v5880 = vmax.bf16 %v5816, %v5684
        %v5881 = vmax.bf16 %v5817, %v5685
        %v5882 = vmax.bf16 %v5818, %v5686
        %v5883 = vmax.bf16 %v5819, %v5687
        %v5884 = vmax.bf16 %v5820, %v5688
        %v5885 = vmax.bf16 %v5821, %v5689
        %v5886 = vmax.bf16 %v5822, %v5690
        %v5887 = vmax.bf16 %v5823, %v5691
        %v5888 = vmax.bf16 %v5824, %v5692
        %v5889 = vmax.bf16 %v5825, %v5693
        %v5890 = vmax.bf16 %v5826, %v5694
        %v5891 = vmax.bf16 %v5827, %v5695
        %v5892 = vmax.bf16 %v5828, %v5696
        %v5893 = vmax.bf16 %v5829, %v5697
        %v5894 = vmax.bf16 %v5830, %v5698
        %v5895 = vmax.bf16 %v5831, %v5699
        %v5896 = vmax.bf16 %v5832, %v5700
        %v5897 = vmax.bf16 %v5833, %v5701
        %v5898 = vmax.bf16 %v5834, %v5702
        %v5899 = vmax.bf16 %v5835, %v5703
        %v5900 = vmax.bf16 %v5836, %v5704
        %v5901 = vmax.bf16 %v5837, %v5705
        %v5902 = vmax.bf16 %v5838, %v5706
        %v5903 = vmax.bf16 %v5839, %v5707
        %v5904 = vmax.bf16 %v5840, %v5708
        %v5905 = vmax.bf16 %v5841, %v5709
        %v5906 = vmax.bf16 %v5842, %v5710
        %v5907 = vmax.bf16 %v5843, %v5711
        %v5908 = vmax.bf16 %v5844, %v5712
        %v5909 = vmax.bf16 %v5845, %v5713
        %v5910 = vmax.bf16 %v5846, %v5714
        %v5911 = vmax.bf16 %v5847, %v5715
        %v5912 = vmax.bf16 %v5848, %v5716
        %v5913 = vmax.bf16 %v5849, %v5717
        %v5914 = vmax.bf16 %v5850, %v5718
        %v5915 = vmax.bf16 %v5851, %v5719
        %v5916 = vmax.bf16 %v5852, %v5720
        %v5917 = vmax.bf16 %v5853, %v5721
        %v5918 = vmax.bf16 %v5854, %v5722
        %v5919 = vmax.bf16 %v5855, %v5723
        %v5920 = vmax.bf16 %v5856, %v5724
        %v5921 = vmax.bf16 %v5857, %v5725
        %v5922 = vmax.bf16 %v5858, %v5726
        %v5923 = vmax.bf16 %v5859, %v5727
        %v5924 = vmax.bf16 %v5860, %v5728
        %v5925 = vmax.bf16 %v5861, %v5729
        %v5926 = vmax.bf16 %v5862, %v5730
        %v5927 = vmax.bf16 %v5863, %v5731
        %v5928 = vmax.bf16 %v5864, %v5732
        %v5929 = vmax.bf16 %v5865, %v5673
        %v5930 = vmax.bf16 %v5866, %v5674
        %v5931 = vmax.bf16 %v5867, %v5675
        %v5932 = vmax.bf16 %v5868, %v5676
        %v5933 = vmax.bf16 %v5869, %v5677
        %v5934 = vmax.bf16 %v5870, %v5678
        %v5935 = vmax.bf16 %v5871, %v5679
        %v5936 = vmax.bf16 %v5872, %v5680
        %v5937 = vmax.bf16 %v5873, %v5681
        %v5938 = vmax.bf16 %v5874, %v5682
        %v5939 = vmax.bf16 %v5875, %v5683
        %v5940 = vmax.bf16 %v5876, %v5684
        %v5941 = vmax.bf16 %v5877, %v5685
        %v5942 = vmax.bf16 %v5878, %v5686
        %v5943 = vmax.bf16 %v5879, %v5687
        %v5944 = vmax.bf16 %v5880, %v5688
        %v5945 = vmax.bf16 %v5881, %v5689
        %v5946 = vmax.bf16 %v5882, %v5690
        %v5947 = vmax.bf16 %v5883, %v5691
        %v5948 = vmax.bf16 %v5884, %v5692
        %v5949 = vmax.bf16 %v5885, %v5693
        %v5950 = vmax.bf16 %v5886, %v5694
        %v5951 = vmax.bf16 %v5887, %v5695
        %v5952 = vmax.bf16 %v5888, %v5696
        %v5953 = vmax.bf16 %v5889, %v5697
        %v5954 = vmax.bf16 %v5890, %v5698
        %v5955 = vmax.bf16 %v5891, %v5699
        %v5956 = vmax.bf16 %v5892, %v5700
        %v5957 = vmax.bf16 %v5893, %v5701
        %v5958 = vmax.bf16 %v5894, %v5702
        %v5959 = vmax.bf16 %v5895, %v5703
        %v5960 = vmax.bf16 %v5896, %v5704
        %v5961 = vmax.bf16 %v5897, %v5705
        %v5962 = vmax.bf16 %v5898, %v5706
        %v5963 = vmax.bf16 %v5899, %v5707
        %v5964 = vmax.bf16 %v5900, %v5708
        %v5965 = vmax.bf16 %v5901, %v5709
        %v5966 = vmax.bf16 %v5902, %v5710
        %v5967 = vmax.bf16 %v5903, %v5711
        %v5968 = vmax.bf16 %v5904, %v5712
        %v5969 = vmax.bf16 %v5905, %v5713
        %v5970 = vmax.bf16 %v5906, %v5714
        %v5971 = vmax.bf16 %v5907, %v5715
        %v5972 = vmax.bf16 %v5908, %v5716
        %v5973 = vmax.bf16 %v5909, %v5717
        %v5974 = vmax.bf16 %v5910, %v5718
        %v5975 = vmax.bf16 %v5911, %v5719
        %v5976 = vmax.bf16 %v5912, %v5720
        %v5977 = vmax.bf16 %v5913, %v5721
        %v5978 = vmax.bf16 %v5914, %v5722
        %v5979 = vmax.bf16 %v5915, %v5723
        %v5980 = vmax.bf16 %v5916, %v5724
        %v5981 = vmax.bf16 %v5917, %v5725
        %v5982 = vmax.bf16 %v5918, %v5726
        %v5983 = vmax.bf16 %v5919, %v5727
        %v5984 = vmax.bf16 %v5920, %v5728
        %v5985 = vmax.bf16 %v5921, %v5729
        %v5986 = vmax.bf16 %v5922, %v5730
        %v5987 = vmax.bf16 %v5923, %v5731
        %v5988 = vmax.bf16 %v5924, %v5732
        %v5989 = vmax.bf16 %v5925, %v5733
        %v5990 = vmax.bf16 %v5926, %v5734
        %v5991 = vmax.bf16 %v5927, %v5735
        %v5992 = vmax.bf16 %v5928, %v5736
        %v5994 = vshrl.u32 %v5929, 16
        %v5996 = vrot.slane %v5994, 4
        %v5997 = vrot.slane %v5996, 4
        %v5999 = vshll.u32 %v5930, 16
        %v6001 = vrot.slane %v5999, 5
        %v6002 = vsel %vm1545, %v5997, %v6001
        %v6003 = vshrl.u32 %v5930, 16
        %v6005 = vrot.slane %v6003, 4
        %v6006 = vor.u32 %v6005, %v6001
        %v6007 = vrot.slane %v6006, 4
        %v6009 = vshll.u32 %v5931, 16
        %v6011 = vrot.slane %v6009, 5
        %v6012 = vsel %vm1545, %v6007, %v6011
        %v6013 = vshrl.u32 %v5931, 16
        %v6015 = vrot.slane %v6013, 4
        %v6016 = vor.u32 %v6015, %v6011
        %v6017 = vrot.slane %v6016, 4
        %v6019 = vshrl.u32 %v5933, 16
        %v6021 = vrot.slane %v6019, 4
        %v6022 = vrot.slane %v6021, 4
        %v6024 = vshll.u32 %v5934, 16
        %v6026 = vrot.slane %v6024, 5
        %v6027 = vsel %vm1545, %v6022, %v6026
        %v6028 = vshrl.u32 %v5934, 16
        %v6030 = vrot.slane %v6028, 4
        %v6031 = vor.u32 %v6030, %v6026
        %v6032 = vrot.slane %v6031, 4
        %v6034 = vshll.u32 %v5935, 16
        %v6036 = vrot.slane %v6034, 5
        %v6037 = vsel %vm1545, %v6032, %v6036
        %v6038 = vshrl.u32 %v5935, 16
        %v6040 = vrot.slane %v6038, 4
        %v6041 = vor.u32 %v6040, %v6036
        %v6042 = vrot.slane %v6041, 4
        %v6044 = vshrl.u32 %v5937, 16
        %v6046 = vrot.slane %v6044, 4
        %v6047 = vrot.slane %v6046, 4
        %v6049 = vshll.u32 %v5938, 16
        %v6051 = vrot.slane %v6049, 5
        %v6052 = vsel %vm1545, %v6047, %v6051
        %v6053 = vshrl.u32 %v5938, 16
        %v6055 = vrot.slane %v6053, 4
        %v6056 = vor.u32 %v6055, %v6051
        %v6057 = vrot.slane %v6056, 4
        %v6059 = vshll.u32 %v5939, 16
        %v6061 = vrot.slane %v6059, 5
        %v6062 = vsel %vm1545, %v6057, %v6061
        %v6063 = vshrl.u32 %v5939, 16
        %v6065 = vrot.slane %v6063, 4
        %v6066 = vor.u32 %v6065, %v6061
        %v6067 = vrot.slane %v6066, 4
        %v6069 = vshrl.u32 %v5941, 16
        %v6071 = vrot.slane %v6069, 4
        %v6072 = vrot.slane %v6071, 4
        %v6074 = vshll.u32 %v5942, 16
        %v6076 = vrot.slane %v6074, 5
        %v6077 = vsel %vm1545, %v6072, %v6076
        %v6078 = vshrl.u32 %v5942, 16
        %v6080 = vrot.slane %v6078, 4
        %v6081 = vor.u32 %v6080, %v6076
        %v6082 = vrot.slane %v6081, 4
        %v6084 = vshll.u32 %v5943, 16
        %v6086 = vrot.slane %v6084, 5
        %v6087 = vsel %vm1545, %v6082, %v6086
        %v6088 = vshrl.u32 %v5943, 16
        %v6090 = vrot.slane %v6088, 4
        %v6091 = vor.u32 %v6090, %v6086
        %v6092 = vrot.slane %v6091, 4
        %v6094 = vshrl.u32 %v5945, 16
        %v6096 = vrot.slane %v6094, 4
        %v6097 = vrot.slane %v6096, 4
        %v6099 = vshll.u32 %v5946, 16
        %v6101 = vrot.slane %v6099, 5
        %v6102 = vsel %vm1545, %v6097, %v6101
        %v6103 = vshrl.u32 %v5946, 16
        %v6105 = vrot.slane %v6103, 4
        %v6106 = vor.u32 %v6105, %v6101
        %v6107 = vrot.slane %v6106, 4
        %v6109 = vshll.u32 %v5947, 16
        %v6111 = vrot.slane %v6109, 5
        %v6112 = vsel %vm1545, %v6107, %v6111
        %v6113 = vshrl.u32 %v5947, 16
        %v6115 = vrot.slane %v6113, 4
        %v6116 = vor.u32 %v6115, %v6111
        %v6117 = vrot.slane %v6116, 4
        %v6119 = vshrl.u32 %v5949, 16
        %v6121 = vrot.slane %v6119, 4
        %v6122 = vrot.slane %v6121, 4
        %v6124 = vshll.u32 %v5950, 16
        %v6126 = vrot.slane %v6124, 5
        %v6127 = vsel %vm1545, %v6122, %v6126
        %v6128 = vshrl.u32 %v5950, 16
        %v6130 = vrot.slane %v6128, 4
        %v6131 = vor.u32 %v6130, %v6126
        %v6132 = vrot.slane %v6131, 4
        %v6134 = vshll.u32 %v5951, 16
        %v6136 = vrot.slane %v6134, 5
        %v6137 = vsel %vm1545, %v6132, %v6136
        %v6138 = vshrl.u32 %v5951, 16
        %v6140 = vrot.slane %v6138, 4
        %v6141 = vor.u32 %v6140, %v6136
        %v6142 = vrot.slane %v6141, 4
        %v6144 = vshrl.u32 %v5953, 16
        %v6146 = vrot.slane %v6144, 4
        %v6147 = vrot.slane %v6146, 4
        %v6149 = vshll.u32 %v5954, 16
        %v6151 = vrot.slane %v6149, 5
        %v6152 = vsel %vm1545, %v6147, %v6151
        %v6153 = vshrl.u32 %v5954, 16
        %v6155 = vrot.slane %v6153, 4
        %v6156 = vor.u32 %v6155, %v6151
        %v6157 = vrot.slane %v6156, 4
        %v6159 = vshll.u32 %v5955, 16
        %v6161 = vrot.slane %v6159, 5
        %v6162 = vsel %vm1545, %v6157, %v6161
        %v6163 = vshrl.u32 %v5955, 16
        %v6165 = vrot.slane %v6163, 4
        %v6166 = vor.u32 %v6165, %v6161
        %v6167 = vrot.slane %v6166, 4
        %v6169 = vshrl.u32 %v5957, 16
        %v6171 = vrot.slane %v6169, 4
        %v6172 = vrot.slane %v6171, 4
        %v6174 = vshll.u32 %v5958, 16
        %v6176 = vrot.slane %v6174, 5
        %v6177 = vsel %vm1545, %v6172, %v6176
        %v6178 = vshrl.u32 %v5958, 16
        %v6180 = vrot.slane %v6178, 4
        %v6181 = vor.u32 %v6180, %v6176
        %v6182 = vrot.slane %v6181, 4
        %v6184 = vshll.u32 %v5959, 16
        %v6186 = vrot.slane %v6184, 5
        %v6187 = vsel %vm1545, %v6182, %v6186
        %v6188 = vshrl.u32 %v5959, 16
        %v6190 = vrot.slane %v6188, 4
        %v6191 = vor.u32 %v6190, %v6186
        %v6192 = vrot.slane %v6191, 4
        %v6194 = vshrl.u32 %v5961, 16
        %v6196 = vrot.slane %v6194, 4
        %v6197 = vrot.slane %v6196, 4
        %v6199 = vshll.u32 %v5962, 16
        %v6201 = vrot.slane %v6199, 5
        %v6202 = vsel %vm1545, %v6197, %v6201
        %v6203 = vshrl.u32 %v5962, 16
        %v6205 = vrot.slane %v6203, 4
        %v6206 = vor.u32 %v6205, %v6201
        %v6207 = vrot.slane %v6206, 4
        %v6209 = vshll.u32 %v5963, 16
        %v6211 = vrot.slane %v6209, 5
        %v6212 = vsel %vm1545, %v6207, %v6211
        %v6213 = vshrl.u32 %v5963, 16
        %v6215 = vrot.slane %v6213, 4
        %v6216 = vor.u32 %v6215, %v6211
        %v6217 = vrot.slane %v6216, 4
        %v6219 = vshrl.u32 %v5965, 16
        %v6221 = vrot.slane %v6219, 4
        %v6222 = vrot.slane %v6221, 4
        %v6224 = vshll.u32 %v5966, 16
        %v6226 = vrot.slane %v6224, 5
        %v6227 = vsel %vm1545, %v6222, %v6226
        %v6228 = vshrl.u32 %v5966, 16
        %v6230 = vrot.slane %v6228, 4
        %v6231 = vor.u32 %v6230, %v6226
        %v6232 = vrot.slane %v6231, 4
        %v6234 = vshll.u32 %v5967, 16
        %v6236 = vrot.slane %v6234, 5
        %v6237 = vsel %vm1545, %v6232, %v6236
        %v6238 = vshrl.u32 %v5967, 16
        %v6240 = vrot.slane %v6238, 4
        %v6241 = vor.u32 %v6240, %v6236
        %v6242 = vrot.slane %v6241, 4
        %v6244 = vshrl.u32 %v5969, 16
        %v6246 = vrot.slane %v6244, 4
        %v6247 = vrot.slane %v6246, 4
        %v6249 = vshll.u32 %v5970, 16
        %v6251 = vrot.slane %v6249, 5
        %v6252 = vsel %vm1545, %v6247, %v6251
        %v6253 = vshrl.u32 %v5970, 16
        %v6255 = vrot.slane %v6253, 4
        %v6256 = vor.u32 %v6255, %v6251
        %v6257 = vrot.slane %v6256, 4
        %v6259 = vshll.u32 %v5971, 16
        %v6261 = vrot.slane %v6259, 5
        %v6262 = vsel %vm1545, %v6257, %v6261
        %v6263 = vshrl.u32 %v5971, 16
        %v6265 = vrot.slane %v6263, 4
        %v6266 = vor.u32 %v6265, %v6261
        %v6267 = vrot.slane %v6266, 4
        %v6269 = vshrl.u32 %v5973, 16
        %v6271 = vrot.slane %v6269, 4
        %v6272 = vrot.slane %v6271, 4
        %v6274 = vshll.u32 %v5974, 16
        %v6276 = vrot.slane %v6274, 5
        %v6277 = vsel %vm1545, %v6272, %v6276
        %v6278 = vshrl.u32 %v5974, 16
        %v6280 = vrot.slane %v6278, 4
        %v6281 = vor.u32 %v6280, %v6276
        %v6282 = vrot.slane %v6281, 4
        %v6284 = vshll.u32 %v5975, 16
        %v6286 = vrot.slane %v6284, 5
        %v6287 = vsel %vm1545, %v6282, %v6286
        %v6288 = vshrl.u32 %v5975, 16
        %v6290 = vrot.slane %v6288, 4
        %v6291 = vor.u32 %v6290, %v6286
        %v6292 = vrot.slane %v6291, 4
        %v6294 = vshrl.u32 %v5977, 16
        %v6296 = vrot.slane %v6294, 4
        %v6297 = vrot.slane %v6296, 4
        %v6299 = vshll.u32 %v5978, 16
        %v6301 = vrot.slane %v6299, 5
        %v6302 = vsel %vm1545, %v6297, %v6301
        %v6303 = vshrl.u32 %v5978, 16
        %v6305 = vrot.slane %v6303, 4
        %v6306 = vor.u32 %v6305, %v6301
        %v6307 = vrot.slane %v6306, 4
        %v6309 = vshll.u32 %v5979, 16
        %v6311 = vrot.slane %v6309, 5
        %v6312 = vsel %vm1545, %v6307, %v6311
        %v6313 = vshrl.u32 %v5979, 16
        %v6315 = vrot.slane %v6313, 4
        %v6316 = vor.u32 %v6315, %v6311
        %v6317 = vrot.slane %v6316, 4
        %v6319 = vshrl.u32 %v5981, 16
        %v6321 = vrot.slane %v6319, 4
        %v6322 = vrot.slane %v6321, 4
        %v6324 = vshll.u32 %v5982, 16
        %v6326 = vrot.slane %v6324, 5
        %v6327 = vsel %vm1545, %v6322, %v6326
        %v6328 = vshrl.u32 %v5982, 16
        %v6330 = vrot.slane %v6328, 4
        %v6331 = vor.u32 %v6330, %v6326
        %v6332 = vrot.slane %v6331, 4
        %v6334 = vshll.u32 %v5983, 16
        %v6336 = vrot.slane %v6334, 5
        %v6337 = vsel %vm1545, %v6332, %v6336
        %v6338 = vshrl.u32 %v5983, 16
        %v6340 = vrot.slane %v6338, 4
        %v6341 = vor.u32 %v6340, %v6336
        %v6342 = vrot.slane %v6341, 4
        %v6344 = vshrl.u32 %v5985, 16
        %v6346 = vrot.slane %v6344, 4
        %v6347 = vrot.slane %v6346, 4
        %v6349 = vshll.u32 %v5986, 16
        %v6351 = vrot.slane %v6349, 5
        %v6352 = vsel %vm1545, %v6347, %v6351
        %v6353 = vshrl.u32 %v5986, 16
        %v6355 = vrot.slane %v6353, 4
        %v6356 = vor.u32 %v6355, %v6351
        %v6357 = vrot.slane %v6356, 4
        %v6359 = vshll.u32 %v5987, 16
        %v6361 = vrot.slane %v6359, 5
        %v6362 = vsel %vm1545, %v6357, %v6361
        %v6363 = vshrl.u32 %v5987, 16
        %v6365 = vrot.slane %v6363, 4
        %v6366 = vor.u32 %v6365, %v6361
        %v6367 = vrot.slane %v6366, 4
        %v6369 = vshrl.u32 %v5989, 16
        %v6371 = vrot.slane %v6369, 4
        %v6372 = vrot.slane %v6371, 4
        %v6374 = vshll.u32 %v5990, 16
        %v6376 = vrot.slane %v6374, 5
        %v6377 = vsel %vm1545, %v6372, %v6376
        %v6378 = vshrl.u32 %v5990, 16
        %v6380 = vrot.slane %v6378, 4
        %v6381 = vor.u32 %v6380, %v6376
        %v6382 = vrot.slane %v6381, 4
        %v6384 = vshll.u32 %v5991, 16
        %v6386 = vrot.slane %v6384, 5
        %v6387 = vsel %vm1545, %v6382, %v6386
        %v6388 = vshrl.u32 %v5991, 16
        %v6390 = vrot.slane %v6388, 4
        %v6391 = vor.u32 %v6390, %v6386
        %v6392 = vrot.slane %v6391, 4
        %v6441 = vmax.bf16 %v5929, %v6002
        %v6442 = vmax.bf16 %v5930, %v6012
        %v6443 = vmax.bf16 %v5931, %v6017
        %v6444 = vmax.bf16 %v5933, %v6027
        %v6445 = vmax.bf16 %v5934, %v6037
        %v6446 = vmax.bf16 %v5935, %v6042
        %v6447 = vmax.bf16 %v5937, %v6052
        %v6448 = vmax.bf16 %v5938, %v6062
        %v6449 = vmax.bf16 %v5939, %v6067
        %v6450 = vmax.bf16 %v5941, %v6077
        %v6451 = vmax.bf16 %v5942, %v6087
        %v6452 = vmax.bf16 %v5943, %v6092
        %v6453 = vmax.bf16 %v5945, %v6102
        %v6454 = vmax.bf16 %v5946, %v6112
        %v6455 = vmax.bf16 %v5947, %v6117
        %v6456 = vmax.bf16 %v5949, %v6127
        %v6457 = vmax.bf16 %v5950, %v6137
        %v6458 = vmax.bf16 %v5951, %v6142
        %v6459 = vmax.bf16 %v5953, %v6152
        %v6460 = vmax.bf16 %v5954, %v6162
        %v6461 = vmax.bf16 %v5955, %v6167
        %v6462 = vmax.bf16 %v5957, %v6177
        %v6463 = vmax.bf16 %v5958, %v6187
        %v6464 = vmax.bf16 %v5959, %v6192
        %v6465 = vmax.bf16 %v5961, %v6202
        %v6466 = vmax.bf16 %v5962, %v6212
        %v6467 = vmax.bf16 %v5963, %v6217
        %v6468 = vmax.bf16 %v5965, %v6227
        %v6469 = vmax.bf16 %v5966, %v6237
        %v6470 = vmax.bf16 %v5967, %v6242
        %v6471 = vmax.bf16 %v5969, %v6252
        %v6472 = vmax.bf16 %v5970, %v6262
        %v6473 = vmax.bf16 %v5971, %v6267
        %v6474 = vmax.bf16 %v5973, %v6277
        %v6475 = vmax.bf16 %v5974, %v6287
        %v6476 = vmax.bf16 %v5975, %v6292
        %v6477 = vmax.bf16 %v5977, %v6302
        %v6478 = vmax.bf16 %v5978, %v6312
        %v6479 = vmax.bf16 %v5979, %v6317
        %v6480 = vmax.bf16 %v5981, %v6327
        %v6481 = vmax.bf16 %v5982, %v6337
        %v6482 = vmax.bf16 %v5983, %v6342
        %v6483 = vmax.bf16 %v5985, %v6352
        %v6484 = vmax.bf16 %v5986, %v6362
        %v6485 = vmax.bf16 %v5987, %v6367
        %v6486 = vmax.bf16 %v5989, %v6377
        %v6487 = vmax.bf16 %v5990, %v6387
        %v6488 = vmax.bf16 %v5991, %v6392
        %v6521 = vrot.slane %v5930, 5
        %v6522 = vrot.slane %v6521, 4
        %v6523 = vrot.slane %v5931, 5
        %v6524 = vsel %vm2076, %v6522, %v6523
        %v6525 = vrot.slane %v6523, 4
        %v6526 = vrot.slane %v5934, 5
        %v6527 = vrot.slane %v6526, 4
        %v6528 = vrot.slane %v5935, 5
        %v6529 = vsel %vm2076, %v6527, %v6528
        %v6530 = vrot.slane %v6528, 4
        %v6531 = vrot.slane %v5938, 5
        %v6532 = vrot.slane %v6531, 4
        %v6533 = vrot.slane %v5939, 5
        %v6534 = vsel %vm2076, %v6532, %v6533
        %v6535 = vrot.slane %v6533, 4
        %v6536 = vrot.slane %v5942, 5
        %v6537 = vrot.slane %v6536, 4
        %v6538 = vrot.slane %v5943, 5
        %v6539 = vsel %vm2076, %v6537, %v6538
        %v6540 = vrot.slane %v6538, 4
        %v6541 = vrot.slane %v5946, 5
        %v6542 = vrot.slane %v6541, 4
        %v6543 = vrot.slane %v5947, 5
        %v6544 = vsel %vm2076, %v6542, %v6543
        %v6545 = vrot.slane %v6543, 4
        %v6546 = vrot.slane %v5950, 5
        %v6547 = vrot.slane %v6546, 4
        %v6548 = vrot.slane %v5951, 5
        %v6549 = vsel %vm2076, %v6547, %v6548
        %v6550 = vrot.slane %v6548, 4
        %v6551 = vrot.slane %v5954, 5
        %v6552 = vrot.slane %v6551, 4
        %v6553 = vrot.slane %v5955, 5
        %v6554 = vsel %vm2076, %v6552, %v6553
        %v6555 = vrot.slane %v6553, 4
        %v6556 = vrot.slane %v5958, 5
        %v6557 = vrot.slane %v6556, 4
        %v6558 = vrot.slane %v5959, 5
        %v6559 = vsel %vm2076, %v6557, %v6558
        %v6560 = vrot.slane %v6558, 4
        %v6561 = vrot.slane %v5962, 5
        %v6562 = vrot.slane %v6561, 4
        %v6563 = vrot.slane %v5963, 5
        %v6564 = vsel %vm2076, %v6562, %v6563
        %v6565 = vrot.slane %v6563, 4
        %v6566 = vrot.slane %v5966, 5
        %v6567 = vrot.slane %v6566, 4
        %v6568 = vrot.slane %v5967, 5
        %v6569 = vsel %vm2076, %v6567, %v6568
        %v6570 = vrot.slane %v6568, 4
        %v6571 = vrot.slane %v5970, 5
        %v6572 = vrot.slane %v6571, 4
        %v6573 = vrot.slane %v5971, 5
        %v6574 = vsel %vm2076, %v6572, %v6573
        %v6575 = vrot.slane %v6573, 4
        %v6576 = vrot.slane %v5974, 5
        %v6577 = vrot.slane %v6576, 4
        %v6578 = vrot.slane %v5975, 5
        %v6579 = vsel %vm2076, %v6577, %v6578
        %v6580 = vrot.slane %v6578, 4
        %v6581 = vrot.slane %v5978, 5
        %v6582 = vrot.slane %v6581, 4
        %v6583 = vrot.slane %v5979, 5
        %v6584 = vsel %vm2076, %v6582, %v6583
        %v6585 = vrot.slane %v6583, 4
        %v6586 = vrot.slane %v5982, 5
        %v6587 = vrot.slane %v6586, 4
        %v6588 = vrot.slane %v5983, 5
        %v6589 = vsel %vm2076, %v6587, %v6588
        %v6590 = vrot.slane %v6588, 4
        %v6591 = vrot.slane %v5986, 5
        %v6592 = vrot.slane %v6591, 4
        %v6593 = vrot.slane %v5987, 5
        %v6594 = vsel %vm2076, %v6592, %v6593
        %v6595 = vrot.slane %v6593, 4
        %v6596 = vrot.slane %v5990, 5
        %v6597 = vrot.slane %v6596, 4
        %v6598 = vrot.slane %v5991, 5
        %v6599 = vsel %vm2076, %v6597, %v6598
        %v6600 = vrot.slane %v6598, 4
        %v6649 = vmax.bf16 %v6441, %v6521
        %v6650 = vmax.bf16 %v6442, %v6524
        %v6651 = vmax.bf16 %v6443, %v6525
        %v6652 = vmax.bf16 %v6444, %v6526
        %v6653 = vmax.bf16 %v6445, %v6529
        %v6654 = vmax.bf16 %v6446, %v6530
        %v6655 = vmax.bf16 %v6447, %v6531
        %v6656 = vmax.bf16 %v6448, %v6534
        %v6657 = vmax.bf16 %v6449, %v6535
        %v6658 = vmax.bf16 %v6450, %v6536
        %v6659 = vmax.bf16 %v6451, %v6539
        %v6660 = vmax.bf16 %v6452, %v6540
        %v6661 = vmax.bf16 %v6453, %v6541
        %v6662 = vmax.bf16 %v6454, %v6544
        %v6663 = vmax.bf16 %v6455, %v6545
        %v6664 = vmax.bf16 %v6456, %v6546
        %v6665 = vmax.bf16 %v6457, %v6549
        %v6666 = vmax.bf16 %v6458, %v6550
        %v6667 = vmax.bf16 %v6459, %v6551
        %v6668 = vmax.bf16 %v6460, %v6554
        %v6669 = vmax.bf16 %v6461, %v6555
        %v6670 = vmax.bf16 %v6462, %v6556
        %v6671 = vmax.bf16 %v6463, %v6559
        %v6672 = vmax.bf16 %v6464, %v6560
        %v6673 = vmax.bf16 %v6465, %v6561
        %v6674 = vmax.bf16 %v6466, %v6564
        %v6675 = vmax.bf16 %v6467, %v6565
        %v6676 = vmax.bf16 %v6468, %v6566
        %v6677 = vmax.bf16 %v6469, %v6569
        %v6678 = vmax.bf16 %v6470, %v6570
        %v6679 = vmax.bf16 %v6471, %v6571
        %v6680 = vmax.bf16 %v6472, %v6574
        %v6681 = vmax.bf16 %v6473, %v6575
        %v6682 = vmax.bf16 %v6474, %v6576
        %v6683 = vmax.bf16 %v6475, %v6579
        %v6684 = vmax.bf16 %v6476, %v6580
        %v6685 = vmax.bf16 %v6477, %v6581
        %v6686 = vmax.bf16 %v6478, %v6584
        %v6687 = vmax.bf16 %v6479, %v6585
        %v6688 = vmax.bf16 %v6480, %v6586
        %v6689 = vmax.bf16 %v6481, %v6589
        %v6690 = vmax.bf16 %v6482, %v6590
        %v6691 = vmax.bf16 %v6483, %v6591
        %v6692 = vmax.bf16 %v6484, %v6594
        %v6693 = vmax.bf16 %v6485, %v6595
        %v6694 = vmax.bf16 %v6486, %v6596
        %v6695 = vmax.bf16 %v6487, %v6599
        %v6696 = vmax.bf16 %v6488, %v6600
        %v6697 = vrot.slane %v6003, 5
        %v6698 = vrot.slane %v5999, 6
        %v6699 = vor.u32 %v6697, %v6698
        %v6700 = vrot.slane %v6699, 4
        %v6701 = vrot.slane %v6013, 5
        %v6702 = vrot.slane %v6009, 6
        %v6703 = vor.u32 %v6701, %v6702
        %v6704 = vsel %vm2255, %v6700, %v6703
        %v6705 = vrot.slane %v6703, 4
        %v6707 = vshll.u32 %v5932, 16
        %v6709 = vrot.slane %v6707, 6
        %v6710 = vsel %vm2255, %v6705, %v6709
        %v6711 = vrot.slane %v6028, 5
        %v6712 = vrot.slane %v6024, 6
        %v6713 = vor.u32 %v6711, %v6712
        %v6714 = vrot.slane %v6713, 4
        %v6715 = vrot.slane %v6038, 5
        %v6716 = vrot.slane %v6034, 6
        %v6717 = vor.u32 %v6715, %v6716
        %v6718 = vsel %vm2255, %v6714, %v6717
        %v6719 = vrot.slane %v6717, 4
        %v6721 = vshll.u32 %v5936, 16
        %v6723 = vrot.slane %v6721, 6
        %v6724 = vsel %vm2255, %v6719, %v6723
        %v6725 = vrot.slane %v6053, 5
        %v6726 = vrot.slane %v6049, 6
        %v6727 = vor.u32 %v6725, %v6726
        %v6728 = vrot.slane %v6727, 4
        %v6729 = vrot.slane %v6063, 5
        %v6730 = vrot.slane %v6059, 6
        %v6731 = vor.u32 %v6729, %v6730
        %v6732 = vsel %vm2255, %v6728, %v6731
        %v6733 = vrot.slane %v6731, 4
        %v6735 = vshll.u32 %v5940, 16
        %v6737 = vrot.slane %v6735, 6
        %v6738 = vsel %vm2255, %v6733, %v6737
        %v6739 = vrot.slane %v6078, 5
        %v6740 = vrot.slane %v6074, 6
        %v6741 = vor.u32 %v6739, %v6740
        %v6742 = vrot.slane %v6741, 4
        %v6743 = vrot.slane %v6088, 5
        %v6744 = vrot.slane %v6084, 6
        %v6745 = vor.u32 %v6743, %v6744
        %v6746 = vsel %vm2255, %v6742, %v6745
        %v6747 = vrot.slane %v6745, 4
        %v6749 = vshll.u32 %v5944, 16
        %v6751 = vrot.slane %v6749, 6
        %v6752 = vsel %vm2255, %v6747, %v6751
        %v6753 = vrot.slane %v6103, 5
        %v6754 = vrot.slane %v6099, 6
        %v6755 = vor.u32 %v6753, %v6754
        %v6756 = vrot.slane %v6755, 4
        %v6757 = vrot.slane %v6113, 5
        %v6758 = vrot.slane %v6109, 6
        %v6759 = vor.u32 %v6757, %v6758
        %v6760 = vsel %vm2255, %v6756, %v6759
        %v6761 = vrot.slane %v6759, 4
        %v6763 = vshll.u32 %v5948, 16
        %v6765 = vrot.slane %v6763, 6
        %v6766 = vsel %vm2255, %v6761, %v6765
        %v6767 = vrot.slane %v6128, 5
        %v6768 = vrot.slane %v6124, 6
        %v6769 = vor.u32 %v6767, %v6768
        %v6770 = vrot.slane %v6769, 4
        %v6771 = vrot.slane %v6138, 5
        %v6772 = vrot.slane %v6134, 6
        %v6773 = vor.u32 %v6771, %v6772
        %v6774 = vsel %vm2255, %v6770, %v6773
        %v6775 = vrot.slane %v6773, 4
        %v6777 = vshll.u32 %v5952, 16
        %v6779 = vrot.slane %v6777, 6
        %v6780 = vsel %vm2255, %v6775, %v6779
        %v6781 = vrot.slane %v6153, 5
        %v6782 = vrot.slane %v6149, 6
        %v6783 = vor.u32 %v6781, %v6782
        %v6784 = vrot.slane %v6783, 4
        %v6785 = vrot.slane %v6163, 5
        %v6786 = vrot.slane %v6159, 6
        %v6787 = vor.u32 %v6785, %v6786
        %v6788 = vsel %vm2255, %v6784, %v6787
        %v6789 = vrot.slane %v6787, 4
        %v6791 = vshll.u32 %v5956, 16
        %v6793 = vrot.slane %v6791, 6
        %v6794 = vsel %vm2255, %v6789, %v6793
        %v6795 = vrot.slane %v6178, 5
        %v6796 = vrot.slane %v6174, 6
        %v6797 = vor.u32 %v6795, %v6796
        %v6798 = vrot.slane %v6797, 4
        %v6799 = vrot.slane %v6188, 5
        %v6800 = vrot.slane %v6184, 6
        %v6801 = vor.u32 %v6799, %v6800
        %v6802 = vsel %vm2255, %v6798, %v6801
        %v6803 = vrot.slane %v6801, 4
        %v6805 = vshll.u32 %v5960, 16
        %v6807 = vrot.slane %v6805, 6
        %v6808 = vsel %vm2255, %v6803, %v6807
        %v6809 = vrot.slane %v6203, 5
        %v6810 = vrot.slane %v6199, 6
        %v6811 = vor.u32 %v6809, %v6810
        %v6812 = vrot.slane %v6811, 4
        %v6813 = vrot.slane %v6213, 5
        %v6814 = vrot.slane %v6209, 6
        %v6815 = vor.u32 %v6813, %v6814
        %v6816 = vsel %vm2255, %v6812, %v6815
        %v6817 = vrot.slane %v6815, 4
        %v6819 = vshll.u32 %v5964, 16
        %v6821 = vrot.slane %v6819, 6
        %v6822 = vsel %vm2255, %v6817, %v6821
        %v6823 = vrot.slane %v6228, 5
        %v6824 = vrot.slane %v6224, 6
        %v6825 = vor.u32 %v6823, %v6824
        %v6826 = vrot.slane %v6825, 4
        %v6827 = vrot.slane %v6238, 5
        %v6828 = vrot.slane %v6234, 6
        %v6829 = vor.u32 %v6827, %v6828
        %v6830 = vsel %vm2255, %v6826, %v6829
        %v6831 = vrot.slane %v6829, 4
        %v6833 = vshll.u32 %v5968, 16
        %v6835 = vrot.slane %v6833, 6
        %v6836 = vsel %vm2255, %v6831, %v6835
        %v6837 = vrot.slane %v6253, 5
        %v6838 = vrot.slane %v6249, 6
        %v6839 = vor.u32 %v6837, %v6838
        %v6840 = vrot.slane %v6839, 4
        %v6841 = vrot.slane %v6263, 5
        %v6842 = vrot.slane %v6259, 6
        %v6843 = vor.u32 %v6841, %v6842
        %v6844 = vsel %vm2255, %v6840, %v6843
        %v6845 = vrot.slane %v6843, 4
        %v6847 = vshll.u32 %v5972, 16
        %v6849 = vrot.slane %v6847, 6
        %v6850 = vsel %vm2255, %v6845, %v6849
        %v6851 = vrot.slane %v6278, 5
        %v6852 = vrot.slane %v6274, 6
        %v6853 = vor.u32 %v6851, %v6852
        %v6854 = vrot.slane %v6853, 4
        %v6855 = vrot.slane %v6288, 5
        %v6856 = vrot.slane %v6284, 6
        %v6857 = vor.u32 %v6855, %v6856
        %v6858 = vsel %vm2255, %v6854, %v6857
        %v6859 = vrot.slane %v6857, 4
        %v6861 = vshll.u32 %v5976, 16
        %v6863 = vrot.slane %v6861, 6
        %v6864 = vsel %vm2255, %v6859, %v6863
        %v6865 = vrot.slane %v6303, 5
        %v6866 = vrot.slane %v6299, 6
        %v6867 = vor.u32 %v6865, %v6866
        %v6868 = vrot.slane %v6867, 4
        %v6869 = vrot.slane %v6313, 5
        %v6870 = vrot.slane %v6309, 6
        %v6871 = vor.u32 %v6869, %v6870
        %v6872 = vsel %vm2255, %v6868, %v6871
        %v6873 = vrot.slane %v6871, 4
        %v6875 = vshll.u32 %v5980, 16
        %v6877 = vrot.slane %v6875, 6
        %v6878 = vsel %vm2255, %v6873, %v6877
        %v6879 = vrot.slane %v6328, 5
        %v6880 = vrot.slane %v6324, 6
        %v6881 = vor.u32 %v6879, %v6880
        %v6882 = vrot.slane %v6881, 4
        %v6883 = vrot.slane %v6338, 5
        %v6884 = vrot.slane %v6334, 6
        %v6885 = vor.u32 %v6883, %v6884
        %v6886 = vsel %vm2255, %v6882, %v6885
        %v6887 = vrot.slane %v6885, 4
        %v6889 = vshll.u32 %v5984, 16
        %v6891 = vrot.slane %v6889, 6
        %v6892 = vsel %vm2255, %v6887, %v6891
        %v6893 = vrot.slane %v6353, 5
        %v6894 = vrot.slane %v6349, 6
        %v6895 = vor.u32 %v6893, %v6894
        %v6896 = vrot.slane %v6895, 4
        %v6897 = vrot.slane %v6363, 5
        %v6898 = vrot.slane %v6359, 6
        %v6899 = vor.u32 %v6897, %v6898
        %v6900 = vsel %vm2255, %v6896, %v6899
        %v6901 = vrot.slane %v6899, 4
        %v6903 = vshll.u32 %v5988, 16
        %v6905 = vrot.slane %v6903, 6
        %v6906 = vsel %vm2255, %v6901, %v6905
        %v6907 = vrot.slane %v6378, 5
        %v6908 = vrot.slane %v6374, 6
        %v6909 = vor.u32 %v6907, %v6908
        %v6910 = vrot.slane %v6909, 4
        %v6911 = vrot.slane %v6388, 5
        %v6912 = vrot.slane %v6384, 6
        %v6913 = vor.u32 %v6911, %v6912
        %v6914 = vsel %vm2255, %v6910, %v6913
        %v6915 = vrot.slane %v6913, 4
        %v6917 = vshll.u32 %v5992, 16
        %v6919 = vrot.slane %v6917, 6
        %v6920 = vsel %vm2255, %v6915, %v6919
        %v6969 = vmax.bf16 %v6649, %v6699
        %v6970 = vmax.bf16 %v6650, %v6704
        %v6971 = vmax.bf16 %v6651, %v6710
        %v6972 = vmax.bf16 %v6652, %v6713
        %v6973 = vmax.bf16 %v6653, %v6718
        %v6974 = vmax.bf16 %v6654, %v6724
        %v6975 = vmax.bf16 %v6655, %v6727
        %v6976 = vmax.bf16 %v6656, %v6732
        %v6977 = vmax.bf16 %v6657, %v6738
        %v6978 = vmax.bf16 %v6658, %v6741
        %v6979 = vmax.bf16 %v6659, %v6746
        %v6980 = vmax.bf16 %v6660, %v6752
        %v6981 = vmax.bf16 %v6661, %v6755
        %v6982 = vmax.bf16 %v6662, %v6760
        %v6983 = vmax.bf16 %v6663, %v6766
        %v6984 = vmax.bf16 %v6664, %v6769
        %v6985 = vmax.bf16 %v6665, %v6774
        %v6986 = vmax.bf16 %v6666, %v6780
        %v6987 = vmax.bf16 %v6667, %v6783
        %v6988 = vmax.bf16 %v6668, %v6788
        %v6989 = vmax.bf16 %v6669, %v6794
        %v6990 = vmax.bf16 %v6670, %v6797
        %v6991 = vmax.bf16 %v6671, %v6802
        %v6992 = vmax.bf16 %v6672, %v6808
        %v6993 = vmax.bf16 %v6673, %v6811
        %v6994 = vmax.bf16 %v6674, %v6816
        %v6995 = vmax.bf16 %v6675, %v6822
        %v6996 = vmax.bf16 %v6676, %v6825
        %v6997 = vmax.bf16 %v6677, %v6830
        %v6998 = vmax.bf16 %v6678, %v6836
        %v6999 = vmax.bf16 %v6679, %v6839
        %v7000 = vmax.bf16 %v6680, %v6844
        %v7001 = vmax.bf16 %v6681, %v6850
        %v7002 = vmax.bf16 %v6682, %v6853
        %v7003 = vmax.bf16 %v6683, %v6858
        %v7004 = vmax.bf16 %v6684, %v6864
        %v7005 = vmax.bf16 %v6685, %v6867
        %v7006 = vmax.bf16 %v6686, %v6872
        %v7007 = vmax.bf16 %v6687, %v6878
        %v7008 = vmax.bf16 %v6688, %v6881
        %v7009 = vmax.bf16 %v6689, %v6886
        %v7010 = vmax.bf16 %v6690, %v6892
        %v7011 = vmax.bf16 %v6691, %v6895
        %v7012 = vmax.bf16 %v6692, %v6900
        %v7013 = vmax.bf16 %v6693, %v6906
        %v7014 = vmax.bf16 %v6694, %v6909
        %v7015 = vmax.bf16 %v6695, %v6914
        %v7016 = vmax.bf16 %v6696, %v6920
        %v7033 = vrot.slane %v5930, 6
        %v7034 = vrot.slane %v7033, 4
        %v7035 = vrot.slane %v5931, 6
        %v7036 = vsel %vm2594, %v7034, %v7035
        %v7037 = vrot.slane %v7035, 4
        %v7038 = vrot.slane %v5932, 6
        %v7039 = vsel %vm2594, %v7037, %v7038
        %v7040 = vrot.slane %v5934, 6
        %v7041 = vrot.slane %v7040, 4
        %v7042 = vrot.slane %v5935, 6
        %v7043 = vsel %vm2594, %v7041, %v7042
        %v7044 = vrot.slane %v7042, 4
        %v7045 = vrot.slane %v5936, 6
        %v7046 = vsel %vm2594, %v7044, %v7045
        %v7047 = vrot.slane %v5938, 6
        %v7048 = vrot.slane %v7047, 4
        %v7049 = vrot.slane %v5939, 6
        %v7050 = vsel %vm2594, %v7048, %v7049
        %v7051 = vrot.slane %v7049, 4
        %v7052 = vrot.slane %v5940, 6
        %v7053 = vsel %vm2594, %v7051, %v7052
        %v7054 = vrot.slane %v5942, 6
        %v7055 = vrot.slane %v7054, 4
        %v7056 = vrot.slane %v5943, 6
        %v7057 = vsel %vm2594, %v7055, %v7056
        %v7058 = vrot.slane %v7056, 4
        %v7059 = vrot.slane %v5944, 6
        %v7060 = vsel %vm2594, %v7058, %v7059
        %v7061 = vrot.slane %v5946, 6
        %v7062 = vrot.slane %v7061, 4
        %v7063 = vrot.slane %v5947, 6
        %v7064 = vsel %vm2594, %v7062, %v7063
        %v7065 = vrot.slane %v7063, 4
        %v7066 = vrot.slane %v5948, 6
        %v7067 = vsel %vm2594, %v7065, %v7066
        %v7068 = vrot.slane %v5950, 6
        %v7069 = vrot.slane %v7068, 4
        %v7070 = vrot.slane %v5951, 6
        %v7071 = vsel %vm2594, %v7069, %v7070
        %v7072 = vrot.slane %v7070, 4
        %v7073 = vrot.slane %v5952, 6
        %v7074 = vsel %vm2594, %v7072, %v7073
        %v7075 = vrot.slane %v5954, 6
        %v7076 = vrot.slane %v7075, 4
        %v7077 = vrot.slane %v5955, 6
        %v7078 = vsel %vm2594, %v7076, %v7077
        %v7079 = vrot.slane %v7077, 4
        %v7080 = vrot.slane %v5956, 6
        %v7081 = vsel %vm2594, %v7079, %v7080
        %v7082 = vrot.slane %v5958, 6
        %v7083 = vrot.slane %v7082, 4
        %v7084 = vrot.slane %v5959, 6
        %v7085 = vsel %vm2594, %v7083, %v7084
        %v7086 = vrot.slane %v7084, 4
        %v7087 = vrot.slane %v5960, 6
        %v7088 = vsel %vm2594, %v7086, %v7087
        %v7089 = vrot.slane %v5962, 6
        %v7090 = vrot.slane %v7089, 4
        %v7091 = vrot.slane %v5963, 6
        %v7092 = vsel %vm2594, %v7090, %v7091
        %v7093 = vrot.slane %v7091, 4
        %v7094 = vrot.slane %v5964, 6
        %v7095 = vsel %vm2594, %v7093, %v7094
        %v7096 = vrot.slane %v5966, 6
        %v7097 = vrot.slane %v7096, 4
        %v7098 = vrot.slane %v5967, 6
        %v7099 = vsel %vm2594, %v7097, %v7098
        %v7100 = vrot.slane %v7098, 4
        %v7101 = vrot.slane %v5968, 6
        %v7102 = vsel %vm2594, %v7100, %v7101
        %v7103 = vrot.slane %v5970, 6
        %v7104 = vrot.slane %v7103, 4
        %v7105 = vrot.slane %v5971, 6
        %v7106 = vsel %vm2594, %v7104, %v7105
        %v7107 = vrot.slane %v7105, 4
        %v7108 = vrot.slane %v5972, 6
        %v7109 = vsel %vm2594, %v7107, %v7108
        %v7110 = vrot.slane %v5974, 6
        %v7111 = vrot.slane %v7110, 4
        %v7112 = vrot.slane %v5975, 6
        %v7113 = vsel %vm2594, %v7111, %v7112
        %v7114 = vrot.slane %v7112, 4
        %v7115 = vrot.slane %v5976, 6
        %v7116 = vsel %vm2594, %v7114, %v7115
        %v7117 = vrot.slane %v5978, 6
        %v7118 = vrot.slane %v7117, 4
        %v7119 = vrot.slane %v5979, 6
        %v7120 = vsel %vm2594, %v7118, %v7119
        %v7121 = vrot.slane %v7119, 4
        %v7122 = vrot.slane %v5980, 6
        %v7123 = vsel %vm2594, %v7121, %v7122
        %v7124 = vrot.slane %v5982, 6
        %v7125 = vrot.slane %v7124, 4
        %v7126 = vrot.slane %v5983, 6
        %v7127 = vsel %vm2594, %v7125, %v7126
        %v7128 = vrot.slane %v7126, 4
        %v7129 = vrot.slane %v5984, 6
        %v7130 = vsel %vm2594, %v7128, %v7129
        %v7131 = vrot.slane %v5986, 6
        %v7132 = vrot.slane %v7131, 4
        %v7133 = vrot.slane %v5987, 6
        %v7134 = vsel %vm2594, %v7132, %v7133
        %v7135 = vrot.slane %v7133, 4
        %v7136 = vrot.slane %v5988, 6
        %v7137 = vsel %vm2594, %v7135, %v7136
        %v7138 = vrot.slane %v5990, 6
        %v7139 = vrot.slane %v7138, 4
        %v7140 = vrot.slane %v5991, 6
        %v7141 = vsel %vm2594, %v7139, %v7140
        %v7142 = vrot.slane %v7140, 4
        %v7143 = vrot.slane %v5992, 6
        %v7144 = vsel %vm2594, %v7142, %v7143
        %v7193 = vmax.bf16 %v6969, %v7033
        %v7194 = vmax.bf16 %v6970, %v7036
        %v7195 = vmax.bf16 %v6971, %v7039
        %v7196 = vmax.bf16 %v6972, %v7040
        %v7197 = vmax.bf16 %v6973, %v7043
        %v7198 = vmax.bf16 %v6974, %v7046
        %v7199 = vmax.bf16 %v6975, %v7047
        %v7200 = vmax.bf16 %v6976, %v7050
        %v7201 = vmax.bf16 %v6977, %v7053
        %v7202 = vmax.bf16 %v6978, %v7054
        %v7203 = vmax.bf16 %v6979, %v7057
        %v7204 = vmax.bf16 %v6980, %v7060
        %v7205 = vmax.bf16 %v6981, %v7061
        %v7206 = vmax.bf16 %v6982, %v7064
        %v7207 = vmax.bf16 %v6983, %v7067
        %v7208 = vmax.bf16 %v6984, %v7068
        %v7209 = vmax.bf16 %v6985, %v7071
        %v7210 = vmax.bf16 %v6986, %v7074
        %v7211 = vmax.bf16 %v6987, %v7075
        %v7212 = vmax.bf16 %v6988, %v7078
        %v7213 = vmax.bf16 %v6989, %v7081
        %v7214 = vmax.bf16 %v6990, %v7082
        %v7215 = vmax.bf16 %v6991, %v7085
        %v7216 = vmax.bf16 %v6992, %v7088
        %v7217 = vmax.bf16 %v6993, %v7089
        %v7218 = vmax.bf16 %v6994, %v7092
        %v7219 = vmax.bf16 %v6995, %v7095
        %v7220 = vmax.bf16 %v6996, %v7096
        %v7221 = vmax.bf16 %v6997, %v7099
        %v7222 = vmax.bf16 %v6998, %v7102
        %v7223 = vmax.bf16 %v6999, %v7103
        %v7224 = vmax.bf16 %v7000, %v7106
        %v7225 = vmax.bf16 %v7001, %v7109
        %v7226 = vmax.bf16 %v7002, %v7110
        %v7227 = vmax.bf16 %v7003, %v7113
        %v7228 = vmax.bf16 %v7004, %v7116
        %v7229 = vmax.bf16 %v7005, %v7117
        %v7230 = vmax.bf16 %v7006, %v7120
        %v7231 = vmax.bf16 %v7007, %v7123
        %v7232 = vmax.bf16 %v7008, %v7124
        %v7233 = vmax.bf16 %v7009, %v7127
        %v7234 = vmax.bf16 %v7010, %v7130
        %v7235 = vmax.bf16 %v7011, %v7131
        %v7236 = vmax.bf16 %v7012, %v7134
        %v7237 = vmax.bf16 %v7013, %v7137
        %v7238 = vmax.bf16 %v7014, %v7138
        %v7239 = vmax.bf16 %v7015, %v7141
        %v7240 = vmax.bf16 %v7016, %v7144
        %v7289 = vrot.slane %v7193, 7
        %v7290 = vrot.slane %v7289, 4
        %v7291 = vrot.slane %v7194, 7
        %v7292 = vsel %vm2853, %v7290, %v7291
        %v7293 = vrot.slane %v7291, 4
        %v7294 = vrot.slane %v7195, 7
        %v7295 = vsel %vm2853, %v7293, %v7294
        %v7296 = vrot.slane %v7196, 7
        %v7297 = vrot.slane %v7296, 4
        %v7298 = vrot.slane %v7197, 7
        %v7299 = vsel %vm2853, %v7297, %v7298
        %v7300 = vrot.slane %v7298, 4
        %v7301 = vrot.slane %v7198, 7
        %v7302 = vsel %vm2853, %v7300, %v7301
        %v7303 = vrot.slane %v7199, 7
        %v7304 = vrot.slane %v7303, 4
        %v7305 = vrot.slane %v7200, 7
        %v7306 = vsel %vm2853, %v7304, %v7305
        %v7307 = vrot.slane %v7305, 4
        %v7308 = vrot.slane %v7201, 7
        %v7309 = vsel %vm2853, %v7307, %v7308
        %v7310 = vrot.slane %v7202, 7
        %v7311 = vrot.slane %v7310, 4
        %v7312 = vrot.slane %v7203, 7
        %v7313 = vsel %vm2853, %v7311, %v7312
        %v7314 = vrot.slane %v7312, 4
        %v7315 = vrot.slane %v7204, 7
        %v7316 = vsel %vm2853, %v7314, %v7315
        %v7317 = vrot.slane %v7205, 7
        %v7318 = vrot.slane %v7317, 4
        %v7319 = vrot.slane %v7206, 7
        %v7320 = vsel %vm2853, %v7318, %v7319
        %v7321 = vrot.slane %v7319, 4
        %v7322 = vrot.slane %v7207, 7
        %v7323 = vsel %vm2853, %v7321, %v7322
        %v7324 = vrot.slane %v7208, 7
        %v7325 = vrot.slane %v7324, 4
        %v7326 = vrot.slane %v7209, 7
        %v7327 = vsel %vm2853, %v7325, %v7326
        %v7328 = vrot.slane %v7326, 4
        %v7329 = vrot.slane %v7210, 7
        %v7330 = vsel %vm2853, %v7328, %v7329
        %v7331 = vrot.slane %v7211, 7
        %v7332 = vrot.slane %v7331, 4
        %v7333 = vrot.slane %v7212, 7
        %v7334 = vsel %vm2853, %v7332, %v7333
        %v7335 = vrot.slane %v7333, 4
        %v7336 = vrot.slane %v7213, 7
        %v7337 = vsel %vm2853, %v7335, %v7336
        %v7338 = vrot.slane %v7214, 7
        %v7339 = vrot.slane %v7338, 4
        %v7340 = vrot.slane %v7215, 7
        %v7341 = vsel %vm2853, %v7339, %v7340
        %v7342 = vrot.slane %v7340, 4
        %v7343 = vrot.slane %v7216, 7
        %v7344 = vsel %vm2853, %v7342, %v7343
        %v7345 = vrot.slane %v7217, 7
        %v7346 = vrot.slane %v7345, 4
        %v7347 = vrot.slane %v7218, 7
        %v7348 = vsel %vm2853, %v7346, %v7347
        %v7349 = vrot.slane %v7347, 4
        %v7350 = vrot.slane %v7219, 7
        %v7351 = vsel %vm2853, %v7349, %v7350
        %v7352 = vrot.slane %v7220, 7
        %v7353 = vrot.slane %v7352, 4
        %v7354 = vrot.slane %v7221, 7
        %v7355 = vsel %vm2853, %v7353, %v7354
        %v7356 = vrot.slane %v7354, 4
        %v7357 = vrot.slane %v7222, 7
        %v7358 = vsel %vm2853, %v7356, %v7357
        %v7359 = vrot.slane %v7223, 7
        %v7360 = vrot.slane %v7359, 4
        %v7361 = vrot.slane %v7224, 7
        %v7362 = vsel %vm2853, %v7360, %v7361
        %v7363 = vrot.slane %v7361, 4
        %v7364 = vrot.slane %v7225, 7
        %v7365 = vsel %vm2853, %v7363, %v7364
        %v7366 = vrot.slane %v7226, 7
        %v7367 = vrot.slane %v7366, 4
        %v7368 = vrot.slane %v7227, 7
        %v7369 = vsel %vm2853, %v7367, %v7368
        %v7370 = vrot.slane %v7368, 4
        %v7371 = vrot.slane %v7228, 7
        %v7372 = vsel %vm2853, %v7370, %v7371
        %v7373 = vrot.slane %v7229, 7
        %v7374 = vrot.slane %v7373, 4
        %v7375 = vrot.slane %v7230, 7
        %v7376 = vsel %vm2853, %v7374, %v7375
        %v7377 = vrot.slane %v7375, 4
        %v7378 = vrot.slane %v7231, 7
        %v7379 = vsel %vm2853, %v7377, %v7378
        %v7380 = vrot.slane %v7232, 7
        %v7381 = vrot.slane %v7380, 4
        %v7382 = vrot.slane %v7233, 7
        %v7383 = vsel %vm2853, %v7381, %v7382
        %v7384 = vrot.slane %v7382, 4
        %v7385 = vrot.slane %v7234, 7
        %v7386 = vsel %vm2853, %v7384, %v7385
        %v7387 = vrot.slane %v7235, 7
        %v7388 = vrot.slane %v7387, 4
        %v7389 = vrot.slane %v7236, 7
        %v7390 = vsel %vm2853, %v7388, %v7389
        %v7391 = vrot.slane %v7389, 4
        %v7392 = vrot.slane %v7237, 7
        %v7393 = vsel %vm2853, %v7391, %v7392
        %v7394 = vrot.slane %v7238, 7
        %v7395 = vrot.slane %v7394, 4
        %v7396 = vrot.slane %v7239, 7
        %v7397 = vsel %vm2853, %v7395, %v7396
        %v7398 = vrot.slane %v7396, 4
        %v7399 = vrot.slane %v7240, 7
        %v7400 = vsel %vm2853, %v7398, %v7399
        %v7401 = vld [vmem:[#allocation11 + $0xc0] sm:$0xf]
        %v7402 = vld [vmem:[#allocation11 + $0xc4] sm:$0xf]
        %v7403 = vld [vmem:[#allocation11 + $0xc8] sm:$0xf]
        %v7404 = vld [vmem:[#allocation11 + $0xcc] sm:$0xf]
        %v7405 = vld [vmem:[#allocation11 + $0xd0] sm:$0xf]
        %v7406 = vld [vmem:[#allocation11 + $0xd4] sm:$0xf]
        %v7407 = vld [vmem:[#allocation11 + $0xd8] sm:$0xf]
        %v7408 = vld [vmem:[#allocation11 + $0xdc] sm:$0xf]
        %v7409 = vld [vmem:[#allocation11 + $0xe0] sm:$0xf]
        %v7410 = vld [vmem:[#allocation11 + $0xe4] sm:$0xf]
        %v7411 = vld [vmem:[#allocation11 + $0xe8] sm:$0xf]
        %v7412 = vld [vmem:[#allocation11 + $0xec] sm:$0xf]
        %v7413 = vld [vmem:[#allocation11 + $0xf0] sm:$0xf]
        %v7414 = vld [vmem:[#allocation11 + $0xf4] sm:$0xf]
        %v7415 = vld [vmem:[#allocation11 + $0xf8] sm:$0xf]
        %v7416 = vld [vmem:[#allocation11 + $0xfc] sm:$0xf]
        %v7417 = vunpack.c.l.b16 %v7292
        %v7418 = vunpack.c.l.b16 %v7295
        %v7419 = vunpack.c.l.b16 %v7299
        %v7420 = vunpack.c.l.b16 %v7302
        %v7421 = vunpack.c.l.b16 %v7306
        %v7422 = vunpack.c.l.b16 %v7309
        %v7423 = vunpack.c.l.b16 %v7313
        %v7424 = vunpack.c.l.b16 %v7316
        %v7425 = vunpack.c.l.b16 %v7320
        %v7426 = vunpack.c.l.b16 %v7323
        %v7427 = vunpack.c.l.b16 %v7327
        %v7428 = vunpack.c.l.b16 %v7330
        %v7429 = vunpack.c.l.b16 %v7334
        %v7430 = vunpack.c.l.b16 %v7337
        %v7431 = vunpack.c.l.b16 %v7341
        %v7432 = vunpack.c.l.b16 %v7344
        %v7433 = vunpack.c.l.b16 %v7348
        %v7434 = vunpack.c.l.b16 %v7351
        %v7435 = vunpack.c.l.b16 %v7355
        %v7436 = vunpack.c.l.b16 %v7358
        %v7437 = vunpack.c.l.b16 %v7362
        %v7438 = vunpack.c.l.b16 %v7365
        %v7439 = vunpack.c.l.b16 %v7369
        %v7440 = vunpack.c.l.b16 %v7372
        %v7441 = vunpack.c.l.b16 %v7376
        %v7442 = vunpack.c.l.b16 %v7379
        %v7443 = vunpack.c.l.b16 %v7383
        %v7444 = vunpack.c.l.b16 %v7386
        %v7445 = vunpack.c.l.b16 %v7390
        %v7446 = vunpack.c.l.b16 %v7393
        %v7447 = vunpack.c.l.b16 %v7397
        %v7448 = vunpack.c.l.b16 %v7400
        %v7449 = vpack.c.b16 %v7418, %v7417
        %v7450 = vpack.c.b16 %v7420, %v7419
        %v7451 = vpack.c.b16 %v7422, %v7421
        %v7452 = vpack.c.b16 %v7424, %v7423
        %v7453 = vpack.c.b16 %v7426, %v7425
        %v7454 = vpack.c.b16 %v7428, %v7427
        %v7455 = vpack.c.b16 %v7430, %v7429
        %v7456 = vpack.c.b16 %v7432, %v7431
        %v7457 = vpack.c.b16 %v7434, %v7433
        %v7458 = vpack.c.b16 %v7436, %v7435
        %v7459 = vpack.c.b16 %v7438, %v7437
        %v7460 = vpack.c.b16 %v7440, %v7439
        %v7461 = vpack.c.b16 %v7442, %v7441
        %v7462 = vpack.c.b16 %v7444, %v7443
        %v7463 = vpack.c.b16 %v7446, %v7445
        %v7464 = vpack.c.b16 %v7448, %v7447
        %v7497 = vunpack.c.l.b16 %v7401
        %v7498 = vunpack.c.l.b16 %v7402
        %v7499 = vunpack.c.l.b16 %v7403
        %v7500 = vunpack.c.l.b16 %v7404
        %v7501 = vunpack.c.l.b16 %v7405
        %v7502 = vunpack.c.l.b16 %v7406
        %v7503 = vunpack.c.l.b16 %v7407
        %v7504 = vunpack.c.l.b16 %v7408
        %v7505 = vunpack.c.l.b16 %v7409
        %v7506 = vunpack.c.l.b16 %v7410
        %v7507 = vunpack.c.l.b16 %v7411
        %v7508 = vunpack.c.l.b16 %v7412
        %v7509 = vunpack.c.l.b16 %v7413
        %v7510 = vunpack.c.l.b16 %v7414
        %v7511 = vunpack.c.l.b16 %v7415
        %v7512 = vunpack.c.l.b16 %v7416
        %v7513 = vpack.c.b16 %v7498, %v7497
        %v7514 = vpack.c.b16 %v7500, %v7499
        %v7515 = vpack.c.b16 %v7502, %v7501
        %v7516 = vpack.c.b16 %v7504, %v7503
        %v7517 = vpack.c.b16 %v7506, %v7505
        %v7518 = vpack.c.b16 %v7508, %v7507
        %v7519 = vpack.c.b16 %v7510, %v7509
        %v7520 = vpack.c.b16 %v7512, %v7511
        %7529 = vmatprep.subr.bf16.mxu0 0
        %7530 = vmatpush1.bf16.msra.mxu0 %v7513
        %7531 = vmatprep.subr.bf16.mxu0 0
        %7532 = vmatpush1.bf16.msra.mxu0 %v7514
        %7533 = vmatprep.subr.bf16.mxu0 0
        %7534 = vmatpush1.bf16.msra.mxu0 %v7515
        %7535 = vmatprep.subr.bf16.mxu0 0
        %7536 = vmatpush1.bf16.msra.mxu0 %v7516
        %7537 = vmatprep.subr.bf16.mxu0 0
        %7538 = vmatpush1.bf16.msra.mxu0 %v7517
        %7539 = vmatprep.subr.bf16.mxu0 0
        %7540 = vmatpush1.bf16.msra.mxu0 %v7518
        %7541 = vmatprep.subr.bf16.mxu0 0
        %7542 = vmatpush1.bf16.msra.mxu0 %v7519
        %7543 = vmatprep.subr.bf16.mxu0 0
        %7544 = vmatpush1.bf16.msra.mxu0 %v7520
        %7545 = vmatprep.subr.bf16.mxu0 0
        %7546 = vmatpush1.bf16.msra.mxu0 0
        %7547 = vmatprep.subr.bf16.mxu0 0
        %7548 = vmatpush1.bf16.msra.mxu0 0
        %7549 = vmatprep.subr.bf16.mxu0 0
        %7550 = vmatpush1.bf16.msra.mxu0 0
        %7551 = vmatprep.subr.bf16.mxu0 0
        %7552 = vmatpush1.bf16.msra.mxu0 0
        %7553 = vmatprep.subr.bf16.mxu0 0
        %7554 = vmatpush1.bf16.msra.mxu0 0
        %7555 = vmatprep.subr.bf16.mxu0 0
        %7556 = vmatpush1.bf16.msra.mxu0 0
        %7557 = vmatprep.subr.bf16.mxu0 0
        %7558 = vmatpush1.bf16.msra.mxu0 0
        %7559 = vmatprep.subr.bf16.mxu0 0
        %7560 = vmatpush1.bf16.msra.mxu0 0
        %7561 = vmatprep.mubr.bf16.mxu0 0
        %7562 = vmatmul.mubr.bf16.gmra.mrb[0].mxu0 %v7449
        %v7563 = vpop.f32.mrb[0].mxu0
        %v7564 = vadd.f32 0.0, %v7563
        %v7565 = vpop.f32.mrb[0].mxu0
        %v7566 = vpop.f32.mrb[0].mxu0
        %v7567 = vadd.f32 0.0, %v7566
        %v7568 = vpop.f32.mrb[0].mxu0
        %7569 = vmatprep.mubr.bf16.mxu0 0
        %7570 = vmatmul.mubr.bf16.gmra.mrb[0].mxu0 %v7450
        %v7571 = vpop.f32.mrb[0].mxu0
        %v7572 = vadd.f32 0.0, %v7571
        %v7573 = vpop.f32.mrb[0].mxu0
        %v7574 = vpop.f32.mrb[0].mxu0
        %v7575 = vadd.f32 0.0, %v7574
        %v7576 = vpop.f32.mrb[0].mxu0
        %7577 = vmatprep.mubr.bf16.mxu0 0
        %7578 = vmatmul.mubr.bf16.gmra.mrb[0].mxu0 %v7451
        %v7579 = vpop.f32.mrb[0].mxu0
        %v7580 = vadd.f32 0.0, %v7579
        %v7581 = vpop.f32.mrb[0].mxu0
        %v7582 = vpop.f32.mrb[0].mxu0
        %v7583 = vadd.f32 0.0, %v7582
        %v7584 = vpop.f32.mrb[0].mxu0
        %7585 = vmatprep.mubr.bf16.mxu0 0
        %7586 = vmatmul.mubr.bf16.gmra.mrb[0].mxu0 %v7452
        %v7587 = vpop.f32.mrb[0].mxu0
        %v7588 = vadd.f32 0.0, %v7587
        %v7589 = vpop.f32.mrb[0].mxu0
        %v7590 = vpop.f32.mrb[0].mxu0
        %v7591 = vadd.f32 0.0, %v7590
        %v7592 = vpop.f32.mrb[0].mxu0
        %7593 = vmatprep.mubr.bf16.mxu0 0
        %7594 = vmatmul.mubr.bf16.gmra.mrb[0].mxu0 %v7453
        %v7595 = vpop.f32.mrb[0].mxu0
        %v7596 = vadd.f32 0.0, %v7595
        %v7597 = vpop.f32.mrb[0].mxu0
        %v7598 = vpop.f32.mrb[0].mxu0
        %v7599 = vadd.f32 0.0, %v7598
        %v7600 = vpop.f32.mrb[0].mxu0
        %7601 = vmatprep.mubr.bf16.mxu0 0
        %7602 = vmatmul.mubr.bf16.gmra.mrb[0].mxu0 %v7454
        %v7603 = vpop.f32.mrb[0].mxu0
        %v7604 = vadd.f32 0.0, %v7603
        %v7605 = vpop.f32.mrb[0].mxu0
        %v7606 = vpop.f32.mrb[0].mxu0
        %v7607 = vadd.f32 0.0, %v7606
        %v7608 = vpop.f32.mrb[0].mxu0
        %7609 = vmatprep.mubr.bf16.mxu0 0
        %7610 = vmatmul.mubr.bf16.gmra.mrb[0].mxu0 %v7455
        %v7611 = vpop.f32.mrb[0].mxu0
        %v7612 = vadd.f32 0.0, %v7611
        %v7613 = vpop.f32.mrb[0].mxu0
        %v7614 = vpop.f32.mrb[0].mxu0
        %v7615 = vadd.f32 0.0, %v7614
        %v7616 = vpop.f32.mrb[0].mxu0
        %7617 = vmatprep.mubr.bf16.mxu0 0
        %7618 = vmatmul.mubr.bf16.gmra.mrb[0].mxu0 %v7456
        %v7619 = vpop.f32.mrb[0].mxu0
        %v7620 = vadd.f32 0.0, %v7619
        %v7621 = vpop.f32.mrb[0].mxu0
        %v7622 = vpop.f32.mrb[0].mxu0
        %v7623 = vadd.f32 0.0, %v7622
        %v7624 = vpop.f32.mrb[0].mxu0
        %7625 = vmatprep.mubr.bf16.mxu0 0
        %7626 = vmatmul.mubr.bf16.gmra.mrb[0].mxu0 %v7457
        %v7627 = vpop.f32.mrb[0].mxu0
        %v7628 = vadd.f32 0.0, %v7627
        %v7629 = vpop.f32.mrb[0].mxu0
        %v7630 = vpop.f32.mrb[0].mxu0
        %v7631 = vadd.f32 0.0, %v7630
        %v7632 = vpop.f32.mrb[0].mxu0
        %7633 = vmatprep.mubr.bf16.mxu0 0
        %7634 = vmatmul.mubr.bf16.gmra.mrb[0].mxu0 %v7458
        %v7635 = vpop.f32.mrb[0].mxu0
        %v7636 = vadd.f32 0.0, %v7635
        %v7637 = vpop.f32.mrb[0].mxu0
        %v7638 = vpop.f32.mrb[0].mxu0
        %v7639 = vadd.f32 0.0, %v7638
        %v7640 = vpop.f32.mrb[0].mxu0
        %7641 = vmatprep.mubr.bf16.mxu0 0
        %7642 = vmatmul.mubr.bf16.gmra.mrb[0].mxu0 %v7459
        %v7643 = vpop.f32.mrb[0].mxu0
        %v7644 = vadd.f32 0.0, %v7643
        %v7645 = vpop.f32.mrb[0].mxu0
        %v7646 = vpop.f32.mrb[0].mxu0
        %v7647 = vadd.f32 0.0, %v7646
        %v7648 = vpop.f32.mrb[0].mxu0
        %7649 = vmatprep.mubr.bf16.mxu0 0
        %7650 = vmatmul.mubr.bf16.gmra.mrb[0].mxu0 %v7460
        %v7651 = vpop.f32.mrb[0].mxu0
        %v7652 = vadd.f32 0.0, %v7651
        %v7653 = vpop.f32.mrb[0].mxu0
        %v7654 = vpop.f32.mrb[0].mxu0
        %v7655 = vadd.f32 0.0, %v7654
        %v7656 = vpop.f32.mrb[0].mxu0
        %7657 = vmatprep.mubr.bf16.mxu0 0
        %7658 = vmatmul.mubr.bf16.gmra.mrb[0].mxu0 %v7461
        %v7659 = vpop.f32.mrb[0].mxu0
        %v7660 = vadd.f32 0.0, %v7659
        %v7661 = vpop.f32.mrb[0].mxu0
        %v7662 = vpop.f32.mrb[0].mxu0
        %v7663 = vadd.f32 0.0, %v7662
        %v7664 = vpop.f32.mrb[0].mxu0
        %7665 = vmatprep.mubr.bf16.mxu0 0
        %7666 = vmatmul.mubr.bf16.gmra.mrb[0].mxu0 %v7462
        %v7667 = vpop.f32.mrb[0].mxu0
        %v7668 = vadd.f32 0.0, %v7667
        %v7669 = vpop.f32.mrb[0].mxu0
        %v7670 = vpop.f32.mrb[0].mxu0
        %v7671 = vadd.f32 0.0, %v7670
        %v7672 = vpop.f32.mrb[0].mxu0
        %7673 = vmatprep.mubr.bf16.mxu0 0
        %7674 = vmatmul.mubr.bf16.gmra.mrb[0].mxu0 %v7463
        %v7675 = vpop.f32.mrb[0].mxu0
        %v7676 = vadd.f32 0.0, %v7675
        %v7677 = vpop.f32.mrb[0].mxu0
        %v7678 = vpop.f32.mrb[0].mxu0
        %v7679 = vadd.f32 0.0, %v7678
        %v7680 = vpop.f32.mrb[0].mxu0
        %7681 = vmatprep.mubr.bf16.mxu0 0
        %7682 = vmatmul.mubr.bf16.gmra.mrb[0].mxu0 %v7464
        %v7683 = vpop.f32.mrb[0].mxu0
        %v7684 = vadd.f32 0.0, %v7683
        %v7685 = vpop.f32.mrb[0].mxu0
        %v7686 = vpop.f32.mrb[0].mxu0
        %v7687 = vadd.f32 0.0, %v7686
        %v7688 = vpop.f32.mrb[0].mxu0
        %7689 = vdwg.mxu0
        %v7690 = vadd.f32 %v5561, %v7564
        %v7691 = vadd.f32 %v5562, %v7567
        %v7692 = vadd.f32 %v5563, %v7572
        %v7693 = vadd.f32 %v5564, %v7575
        %v7694 = vadd.f32 %v5565, %v7580
        %v7695 = vadd.f32 %v5566, %v7583
        %v7696 = vadd.f32 %v5567, %v7588
        %v7697 = vadd.f32 %v5568, %v7591
        %v7698 = vadd.f32 %v5569, %v7596
        %v7699 = vadd.f32 %v5570, %v7599
        %v7700 = vadd.f32 %v5571, %v7604
        %v7701 = vadd.f32 %v5572, %v7607
        %v7702 = vadd.f32 %v5573, %v7612
        %v7703 = vadd.f32 %v5574, %v7615
        %v7704 = vadd.f32 %v5575, %v7620
        %v7705 = vadd.f32 %v5576, %v7623
        %v7706 = vadd.f32 %v5577, %v7628
        %v7707 = vadd.f32 %v5578, %v7631
        %v7708 = vadd.f32 %v5579, %v7636
        %v7709 = vadd.f32 %v5580, %v7639
        %v7710 = vadd.f32 %v5581, %v7644
        %v7711 = vadd.f32 %v5582, %v7647
        %v7712 = vadd.f32 %v5583, %v7652
        %v7713 = vadd.f32 %v5584, %v7655
        %v7714 = vadd.f32 %v5585, %v7660
        %v7715 = vadd.f32 %v5586, %v7663
        %v7716 = vadd.f32 %v5587, %v7668
        %v7717 = vadd.f32 %v5588, %v7671
        %v7718 = vadd.f32 %v5589, %v7676
        %v7719 = vadd.f32 %v5590, %v7679
        %v7720 = vadd.f32 %v5591, %v7684
        %v7721 = vadd.f32 %v5592, %v7687
        %v7722 = vld [vmem:[#allocation12] sm:$0x1]
        %v7724 = vlaneseq
        %v7725 = vshrl.u32 %v7724, 7
        %v7726 = vsub.s32 0, %v7725
        %v7727 = vrot.slane %v7722, %v7726
        %v7729 = vmul.f32 %v7690, %v7727
        %v7730 = vmul.f32 %v7691, %v7727
        %v7731 = vmul.f32 %v7692, %v7727
        %v7732 = vmul.f32 %v7693, %v7727
        %v7733 = vmul.f32 %v7694, %v7727
        %v7734 = vmul.f32 %v7695, %v7727
        %v7735 = vmul.f32 %v7696, %v7727
        %v7736 = vmul.f32 %v7697, %v7727
        %v7737 = vmul.f32 %v7698, %v7727
        %v7738 = vmul.f32 %v7699, %v7727
        %v7739 = vmul.f32 %v7700, %v7727
        %v7740 = vmul.f32 %v7701, %v7727
        %v7741 = vmul.f32 %v7702, %v7727
        %v7742 = vmul.f32 %v7703, %v7727
        %v7743 = vmul.f32 %v7704, %v7727
        %v7744 = vmul.f32 %v7705, %v7727
        %v7745 = vmul.f32 %v7706, %v7727
        %v7746 = vmul.f32 %v7707, %v7727
        %v7747 = vmul.f32 %v7708, %v7727
        %v7748 = vmul.f32 %v7709, %v7727
        %v7749 = vmul.f32 %v7710, %v7727
        %v7750 = vmul.f32 %v7711, %v7727
        %v7751 = vmul.f32 %v7712, %v7727
        %v7752 = vmul.f32 %v7713, %v7727
        %v7753 = vmul.f32 %v7714, %v7727
        %v7754 = vmul.f32 %v7715, %v7727
        %v7755 = vmul.f32 %v7716, %v7727
        %v7756 = vmul.f32 %v7717, %v7727
        %v7757 = vmul.f32 %v7718, %v7727
        %v7758 = vmul.f32 %v7719, %v7727
        %v7759 = vmul.f32 %v7720, %v7727
        %v7760 = vmul.f32 %v7721, %v7727
        %v7761 = vld [vmem:[#allocation14] sm:$0x1]
        %v7763 = vlaneseq
        %v7764 = vshrl.u32 %v7763, 7
        %v7765 = vsub.s32 0, %v7764
        %v7766 = vrot.slane %v7761, %v7765
        %v7768 = vadd.f32 %v7729, %v7766
        %v7769 = vadd.f32 %v7730, %v7766
        %v7770 = vadd.f32 %v7731, %v7766
        %v7771 = vadd.f32 %v7732, %v7766
        %v7772 = vadd.f32 %v7733, %v7766
        %v7773 = vadd.f32 %v7734, %v7766
        %v7774 = vadd.f32 %v7735, %v7766
        %v7775 = vadd.f32 %v7736, %v7766
        %v7776 = vadd.f32 %v7737, %v7766
        %v7777 = vadd.f32 %v7738, %v7766
        %v7778 = vadd.f32 %v7739, %v7766
        %v7779 = vadd.f32 %v7740, %v7766
        %v7780 = vadd.f32 %v7741, %v7766
        %v7781 = vadd.f32 %v7742, %v7766
        %v7782 = vadd.f32 %v7743, %v7766
        %v7783 = vadd.f32 %v7744, %v7766
        %v7784 = vadd.f32 %v7745, %v7766
        %v7785 = vadd.f32 %v7746, %v7766
        %v7786 = vadd.f32 %v7747, %v7766
        %v7787 = vadd.f32 %v7748, %v7766
        %v7788 = vadd.f32 %v7749, %v7766
        %v7789 = vadd.f32 %v7750, %v7766
        %v7790 = vadd.f32 %v7751, %v7766
        %v7791 = vadd.f32 %v7752, %v7766
        %v7792 = vadd.f32 %v7753, %v7766
        %v7793 = vadd.f32 %v7754, %v7766
        %v7794 = vadd.f32 %v7755, %v7766
        %v7795 = vadd.f32 %v7756, %v7766
        %v7796 = vadd.f32 %v7757, %v7766
        %v7797 = vadd.f32 %v7758, %v7766
        %v7798 = vadd.f32 %v7759, %v7766
        %v7799 = vadd.f32 %v7760, %v7766
        %v7800 = vsub.f32 0.0, %v7768
        %v7801 = vsub.f32 0.0, %v7769
        %v7802 = vsub.f32 0.0, %v7770
        %v7803 = vsub.f32 0.0, %v7771
        %v7804 = vsub.f32 0.0, %v7772
        %v7805 = vsub.f32 0.0, %v7773
        %v7806 = vsub.f32 0.0, %v7774
        %v7807 = vsub.f32 0.0, %v7775
        %v7808 = vsub.f32 0.0, %v7776
        %v7809 = vsub.f32 0.0, %v7777
        %v7810 = vsub.f32 0.0, %v7778
        %v7811 = vsub.f32 0.0, %v7779
        %v7812 = vsub.f32 0.0, %v7780
        %v7813 = vsub.f32 0.0, %v7781
        %v7814 = vsub.f32 0.0, %v7782
        %v7815 = vsub.f32 0.0, %v7783
        %v7816 = vsub.f32 0.0, %v7784
        %v7817 = vsub.f32 0.0, %v7785
        %v7818 = vsub.f32 0.0, %v7786
        %v7819 = vsub.f32 0.0, %v7787
        %v7820 = vsub.f32 0.0, %v7788
        %v7821 = vsub.f32 0.0, %v7789
        %v7822 = vsub.f32 0.0, %v7790
        %v7823 = vsub.f32 0.0, %v7791
        %v7824 = vsub.f32 0.0, %v7792
        %v7825 = vsub.f32 0.0, %v7793
        %v7826 = vsub.f32 0.0, %v7794
        %v7827 = vsub.f32 0.0, %v7795
        %v7828 = vsub.f32 0.0, %v7796
        %v7829 = vsub.f32 0.0, %v7797
        %v7830 = vsub.f32 0.0, %v7798
        %v7831 = vsub.f32 0.0, %v7799
        %v7832 = vmul.f32 %v7800, 1.442695
        %v7833 = vpow.pop %v7832
        %v7834 = vmul.f32 %v7801, 1.442695
        %v7835 = vpow.pop %v7834
        %v7836 = vmul.f32 %v7802, 1.442695
        %v7837 = vpow.pop %v7836
        %v7838 = vmul.f32 %v7803, 1.442695
        %v7839 = vpow.pop %v7838
        %v7840 = vmul.f32 %v7804, 1.442695
        %v7841 = vpow.pop %v7840
        %v7842 = vmul.f32 %v7805, 1.442695
        %v7843 = vpow.pop %v7842
        %v7844 = vmul.f32 %v7806, 1.442695
        %v7845 = vpow.pop %v7844
        %v7846 = vmul.f32 %v7807, 1.442695
        %v7847 = vpow.pop %v7846
        %v7848 = vmul.f32 %v7808, 1.442695
        %v7849 = vpow.pop %v7848
        %v7850 = vmul.f32 %v7809, 1.442695
        %v7851 = vpow.pop %v7850
        %v7852 = vmul.f32 %v7810, 1.442695
        %v7853 = vpow.pop %v7852
        %v7854 = vmul.f32 %v7811, 1.442695
        %v7855 = vpow.pop %v7854
        %v7856 = vmul.f32 %v7812, 1.442695
        %v7857 = vpow.pop %v7856
        %v7858 = vmul.f32 %v7813, 1.442695
        %v7859 = vpow.pop %v7858
        %v7860 = vmul.f32 %v7814, 1.442695
        %v7861 = vpow.pop %v7860
        %v7862 = vmul.f32 %v7815, 1.442695
        %v7863 = vpow.pop %v7862
        %v7864 = vmul.f32 %v7816, 1.442695
        %v7865 = vpow.pop %v7864
        %v7866 = vmul.f32 %v7817, 1.442695
        %v7867 = vpow.pop %v7866
        %v7868 = vmul.f32 %v7818, 1.442695
        %v7869 = vpow.pop %v7868
        %v7870 = vmul.f32 %v7819, 1.442695
        %v7871 = vpow.pop %v7870
        %v7872 = vmul.f32 %v7820, 1.442695
        %v7873 = vpow.pop %v7872
        %v7874 = vmul.f32 %v7821, 1.442695
        %v7875 = vpow.pop %v7874
        %v7876 = vmul.f32 %v7822, 1.442695
        %v7877 = vpow.pop %v7876
        %v7878 = vmul.f32 %v7823, 1.442695
        %v7879 = vpow.pop %v7878
        %v7880 = vmul.f32 %v7824, 1.442695
        %v7881 = vpow.pop %v7880
        %v7882 = vmul.f32 %v7825, 1.442695
        %v7883 = vpow.pop %v7882
        %v7884 = vmul.f32 %v7826, 1.442695
        %v7885 = vpow.pop %v7884
        %v7886 = vmul.f32 %v7827, 1.442695
        %v7887 = vpow.pop %v7886
        %v7888 = vmul.f32 %v7828, 1.442695
        %v7889 = vpow.pop %v7888
        %v7890 = vmul.f32 %v7829, 1.442695
        %v7891 = vpow.pop %v7890
        %v7892 = vmul.f32 %v7830, 1.442695
        %v7893 = vpow.pop %v7892
        %v7894 = vmul.f32 %v7831, 1.442695
        %v7895 = vpow.pop %v7894
        %v7896 = vadd.f32 %v7833, 1.0
        %v7897 = vadd.f32 %v7835, 1.0
        %v7898 = vadd.f32 %v7837, 1.0
        %v7899 = vadd.f32 %v7839, 1.0
        %v7900 = vadd.f32 %v7841, 1.0
        %v7901 = vadd.f32 %v7843, 1.0
        %v7902 = vadd.f32 %v7845, 1.0
        %v7903 = vadd.f32 %v7847, 1.0
        %v7904 = vadd.f32 %v7849, 1.0
        %v7905 = vadd.f32 %v7851, 1.0
        %v7906 = vadd.f32 %v7853, 1.0
        %v7907 = vadd.f32 %v7855, 1.0
        %v7908 = vadd.f32 %v7857, 1.0
        %v7909 = vadd.f32 %v7859, 1.0
        %v7910 = vadd.f32 %v7861, 1.0
        %v7911 = vadd.f32 %v7863, 1.0
        %v7912 = vadd.f32 %v7865, 1.0
        %v7913 = vadd.f32 %v7867, 1.0
        %v7914 = vadd.f32 %v7869, 1.0
        %v7915 = vadd.f32 %v7871, 1.0
        %v7916 = vadd.f32 %v7873, 1.0
        %v7917 = vadd.f32 %v7875, 1.0
        %v7918 = vadd.f32 %v7877, 1.0
        %v7919 = vadd.f32 %v7879, 1.0
        %v7920 = vadd.f32 %v7881, 1.0
        %v7921 = vadd.f32 %v7883, 1.0
        %v7922 = vadd.f32 %v7885, 1.0
        %v7923 = vadd.f32 %v7887, 1.0
        %v7924 = vadd.f32 %v7889, 1.0
        %v7925 = vadd.f32 %v7891, 1.0
        %v7926 = vadd.f32 %v7893, 1.0
        %v7927 = vadd.f32 %v7895, 1.0
        %v7928 = vrcp.pop %v7896
        %v7929 = vrcp.pop %v7897
        %v7930 = vrcp.pop %v7898
        %v7931 = vrcp.pop %v7899
        %v7932 = vrcp.pop %v7900
        %v7933 = vrcp.pop %v7901
        %v7934 = vrcp.pop %v7902
        %v7935 = vrcp.pop %v7903
        %v7936 = vrcp.pop %v7904
        %v7937 = vrcp.pop %v7905
        %v7938 = vrcp.pop %v7906
        %v7939 = vrcp.pop %v7907
        %v7940 = vrcp.pop %v7908
        %v7941 = vrcp.pop %v7909
        %v7942 = vrcp.pop %v7910
        %v7943 = vrcp.pop %v7911
        %v7944 = vrcp.pop %v7912
        %v7945 = vrcp.pop %v7913
        %v7946 = vrcp.pop %v7914
        %v7947 = vrcp.pop %v7915
        %v7948 = vrcp.pop %v7916
        %v7949 = vrcp.pop %v7917
        %v7950 = vrcp.pop %v7918
        %v7951 = vrcp.pop %v7919
        %v7952 = vrcp.pop %v7920
        %v7953 = vrcp.pop %v7921
        %v7954 = vrcp.pop %v7922
        %v7955 = vrcp.pop %v7923
        %v7956 = vrcp.pop %v7924
        %v7957 = vrcp.pop %v7925
        %v7958 = vrcp.pop %v7926
        %v7959 = vrcp.pop %v7927
        %v7960 = vmul.f32 %v7768, %v7928
        %v7961 = vmul.f32 %v7769, %v7929
        %v7962 = vmul.f32 %v7770, %v7930
        %v7963 = vmul.f32 %v7771, %v7931
        %v7964 = vmul.f32 %v7772, %v7932
        %v7965 = vmul.f32 %v7773, %v7933
        %v7966 = vmul.f32 %v7774, %v7934
        %v7967 = vmul.f32 %v7775, %v7935
        %v7968 = vmul.f32 %v7776, %v7936
        %v7969 = vmul.f32 %v7777, %v7937
        %v7970 = vmul.f32 %v7778, %v7938
        %v7971 = vmul.f32 %v7779, %v7939
        %v7972 = vmul.f32 %v7780, %v7940
        %v7973 = vmul.f32 %v7781, %v7941
        %v7974 = vmul.f32 %v7782, %v7942
        %v7975 = vmul.f32 %v7783, %v7943
        %v7976 = vmul.f32 %v7784, %v7944
        %v7977 = vmul.f32 %v7785, %v7945
        %v7978 = vmul.f32 %v7786, %v7946
        %v7979 = vmul.f32 %v7787, %v7947
        %v7980 = vmul.f32 %v7788, %v7948
        %v7981 = vmul.f32 %v7789, %v7949
        %v7982 = vmul.f32 %v7790, %v7950
        %v7983 = vmul.f32 %v7791, %v7951
        %v7984 = vmul.f32 %v7792, %v7952
        %v7985 = vmul.f32 %v7793, %v7953
        %v7986 = vmul.f32 %v7794, %v7954
        %v7987 = vmul.f32 %v7795, %v7955
        %v7988 = vmul.f32 %v7796, %v7956
        %v7989 = vmul.f32 %v7797, %v7957
        %v7990 = vmul.f32 %v7798, %v7958
        %v7991 = vmul.f32 %v7799, %v7959
        %v7992 = vpack.c.bf16 %v7961, %v7960
        %v7993 = vpack.c.bf16 %v7963, %v7962
        %v7994 = vpack.c.bf16 %v7965, %v7964
        %v7995 = vpack.c.bf16 %v7967, %v7966
        %v7996 = vpack.c.bf16 %v7969, %v7968
        %v7997 = vpack.c.bf16 %v7971, %v7970
        %v7998 = vpack.c.bf16 %v7973, %v7972
        %v7999 = vpack.c.bf16 %v7975, %v7974
        %v8000 = vpack.c.bf16 %v7977, %v7976
        %v8001 = vpack.c.bf16 %v7979, %v7978
        %v8002 = vpack.c.bf16 %v7981, %v7980
        %v8003 = vpack.c.bf16 %v7983, %v7982
        %v8004 = vpack.c.bf16 %v7985, %v7984
        %v8005 = vpack.c.bf16 %v7987, %v7986
        %v8006 = vpack.c.bf16 %v7989, %v7988
        %v8007 = vpack.c.bf16 %v7991, %v7990
        %v8024 = vunpack.c.l.b16 %v7992
        %v8025 = vunpack.c.h.b16 %v7992
        %v8026 = vunpack.c.l.b16 %v7993
        %v8027 = vunpack.c.h.b16 %v7993
        %v8028 = vunpack.c.l.b16 %v7994
        %v8029 = vunpack.c.h.b16 %v7994
        %v8030 = vunpack.c.l.b16 %v7995
        %v8031 = vunpack.c.h.b16 %v7995
        %v8032 = vunpack.c.l.b16 %v7996
        %v8033 = vunpack.c.h.b16 %v7996
        %v8034 = vunpack.c.l.b16 %v7997
        %v8035 = vunpack.c.h.b16 %v7997
        %v8036 = vunpack.c.l.b16 %v7998
        %v8037 = vunpack.c.h.b16 %v7998
        %v8038 = vunpack.c.l.b16 %v7999
        %v8039 = vunpack.c.h.b16 %v7999
        %v8040 = vunpack.c.l.b16 %v8000
        %v8041 = vunpack.c.h.b16 %v8000
        %v8042 = vunpack.c.l.b16 %v8001
        %v8043 = vunpack.c.h.b16 %v8001
        %v8044 = vunpack.c.l.b16 %v8002
        %v8045 = vunpack.c.h.b16 %v8002
        %v8046 = vunpack.c.l.b16 %v8003
        %v8047 = vunpack.c.h.b16 %v8003
        %v8048 = vunpack.c.l.b16 %v8004
        %v8049 = vunpack.c.h.b16 %v8004
        %v8050 = vunpack.c.l.b16 %v8005
        %v8051 = vunpack.c.h.b16 %v8005
        %v8052 = vunpack.c.l.b16 %v8006
        %v8053 = vunpack.c.h.b16 %v8006
        %v8054 = vunpack.c.l.b16 %v8007
        %v8055 = vunpack.c.h.b16 %v8007
        %v8056 = vpack.c.b16 %v8024, %v8024
        %v8057 = vpack.c.b16 %v8025, %v8025
        %v8058 = vpack.c.b16 %v8026, %v8026
        %v8059 = vpack.c.b16 %v8027, %v8027
        %v8060 = vpack.c.b16 %v8028, %v8028
        %v8061 = vpack.c.b16 %v8029, %v8029
        %v8062 = vpack.c.b16 %v8030, %v8030
        %v8063 = vpack.c.b16 %v8031, %v8031
        %v8064 = vpack.c.b16 %v8032, %v8032
        %v8065 = vpack.c.b16 %v8033, %v8033
        %v8066 = vpack.c.b16 %v8034, %v8034
        %v8067 = vpack.c.b16 %v8035, %v8035
        %v8068 = vpack.c.b16 %v8036, %v8036
        %v8069 = vpack.c.b16 %v8037, %v8037
        %v8070 = vpack.c.b16 %v8038, %v8038
        %v8071 = vpack.c.b16 %v8039, %v8039
        %v8072 = vpack.c.b16 %v8040, %v8040
        %v8073 = vpack.c.b16 %v8041, %v8041
        %v8074 = vpack.c.b16 %v8042, %v8042
        %v8075 = vpack.c.b16 %v8043, %v8043
        %v8076 = vpack.c.b16 %v8044, %v8044
        %v8077 = vpack.c.b16 %v8045, %v8045
        %v8078 = vpack.c.b16 %v8046, %v8046
        %v8079 = vpack.c.b16 %v8047, %v8047
        %v8080 = vpack.c.b16 %v8048, %v8048
        %v8081 = vpack.c.b16 %v8049, %v8049
        %v8082 = vpack.c.b16 %v8050, %v8050
        %v8083 = vpack.c.b16 %v8051, %v8051
        %v8084 = vpack.c.b16 %v8052, %v8052
        %v8085 = vpack.c.b16 %v8053, %v8053
        %v8086 = vpack.c.b16 %v8054, %v8054
        %v8087 = vpack.c.b16 %v8055, %v8055
        %8120 = vst [vmem:[%s373] sm:$0xf] %v8056
        %8121 = vst [vmem:[%s373 + $0x4] sm:$0xf] %v8057
        %8122 = vst [vmem:[%s373 + $0x8] sm:$0xf] %v8058
        %8123 = vst [vmem:[%s373 + $0xc] sm:$0xf] %v8059
        %8124 = vst [vmem:[%s373 + $0x10] sm:$0xf] %v8060
        %8125 = vst [vmem:[%s373 + $0x14] sm:$0xf] %v8061
        %8126 = vst [vmem:[%s373 + $0x18] sm:$0xf] %v8062
        %8127 = vst [vmem:[%s373 + $0x1c] sm:$0xf] %v8063
        %8128 = vst [vmem:[%s373 + $0x20] sm:$0xf] %v8064
        %8129 = vst [vmem:[%s373 + $0x24] sm:$0xf] %v8065
        %8130 = vst [vmem:[%s373 + $0x28] sm:$0xf] %v8066
        %8131 = vst [vmem:[%s373 + $0x2c] sm:$0xf] %v8067
        %8132 = vst [vmem:[%s373 + $0x30] sm:$0xf] %v8068
        %8133 = vst [vmem:[%s373 + $0x34] sm:$0xf] %v8069
        %8134 = vst [vmem:[%s373 + $0x38] sm:$0xf] %v8070
        %8135 = vst [vmem:[%s373 + $0x3c] sm:$0xf] %v8071
        %8136 = vst [vmem:[%s373 + $0x40] sm:$0xf] %v8072
        %8137 = vst [vmem:[%s373 + $0x44] sm:$0xf] %v8073
        %8138 = vst [vmem:[%s373 + $0x48] sm:$0xf] %v8074
        %8139 = vst [vmem:[%s373 + $0x4c] sm:$0xf] %v8075
        %8140 = vst [vmem:[%s373 + $0x50] sm:$0xf] %v8076
        %8141 = vst [vmem:[%s373 + $0x54] sm:$0xf] %v8077
        %8142 = vst [vmem:[%s373 + $0x58] sm:$0xf] %v8078
        %8143 = vst [vmem:[%s373 + $0x5c] sm:$0xf] %v8079
        %8144 = vst [vmem:[%s373 + $0x60] sm:$0xf] %v8080
        %8145 = vst [vmem:[%s373 + $0x64] sm:$0xf] %v8081
        %8146 = vst [vmem:[%s373 + $0x68] sm:$0xf] %v8082
        %8147 = vst [vmem:[%s373 + $0x6c] sm:$0xf] %v8083
        %8148 = vst [vmem:[%s373 + $0x70] sm:$0xf] %v8084
        %8149 = vst [vmem:[%s373 + $0x74] sm:$0xf] %v8085
        %8150 = vst [vmem:[%s373 + $0x78] sm:$0xf] %v8086
        %8151 = vst [vmem:[%s373 + $0x7c] sm:$0xf] %v8087
        %s8152 = sand.u32 %s187, 1
        %s8153 = scalar_lea.sflag [#allocation5], %s8152
        %s8154 = sand.u32 %s187, 1
        %s8155 = smul.addr %s8154, 128
        %s8156 = scalar_lea.vmem [#allocation15], %s8155
        // Predicated region
        $region77: #{tpu_custom_call.1} parent=47 // pred_check
          %p8157 = pneg %p197
        $region78: #{tpu_custom_call.1} parent=47 // pred_check_branch
          %8159 = sbr.rel (%p8157) target = $region80
        $region79: #{tpu_custom_call.1} parent=47 // pred_region
          %s8161 = ssub.s32 2048, 2048
          %8162 = vsyncadd %s8153, %s8161
          %s8163 = smul.addr %s27, 32
          %s8164 = smul.addr %s8163, 64
          %s8165 = scalar_lea.hbm %s7, %s8164
          %s8166 = sshll.u32 %s8156, 4
          %s8167 = int_to_ptr.vmem [resolvable:$true] %s8166
          %8172 = dma.vmem_to_hbm [thread:$0]  %s8167, 2048, %s8165, %s8153, 64, 64, 4
        $region80: #{tpu_custom_call.1} parent=47 // pred_fallthru
          _
      $region48: #{tpu_custom_call.1} parent=5 // pred_fallthru
        _
      %p8173 = scmp.le.s32.totalorder 2, %s22
      // Predicated region
      $region81: #{tpu_custom_call.1} parent=5 // pred_check
        %p8174 = pneg %p8173
      $region82: #{tpu_custom_call.1} parent=5 // pred_check_branch
        %8176 = sbr.rel (%p8174) target = $region84
      $region83: #{tpu_custom_call.1} parent=5 // pred_region
        %s8177 = ssub.s32 %s22, 2
        // Predicated region
        $region85: #{tpu_custom_call.1} parent=83 // pred_check
          %p8178 = pneg %p203
        $region86: #{tpu_custom_call.1} parent=83 // pred_check_branch
          %8180 = sbr.rel (%p8178) target = $region88
        $region87: #{tpu_custom_call.1} parent=83 // pred_region
          %s8181 = sand.u32 %s188, 1
          %s8182 = scalar_lea.sflag [#allocation5], %s8181
          %s8183 = sand.u32 %s188, 1
          %s8184 = smul.addr %s8183, 128
          %s8185 = scalar_lea.vmem [#allocation15], %s8184
          %8186 = dma.done %s8182, 2048
        $region88: #{tpu_custom_call.1} parent=83 // pred_fallthru
          _
      $region84: #{tpu_custom_call.1} parent=5 // pred_fallthru
        _
    $region6: #{tpu_custom_call.1} parent=1 // loop_footer
      %s26 = sadd.s32 1, %s22
    $region7: #{tpu_custom_call.1} parent=1 // loop_footer_branch
      %21 = sbr.rel target = $region3
    $region8: #{tpu_custom_call.1} parent=1 // loop_exit
      _
    %8187 = vsyncpa [#allocation4], 1
    %s8188 = scalar_lea.sflag [#allocation4], 1
    %8189 = vsyncpa %s8188, 1
    %8190 = vsyncpa [#allocation7], 1
    %8191 = vsyncpa [#allocation10], 1
    %8192 = vsyncpa [#allocation13], 1
    %8193 = vsyncpa [#allocation5], 1
    %s8194 = scalar_lea.sflag [#allocation5], 1
    %8195 = vsyncpa %s8194, 1

</llo_original>
